<compile_context>
chip_gen: v7x
topology: tpu7x:2x2x1
jax: 0.10.0
libtpu: 0.0.40
codegen_flags: <defaults>
</compile_context>

<pallas_src>
import functools

import jax
import jax.numpy as jnp
from jax.experimental import pallas as pl
from jax.experimental.pallas import tpu as pltpu

IN_FEATURES = 64 * 795          # 50880, fixed by the module definition
H1, H2, H3 = 256, 128, 64
NUM_CLASSES = 4                  # small, configurable

C_PAD = 128                      # pad class dim to a full lane group
TK = 12800                       # K-tile (multiple of 128); 4 K-steps
K_PAD = ((IN_FEATURES + TK - 1) // TK) * TK   # 51200


def _eeg_kernel(num_classes,
                x_ref, w1_ref, b1_ref, w2_ref, b2_ref,
                w3_ref, b3_ref, w4_ref, b4_ref,
                o_ref, acc_ref):
    """Grid axis 0 walks the (huge) first-layer K dimension; the small
    layers + log-softmax run once at the final K step."""
    k = pl.program_id(0)

    @pl.when(k == 0)
    def _():
        acc_ref[...] = jnp.zeros_like(acc_ref)

    # First Linear: bf16 x bf16 -> f32 accumulate of partial (B_pad, 256).
    acc_ref[...] += jnp.dot(x_ref[...], w1_ref[...],
                            preferred_element_type=jnp.float32)

    @pl.when(k == pl.num_programs(0) - 1)
    def _():
        h1 = jnp.maximum(acc_ref[...] + b1_ref[...], 0.0)                      # (B,256)
        h2 = jnp.maximum(
            jnp.dot(h1, w2_ref[...], preferred_element_type=jnp.float32)
            + b2_ref[...], 0.0)                                                # (B,128)
        h3 = jnp.maximum(
            jnp.dot(h2, w3_ref[...], preferred_element_type=jnp.float32)
            + b3_ref[...], 0.0)                                                # (B,64)
        logits = jnp.dot(h3, w4_ref[...],
                         preferred_element_type=jnp.float32) + b4_ref[...]     # (B,C_PAD)

        # Mask padded class columns so they don't affect the log-softmax.
        col = jax.lax.broadcasted_iota(jnp.int32, logits.shape, 1)
        logits = jnp.where(col < num_classes, logits, jnp.float32(-1e30))

        m = jnp.max(logits, axis=-1, keepdims=True)
        lse = m + jnp.log(jnp.sum(jnp.exp(logits - m), axis=-1, keepdims=True))
        o_ref[...] = logits - lse


def prepare_params(params, num_classes=NUM_CLASSES):
    """One-time (hoisted) padding / transposition / casting of the weights.

    Call this ONCE at model-load time; the returned tuple is what
    eeg_classifier_forward consumes on every call.
    """
    assert num_classes <= C_PAD, f"num_classes must be <= {C_PAD}"
    w1, b1, w2, b2, w3, b3, w4, b4 = params
    assert w1.shape == (IN_FEATURES, H1)

    # Streamed layer: pad K and cast to bf16 (f32 accumulation in-kernel).
    w1_pad = jnp.zeros((K_PAD, H1), jnp.bfloat16).at[:IN_FEATURES, :].set(
        w1.astype(jnp.bfloat16))
    # Tiny resident layers stay f32.
    w4_pad = jnp.zeros((H3, C_PAD), jnp.float32).at[:, :num_classes].set(
        w4.astype(jnp.float32))
    b4_pad = jnp.zeros((1, C_PAD), jnp.float32).at[0, :num_classes].set(
        b4.astype(jnp.float32))

    return (w1_pad,
            b1.astype(jnp.float32).reshape(1, H1),
            w2.astype(jnp.float32), b2.astype(jnp.float32).reshape(1, H2),
            w3.astype(jnp.float32), b3.astype(jnp.float32).reshape(1, H3),
            w4_pad, b4_pad)


def eeg_classifier_forward(x, prepared_params, num_classes=NUM_CLASSES):
    """x: (B, 64, 795) (or any shape flattening to 64*795 per row).

    prepared_params: output of prepare_params() (padded / bf16 W1 etc.).
    """
    (w1_pad, b1, w2, b2, w3, b3, w4_pad, b4_pad) = prepared_params
    B = x.shape[0]
    xf = x.reshape(B, -1)
    assert xf.shape[1] == IN_FEATURES
    assert num_classes <= C_PAD

    # Pad batch to a multiple of 8 sublanes (no silent clipping for B > 8)
    # and pad K; zero padding contributes nothing to the matmul.
    b_pad = max(8, ((B + 7) // 8) * 8)
    x_pad = jnp.pad(xf.astype(jnp.bfloat16),
                    ((0, b_pad - B), (0, K_PAD - IN_FEATURES)))

    grid = (K_PAD // TK,)
    kernel = functools.partial(_eeg_kernel, num_classes)

    out = pl.pallas_call(
        kernel,
        out_shape=jax.ShapeDtypeStruct((b_pad, C_PAD), jnp.float32),
        grid_spec=pltpu.PrefetchScalarGridSpec(
            num_scalar_prefetch=0,
            grid=grid,
            in_specs=[
                pl.BlockSpec((b_pad, TK), lambda k: (0, k)),      # x tile (bf16)
                pl.BlockSpec((TK, H1),    lambda k: (k, 0)),      # w1 tile (bf16)
                pl.BlockSpec((1, H1),     lambda k: (0, 0)),      # b1
                pl.BlockSpec((H1, H2),    lambda k: (0, 0)),      # w2
                pl.BlockSpec((1, H2),     lambda k: (0, 0)),      # b2
                pl.BlockSpec((H2, H3),    lambda k: (0, 0)),      # w3
                pl.BlockSpec((1, H3),     lambda k: (0, 0)),      # b3
                pl.BlockSpec((H3, C_PAD), lambda k: (0, 0)),      # w4 (padded cols)
                pl.BlockSpec((1, C_PAD),  lambda k: (0, 0)),      # b4 (padded cols)
            ],
            out_specs=pl.BlockSpec((b_pad, C_PAD), lambda k: (0, 0)),
            scratch_shapes=[pltpu.VMEM((b_pad, H1), jnp.float32)],
        ),
        compiler_params=pltpu.CompilerParams(
            dimension_semantics=("arbitrary",),
            vmem_limit_bytes=48 * 1024 * 1024),
    )(x_pad, w1_pad, b1, w2, b2, w3, b3, w4_pad, b4_pad)

    return out[:B, :num_classes]


def init_params(key, num_classes=NUM_CLASSES):
    """Deterministic small-scale init; weights stored as (in, out)."""
    ks = jax.random.split(key, 8)
    scale = 0.02
    w1 = scale * jax.random.normal(ks[0], (IN_FEATURES, H1), jnp.float32)
    b1 = scale * jax.random.normal(ks[1], (H1,), jnp.float32)
    w2 = scale * jax.random.normal(ks[2], (H1, H2), jnp.float32)
    b2 = scale * jax.random.normal(ks[3], (H2,), jnp.float32)
    w3 = scale * jax.random.normal(ks[4], (H2, H3), jnp.float32)
    b3 = scale * jax.random.normal(ks[5], (H3,), jnp.float32)
    w4 = scale * jax.random.normal(ks[6], (H3, num_classes), jnp.float32)
    b4 = scale * jax.random.normal(ks[7], (num_classes,), jnp.float32)
    return (w1, b1, w2, b2, w3, b3, w4, b4)


def reference_forward(x, params, num_classes=NUM_CLASSES):
    w1, b1, w2, b2, w3, b3, w4, b4 = params
    h = x.reshape(x.shape[0], -1).astype(jnp.float32)
    h = jnp.maximum(h @ w1 + b1, 0.0)
    h = jnp.maximum(h @ w2 + b2, 0.0)
    h = jnp.maximum(h @ w3 + b3, 0.0)
    logits = h @ w4 + b4
    return jax.nn.log_softmax(logits, axis=1)


if __name__ == "__main__":
    key = jax.random.PRNGKey(0)
    x_key, _ = jax.random.split(key)

    B = 2
    x = jax.random.normal(x_key, (B, 64, 795), jnp.float32)   # EEG: 64 ch x 795 samples
    params = init_params(jax.random.PRNGKey(42))

    # Hoisted, one-time padding + bf16 cast of the streamed weights.
    prepared = prepare_params(params)
    prepared = jax.block_until_ready(prepared)

    out = eeg_classifier_forward(x, prepared)
    out = jax.block_until_ready(out)

    ref = reference_forward(x, params)
    assert out.shape == (B, NUM_CLASSES)
    # bf16-streamed W1/x vs f32 reference -> slightly looser tolerance.
    assert jnp.allclose(out, ref, atol=1e-2, rtol=1e-2), (out, ref)

    print("KERNEL_OK")
</pallas_src>

<mosaic_0001>
module attributes {stable_mosaic.version = 11 : i64} {
  func.func @_eeg_kernel(%arg0: i32, %arg1: memref<8x12800xbf16, #tpu.memory_space<vmem>>, %arg2: memref<12800x256xbf16, #tpu.memory_space<vmem>>, %arg3: memref<1x256xf32, #tpu.memory_space<vmem>>, %arg4: memref<256x128xf32, #tpu.memory_space<vmem>>, %arg5: memref<1x128xf32, #tpu.memory_space<vmem>>, %arg6: memref<128x64xf32, #tpu.memory_space<vmem>>, %arg7: memref<1x64xf32, #tpu.memory_space<vmem>>, %arg8: memref<64x128xf32, #tpu.memory_space<vmem>>, %arg9: memref<1x128xf32, #tpu.memory_space<vmem>>, %arg10: memref<8x128xf32, #tpu.memory_space<vmem>>, %arg11: memref<8x256xf32, #tpu.memory_space<vmem>>) attributes {dimension_semantics = [#tpu.dimension_semantics<arbitrary>], iteration_bounds = array<i64: 4>, scalar_prefetch = 0 : i64, scratch_operands = 1 : i64, tpu.core_type = #tpu.core_type<tc>, window_params = [{transform_indices = @transform_0, window_bounds = array<i64: 8, 12800>}, {transform_indices = @transform_1, window_bounds = array<i64: 12800, 256>}, {pipeline_mode = #tpu.pipeline_mode<synchronous>, transform_indices = @transform_2, window_bounds = array<i64: 1, 256>}, {pipeline_mode = #tpu.pipeline_mode<synchronous>, transform_indices = @transform_3, window_bounds = array<i64: 256, 128>}, {pipeline_mode = #tpu.pipeline_mode<synchronous>, transform_indices = @transform_4, window_bounds = array<i64: 1, 128>}, {pipeline_mode = #tpu.pipeline_mode<synchronous>, transform_indices = @transform_5, window_bounds = array<i64: 128, 64>}, {pipeline_mode = #tpu.pipeline_mode<synchronous>, transform_indices = @transform_6, window_bounds = array<i64: 1, 64>}, {pipeline_mode = #tpu.pipeline_mode<synchronous>, transform_indices = @transform_7, window_bounds = array<i64: 64, 128>}, {pipeline_mode = #tpu.pipeline_mode<synchronous>, transform_indices = @transform_8, window_bounds = array<i64: 1, 128>}, {pipeline_mode = #tpu.pipeline_mode<synchronous>, transform_indices = @transform_9, window_bounds = array<i64: 8, 128>}]} {
    %c0_i32 = arith.constant 0 : i32
    %0 = arith.cmpi eq, %arg0, %c0_i32 : i32
    %1 = arith.extui %0 : i1 to i32
    %c0_i32_0 = arith.constant 0 : i32
    %2 = arith.cmpi ne, %1, %c0_i32_0 : i32
    scf.if %2 {
      %cst_9 = arith.constant 0.000000e+00 : f32
      %12 = vector.broadcast %cst_9 : f32 to vector<8x256xf32>
      %c0_10 = arith.constant 0 : index
      %c0_11 = arith.constant 0 : index
      %13 = vector.load %arg11[%c0_10, %c0_11] : memref<8x256xf32, #tpu.memory_space<vmem>>, vector<8x256xf32>
      tpu.vector_store %arg11[%c0_10, %c0_11], %12 {strides = array<i32>} : memref<8x256xf32, #tpu.memory_space<vmem>>, vector<8x256xf32>,
    } else {
    }
    %c0 = arith.constant 0 : index
    %c0_1 = arith.constant 0 : index
    %3 = vector.load %arg11[%c0, %c0_1] : memref<8x256xf32, #tpu.memory_space<vmem>>, vector<8x256xf32>
    %c0_2 = arith.constant 0 : index
    %c0_3 = arith.constant 0 : index
    %4 = vector.load %arg1[%c0_2, %c0_3] : memref<8x12800xbf16, #tpu.memory_space<vmem>>, vector<8x12800xbf16>
    %c0_4 = arith.constant 0 : index
    %c0_5 = arith.constant 0 : index
    %5 = vector.load %arg2[%c0_4, %c0_5] : memref<12800x256xbf16, #tpu.memory_space<vmem>>, vector<12800x256xbf16>
    %cst = arith.constant dense<0.000000e+00> : vector<8x256xf32>
    %6 = tpu.matmul %4, %5, %cst {dimension_numbers = #tpu.dot_dimension_numbers<[1], [0], [0], [1], [0, 0, 1, 1], [], []>} : vector<8x12800xbf16>, vector<12800x256xbf16>, vector<8x256xf32> -> vector<8x256xf32>
    %7 = arith.addf %3, %6 : vector<8x256xf32>
    %c0_6 = arith.constant 0 : index
    %c0_7 = arith.constant 0 : index
    %8 = vector.load %arg11[%c0_6, %c0_7] : memref<8x256xf32, #tpu.memory_space<vmem>>, vector<8x256xf32>
    tpu.vector_store %arg11[%c0_6, %c0_7], %7 {strides = array<i32>} : memref<8x256xf32, #tpu.memory_space<vmem>>, vector<8x256xf32>,
    %c3_i32 = arith.constant 3 : i32
    %9 = arith.cmpi eq, %arg0, %c3_i32 : i32
    %10 = arith.extui %9 : i1 to i32
    %c0_i32_8 = arith.constant 0 : i32
    %11 = arith.cmpi ne, %10, %c0_i32_8 : i32
    scf.if %11 {
      %c0_9 = arith.constant 0 : index
      %c0_10 = arith.constant 0 : index
      %12 = vector.load %arg11[%c0_9, %c0_10] : memref<8x256xf32, #tpu.memory_space<vmem>>, vector<8x256xf32>
      %c0_11 = arith.constant 0 : index
      %c0_12 = arith.constant 0 : index
      %13 = vector.load %arg3[%c0_11, %c0_12] : memref<1x256xf32, #tpu.memory_space<vmem>>, vector<1x256xf32>
      %14 = vector.broadcast %13 : vector<1x256xf32> to vector<8x256xf32>
      %15 = arith.addf %12, %14 : vector<8x256xf32>
      %cst_13 = arith.constant 0.000000e+00 : f32
      %16 = vector.broadcast %cst_13 : f32 to vector<8x256xf32>
      %17 = arith.maximumf %15, %16 : vector<8x256xf32>
      %c0_14 = arith.constant 0 : index
      %c0_15 = arith.constant 0 : index
      %18 = vector.load %arg4[%c0_14, %c0_15] : memref<256x128xf32, #tpu.memory_space<vmem>>, vector<256x128xf32>
      %cst_16 = arith.constant dense<0.000000e+00> : vector<8x128xf32>
      %19 = tpu.matmul %17, %18, %cst_16 {dimension_numbers = #tpu.dot_dimension_numbers<[1], [0], [0], [1], [0, 0, 1, 1], [], []>} : vector<8x256xf32>, vector<256x128xf32>, vector<8x128xf32> -> vector<8x128xf32>
      %c0_17 = arith.constant 0 : index
      %c0_18 = arith.constant 0 : index
      %20 = vector.load %arg5[%c0_17, %c0_18] : memref<1x128xf32, #tpu.memory_space<vmem>>, vector<1x128xf32>
      %21 = vector.broadcast %20 : vector<1x128xf32> to vector<8x128xf32>
      %22 = arith.addf %19, %21 : vector<8x128xf32>
      %cst_19 = arith.constant 0.000000e+00 : f32
      %23 = vector.broadcast %cst_19 : f32 to vector<8x128xf32>
      %24 = arith.maximumf %22, %23 : vector<8x128xf32>
      %c0_20 = arith.constant 0 : index
      %c0_21 = arith.constant 0 : index
      %25 = vector.load %arg6[%c0_20, %c0_21] : memref<128x64xf32, #tpu.memory_space<vmem>>, vector<128x64xf32>
      %cst_22 = arith.constant dense<0.000000e+00> : vector<8x64xf32>
      %26 = tpu.matmul %24, %25, %cst_22 {dimension_numbers = #tpu.dot_dimension_numbers<[1], [0], [0], [1], [0, 0, 1, 1], [], []>} : vector<8x128xf32>, vector<128x64xf32>, vector<8x64xf32> -> vector<8x64xf32>
      %c0_23 = arith.constant 0 : index
      %c0_24 = arith.constant 0 : index
      %27 = vector.load %arg7[%c0_23, %c0_24] : memref<1x64xf32, #tpu.memory_space<vmem>>, vector<1x64xf32>
      %28 = vector.broadcast %27 : vector<1x64xf32> to vector<8x64xf32>
      %29 = arith.addf %26, %28 : vector<8x64xf32>
      %cst_25 = arith.constant 0.000000e+00 : f32
      %30 = vector.broadcast %cst_25 : f32 to vector<8x64xf32>
      %31 = arith.maximumf %29, %30 : vector<8x64xf32>
      %c0_26 = arith.constant 0 : index
      %c0_27 = arith.constant 0 : index
      %32 = vector.load %arg8[%c0_26, %c0_27] : memref<64x128xf32, #tpu.memory_space<vmem>>, vector<64x128xf32>
      %cst_28 = arith.constant dense<0.000000e+00> : vector<8x128xf32>
      %33 = tpu.matmul %31, %32, %cst_28 {dimension_numbers = #tpu.dot_dimension_numbers<[1], [0], [0], [1], [0, 0, 1, 1], [], []>} : vector<8x64xf32>, vector<64x128xf32>, vector<8x128xf32> -> vector<8x128xf32>
      %c0_29 = arith.constant 0 : index
      %c0_30 = arith.constant 0 : index
      %34 = vector.load %arg9[%c0_29, %c0_30] : memref<1x128xf32, #tpu.memory_space<vmem>>, vector<1x128xf32>
      %35 = vector.broadcast %34 : vector<1x128xf32> to vector<8x128xf32>
      %36 = arith.addf %33, %35 : vector<8x128xf32>
      %37 = tpu.iota {dimensions = array<i32: 1>} : vector<8x128xi32>
      %c4_i32 = arith.constant 4 : i32
      %38 = vector.broadcast %c4_i32 : i32 to vector<8x128xi32>
      %39 = arith.cmpi slt, %37, %38 : vector<8x128xi32>
      %cst_31 = arith.constant -1.000000e+30 : f32
      %40 = vector.broadcast %cst_31 : f32 to vector<8x128xf32>
      %41 = arith.select %39, %36, %40 : vector<8x128xi1>, vector<8x128xf32>
      %cst_32 = arith.constant dense<0xFF800000> : vector<8xf32>
      %42 = vector.multi_reduction <maximumf>, %41, %cst_32 [1] : vector<8x128xf32> to vector<8xf32>
      %43 = vector.shape_cast %42 : vector<8xf32> to vector<8x1xf32>
      %44 = vector.broadcast %43 : vector<8x1xf32> to vector<8x128xf32>
      %45 = arith.subf %41, %44 : vector<8x128xf32>
      %46 = math.exp %45 : vector<8x128xf32>
      %cst_33 = arith.constant dense<0.000000e+00> : vector<8xf32>
      %47 = vector.multi_reduction <add>, %46, %cst_33 [1] : vector<8x128xf32> to vector<8xf32>
      %48 = vector.shape_cast %47 : vector<8xf32> to vector<8x1xf32>
      %49 = math.log %48 : vector<8x1xf32>
      %50 = arith.addf %43, %49 : vector<8x1xf32>
      %51 = vector.broadcast %50 : vector<8x1xf32> to vector<8x128xf32>
      %52 = arith.subf %41, %51 : vector<8x128xf32>
      %c0_34 = arith.constant 0 : index
      %c0_35 = arith.constant 0 : index
      %53 = vector.load %arg10[%c0_34, %c0_35] : memref<8x128xf32, #tpu.memory_space<vmem>>, vector<8x128xf32>
      tpu.vector_store %arg10[%c0_34, %c0_35], %52 {strides = array<i32>} : memref<8x128xf32, #tpu.memory_space<vmem>>, vector<8x128xf32>,
    } else {
    }
    return
  }
  func.func @transform_0(%arg0: i32) -> (i32, i32) {
    %c0_i32 = arith.constant 0 : i32
    %c0_i32_0 = arith.constant 0 : i32
    return %c0_i32, %arg0 : i32, i32
  }
  func.func @transform_1(%arg0: i32) -> (i32, i32) {
    %c0_i32 = arith.constant 0 : i32
    %c0_i32_0 = arith.constant 0 : i32
    return %arg0, %c0_i32 : i32, i32
  }
  func.func @transform_2(%arg0: i32) -> (i32, i32) {
    %c0_i32 = arith.constant 0 : i32
    %c0_i32_0 = arith.constant 0 : i32
    %c0_i32_1 = arith.constant 0 : i32
    return %c0_i32, %c0_i32_0 : i32, i32
  }
  func.func @transform_3(%arg0: i32) -> (i32, i32) {
    %c0_i32 = arith.constant 0 : i32
    %c0_i32_0 = arith.constant 0 : i32
    %c0_i32_1 = arith.constant 0 : i32
    return %c0_i32, %c0_i32_0 : i32, i32
  }
  func.func @transform_4(%arg0: i32) -> (i32, i32) {
    %c0_i32 = arith.constant 0 : i32
    %c0_i32_0 = arith.constant 0 : i32
    %c0_i32_1 = arith.constant 0 : i32
    return %c0_i32, %c0_i32_0 : i32, i32
  }
  func.func @transform_5(%arg0: i32) -> (i32, i32) {
    %c0_i32 = arith.constant 0 : i32
    %c0_i32_0 = arith.constant 0 : i32
    %c0_i32_1 = arith.constant 0 : i32
    return %c0_i32, %c0_i32_0 : i32, i32
  }
  func.func @transform_6(%arg0: i32) -> (i32, i32) {
    %c0_i32 = arith.constant 0 : i32
    %c0_i32_0 = arith.constant 0 : i32
    %c0_i32_1 = arith.constant 0 : i32
    return %c0_i32, %c0_i32_0 : i32, i32
  }
  func.func @transform_7(%arg0: i32) -> (i32, i32) {
    %c0_i32 = arith.constant 0 : i32
    %c0_i32_0 = arith.constant 0 : i32
    %c0_i32_1 = arith.constant 0 : i32
    return %c0_i32, %c0_i32_0 : i32, i32
  }
  func.func @transform_8(%arg0: i32) -> (i32, i32) {
    %c0_i32 = arith.constant 0 : i32
    %c0_i32_0 = arith.constant 0 : i32
    %c0_i32_1 = arith.constant 0 : i32
    return %c0_i32, %c0_i32_0 : i32, i32
  }
  func.func @transform_9(%arg0: i32) -> (i32, i32) {
    %c0_i32 = arith.constant 0 : i32
    %c0_i32_0 = arith.constant 0 : i32
    %c0_i32_1 = arith.constant 0 : i32
    return %c0_i32, %c0_i32_0 : i32, i32
  }
}

</mosaic_0001>

<llo_original>
// kernel: tpu_custom_call.1
$region0: #{tpu_custom_call.1}
  #allocation0 [shape = 'u32[]', space=smem, size = 0x4, offset = 0x4, fixed_abs, tag = 'smem constant byte address 0x4 - core index']
  #allocation1 [shape = 'u32[144,128]{1,0:T(1,128)}', space=vmem, size = 0x12000, scoped, tag = 'internal scratch']
  #allocation2 [shape = 'f32[8,256]{1,0:T(8,128)}', space=vmem, size = 0x2000, scoped, tag = 'scratch operand']
  %s0 = inlined_call_operand.hbm [shape: bf16[8,51200], index: 0, kind: input, shape index: {}]
  %s1 = inlined_call_operand.hbm [shape: bf16[51200,256], index: 1, kind: input, shape index: {}]
  %s2 = inlined_call_operand.hbm [shape: f32[1,256], index: 2, kind: input, shape index: {}]
  %s3 = inlined_call_operand.hbm [shape: f32[256,128], index: 3, kind: input, shape index: {}]
  %s4 = inlined_call_operand.hbm [shape: f32[1,128], index: 4, kind: input, shape index: {}]
  %s5 = inlined_call_operand.vmem [shape: f32[128,64], index: 5, kind: input, shape index: {}]
  %s6 = inlined_call_operand.hbm [shape: f32[1,64], index: 6, kind: input, shape index: {}]
  %s7 = inlined_call_operand.hbm [shape: f32[64,128], index: 7, kind: input, shape index: {}]
  %s8 = inlined_call_operand.hbm [shape: f32[1,128], index: 8, kind: input, shape index: {}]
  %s9 = inlined_call_operand.hbm [shape: f32[8,128], index: 9, kind: output, shape index: {}]
  %s10 = sld [smem:[#allocation0]]
  $region109: #{tpu_custom_call.1} parent=0
    _
  %s12 = ssub.s32 1, %s10
  %s13 = scalar_select 0, %s12, %s10
  $region1: #{tpu_custom_call.1} parent=0
    #allocation3 [shape = 'u8[409600]{0}', space=vmem, size = 0x64000, scoped, tag = 'input window, operand 0']
    #allocation4 [shape = 's32[2]{0}', space=sflag, size = 0x8, scoped, tag = 'scoped memory for tpu_custom_call.1']
    #allocation5 [shape = 's32[2]{0}', space=sflag, size = 0x8, scoped, tag = 'scoped memory for tpu_custom_call.1']
    #allocation6 [shape = 'u8[13107200]{0}', space=vmem, size = 0xc80000, scoped, tag = 'input window, operand 1']
    #allocation7 [shape = 's32[2]{0}', space=sflag, size = 0x8, scoped, tag = 'scoped memory for tpu_custom_call.1']
    #allocation8 [shape = 'u8[1024]{0}', space=vmem, size = 0x400, scoped, tag = 'input window, operand 2, single buffered']
    #allocation9 [shape = 'u8[131072]{0}', space=vmem, size = 0x20000, scoped, tag = 'input window, operand 3, single buffered']
    #allocation10 [shape = 's32[1]{0}', space=sflag, size = 0x4, scoped, tag = 'scoped memory for tpu_custom_call.1']
    #allocation11 [shape = 'u8[512]{0}', space=vmem, size = 0x400, scoped, tag = 'input window, operand 4, single buffered']
    #allocation12 [shape = 'u8[512]{0}', space=vmem, size = 0x400, scoped, tag = 'input window, operand 6, single buffered']
    #allocation13 [shape = 's32[1]{0}', space=sflag, size = 0x4, scoped, tag = 'scoped memory for tpu_custom_call.1']
    #allocation14 [shape = 'u8[32768]{0}', space=vmem, size = 0x8000, scoped, tag = 'input window, operand 7, single buffered']
    #allocation15 [shape = 'u8[512]{0}', space=vmem, size = 0x400, scoped, tag = 'input window, operand 8, single buffered']
    #allocation16 [shape = 's32[1]{0}', space=sflag, size = 0x4, scoped, tag = 'scoped memory for tpu_custom_call.1']
    #allocation17 [shape = 'u8[4096]{0}', space=vmem, size = 0x1000, scoped, tag = 'output window, operand 0, single buffered']
    %14 = vsyncpa [#allocation4], 0
    %s15 = scalar_lea.sflag [#allocation4], 1
    %16 = vsyncpa %s15, 0
    %17 = vsyncpa [#allocation7], 0
    %s18 = scalar_lea.sflag [#allocation7], 1
    %19 = vsyncpa %s18, 0
    %20 = vsyncpa [#allocation10], 0
    %21 = vsyncpa [#allocation13], 0
    %22 = vsyncpa [#allocation16], 0
    %23 = vsyncpa [#allocation5], 0
    loop: start=0, step=1, limit=6
    $region2: #{tpu_custom_call.1} parent=1 // loop_pre_header
      _
    $region3: #{tpu_custom_call.1} parent=1 // loop_header
      %s25 = sphi 0, %s29
      %p26 = scmp.ge.s32.totalorder %s25, 6
      %s35 = sphi 0, %s37
      %s38 = sphi 0, %s35
      %s39 = sphi 0, %s38
      %s55 = sphi 0, %s39
      %s61 = sphi 0, %s63
      %s64 = sphi 0, %s61
      %s65 = sphi 0, %s64
      %s81 = sphi 0, %s65
      %s85 = sphi 0, %s85
      %s87 = sphi 0, %s85
      %s88 = sphi 0, %s87
      %s102 = sphi 0, %s88
      %s106 = sphi 0, %s106
      %s108 = sphi 0, %s106
      %s109 = sphi 0, %s108
      %s123 = sphi 0, %s109
      %s127 = sphi 0, %s127
      %s129 = sphi 0, %s127
      %s130 = sphi 0, %s129
      %s144 = sphi 0, %s130
      %s148 = sphi 0, %s148
      %s150 = sphi 0, %s148
      %s151 = sphi 0, %s150
      %s165 = sphi 0, %s151
      %s169 = sphi 0, %s169
      %s171 = sphi 0, %s169
      %s172 = sphi 0, %s171
      %s186 = sphi 0, %s172
      %s190 = sphi 0, %s190
      %s192 = sphi 0, %s190
      %s193 = sphi 0, %s192
      %s207 = sphi 0, %s193
      %s211 = sphi 0, %s211
      %s213 = sphi 0, %s211
      %s214 = sphi 0, %s213
      %s228 = sphi 0, %s214
      %s232 = sphi 0, %s232
      %s234 = sphi 0, %s232
      %s235 = sphi 0, %s234
      %s249 = sphi 0, %s235
    $region4: #{tpu_custom_call.1} parent=1 // loop_header_branch
      %28 = sbr.rel (%p26) target = $region8
    $region5: #{tpu_custom_call.1} parent=1 // loop_body
      %s30 = ssub.s32 %s25, 1
      %s31 = ssub.s32 %s25, 2
      %s32 = sadd.s32 %s25, 1
      %s33 = ssub.s32 %s25, %s32
      %p34 = scmp.eq.s32.totalorder %s33, 0
      %s36 = sadd.s32 %s35, 1
      %s37 = scalar_select %p34, %s35, %s36
      %p40 = pneg %p34
      %p41 = scmp.eq.s32.totalorder %s25, 3
      %p42 = por %p40, %p41
      %p43 = scmp.ne.s32.totalorder %s35, %s38
      %p44 = scmp.eq.s32.totalorder %s25, 0
      %p45 = por %p43, %p44
      %p46 = scmp.ne.s32.totalorder %s35, %s38
      %p47 = scmp.eq.s32.totalorder %s30, 3
      %p48 = por %p46, %p47
      %p49 = scmp.ne.s32.totalorder %s38, %s39
      %p50 = scmp.eq.s32.totalorder %s30, 0
      %p51 = por %p49, %p50
      %p52 = scmp.ne.s32.totalorder %s38, %s39
      %p53 = scmp.eq.s32.totalorder %s31, 3
      %p54 = por %p52, %p53
      %p56 = scmp.ne.s32.totalorder %s39, %s55
      %p57 = scmp.eq.s32.totalorder %s31, 0
      %p58 = por %p56, %p57
      %s59 = ssub.s32 %s25, %s32
      %p60 = scmp.eq.s32.totalorder %s59, 0
      %s62 = sadd.s32 %s61, 1
      %s63 = scalar_select %p60, %s61, %s62
      %p66 = pneg %p60
      %p67 = scmp.eq.s32.totalorder %s25, 3
      %p68 = por %p66, %p67
      %p69 = scmp.ne.s32.totalorder %s61, %s64
      %p70 = scmp.eq.s32.totalorder %s25, 0
      %p71 = por %p69, %p70
      %p72 = scmp.ne.s32.totalorder %s61, %s64
      %p73 = scmp.eq.s32.totalorder %s30, 3
      %p74 = por %p72, %p73
      %p75 = scmp.ne.s32.totalorder %s64, %s65
      %p76 = scmp.eq.s32.totalorder %s30, 0
      %p77 = por %p75, %p76
      %p78 = scmp.ne.s32.totalorder %s64, %s65
      %p79 = scmp.eq.s32.totalorder %s31, 3
      %p80 = por %p78, %p79
      %p82 = scmp.ne.s32.totalorder %s65, %s81
      %p83 = scmp.eq.s32.totalorder %s31, 0
      %p84 = por %p82, %p83
      %s86 = sadd.s32 %s85, 1
      %p89 = scmp.eq.s32.totalorder %s25, 3
      %p90 = scmp.ne.s32.totalorder %s85, %s87
      %p91 = scmp.eq.s32.totalorder %s25, 0
      %p92 = por %p90, %p91
      %p93 = scmp.ne.s32.totalorder %s85, %s87
      %p94 = scmp.eq.s32.totalorder %s30, 3
      %p95 = por %p93, %p94
      %p96 = scmp.ne.s32.totalorder %s87, %s88
      %p97 = scmp.eq.s32.totalorder %s30, 0
      %p98 = por %p96, %p97
      %p99 = scmp.ne.s32.totalorder %s87, %s88
      %p100 = scmp.eq.s32.totalorder %s31, 3
      %p101 = por %p99, %p100
      %p103 = scmp.ne.s32.totalorder %s88, %s102
      %p104 = scmp.eq.s32.totalorder %s31, 0
      %p105 = por %p103, %p104
      %s107 = sadd.s32 %s106, 1
      %p110 = scmp.eq.s32.totalorder %s25, 3
      %p111 = scmp.ne.s32.totalorder %s106, %s108
      %p112 = scmp.eq.s32.totalorder %s25, 0
      %p113 = por %p111, %p112
      %p114 = scmp.ne.s32.totalorder %s106, %s108
      %p115 = scmp.eq.s32.totalorder %s30, 3
      %p116 = por %p114, %p115
      %p117 = scmp.ne.s32.totalorder %s108, %s109
      %p118 = scmp.eq.s32.totalorder %s30, 0
      %p119 = por %p117, %p118
      %p120 = scmp.ne.s32.totalorder %s108, %s109
      %p121 = scmp.eq.s32.totalorder %s31, 3
      %p122 = por %p120, %p121
      %p124 = scmp.ne.s32.totalorder %s109, %s123
      %p125 = scmp.eq.s32.totalorder %s31, 0
      %p126 = por %p124, %p125
      %s128 = sadd.s32 %s127, 1
      %p131 = scmp.eq.s32.totalorder %s25, 3
      %p132 = scmp.ne.s32.totalorder %s127, %s129
      %p133 = scmp.eq.s32.totalorder %s25, 0
      %p134 = por %p132, %p133
      %p135 = scmp.ne.s32.totalorder %s127, %s129
      %p136 = scmp.eq.s32.totalorder %s30, 3
      %p137 = por %p135, %p136
      %p138 = scmp.ne.s32.totalorder %s129, %s130
      %p139 = scmp.eq.s32.totalorder %s30, 0
      %p140 = por %p138, %p139
      %p141 = scmp.ne.s32.totalorder %s129, %s130
      %p142 = scmp.eq.s32.totalorder %s31, 3
      %p143 = por %p141, %p142
      %p145 = scmp.ne.s32.totalorder %s130, %s144
      %p146 = scmp.eq.s32.totalorder %s31, 0
      %p147 = por %p145, %p146
      %s149 = sadd.s32 %s148, 1
      %p152 = scmp.eq.s32.totalorder %s25, 3
      %p153 = scmp.ne.s32.totalorder %s148, %s150
      %p154 = scmp.eq.s32.totalorder %s25, 0
      %p155 = por %p153, %p154
      %p156 = scmp.ne.s32.totalorder %s148, %s150
      %p157 = scmp.eq.s32.totalorder %s30, 3
      %p158 = por %p156, %p157
      %p159 = scmp.ne.s32.totalorder %s150, %s151
      %p160 = scmp.eq.s32.totalorder %s30, 0
      %p161 = por %p159, %p160
      %p162 = scmp.ne.s32.totalorder %s150, %s151
      %p163 = scmp.eq.s32.totalorder %s31, 3
      %p164 = por %p162, %p163
      %p166 = scmp.ne.s32.totalorder %s151, %s165
      %p167 = scmp.eq.s32.totalorder %s31, 0
      %p168 = por %p166, %p167
      %s170 = sadd.s32 %s169, 1
      %p173 = scmp.eq.s32.totalorder %s25, 3
      %p174 = scmp.ne.s32.totalorder %s169, %s171
      %p175 = scmp.eq.s32.totalorder %s25, 0
      %p176 = por %p174, %p175
      %p177 = scmp.ne.s32.totalorder %s169, %s171
      %p178 = scmp.eq.s32.totalorder %s30, 3
      %p179 = por %p177, %p178
      %p180 = scmp.ne.s32.totalorder %s171, %s172
      %p181 = scmp.eq.s32.totalorder %s30, 0
      %p182 = por %p180, %p181
      %p183 = scmp.ne.s32.totalorder %s171, %s172
      %p184 = scmp.eq.s32.totalorder %s31, 3
      %p185 = por %p183, %p184
      %p187 = scmp.ne.s32.totalorder %s172, %s186
      %p188 = scmp.eq.s32.totalorder %s31, 0
      %p189 = por %p187, %p188
      %s191 = sadd.s32 %s190, 1
      %p194 = scmp.eq.s32.totalorder %s25, 3
      %p195 = scmp.ne.s32.totalorder %s190, %s192
      %p196 = scmp.eq.s32.totalorder %s25, 0
      %p197 = por %p195, %p196
      %p198 = scmp.ne.s32.totalorder %s190, %s192
      %p199 = scmp.eq.s32.totalorder %s30, 3
      %p200 = por %p198, %p199
      %p201 = scmp.ne.s32.totalorder %s192, %s193
      %p202 = scmp.eq.s32.totalorder %s30, 0
      %p203 = por %p201, %p202
      %p204 = scmp.ne.s32.totalorder %s192, %s193
      %p205 = scmp.eq.s32.totalorder %s31, 3
      %p206 = por %p204, %p205
      %p208 = scmp.ne.s32.totalorder %s193, %s207
      %p209 = scmp.eq.s32.totalorder %s31, 0
      %p210 = por %p208, %p209
      %s212 = sadd.s32 %s211, 1
      %p215 = scmp.eq.s32.totalorder %s25, 3
      %p216 = scmp.ne.s32.totalorder %s211, %s213
      %p217 = scmp.eq.s32.totalorder %s25, 0
      %p218 = por %p216, %p217
      %p219 = scmp.ne.s32.totalorder %s211, %s213
      %p220 = scmp.eq.s32.totalorder %s30, 3
      %p221 = por %p219, %p220
      %p222 = scmp.ne.s32.totalorder %s213, %s214
      %p223 = scmp.eq.s32.totalorder %s30, 0
      %p224 = por %p222, %p223
      %p225 = scmp.ne.s32.totalorder %s213, %s214
      %p226 = scmp.eq.s32.totalorder %s31, 3
      %p227 = por %p225, %p226
      %p229 = scmp.ne.s32.totalorder %s214, %s228
      %p230 = scmp.eq.s32.totalorder %s31, 0
      %p231 = por %p229, %p230
      %s233 = sadd.s32 %s232, 1
      %p236 = scmp.eq.s32.totalorder %s25, 3
      %p237 = scmp.ne.s32.totalorder %s232, %s234
      %p238 = scmp.eq.s32.totalorder %s25, 0
      %p239 = por %p237, %p238
      %p240 = scmp.ne.s32.totalorder %s232, %s234
      %p241 = scmp.eq.s32.totalorder %s30, 3
      %p242 = por %p240, %p241
      %p243 = scmp.ne.s32.totalorder %s234, %s235
      %p244 = scmp.eq.s32.totalorder %s30, 0
      %p245 = por %p243, %p244
      %p246 = scmp.ne.s32.totalorder %s234, %s235
      %p247 = scmp.eq.s32.totalorder %s31, 3
      %p248 = por %p246, %p247
      %p250 = scmp.ne.s32.totalorder %s235, %s249
      %p251 = scmp.eq.s32.totalorder %s31, 0
      %p252 = por %p250, %p251
      %p253 = scmp.le.s32.totalorder 1, %s25
      %p254 = scmp.lt.s32.totalorder %s25, 5
      %p255 = pnand %p253, %p254
      %p256 = pneg %p255
      // Predicated region
      $region9: #{tpu_custom_call.1} parent=5 // pred_check
        _
      $region10: #{tpu_custom_call.1} parent=5 // pred_check_branch
        %258 = sbr.rel (%p255) target = $region12
      $region11: #{tpu_custom_call.1} parent=5 // pred_region
        %s259 = ssub.s32 %s25, 1
        // Predicated region
        $region13: #{tpu_custom_call.1} parent=11 // pred_check
          %p260 = pneg %p98
        $region14: #{tpu_custom_call.1} parent=11 // pred_check_branch
          %262 = sbr.rel (%p260) target = $region16
        $region15: #{tpu_custom_call.1} parent=11 // pred_region
          %s264 = ssub.s32 32, 32
          %265 = vsyncadd [#allocation7], %s264
          %s267 = sshll.u32 [#allocation8], 4
          %s268 = int_to_ptr.vmem [resolvable:$true] %s267
          %270 = dma.hbm_to_vmem [thread:$0]  %s2, 32, %s268, [#allocation7]
        $region16: #{tpu_custom_call.1} parent=11 // pred_fallthru
          _
        // Predicated region
        $region17: #{tpu_custom_call.1} parent=11 // pred_check
          %p271 = pneg %p119
        $region18: #{tpu_custom_call.1} parent=11 // pred_check_branch
          %273 = sbr.rel (%p271) target = $region20
        $region19: #{tpu_custom_call.1} parent=11 // pred_region
          %s275 = ssub.s32 4096, 4096
          %276 = vsyncadd [#allocation10], %s275
          %s277 = sshll.u32 [#allocation9], 4
          %s278 = int_to_ptr.vmem [resolvable:$true] %s277
          %283 = dma.hbm_to_vmem [thread:$0]  %s3, 4096, %s278, [#allocation10], 128, 128, 8
        $region20: #{tpu_custom_call.1} parent=11 // pred_fallthru
          _
        // Predicated region
        $region21: #{tpu_custom_call.1} parent=11 // pred_check
          %p284 = pneg %p140
        $region22: #{tpu_custom_call.1} parent=11 // pred_check_branch
          %286 = sbr.rel (%p284) target = $region24
        $region23: #{tpu_custom_call.1} parent=11 // pred_region
          %s288 = ssub.s32 16, 16
          %289 = vsyncadd [#allocation10], %s288
          %s291 = sshll.u32 [#allocation11], 4
          %s292 = int_to_ptr.vmem [resolvable:$true] %s291
          %294 = dma.hbm_to_vmem [thread:$0]  %s4, 16, %s292, [#allocation10]
        $region24: #{tpu_custom_call.1} parent=11 // pred_fallthru
          _
        // Predicated region
        $region25: #{tpu_custom_call.1} parent=11 // pred_check
          %p295 = pneg %p161
        $region26: #{tpu_custom_call.1} parent=11 // pred_check_branch
          %297 = sbr.rel (%p295) target = $region28
        $region27: #{tpu_custom_call.1} parent=11 // pred_region
          _
        $region28: #{tpu_custom_call.1} parent=11 // pred_fallthru
          _
        // Predicated region
        $region29: #{tpu_custom_call.1} parent=11 // pred_check
          %p298 = pneg %p182
        $region30: #{tpu_custom_call.1} parent=11 // pred_check_branch
          %300 = sbr.rel (%p298) target = $region32
        $region31: #{tpu_custom_call.1} parent=11 // pred_region
          %s302 = ssub.s32 16, 16
          %303 = vsyncadd [#allocation13], %s302
          %s305 = sshll.u32 [#allocation12], 4
          %s306 = int_to_ptr.vmem [resolvable:$true] %s305
          %308 = dma.hbm_to_vmem [thread:$0]  %s6, 16, %s306, [#allocation13]
        $region32: #{tpu_custom_call.1} parent=11 // pred_fallthru
          _
        // Predicated region
        $region33: #{tpu_custom_call.1} parent=11 // pred_check
          %p309 = pneg %p203
        $region34: #{tpu_custom_call.1} parent=11 // pred_check_branch
          %311 = sbr.rel (%p309) target = $region36
        $region35: #{tpu_custom_call.1} parent=11 // pred_region
          %s313 = ssub.s32 1024, 1024
          %314 = vsyncadd [#allocation13], %s313
          %s315 = sshll.u32 [#allocation14], 4
          %s316 = int_to_ptr.vmem [resolvable:$true] %s315
          %321 = dma.hbm_to_vmem [thread:$0]  %s7, 1024, %s316, [#allocation13], 128, 128, 8
        $region36: #{tpu_custom_call.1} parent=11 // pred_fallthru
          _
        // Predicated region
        $region37: #{tpu_custom_call.1} parent=11 // pred_check
          %p322 = pneg %p224
        $region38: #{tpu_custom_call.1} parent=11 // pred_check_branch
          %324 = sbr.rel (%p322) target = $region40
        $region39: #{tpu_custom_call.1} parent=11 // pred_region
          %s326 = ssub.s32 16, 16
          %327 = vsyncadd [#allocation16], %s326
          %s329 = sshll.u32 [#allocation15], 4
          %s330 = int_to_ptr.vmem [resolvable:$true] %s329
          %332 = dma.hbm_to_vmem [thread:$0]  %s8, 16, %s330, [#allocation16]
        $region40: #{tpu_custom_call.1} parent=11 // pred_fallthru
          _
      $region12: #{tpu_custom_call.1} parent=5 // pred_fallthru
        _
      %p333 = scmp.lt.s32.totalorder %s25, 4
      // Predicated region
      $region41: #{tpu_custom_call.1} parent=5 // pred_check
        %p334 = pneg %p333
      $region42: #{tpu_custom_call.1} parent=5 // pred_check_branch
        %336 = sbr.rel (%p334) target = $region44
      $region43: #{tpu_custom_call.1} parent=5 // pred_region
        // Predicated region
        $region45: #{tpu_custom_call.1} parent=43 // pred_check
          %p337 = pneg %p45
        $region46: #{tpu_custom_call.1} parent=43 // pred_check_branch
          %339 = sbr.rel (%p337) target = $region48
        $region47: #{tpu_custom_call.1} parent=43 // pred_region
          %s340 = sand.u32 %s35, 1
          %s341 = scalar_lea.sflag [#allocation4], %s340
          %s342 = sand.u32 %s35, 1
          %s343 = smul.addr %s342, 400
          %s344 = scalar_lea.vmem [#allocation3], %s343
          %s345 = smul.u32 100, %s25
          %s347 = ssub.s32 6400, 6400
          %348 = vsyncadd %s341, %s347
          %s349 = smul.addr %s345, 64
          %s350 = scalar_lea.hbm %s0, %s349
          %s352 = sshll.u32 %s344, 4
          %s353 = int_to_ptr.vmem [resolvable:$true] %s352
          %355 = dma.hbm_to_vmem [thread:$0]  %s350, 6400, %s353, %s341
        $region48: #{tpu_custom_call.1} parent=43 // pred_fallthru
          _
        // Predicated region
        $region49: #{tpu_custom_call.1} parent=43 // pred_check
          %p356 = pneg %p71
        $region50: #{tpu_custom_call.1} parent=43 // pred_check_branch
          %358 = sbr.rel (%p356) target = $region52
        $region51: #{tpu_custom_call.1} parent=43 // pred_region
          %s359 = sand.u32 %s25, 1
          %s360 = scalar_lea.sflag [#allocation7], %s359
          %s361 = sand.u32 %s61, 1
          %s362 = smul.addr %s361, 12800
          %s363 = scalar_lea.vmem [#allocation6], %s362
          %s364 = smul.u32 1600, %s25
          %s366 = ssub.s32 204800, 204800
          %367 = vsyncadd %s360, %s366
          %s368 = smul.addr %s364, 2
          %s369 = smul.addr %s368, 64
          %s370 = scalar_lea.hbm %s1, %s369
          %s371 = sshll.u32 %s363, 4
          %s372 = int_to_ptr.vmem [resolvable:$true] %s371
          %377 = dma.hbm_to_vmem [thread:$0]  %s370, 204800, %s372, %s360, 128, 128, 8
        $region52: #{tpu_custom_call.1} parent=43 // pred_fallthru
          _
      $region44: #{tpu_custom_call.1} parent=5 // pred_fallthru
        _
      %p378 = scmp.le.s32.totalorder 1, %s25
      %p379 = scmp.lt.s32.totalorder %s25, 5
      %p380 = pnand %p378, %p379
      %p381 = pneg %p380
      // Predicated region
      $region53: #{tpu_custom_call.1} parent=5 // pred_check
        _
      $region54: #{tpu_custom_call.1} parent=5 // pred_check_branch
        %383 = sbr.rel (%p380) target = $region56
      $region55: #{tpu_custom_call.1} parent=5 // pred_region
        %s384 = ssub.s32 %s25, 1
        %s385 = sand.u32 %s38, 1
        %s386 = scalar_lea.sflag [#allocation4], %s385
        %s387 = sand.u32 %s38, 1
        %s388 = smul.addr %s387, 400
        %s389 = scalar_lea.vmem [#allocation3], %s388
        // Predicated region
        $region57: #{tpu_custom_call.1} parent=55 // pred_check
          %p390 = pneg %p51
        $region58: #{tpu_custom_call.1} parent=55 // pred_check_branch
          %392 = sbr.rel (%p390) target = $region60
        $region59: #{tpu_custom_call.1} parent=55 // pred_region
          %393 = dma.done %s386, 6400
        $region60: #{tpu_custom_call.1} parent=55 // pred_fallthru
          _
        %s394 = sand.u32 %s30, 1
        %s395 = scalar_lea.sflag [#allocation7], %s394
        %s396 = sand.u32 %s64, 1
        %s397 = smul.addr %s396, 12800
        %s398 = scalar_lea.vmem [#allocation6], %s397
        // Predicated region
        $region61: #{tpu_custom_call.1} parent=55 // pred_check
          %p399 = pneg %p77
        $region62: #{tpu_custom_call.1} parent=55 // pred_check_branch
          %401 = sbr.rel (%p399) target = $region64
        $region63: #{tpu_custom_call.1} parent=55 // pred_region
          %402 = dma.done %s395, 204800
        $region64: #{tpu_custom_call.1} parent=55 // pred_fallthru
          _
        // Predicated region
        $region65: #{tpu_custom_call.1} parent=55 // pred_check
          %p403 = pneg %p98
        $region66: #{tpu_custom_call.1} parent=55 // pred_check_branch
          %405 = sbr.rel (%p403) target = $region68
        $region67: #{tpu_custom_call.1} parent=55 // pred_region
          %406 = dma.done [#allocation7], 32
        $region68: #{tpu_custom_call.1} parent=55 // pred_fallthru
          _
        // Predicated region
        $region69: #{tpu_custom_call.1} parent=55 // pred_check
          %p407 = pneg %p119
        $region70: #{tpu_custom_call.1} parent=55 // pred_check_branch
          %409 = sbr.rel (%p407) target = $region72
        $region71: #{tpu_custom_call.1} parent=55 // pred_region
          %410 = dma.done [#allocation10], 4096
        $region72: #{tpu_custom_call.1} parent=55 // pred_fallthru
          _
        // Predicated region
        $region73: #{tpu_custom_call.1} parent=55 // pred_check
          %p411 = pneg %p140
        $region74: #{tpu_custom_call.1} parent=55 // pred_check_branch
          %413 = sbr.rel (%p411) target = $region76
        $region75: #{tpu_custom_call.1} parent=55 // pred_region
          %414 = dma.done [#allocation10], 16
        $region76: #{tpu_custom_call.1} parent=55 // pred_fallthru
          _
        // Predicated region
        $region77: #{tpu_custom_call.1} parent=55 // pred_check
          %p415 = pneg %p182
        $region78: #{tpu_custom_call.1} parent=55 // pred_check_branch
          %417 = sbr.rel (%p415) target = $region80
        $region79: #{tpu_custom_call.1} parent=55 // pred_region
          %418 = dma.done [#allocation13], 16
        $region80: #{tpu_custom_call.1} parent=55 // pred_fallthru
          _
        // Predicated region
        $region81: #{tpu_custom_call.1} parent=55 // pred_check
          %p419 = pneg %p203
        $region82: #{tpu_custom_call.1} parent=55 // pred_check_branch
          %421 = sbr.rel (%p419) target = $region84
        $region83: #{tpu_custom_call.1} parent=55 // pred_region
          %422 = dma.done [#allocation13], 1024
        $region84: #{tpu_custom_call.1} parent=55 // pred_fallthru
          _
        // Predicated region
        $region85: #{tpu_custom_call.1} parent=55 // pred_check
          %p423 = pneg %p224
        $region86: #{tpu_custom_call.1} parent=55 // pred_check_branch
          %425 = sbr.rel (%p423) target = $region88
        $region87: #{tpu_custom_call.1} parent=55 // pred_region
          %426 = dma.done [#allocation16], 16
        $region88: #{tpu_custom_call.1} parent=55 // pred_fallthru
          _
        %s427 = sand.u32 %s38, 1
        %s428 = scalar_lea.sflag [#allocation4], %s427
        %s429 = sand.u32 %s38, 1
        %s430 = smul.addr %s429, 400
        %s431 = scalar_lea.vmem [#allocation3], %s430
        %p432 = pneg %p51
        %p433 = pneg %p48
        %s434 = sand.u32 %s30, 1
        %s435 = scalar_lea.sflag [#allocation7], %s434
        %s436 = sand.u32 %s64, 1
        %s437 = smul.addr %s436, 12800
        %s438 = scalar_lea.vmem [#allocation6], %s437
        %p439 = pneg %p77
        %p440 = pneg %p74
        %p441 = pneg %p98
        %p442 = pneg %p95
        %p443 = pneg %p119
        %p444 = pneg %p116
        %p445 = pneg %p140
        %p446 = pneg %p137
        %p447 = pneg %p161
        %p448 = pneg %p158
        %p449 = pneg %p182
        %p450 = pneg %p179
        %p451 = pneg %p203
        %p452 = pneg %p200
        %p453 = pneg %p224
        %p454 = pneg %p221
        %p455 = pneg %p245
        %p456 = pneg %p242
        %s457 = smul.u32 100, %s30
        %s458 = smul.u32 1600, %s30
        %p459 = scmp.eq.s32.totalorder %s30, 0
        // Predicated region
        $region89: #{tpu_custom_call.1} parent=55 // pred_check
          %p460 = pneg %p459
        $region90: #{tpu_custom_call.1} parent=55 // pred_check_branch
          %462 = sbr.rel (%p460) target = $region92
        $region91: #{tpu_custom_call.1} parent=55 // pred_region
          %463 = vst [vmem:[#allocation2] sm:$0xff] 0.0
          %464 = vst [vmem:[#allocation2 + $0x8] sm:$0xff] 0.0
        $region92: #{tpu_custom_call.1} parent=55 // pred_fallthru
          _
        %v465 = vld [vmem:[#allocation2] sm:$0xff]
        %v466 = vld [vmem:[#allocation2 + $0x8] sm:$0xff]
        %v467 = vld [vmem:[%s389] sm:$0xff]
        %v468 = vld [vmem:[%s389 + $0x8] sm:$0xff]
        %v469 = vld [vmem:[%s389 + $0x10] sm:$0xff]
        %v470 = vld [vmem:[%s389 + $0x18] sm:$0xff]
        %v471 = vld [vmem:[%s389 + $0x20] sm:$0xff]
        %v472 = vld [vmem:[%s389 + $0x28] sm:$0xff]
        %v473 = vld [vmem:[%s389 + $0x30] sm:$0xff]
        %v474 = vld [vmem:[%s389 + $0x38] sm:$0xff]
        %v475 = vld [vmem:[%s389 + $0x40] sm:$0xff]
        %v476 = vld [vmem:[%s389 + $0x48] sm:$0xff]
        %v477 = vld [vmem:[%s389 + $0x50] sm:$0xff]
        %v478 = vld [vmem:[%s389 + $0x58] sm:$0xff]
        %v479 = vld [vmem:[%s389 + $0x60] sm:$0xff]
        %v480 = vld [vmem:[%s389 + $0x68] sm:$0xff]
        %v481 = vld [vmem:[%s389 + $0x70] sm:$0xff]
        %v482 = vld [vmem:[%s389 + $0x78] sm:$0xff]
        %v483 = vld [vmem:[%s389 + $0x80] sm:$0xff]
        %v484 = vld [vmem:[%s389 + $0x88] sm:$0xff]
        %v485 = vld [vmem:[%s389 + $0x90] sm:$0xff]
        %v486 = vld [vmem:[%s389 + $0x98] sm:$0xff]
        %v487 = vld [vmem:[%s389 + $0xa0] sm:$0xff]
        %v488 = vld [vmem:[%s389 + $0xa8] sm:$0xff]
        %v489 = vld [vmem:[%s389 + $0xb0] sm:$0xff]
        %v490 = vld [vmem:[%s389 + $0xb8] sm:$0xff]
        %v491 = vld [vmem:[%s389 + $0xc0] sm:$0xff]
        %v492 = vld [vmem:[%s389 + $0xc8] sm:$0xff]
        %v493 = vld [vmem:[%s389 + $0xd0] sm:$0xff]
        %v494 = vld [vmem:[%s389 + $0xd8] sm:$0xff]
        %v495 = vld [vmem:[%s389 + $0xe0] sm:$0xff]
        %v496 = vld [vmem:[%s389 + $0xe8] sm:$0xff]
        %v497 = vld [vmem:[%s389 + $0xf0] sm:$0xff]
        %v498 = vld [vmem:[%s389 + $0xf8] sm:$0xff]
        %v499 = vld [vmem:[%s389 + $0x100] sm:$0xff]
        %v500 = vld [vmem:[%s389 + $0x108] sm:$0xff]
        %v501 = vld [vmem:[%s389 + $0x110] sm:$0xff]
        %v502 = vld [vmem:[%s389 + $0x118] sm:$0xff]
        %v503 = vld [vmem:[%s389 + $0x120] sm:$0xff]
        %v504 = vld [vmem:[%s389 + $0x128] sm:$0xff]
        %v505 = vld [vmem:[%s389 + $0x130] sm:$0xff]
        %v506 = vld [vmem:[%s389 + $0x138] sm:$0xff]
        %v507 = vld [vmem:[%s389 + $0x140] sm:$0xff]
        %v508 = vld [vmem:[%s389 + $0x148] sm:$0xff]
        %v509 = vld [vmem:[%s389 + $0x150] sm:$0xff]
        %v510 = vld [vmem:[%s389 + $0x158] sm:$0xff]
        %v511 = vld [vmem:[%s389 + $0x160] sm:$0xff]
        %v512 = vld [vmem:[%s389 + $0x168] sm:$0xff]
        %v513 = vld [vmem:[%s389 + $0x170] sm:$0xff]
        %v514 = vld [vmem:[%s389 + $0x178] sm:$0xff]
        %v515 = vld [vmem:[%s389 + $0x180] sm:$0xff]
        %v516 = vld [vmem:[%s389 + $0x188] sm:$0xff]
        %v517 = vld [vmem:[%s398] sm:$0xff]
        %v518 = vld [vmem:[%s398 + $0x8] sm:$0xff]
        %v519 = vld [vmem:[%s398 + $0x10] sm:$0xff]
        %v520 = vld [vmem:[%s398 + $0x18] sm:$0xff]
        %v521 = vld [vmem:[%s398 + $0x20] sm:$0xff]
        %v522 = vld [vmem:[%s398 + $0x28] sm:$0xff]
        %v523 = vld [vmem:[%s398 + $0x30] sm:$0xff]
        %v524 = vld [vmem:[%s398 + $0x38] sm:$0xff]
        %v525 = vld [vmem:[%s398 + $0x40] sm:$0xff]
        %v526 = vld [vmem:[%s398 + $0x48] sm:$0xff]
        %v527 = vld [vmem:[%s398 + $0x50] sm:$0xff]
        %v528 = vld [vmem:[%s398 + $0x58] sm:$0xff]
        %v529 = vld [vmem:[%s398 + $0x60] sm:$0xff]
        %v530 = vld [vmem:[%s398 + $0x68] sm:$0xff]
        %v531 = vld [vmem:[%s398 + $0x70] sm:$0xff]
        %v532 = vld [vmem:[%s398 + $0x78] sm:$0xff]
        %v533 = vld [vmem:[%s398 + $0x80] sm:$0xff]
        %v534 = vld [vmem:[%s398 + $0x88] sm:$0xff]
        %v535 = vld [vmem:[%s398 + $0x90] sm:$0xff]
        %v536 = vld [vmem:[%s398 + $0x98] sm:$0xff]
        %v537 = vld [vmem:[%s398 + $0xa0] sm:$0xff]
        %v538 = vld [vmem:[%s398 + $0xa8] sm:$0xff]
        %v539 = vld [vmem:[%s398 + $0xb0] sm:$0xff]
        %v540 = vld [vmem:[%s398 + $0xb8] sm:$0xff]
        %v541 = vld [vmem:[%s398 + $0xc0] sm:$0xff]
        %v542 = vld [vmem:[%s398 + $0xc8] sm:$0xff]
        %v543 = vld [vmem:[%s398 + $0xd0] sm:$0xff]
        %v544 = vld [vmem:[%s398 + $0xd8] sm:$0xff]
        %v545 = vld [vmem:[%s398 + $0xe0] sm:$0xff]
        %v546 = vld [vmem:[%s398 + $0xe8] sm:$0xff]
        %v547 = vld [vmem:[%s398 + $0xf0] sm:$0xff]
        %v548 = vld [vmem:[%s398 + $0xf8] sm:$0xff]
        %v549 = vld [vmem:[%s398 + $0x100] sm:$0xff]
        %v550 = vld [vmem:[%s398 + $0x108] sm:$0xff]
        %v551 = vld [vmem:[%s398 + $0x110] sm:$0xff]
        %v552 = vld [vmem:[%s398 + $0x118] sm:$0xff]
        %v553 = vld [vmem:[%s398 + $0x120] sm:$0xff]
        %v554 = vld [vmem:[%s398 + $0x128] sm:$0xff]
        %v555 = vld [vmem:[%s398 + $0x130] sm:$0xff]
        %v556 = vld [vmem:[%s398 + $0x138] sm:$0xff]
        %v557 = vld [vmem:[%s398 + $0x140] sm:$0xff]
        %v558 = vld [vmem:[%s398 + $0x148] sm:$0xff]
        %v559 = vld [vmem:[%s398 + $0x150] sm:$0xff]
        %v560 = vld [vmem:[%s398 + $0x158] sm:$0xff]
        %v561 = vld [vmem:[%s398 + $0x160] sm:$0xff]
        %v562 = vld [vmem:[%s398 + $0x168] sm:$0xff]
        %v563 = vld [vmem:[%s398 + $0x170] sm:$0xff]
        %v564 = vld [vmem:[%s398 + $0x178] sm:$0xff]
        %v565 = vld [vmem:[%s398 + $0x180] sm:$0xff]
        %v566 = vld [vmem:[%s398 + $0x188] sm:$0xff]
        %v567 = vld [vmem:[%s398 + $0x190] sm:$0xff]
        %v568 = vld [vmem:[%s398 + $0x198] sm:$0xff]
        %v569 = vld [vmem:[%s398 + $0x1a0] sm:$0xff]
        %v570 = vld [vmem:[%s398 + $0x1a8] sm:$0xff]
        %v571 = vld [vmem:[%s398 + $0x1b0] sm:$0xff]
        %v572 = vld [vmem:[%s398 + $0x1b8] sm:$0xff]
        %v573 = vld [vmem:[%s398 + $0x1c0] sm:$0xff]
        %v574 = vld [vmem:[%s398 + $0x1c8] sm:$0xff]
        %v575 = vld [vmem:[%s398 + $0x1d0] sm:$0xff]
        %v576 = vld [vmem:[%s398 + $0x1d8] sm:$0xff]
        %v577 = vld [vmem:[%s398 + $0x1e0] sm:$0xff]
        %v578 = vld [vmem:[%s398 + $0x1e8] sm:$0xff]
        %v579 = vld [vmem:[%s398 + $0x1f0] sm:$0xff]
        %v580 = vld [vmem:[%s398 + $0x1f8] sm:$0xff]
        %v581 = vld [vmem:[%s398 + $0x200] sm:$0xff]
        %v582 = vld [vmem:[%s398 + $0x208] sm:$0xff]
        %v583 = vld [vmem:[%s398 + $0x210] sm:$0xff]
        %v584 = vld [vmem:[%s398 + $0x218] sm:$0xff]
        %v585 = vld [vmem:[%s398 + $0x220] sm:$0xff]
        %v586 = vld [vmem:[%s398 + $0x228] sm:$0xff]
        %v587 = vld [vmem:[%s398 + $0x230] sm:$0xff]
        %v588 = vld [vmem:[%s398 + $0x238] sm:$0xff]
        %v589 = vld [vmem:[%s398 + $0x240] sm:$0xff]
        %v590 = vld [vmem:[%s398 + $0x248] sm:$0xff]
        %v591 = vld [vmem:[%s398 + $0x250] sm:$0xff]
        %v592 = vld [vmem:[%s398 + $0x258] sm:$0xff]
        %v593 = vld [vmem:[%s398 + $0x260] sm:$0xff]
        %v594 = vld [vmem:[%s398 + $0x268] sm:$0xff]
        %v595 = vld [vmem:[%s398 + $0x270] sm:$0xff]
        %v596 = vld [vmem:[%s398 + $0x278] sm:$0xff]
        %v597 = vld [vmem:[%s398 + $0x280] sm:$0xff]
        %v598 = vld [vmem:[%s398 + $0x288] sm:$0xff]
        %v599 = vld [vmem:[%s398 + $0x290] sm:$0xff]
        %v600 = vld [vmem:[%s398 + $0x298] sm:$0xff]
        %v601 = vld [vmem:[%s398 + $0x2a0] sm:$0xff]
        %v602 = vld [vmem:[%s398 + $0x2a8] sm:$0xff]
        %v603 = vld [vmem:[%s398 + $0x2b0] sm:$0xff]
        %v604 = vld [vmem:[%s398 + $0x2b8] sm:$0xff]
        %v605 = vld [vmem:[%s398 + $0x2c0] sm:$0xff]
        %v606 = vld [vmem:[%s398 + $0x2c8] sm:$0xff]
        %v607 = vld [vmem:[%s398 + $0x2d0] sm:$0xff]
        %v608 = vld [vmem:[%s398 + $0x2d8] sm:$0xff]
        %v609 = vld [vmem:[%s398 + $0x2e0] sm:$0xff]
        %v610 = vld [vmem:[%s398 + $0x2e8] sm:$0xff]
        %v611 = vld [vmem:[%s398 + $0x2f0] sm:$0xff]
        %v612 = vld [vmem:[%s398 + $0x2f8] sm:$0xff]
        %v613 = vld [vmem:[%s398 + $0x300] sm:$0xff]
        %v614 = vld [vmem:[%s398 + $0x308] sm:$0xff]
        %v615 = vld [vmem:[%s398 + $0x310] sm:$0xff]
        %v616 = vld [vmem:[%s398 + $0x318] sm:$0xff]
        %v617 = vld [vmem:[%s398 + $0x320] sm:$0xff]
        %v618 = vld [vmem:[%s398 + $0x328] sm:$0xff]
        %v619 = vld [vmem:[%s398 + $0x330] sm:$0xff]
        %v620 = vld [vmem:[%s398 + $0x338] sm:$0xff]
        %v621 = vld [vmem:[%s398 + $0x340] sm:$0xff]
        %v622 = vld [vmem:[%s398 + $0x348] sm:$0xff]
        %v623 = vld [vmem:[%s398 + $0x350] sm:$0xff]
        %v624 = vld [vmem:[%s398 + $0x358] sm:$0xff]
        %v625 = vld [vmem:[%s398 + $0x360] sm:$0xff]
        %v626 = vld [vmem:[%s398 + $0x368] sm:$0xff]
        %v627 = vld [vmem:[%s398 + $0x370] sm:$0xff]
        %v628 = vld [vmem:[%s398 + $0x378] sm:$0xff]
        %v629 = vld [vmem:[%s398 + $0x380] sm:$0xff]
        %v630 = vld [vmem:[%s398 + $0x388] sm:$0xff]
        %v631 = vld [vmem:[%s398 + $0x390] sm:$0xff]
        %v632 = vld [vmem:[%s398 + $0x398] sm:$0xff]
        %v633 = vld [vmem:[%s398 + $0x3a0] sm:$0xff]
        %v634 = vld [vmem:[%s398 + $0x3a8] sm:$0xff]
        %v635 = vld [vmem:[%s398 + $0x3b0] sm:$0xff]
        %v636 = vld [vmem:[%s398 + $0x3b8] sm:$0xff]
        %v637 = vld [vmem:[%s398 + $0x3c0] sm:$0xff]
        %v638 = vld [vmem:[%s398 + $0x3c8] sm:$0xff]
        %v639 = vld [vmem:[%s398 + $0x3d0] sm:$0xff]
        %v640 = vld [vmem:[%s398 + $0x3d8] sm:$0xff]
        %v641 = vld [vmem:[%s398 + $0x3e0] sm:$0xff]
        %v642 = vld [vmem:[%s398 + $0x3e8] sm:$0xff]
        %v643 = vld [vmem:[%s398 + $0x3f0] sm:$0xff]
        %v644 = vld [vmem:[%s398 + $0x3f8] sm:$0xff]
        %v645 = vld [vmem:[%s398 + $0x400] sm:$0xff]
        %v646 = vld [vmem:[%s398 + $0x408] sm:$0xff]
        %v647 = vld [vmem:[%s398 + $0x410] sm:$0xff]
        %v648 = vld [vmem:[%s398 + $0x418] sm:$0xff]
        %v649 = vld [vmem:[%s398 + $0x420] sm:$0xff]
        %v650 = vld [vmem:[%s398 + $0x428] sm:$0xff]
        %v651 = vld [vmem:[%s398 + $0x430] sm:$0xff]
        %v652 = vld [vmem:[%s398 + $0x438] sm:$0xff]
        %v653 = vld [vmem:[%s398 + $0x440] sm:$0xff]
        %v654 = vld [vmem:[%s398 + $0x448] sm:$0xff]
        %v655 = vld [vmem:[%s398 + $0x450] sm:$0xff]
        %v656 = vld [vmem:[%s398 + $0x458] sm:$0xff]
        %v657 = vld [vmem:[%s398 + $0x460] sm:$0xff]
        %v658 = vld [vmem:[%s398 + $0x468] sm:$0xff]
        %v659 = vld [vmem:[%s398 + $0x470] sm:$0xff]
        %v660 = vld [vmem:[%s398 + $0x478] sm:$0xff]
        %v661 = vld [vmem:[%s398 + $0x480] sm:$0xff]
        %v662 = vld [vmem:[%s398 + $0x488] sm:$0xff]
        %v663 = vld [vmem:[%s398 + $0x490] sm:$0xff]
        %v664 = vld [vmem:[%s398 + $0x498] sm:$0xff]
        %v665 = vld [vmem:[%s398 + $0x4a0] sm:$0xff]
        %v666 = vld [vmem:[%s398 + $0x4a8] sm:$0xff]
        %v667 = vld [vmem:[%s398 + $0x4b0] sm:$0xff]
        %v668 = vld [vmem:[%s398 + $0x4b8] sm:$0xff]
        %v669 = vld [vmem:[%s398 + $0x4c0] sm:$0xff]
        %v670 = vld [vmem:[%s398 + $0x4c8] sm:$0xff]
        %v671 = vld [vmem:[%s398 + $0x4d0] sm:$0xff]
        %v672 = vld [vmem:[%s398 + $0x4d8] sm:$0xff]
        %v673 = vld [vmem:[%s398 + $0x4e0] sm:$0xff]
        %v674 = vld [vmem:[%s398 + $0x4e8] sm:$0xff]
        %v675 = vld [vmem:[%s398 + $0x4f0] sm:$0xff]
        %v676 = vld [vmem:[%s398 + $0x4f8] sm:$0xff]
        %v677 = vld [vmem:[%s398 + $0x500] sm:$0xff]
        %v678 = vld [vmem:[%s398 + $0x508] sm:$0xff]
        %v679 = vld [vmem:[%s398 + $0x510] sm:$0xff]
        %v680 = vld [vmem:[%s398 + $0x518] sm:$0xff]
        %v681 = vld [vmem:[%s398 + $0x520] sm:$0xff]
        %v682 = vld [vmem:[%s398 + $0x528] sm:$0xff]
        %v683 = vld [vmem:[%s398 + $0x530] sm:$0xff]
        %v684 = vld [vmem:[%s398 + $0x538] sm:$0xff]
        %v685 = vld [vmem:[%s398 + $0x540] sm:$0xff]
        %v686 = vld [vmem:[%s398 + $0x548] sm:$0xff]
        %v687 = vld [vmem:[%s398 + $0x550] sm:$0xff]
        %v688 = vld [vmem:[%s398 + $0x558] sm:$0xff]
        %v689 = vld [vmem:[%s398 + $0x560] sm:$0xff]
        %v690 = vld [vmem:[%s398 + $0x568] sm:$0xff]
        %v691 = vld [vmem:[%s398 + $0x570] sm:$0xff]
        %v692 = vld [vmem:[%s398 + $0x578] sm:$0xff]
        %v693 = vld [vmem:[%s398 + $0x580] sm:$0xff]
        %v694 = vld [vmem:[%s398 + $0x588] sm:$0xff]
        %v695 = vld [vmem:[%s398 + $0x590] sm:$0xff]
        %v696 = vld [vmem:[%s398 + $0x598] sm:$0xff]
        %v697 = vld [vmem:[%s398 + $0x5a0] sm:$0xff]
        %v698 = vld [vmem:[%s398 + $0x5a8] sm:$0xff]
        %v699 = vld [vmem:[%s398 + $0x5b0] sm:$0xff]
        %v700 = vld [vmem:[%s398 + $0x5b8] sm:$0xff]
        %v701 = vld [vmem:[%s398 + $0x5c0] sm:$0xff]
        %v702 = vld [vmem:[%s398 + $0x5c8] sm:$0xff]
        %v703 = vld [vmem:[%s398 + $0x5d0] sm:$0xff]
        %v704 = vld [vmem:[%s398 + $0x5d8] sm:$0xff]
        %v705 = vld [vmem:[%s398 + $0x5e0] sm:$0xff]
        %v706 = vld [vmem:[%s398 + $0x5e8] sm:$0xff]
        %v707 = vld [vmem:[%s398 + $0x5f0] sm:$0xff]
        %v708 = vld [vmem:[%s398 + $0x5f8] sm:$0xff]
        %v709 = vld [vmem:[%s398 + $0x600] sm:$0xff]
        %v710 = vld [vmem:[%s398 + $0x608] sm:$0xff]
        %v711 = vld [vmem:[%s398 + $0x610] sm:$0xff]
        %v712 = vld [vmem:[%s398 + $0x618] sm:$0xff]
        %v713 = vld [vmem:[%s398 + $0x620] sm:$0xff]
        %v714 = vld [vmem:[%s398 + $0x628] sm:$0xff]
        %v715 = vld [vmem:[%s398 + $0x630] sm:$0xff]
        %v716 = vld [vmem:[%s398 + $0x638] sm:$0xff]
        %v717 = vld [vmem:[%s398 + $0x640] sm:$0xff]
        %v718 = vld [vmem:[%s398 + $0x648] sm:$0xff]
        %v719 = vld [vmem:[%s398 + $0x650] sm:$0xff]
        %v720 = vld [vmem:[%s398 + $0x658] sm:$0xff]
        %v721 = vld [vmem:[%s398 + $0x660] sm:$0xff]
        %v722 = vld [vmem:[%s398 + $0x668] sm:$0xff]
        %v723 = vld [vmem:[%s398 + $0x670] sm:$0xff]
        %v724 = vld [vmem:[%s398 + $0x678] sm:$0xff]
        %v725 = vld [vmem:[%s398 + $0x680] sm:$0xff]
        %v726 = vld [vmem:[%s398 + $0x688] sm:$0xff]
        %v727 = vld [vmem:[%s398 + $0x690] sm:$0xff]
        %v728 = vld [vmem:[%s398 + $0x698] sm:$0xff]
        %v729 = vld [vmem:[%s398 + $0x6a0] sm:$0xff]
        %v730 = vld [vmem:[%s398 + $0x6a8] sm:$0xff]
        %v731 = vld [vmem:[%s398 + $0x6b0] sm:$0xff]
        %v732 = vld [vmem:[%s398 + $0x6b8] sm:$0xff]
        %v733 = vld [vmem:[%s398 + $0x6c0] sm:$0xff]
        %v734 = vld [vmem:[%s398 + $0x6c8] sm:$0xff]
        %v735 = vld [vmem:[%s398 + $0x6d0] sm:$0xff]
        %v736 = vld [vmem:[%s398 + $0x6d8] sm:$0xff]
        %v737 = vld [vmem:[%s398 + $0x6e0] sm:$0xff]
        %v738 = vld [vmem:[%s398 + $0x6e8] sm:$0xff]
        %v739 = vld [vmem:[%s398 + $0x6f0] sm:$0xff]
        %v740 = vld [vmem:[%s398 + $0x6f8] sm:$0xff]
        %v741 = vld [vmem:[%s398 + $0x700] sm:$0xff]
        %v742 = vld [vmem:[%s398 + $0x708] sm:$0xff]
        %v743 = vld [vmem:[%s398 + $0x710] sm:$0xff]
        %v744 = vld [vmem:[%s398 + $0x718] sm:$0xff]
        %v745 = vld [vmem:[%s398 + $0x720] sm:$0xff]
        %v746 = vld [vmem:[%s398 + $0x728] sm:$0xff]
        %v747 = vld [vmem:[%s398 + $0x730] sm:$0xff]
        %v748 = vld [vmem:[%s398 + $0x738] sm:$0xff]
        %v749 = vld [vmem:[%s398 + $0x740] sm:$0xff]
        %v750 = vld [vmem:[%s398 + $0x748] sm:$0xff]
        %v751 = vld [vmem:[%s398 + $0x750] sm:$0xff]
        %v752 = vld [vmem:[%s398 + $0x758] sm:$0xff]
        %v753 = vld [vmem:[%s398 + $0x760] sm:$0xff]
        %v754 = vld [vmem:[%s398 + $0x768] sm:$0xff]
        %v755 = vld [vmem:[%s398 + $0x770] sm:$0xff]
        %v756 = vld [vmem:[%s398 + $0x778] sm:$0xff]
        %v757 = vld [vmem:[%s398 + $0x780] sm:$0xff]
        %v758 = vld [vmem:[%s398 + $0x788] sm:$0xff]
        %v759 = vld [vmem:[%s398 + $0x790] sm:$0xff]
        %v760 = vld [vmem:[%s398 + $0x798] sm:$0xff]
        %v761 = vld [vmem:[%s398 + $0x7a0] sm:$0xff]
        %v762 = vld [vmem:[%s398 + $0x7a8] sm:$0xff]
        %v763 = vld [vmem:[%s398 + $0x7b0] sm:$0xff]
        %v764 = vld [vmem:[%s398 + $0x7b8] sm:$0xff]
        %v765 = vld [vmem:[%s398 + $0x7c0] sm:$0xff]
        %v766 = vld [vmem:[%s398 + $0x7c8] sm:$0xff]
        %v767 = vld [vmem:[%s398 + $0x7d0] sm:$0xff]
        %v768 = vld [vmem:[%s398 + $0x7d8] sm:$0xff]
        %v769 = vld [vmem:[%s398 + $0x7e0] sm:$0xff]
        %v770 = vld [vmem:[%s398 + $0x7e8] sm:$0xff]
        %v771 = vld [vmem:[%s398 + $0x7f0] sm:$0xff]
        %v772 = vld [vmem:[%s398 + $0x7f8] sm:$0xff]
        %v773 = vld [vmem:[%s398 + $0x800] sm:$0xff]
        %v774 = vld [vmem:[%s398 + $0x808] sm:$0xff]
        %v775 = vld [vmem:[%s398 + $0x810] sm:$0xff]
        %v776 = vld [vmem:[%s398 + $0x818] sm:$0xff]
        %v777 = vld [vmem:[%s398 + $0x820] sm:$0xff]
        %v778 = vld [vmem:[%s398 + $0x828] sm:$0xff]
        %v779 = vld [vmem:[%s398 + $0x830] sm:$0xff]
        %v780 = vld [vmem:[%s398 + $0x838] sm:$0xff]
        %v781 = vld [vmem:[%s398 + $0x840] sm:$0xff]
        %v782 = vld [vmem:[%s398 + $0x848] sm:$0xff]
        %v783 = vld [vmem:[%s398 + $0x850] sm:$0xff]
        %v784 = vld [vmem:[%s398 + $0x858] sm:$0xff]
        %v785 = vld [vmem:[%s398 + $0x860] sm:$0xff]
        %v786 = vld [vmem:[%s398 + $0x868] sm:$0xff]
        %v787 = vld [vmem:[%s398 + $0x870] sm:$0xff]
        %v788 = vld [vmem:[%s398 + $0x878] sm:$0xff]
        %v789 = vld [vmem:[%s398 + $0x880] sm:$0xff]
        %v790 = vld [vmem:[%s398 + $0x888] sm:$0xff]
        %v791 = vld [vmem:[%s398 + $0x890] sm:$0xff]
        %v792 = vld [vmem:[%s398 + $0x898] sm:$0xff]
        %v793 = vld [vmem:[%s398 + $0x8a0] sm:$0xff]
        %v794 = vld [vmem:[%s398 + $0x8a8] sm:$0xff]
        %v795 = vld [vmem:[%s398 + $0x8b0] sm:$0xff]
        %v796 = vld [vmem:[%s398 + $0x8b8] sm:$0xff]
        %v797 = vld [vmem:[%s398 + $0x8c0] sm:$0xff]
        %v798 = vld [vmem:[%s398 + $0x8c8] sm:$0xff]
        %v799 = vld [vmem:[%s398 + $0x8d0] sm:$0xff]
        %v800 = vld [vmem:[%s398 + $0x8d8] sm:$0xff]
        %v801 = vld [vmem:[%s398 + $0x8e0] sm:$0xff]
        %v802 = vld [vmem:[%s398 + $0x8e8] sm:$0xff]
        %v803 = vld [vmem:[%s398 + $0x8f0] sm:$0xff]
        %v804 = vld [vmem:[%s398 + $0x8f8] sm:$0xff]
        %v805 = vld [vmem:[%s398 + $0x900] sm:$0xff]
        %v806 = vld [vmem:[%s398 + $0x908] sm:$0xff]
        %v807 = vld [vmem:[%s398 + $0x910] sm:$0xff]
        %v808 = vld [vmem:[%s398 + $0x918] sm:$0xff]
        %v809 = vld [vmem:[%s398 + $0x920] sm:$0xff]
        %v810 = vld [vmem:[%s398 + $0x928] sm:$0xff]
        %v811 = vld [vmem:[%s398 + $0x930] sm:$0xff]
        %v812 = vld [vmem:[%s398 + $0x938] sm:$0xff]
        %v813 = vld [vmem:[%s398 + $0x940] sm:$0xff]
        %v814 = vld [vmem:[%s398 + $0x948] sm:$0xff]
        %v815 = vld [vmem:[%s398 + $0x950] sm:$0xff]
        %v816 = vld [vmem:[%s398 + $0x958] sm:$0xff]
        %v817 = vld [vmem:[%s398 + $0x960] sm:$0xff]
        %v818 = vld [vmem:[%s398 + $0x968] sm:$0xff]
        %v819 = vld [vmem:[%s398 + $0x970] sm:$0xff]
        %v820 = vld [vmem:[%s398 + $0x978] sm:$0xff]
        %v821 = vld [vmem:[%s398 + $0x980] sm:$0xff]
        %v822 = vld [vmem:[%s398 + $0x988] sm:$0xff]
        %v823 = vld [vmem:[%s398 + $0x990] sm:$0xff]
        %v824 = vld [vmem:[%s398 + $0x998] sm:$0xff]
        %v825 = vld [vmem:[%s398 + $0x9a0] sm:$0xff]
        %v826 = vld [vmem:[%s398 + $0x9a8] sm:$0xff]
        %v827 = vld [vmem:[%s398 + $0x9b0] sm:$0xff]
        %v828 = vld [vmem:[%s398 + $0x9b8] sm:$0xff]
        %v829 = vld [vmem:[%s398 + $0x9c0] sm:$0xff]
        %v830 = vld [vmem:[%s398 + $0x9c8] sm:$0xff]
        %v831 = vld [vmem:[%s398 + $0x9d0] sm:$0xff]
        %v832 = vld [vmem:[%s398 + $0x9d8] sm:$0xff]
        %v833 = vld [vmem:[%s398 + $0x9e0] sm:$0xff]
        %v834 = vld [vmem:[%s398 + $0x9e8] sm:$0xff]
        %v835 = vld [vmem:[%s398 + $0x9f0] sm:$0xff]
        %v836 = vld [vmem:[%s398 + $0x9f8] sm:$0xff]
        %v837 = vld [vmem:[%s398 + $0xa00] sm:$0xff]
        %v838 = vld [vmem:[%s398 + $0xa08] sm:$0xff]
        %v839 = vld [vmem:[%s398 + $0xa10] sm:$0xff]
        %v840 = vld [vmem:[%s398 + $0xa18] sm:$0xff]
        %v841 = vld [vmem:[%s398 + $0xa20] sm:$0xff]
        %v842 = vld [vmem:[%s398 + $0xa28] sm:$0xff]
        %v843 = vld [vmem:[%s398 + $0xa30] sm:$0xff]
        %v844 = vld [vmem:[%s398 + $0xa38] sm:$0xff]
        %v845 = vld [vmem:[%s398 + $0xa40] sm:$0xff]
        %v846 = vld [vmem:[%s398 + $0xa48] sm:$0xff]
        %v847 = vld [vmem:[%s398 + $0xa50] sm:$0xff]
        %v848 = vld [vmem:[%s398 + $0xa58] sm:$0xff]
        %v849 = vld [vmem:[%s398 + $0xa60] sm:$0xff]
        %v850 = vld [vmem:[%s398 + $0xa68] sm:$0xff]
        %v851 = vld [vmem:[%s398 + $0xa70] sm:$0xff]
        %v852 = vld [vmem:[%s398 + $0xa78] sm:$0xff]
        %v853 = vld [vmem:[%s398 + $0xa80] sm:$0xff]
        %v854 = vld [vmem:[%s398 + $0xa88] sm:$0xff]
        %v855 = vld [vmem:[%s398 + $0xa90] sm:$0xff]
        %v856 = vld [vmem:[%s398 + $0xa98] sm:$0xff]
        %v857 = vld [vmem:[%s398 + $0xaa0] sm:$0xff]
        %v858 = vld [vmem:[%s398 + $0xaa8] sm:$0xff]
        %v859 = vld [vmem:[%s398 + $0xab0] sm:$0xff]
        %v860 = vld [vmem:[%s398 + $0xab8] sm:$0xff]
        %v861 = vld [vmem:[%s398 + $0xac0] sm:$0xff]
        %v862 = vld [vmem:[%s398 + $0xac8] sm:$0xff]
        %v863 = vld [vmem:[%s398 + $0xad0] sm:$0xff]
        %v864 = vld [vmem:[%s398 + $0xad8] sm:$0xff]
        %v865 = vld [vmem:[%s398 + $0xae0] sm:$0xff]
        %v866 = vld [vmem:[%s398 + $0xae8] sm:$0xff]
        %v867 = vld [vmem:[%s398 + $0xaf0] sm:$0xff]
        %v868 = vld [vmem:[%s398 + $0xaf8] sm:$0xff]
        %v869 = vld [vmem:[%s398 + $0xb00] sm:$0xff]
        %v870 = vld [vmem:[%s398 + $0xb08] sm:$0xff]
        %v871 = vld [vmem:[%s398 + $0xb10] sm:$0xff]
        %v872 = vld [vmem:[%s398 + $0xb18] sm:$0xff]
        %v873 = vld [vmem:[%s398 + $0xb20] sm:$0xff]
        %v874 = vld [vmem:[%s398 + $0xb28] sm:$0xff]
        %v875 = vld [vmem:[%s398 + $0xb30] sm:$0xff]
        %v876 = vld [vmem:[%s398 + $0xb38] sm:$0xff]
        %v877 = vld [vmem:[%s398 + $0xb40] sm:$0xff]
        %v878 = vld [vmem:[%s398 + $0xb48] sm:$0xff]
        %v879 = vld [vmem:[%s398 + $0xb50] sm:$0xff]
        %v880 = vld [vmem:[%s398 + $0xb58] sm:$0xff]
        %v881 = vld [vmem:[%s398 + $0xb60] sm:$0xff]
        %v882 = vld [vmem:[%s398 + $0xb68] sm:$0xff]
        %v883 = vld [vmem:[%s398 + $0xb70] sm:$0xff]
        %v884 = vld [vmem:[%s398 + $0xb78] sm:$0xff]
        %v885 = vld [vmem:[%s398 + $0xb80] sm:$0xff]
        %v886 = vld [vmem:[%s398 + $0xb88] sm:$0xff]
        %v887 = vld [vmem:[%s398 + $0xb90] sm:$0xff]
        %v888 = vld [vmem:[%s398 + $0xb98] sm:$0xff]
        %v889 = vld [vmem:[%s398 + $0xba0] sm:$0xff]
        %v890 = vld [vmem:[%s398 + $0xba8] sm:$0xff]
        %v891 = vld [vmem:[%s398 + $0xbb0] sm:$0xff]
        %v892 = vld [vmem:[%s398 + $0xbb8] sm:$0xff]
        %v893 = vld [vmem:[%s398 + $0xbc0] sm:$0xff]
        %v894 = vld [vmem:[%s398 + $0xbc8] sm:$0xff]
        %v895 = vld [vmem:[%s398 + $0xbd0] sm:$0xff]
        %v896 = vld [vmem:[%s398 + $0xbd8] sm:$0xff]
        %v897 = vld [vmem:[%s398 + $0xbe0] sm:$0xff]
        %v898 = vld [vmem:[%s398 + $0xbe8] sm:$0xff]
        %v899 = vld [vmem:[%s398 + $0xbf0] sm:$0xff]
        %v900 = vld [vmem:[%s398 + $0xbf8] sm:$0xff]
        %v901 = vld [vmem:[%s398 + $0xc00] sm:$0xff]
        %v902 = vld [vmem:[%s398 + $0xc08] sm:$0xff]
        %v903 = vld [vmem:[%s398 + $0xc10] sm:$0xff]
        %v904 = vld [vmem:[%s398 + $0xc18] sm:$0xff]
        %v905 = vld [vmem:[%s398 + $0xc20] sm:$0xff]
        %v906 = vld [vmem:[%s398 + $0xc28] sm:$0xff]
        %v907 = vld [vmem:[%s398 + $0xc30] sm:$0xff]
        %v908 = vld [vmem:[%s398 + $0xc38] sm:$0xff]
        %v909 = vld [vmem:[%s398 + $0xc40] sm:$0xff]
        %v910 = vld [vmem:[%s398 + $0xc48] sm:$0xff]
        %v911 = vld [vmem:[%s398 + $0xc50] sm:$0xff]
        %v912 = vld [vmem:[%s398 + $0xc58] sm:$0xff]
        %v913 = vld [vmem:[%s398 + $0xc60] sm:$0xff]
        %v914 = vld [vmem:[%s398 + $0xc68] sm:$0xff]
        %v915 = vld [vmem:[%s398 + $0xc70] sm:$0xff]
        %v916 = vld [vmem:[%s398 + $0xc78] sm:$0xff]
        %v917 = vld [vmem:[%s398 + $0xc80] sm:$0xff]
        %v918 = vld [vmem:[%s398 + $0xc88] sm:$0xff]
        %v919 = vld [vmem:[%s398 + $0xc90] sm:$0xff]
        %v920 = vld [vmem:[%s398 + $0xc98] sm:$0xff]
        %v921 = vld [vmem:[%s398 + $0xca0] sm:$0xff]
        %v922 = vld [vmem:[%s398 + $0xca8] sm:$0xff]
        %v923 = vld [vmem:[%s398 + $0xcb0] sm:$0xff]
        %v924 = vld [vmem:[%s398 + $0xcb8] sm:$0xff]
        %v925 = vld [vmem:[%s398 + $0xcc0] sm:$0xff]
        %v926 = vld [vmem:[%s398 + $0xcc8] sm:$0xff]
        %v927 = vld [vmem:[%s398 + $0xcd0] sm:$0xff]
        %v928 = vld [vmem:[%s398 + $0xcd8] sm:$0xff]
        %v929 = vld [vmem:[%s398 + $0xce0] sm:$0xff]
        %v930 = vld [vmem:[%s398 + $0xce8] sm:$0xff]
        %v931 = vld [vmem:[%s398 + $0xcf0] sm:$0xff]
        %v932 = vld [vmem:[%s398 + $0xcf8] sm:$0xff]
        %v933 = vld [vmem:[%s398 + $0xd00] sm:$0xff]
        %v934 = vld [vmem:[%s398 + $0xd08] sm:$0xff]
        %v935 = vld [vmem:[%s398 + $0xd10] sm:$0xff]
        %v936 = vld [vmem:[%s398 + $0xd18] sm:$0xff]
        %v937 = vld [vmem:[%s398 + $0xd20] sm:$0xff]
        %v938 = vld [vmem:[%s398 + $0xd28] sm:$0xff]
        %v939 = vld [vmem:[%s398 + $0xd30] sm:$0xff]
        %v940 = vld [vmem:[%s398 + $0xd38] sm:$0xff]
        %v941 = vld [vmem:[%s398 + $0xd40] sm:$0xff]
        %v942 = vld [vmem:[%s398 + $0xd48] sm:$0xff]
        %v943 = vld [vmem:[%s398 + $0xd50] sm:$0xff]
        %v944 = vld [vmem:[%s398 + $0xd58] sm:$0xff]
        %v945 = vld [vmem:[%s398 + $0xd60] sm:$0xff]
        %v946 = vld [vmem:[%s398 + $0xd68] sm:$0xff]
        %v947 = vld [vmem:[%s398 + $0xd70] sm:$0xff]
        %v948 = vld [vmem:[%s398 + $0xd78] sm:$0xff]
        %v949 = vld [vmem:[%s398 + $0xd80] sm:$0xff]
        %v950 = vld [vmem:[%s398 + $0xd88] sm:$0xff]
        %v951 = vld [vmem:[%s398 + $0xd90] sm:$0xff]
        %v952 = vld [vmem:[%s398 + $0xd98] sm:$0xff]
        %v953 = vld [vmem:[%s398 + $0xda0] sm:$0xff]
        %v954 = vld [vmem:[%s398 + $0xda8] sm:$0xff]
        %v955 = vld [vmem:[%s398 + $0xdb0] sm:$0xff]
        %v956 = vld [vmem:[%s398 + $0xdb8] sm:$0xff]
        %v957 = vld [vmem:[%s398 + $0xdc0] sm:$0xff]
        %v958 = vld [vmem:[%s398 + $0xdc8] sm:$0xff]
        %v959 = vld [vmem:[%s398 + $0xdd0] sm:$0xff]
        %v960 = vld [vmem:[%s398 + $0xdd8] sm:$0xff]
        %v961 = vld [vmem:[%s398 + $0xde0] sm:$0xff]
        %v962 = vld [vmem:[%s398 + $0xde8] sm:$0xff]
        %v963 = vld [vmem:[%s398 + $0xdf0] sm:$0xff]
        %v964 = vld [vmem:[%s398 + $0xdf8] sm:$0xff]
        %v965 = vld [vmem:[%s398 + $0xe00] sm:$0xff]
        %v966 = vld [vmem:[%s398 + $0xe08] sm:$0xff]
        %v967 = vld [vmem:[%s398 + $0xe10] sm:$0xff]
        %v968 = vld [vmem:[%s398 + $0xe18] sm:$0xff]
        %v969 = vld [vmem:[%s398 + $0xe20] sm:$0xff]
        %v970 = vld [vmem:[%s398 + $0xe28] sm:$0xff]
        %v971 = vld [vmem:[%s398 + $0xe30] sm:$0xff]
        %v972 = vld [vmem:[%s398 + $0xe38] sm:$0xff]
        %v973 = vld [vmem:[%s398 + $0xe40] sm:$0xff]
        %v974 = vld [vmem:[%s398 + $0xe48] sm:$0xff]
        %v975 = vld [vmem:[%s398 + $0xe50] sm:$0xff]
        %v976 = vld [vmem:[%s398 + $0xe58] sm:$0xff]
        %v977 = vld [vmem:[%s398 + $0xe60] sm:$0xff]
        %v978 = vld [vmem:[%s398 + $0xe68] sm:$0xff]
        %v979 = vld [vmem:[%s398 + $0xe70] sm:$0xff]
        %v980 = vld [vmem:[%s398 + $0xe78] sm:$0xff]
        %v981 = vld [vmem:[%s398 + $0xe80] sm:$0xff]
        %v982 = vld [vmem:[%s398 + $0xe88] sm:$0xff]
        %v983 = vld [vmem:[%s398 + $0xe90] sm:$0xff]
        %v984 = vld [vmem:[%s398 + $0xe98] sm:$0xff]
        %v985 = vld [vmem:[%s398 + $0xea0] sm:$0xff]
        %v986 = vld [vmem:[%s398 + $0xea8] sm:$0xff]
        %v987 = vld [vmem:[%s398 + $0xeb0] sm:$0xff]
        %v988 = vld [vmem:[%s398 + $0xeb8] sm:$0xff]
        %v989 = vld [vmem:[%s398 + $0xec0] sm:$0xff]
        %v990 = vld [vmem:[%s398 + $0xec8] sm:$0xff]
        %v991 = vld [vmem:[%s398 + $0xed0] sm:$0xff]
        %v992 = vld [vmem:[%s398 + $0xed8] sm:$0xff]
        %v993 = vld [vmem:[%s398 + $0xee0] sm:$0xff]
        %v994 = vld [vmem:[%s398 + $0xee8] sm:$0xff]
        %v995 = vld [vmem:[%s398 + $0xef0] sm:$0xff]
        %v996 = vld [vmem:[%s398 + $0xef8] sm:$0xff]
        %v997 = vld [vmem:[%s398 + $0xf00] sm:$0xff]
        %v998 = vld [vmem:[%s398 + $0xf08] sm:$0xff]
        %v999 = vld [vmem:[%s398 + $0xf10] sm:$0xff]
        %v1000 = vld [vmem:[%s398 + $0xf18] sm:$0xff]
        %v1001 = vld [vmem:[%s398 + $0xf20] sm:$0xff]
        %v1002 = vld [vmem:[%s398 + $0xf28] sm:$0xff]
        %v1003 = vld [vmem:[%s398 + $0xf30] sm:$0xff]
        %v1004 = vld [vmem:[%s398 + $0xf38] sm:$0xff]
        %v1005 = vld [vmem:[%s398 + $0xf40] sm:$0xff]
        %v1006 = vld [vmem:[%s398 + $0xf48] sm:$0xff]
        %v1007 = vld [vmem:[%s398 + $0xf50] sm:$0xff]
        %v1008 = vld [vmem:[%s398 + $0xf58] sm:$0xff]
        %v1009 = vld [vmem:[%s398 + $0xf60] sm:$0xff]
        %v1010 = vld [vmem:[%s398 + $0xf68] sm:$0xff]
        %v1011 = vld [vmem:[%s398 + $0xf70] sm:$0xff]
        %v1012 = vld [vmem:[%s398 + $0xf78] sm:$0xff]
        %v1013 = vld [vmem:[%s398 + $0xf80] sm:$0xff]
        %v1014 = vld [vmem:[%s398 + $0xf88] sm:$0xff]
        %v1015 = vld [vmem:[%s398 + $0xf90] sm:$0xff]
        %v1016 = vld [vmem:[%s398 + $0xf98] sm:$0xff]
        %v1017 = vld [vmem:[%s398 + $0xfa0] sm:$0xff]
        %v1018 = vld [vmem:[%s398 + $0xfa8] sm:$0xff]
        %v1019 = vld [vmem:[%s398 + $0xfb0] sm:$0xff]
        %v1020 = vld [vmem:[%s398 + $0xfb8] sm:$0xff]
        %v1021 = vld [vmem:[%s398 + $0xfc0] sm:$0xff]
        %v1022 = vld [vmem:[%s398 + $0xfc8] sm:$0xff]
        %v1023 = vld [vmem:[%s398 + $0xfd0] sm:$0xff]
        %v1024 = vld [vmem:[%s398 + $0xfd8] sm:$0xff]
        %v1025 = vld [vmem:[%s398 + $0xfe0] sm:$0xff]
        %v1026 = vld [vmem:[%s398 + $0xfe8] sm:$0xff]
        %v1027 = vld [vmem:[%s398 + $0xff0] sm:$0xff]
        %v1028 = vld [vmem:[%s398 + $0xff8] sm:$0xff]
        %v1029 = vld [vmem:[%s398 + $0x1000] sm:$0xff]
        %v1030 = vld [vmem:[%s398 + $0x1008] sm:$0xff]
        %v1031 = vld [vmem:[%s398 + $0x1010] sm:$0xff]
        %v1032 = vld [vmem:[%s398 + $0x1018] sm:$0xff]
        %v1033 = vld [vmem:[%s398 + $0x1020] sm:$0xff]
        %v1034 = vld [vmem:[%s398 + $0x1028] sm:$0xff]
        %v1035 = vld [vmem:[%s398 + $0x1030] sm:$0xff]
        %v1036 = vld [vmem:[%s398 + $0x1038] sm:$0xff]
        %v1037 = vld [vmem:[%s398 + $0x1040] sm:$0xff]
        %v1038 = vld [vmem:[%s398 + $0x1048] sm:$0xff]
        %v1039 = vld [vmem:[%s398 + $0x1050] sm:$0xff]
        %v1040 = vld [vmem:[%s398 + $0x1058] sm:$0xff]
        %v1041 = vld [vmem:[%s398 + $0x1060] sm:$0xff]
        %v1042 = vld [vmem:[%s398 + $0x1068] sm:$0xff]
        %v1043 = vld [vmem:[%s398 + $0x1070] sm:$0xff]
        %v1044 = vld [vmem:[%s398 + $0x1078] sm:$0xff]
        %v1045 = vld [vmem:[%s398 + $0x1080] sm:$0xff]
        %v1046 = vld [vmem:[%s398 + $0x1088] sm:$0xff]
        %v1047 = vld [vmem:[%s398 + $0x1090] sm:$0xff]
        %v1048 = vld [vmem:[%s398 + $0x1098] sm:$0xff]
        %v1049 = vld [vmem:[%s398 + $0x10a0] sm:$0xff]
        %v1050 = vld [vmem:[%s398 + $0x10a8] sm:$0xff]
        %v1051 = vld [vmem:[%s398 + $0x10b0] sm:$0xff]
        %v1052 = vld [vmem:[%s398 + $0x10b8] sm:$0xff]
        %v1053 = vld [vmem:[%s398 + $0x10c0] sm:$0xff]
        %v1054 = vld [vmem:[%s398 + $0x10c8] sm:$0xff]
        %v1055 = vld [vmem:[%s398 + $0x10d0] sm:$0xff]
        %v1056 = vld [vmem:[%s398 + $0x10d8] sm:$0xff]
        %v1057 = vld [vmem:[%s398 + $0x10e0] sm:$0xff]
        %v1058 = vld [vmem:[%s398 + $0x10e8] sm:$0xff]
        %v1059 = vld [vmem:[%s398 + $0x10f0] sm:$0xff]
        %v1060 = vld [vmem:[%s398 + $0x10f8] sm:$0xff]
        %v1061 = vld [vmem:[%s398 + $0x1100] sm:$0xff]
        %v1062 = vld [vmem:[%s398 + $0x1108] sm:$0xff]
        %v1063 = vld [vmem:[%s398 + $0x1110] sm:$0xff]
        %v1064 = vld [vmem:[%s398 + $0x1118] sm:$0xff]
        %v1065 = vld [vmem:[%s398 + $0x1120] sm:$0xff]
        %v1066 = vld [vmem:[%s398 + $0x1128] sm:$0xff]
        %v1067 = vld [vmem:[%s398 + $0x1130] sm:$0xff]
        %v1068 = vld [vmem:[%s398 + $0x1138] sm:$0xff]
        %v1069 = vld [vmem:[%s398 + $0x1140] sm:$0xff]
        %v1070 = vld [vmem:[%s398 + $0x1148] sm:$0xff]
        %v1071 = vld [vmem:[%s398 + $0x1150] sm:$0xff]
        %v1072 = vld [vmem:[%s398 + $0x1158] sm:$0xff]
        %v1073 = vld [vmem:[%s398 + $0x1160] sm:$0xff]
        %v1074 = vld [vmem:[%s398 + $0x1168] sm:$0xff]
        %v1075 = vld [vmem:[%s398 + $0x1170] sm:$0xff]
        %v1076 = vld [vmem:[%s398 + $0x1178] sm:$0xff]
        %v1077 = vld [vmem:[%s398 + $0x1180] sm:$0xff]
        %v1078 = vld [vmem:[%s398 + $0x1188] sm:$0xff]
        %v1079 = vld [vmem:[%s398 + $0x1190] sm:$0xff]
        %v1080 = vld [vmem:[%s398 + $0x1198] sm:$0xff]
        %v1081 = vld [vmem:[%s398 + $0x11a0] sm:$0xff]
        %v1082 = vld [vmem:[%s398 + $0x11a8] sm:$0xff]
        %v1083 = vld [vmem:[%s398 + $0x11b0] sm:$0xff]
        %v1084 = vld [vmem:[%s398 + $0x11b8] sm:$0xff]
        %v1085 = vld [vmem:[%s398 + $0x11c0] sm:$0xff]
        %v1086 = vld [vmem:[%s398 + $0x11c8] sm:$0xff]
        %v1087 = vld [vmem:[%s398 + $0x11d0] sm:$0xff]
        %v1088 = vld [vmem:[%s398 + $0x11d8] sm:$0xff]
        %v1089 = vld [vmem:[%s398 + $0x11e0] sm:$0xff]
        %v1090 = vld [vmem:[%s398 + $0x11e8] sm:$0xff]
        %v1091 = vld [vmem:[%s398 + $0x11f0] sm:$0xff]
        %v1092 = vld [vmem:[%s398 + $0x11f8] sm:$0xff]
        %v1093 = vld [vmem:[%s398 + $0x1200] sm:$0xff]
        %v1094 = vld [vmem:[%s398 + $0x1208] sm:$0xff]
        %v1095 = vld [vmem:[%s398 + $0x1210] sm:$0xff]
        %v1096 = vld [vmem:[%s398 + $0x1218] sm:$0xff]
        %v1097 = vld [vmem:[%s398 + $0x1220] sm:$0xff]
        %v1098 = vld [vmem:[%s398 + $0x1228] sm:$0xff]
        %v1099 = vld [vmem:[%s398 + $0x1230] sm:$0xff]
        %v1100 = vld [vmem:[%s398 + $0x1238] sm:$0xff]
        %v1101 = vld [vmem:[%s398 + $0x1240] sm:$0xff]
        %v1102 = vld [vmem:[%s398 + $0x1248] sm:$0xff]
        %v1103 = vld [vmem:[%s398 + $0x1250] sm:$0xff]
        %v1104 = vld [vmem:[%s398 + $0x1258] sm:$0xff]
        %v1105 = vld [vmem:[%s398 + $0x1260] sm:$0xff]
        %v1106 = vld [vmem:[%s398 + $0x1268] sm:$0xff]
        %v1107 = vld [vmem:[%s398 + $0x1270] sm:$0xff]
        %v1108 = vld [vmem:[%s398 + $0x1278] sm:$0xff]
        %v1109 = vld [vmem:[%s398 + $0x1280] sm:$0xff]
        %v1110 = vld [vmem:[%s398 + $0x1288] sm:$0xff]
        %v1111 = vld [vmem:[%s398 + $0x1290] sm:$0xff]
        %v1112 = vld [vmem:[%s398 + $0x1298] sm:$0xff]
        %v1113 = vld [vmem:[%s398 + $0x12a0] sm:$0xff]
        %v1114 = vld [vmem:[%s398 + $0x12a8] sm:$0xff]
        %v1115 = vld [vmem:[%s398 + $0x12b0] sm:$0xff]
        %v1116 = vld [vmem:[%s398 + $0x12b8] sm:$0xff]
        %v1117 = vld [vmem:[%s398 + $0x12c0] sm:$0xff]
        %v1118 = vld [vmem:[%s398 + $0x12c8] sm:$0xff]
        %v1119 = vld [vmem:[%s398 + $0x12d0] sm:$0xff]
        %v1120 = vld [vmem:[%s398 + $0x12d8] sm:$0xff]
        %v1121 = vld [vmem:[%s398 + $0x12e0] sm:$0xff]
        %v1122 = vld [vmem:[%s398 + $0x12e8] sm:$0xff]
        %v1123 = vld [vmem:[%s398 + $0x12f0] sm:$0xff]
        %v1124 = vld [vmem:[%s398 + $0x12f8] sm:$0xff]
        %v1125 = vld [vmem:[%s398 + $0x1300] sm:$0xff]
        %v1126 = vld [vmem:[%s398 + $0x1308] sm:$0xff]
        %v1127 = vld [vmem:[%s398 + $0x1310] sm:$0xff]
        %v1128 = vld [vmem:[%s398 + $0x1318] sm:$0xff]
        %v1129 = vld [vmem:[%s398 + $0x1320] sm:$0xff]
        %v1130 = vld [vmem:[%s398 + $0x1328] sm:$0xff]
        %v1131 = vld [vmem:[%s398 + $0x1330] sm:$0xff]
        %v1132 = vld [vmem:[%s398 + $0x1338] sm:$0xff]
        %v1133 = vld [vmem:[%s398 + $0x1340] sm:$0xff]
        %v1134 = vld [vmem:[%s398 + $0x1348] sm:$0xff]
        %v1135 = vld [vmem:[%s398 + $0x1350] sm:$0xff]
        %v1136 = vld [vmem:[%s398 + $0x1358] sm:$0xff]
        %v1137 = vld [vmem:[%s398 + $0x1360] sm:$0xff]
        %v1138 = vld [vmem:[%s398 + $0x1368] sm:$0xff]
        %v1139 = vld [vmem:[%s398 + $0x1370] sm:$0xff]
        %v1140 = vld [vmem:[%s398 + $0x1378] sm:$0xff]
        %v1141 = vld [vmem:[%s398 + $0x1380] sm:$0xff]
        %v1142 = vld [vmem:[%s398 + $0x1388] sm:$0xff]
        %v1143 = vld [vmem:[%s398 + $0x1390] sm:$0xff]
        %v1144 = vld [vmem:[%s398 + $0x1398] sm:$0xff]
        %v1145 = vld [vmem:[%s398 + $0x13a0] sm:$0xff]
        %v1146 = vld [vmem:[%s398 + $0x13a8] sm:$0xff]
        %v1147 = vld [vmem:[%s398 + $0x13b0] sm:$0xff]
        %v1148 = vld [vmem:[%s398 + $0x13b8] sm:$0xff]
        %v1149 = vld [vmem:[%s398 + $0x13c0] sm:$0xff]
        %v1150 = vld [vmem:[%s398 + $0x13c8] sm:$0xff]
        %v1151 = vld [vmem:[%s398 + $0x13d0] sm:$0xff]
        %v1152 = vld [vmem:[%s398 + $0x13d8] sm:$0xff]
        %v1153 = vld [vmem:[%s398 + $0x13e0] sm:$0xff]
        %v1154 = vld [vmem:[%s398 + $0x13e8] sm:$0xff]
        %v1155 = vld [vmem:[%s398 + $0x13f0] sm:$0xff]
        %v1156 = vld [vmem:[%s398 + $0x13f8] sm:$0xff]
        %v1157 = vld [vmem:[%s398 + $0x1400] sm:$0xff]
        %v1158 = vld [vmem:[%s398 + $0x1408] sm:$0xff]
        %v1159 = vld [vmem:[%s398 + $0x1410] sm:$0xff]
        %v1160 = vld [vmem:[%s398 + $0x1418] sm:$0xff]
        %v1161 = vld [vmem:[%s398 + $0x1420] sm:$0xff]
        %v1162 = vld [vmem:[%s398 + $0x1428] sm:$0xff]
        %v1163 = vld [vmem:[%s398 + $0x1430] sm:$0xff]
        %v1164 = vld [vmem:[%s398 + $0x1438] sm:$0xff]
        %v1165 = vld [vmem:[%s398 + $0x1440] sm:$0xff]
        %v1166 = vld [vmem:[%s398 + $0x1448] sm:$0xff]
        %v1167 = vld [vmem:[%s398 + $0x1450] sm:$0xff]
        %v1168 = vld [vmem:[%s398 + $0x1458] sm:$0xff]
        %v1169 = vld [vmem:[%s398 + $0x1460] sm:$0xff]
        %v1170 = vld [vmem:[%s398 + $0x1468] sm:$0xff]
        %v1171 = vld [vmem:[%s398 + $0x1470] sm:$0xff]
        %v1172 = vld [vmem:[%s398 + $0x1478] sm:$0xff]
        %v1173 = vld [vmem:[%s398 + $0x1480] sm:$0xff]
        %v1174 = vld [vmem:[%s398 + $0x1488] sm:$0xff]
        %v1175 = vld [vmem:[%s398 + $0x1490] sm:$0xff]
        %v1176 = vld [vmem:[%s398 + $0x1498] sm:$0xff]
        %v1177 = vld [vmem:[%s398 + $0x14a0] sm:$0xff]
        %v1178 = vld [vmem:[%s398 + $0x14a8] sm:$0xff]
        %v1179 = vld [vmem:[%s398 + $0x14b0] sm:$0xff]
        %v1180 = vld [vmem:[%s398 + $0x14b8] sm:$0xff]
        %v1181 = vld [vmem:[%s398 + $0x14c0] sm:$0xff]
        %v1182 = vld [vmem:[%s398 + $0x14c8] sm:$0xff]
        %v1183 = vld [vmem:[%s398 + $0x14d0] sm:$0xff]
        %v1184 = vld [vmem:[%s398 + $0x14d8] sm:$0xff]
        %v1185 = vld [vmem:[%s398 + $0x14e0] sm:$0xff]
        %v1186 = vld [vmem:[%s398 + $0x14e8] sm:$0xff]
        %v1187 = vld [vmem:[%s398 + $0x14f0] sm:$0xff]
        %v1188 = vld [vmem:[%s398 + $0x14f8] sm:$0xff]
        %v1189 = vld [vmem:[%s398 + $0x1500] sm:$0xff]
        %v1190 = vld [vmem:[%s398 + $0x1508] sm:$0xff]
        %v1191 = vld [vmem:[%s398 + $0x1510] sm:$0xff]
        %v1192 = vld [vmem:[%s398 + $0x1518] sm:$0xff]
        %v1193 = vld [vmem:[%s398 + $0x1520] sm:$0xff]
        %v1194 = vld [vmem:[%s398 + $0x1528] sm:$0xff]
        %v1195 = vld [vmem:[%s398 + $0x1530] sm:$0xff]
        %v1196 = vld [vmem:[%s398 + $0x1538] sm:$0xff]
        %v1197 = vld [vmem:[%s398 + $0x1540] sm:$0xff]
        %v1198 = vld [vmem:[%s398 + $0x1548] sm:$0xff]
        %v1199 = vld [vmem:[%s398 + $0x1550] sm:$0xff]
        %v1200 = vld [vmem:[%s398 + $0x1558] sm:$0xff]
        %v1201 = vld [vmem:[%s398 + $0x1560] sm:$0xff]
        %v1202 = vld [vmem:[%s398 + $0x1568] sm:$0xff]
        %v1203 = vld [vmem:[%s398 + $0x1570] sm:$0xff]
        %v1204 = vld [vmem:[%s398 + $0x1578] sm:$0xff]
        %v1205 = vld [vmem:[%s398 + $0x1580] sm:$0xff]
        %v1206 = vld [vmem:[%s398 + $0x1588] sm:$0xff]
        %v1207 = vld [vmem:[%s398 + $0x1590] sm:$0xff]
        %v1208 = vld [vmem:[%s398 + $0x1598] sm:$0xff]
        %v1209 = vld [vmem:[%s398 + $0x15a0] sm:$0xff]
        %v1210 = vld [vmem:[%s398 + $0x15a8] sm:$0xff]
        %v1211 = vld [vmem:[%s398 + $0x15b0] sm:$0xff]
        %v1212 = vld [vmem:[%s398 + $0x15b8] sm:$0xff]
        %v1213 = vld [vmem:[%s398 + $0x15c0] sm:$0xff]
        %v1214 = vld [vmem:[%s398 + $0x15c8] sm:$0xff]
        %v1215 = vld [vmem:[%s398 + $0x15d0] sm:$0xff]
        %v1216 = vld [vmem:[%s398 + $0x15d8] sm:$0xff]
        %v1217 = vld [vmem:[%s398 + $0x15e0] sm:$0xff]
        %v1218 = vld [vmem:[%s398 + $0x15e8] sm:$0xff]
        %v1219 = vld [vmem:[%s398 + $0x15f0] sm:$0xff]
        %v1220 = vld [vmem:[%s398 + $0x15f8] sm:$0xff]
        %v1221 = vld [vmem:[%s398 + $0x1600] sm:$0xff]
        %v1222 = vld [vmem:[%s398 + $0x1608] sm:$0xff]
        %v1223 = vld [vmem:[%s398 + $0x1610] sm:$0xff]
        %v1224 = vld [vmem:[%s398 + $0x1618] sm:$0xff]
        %v1225 = vld [vmem:[%s398 + $0x1620] sm:$0xff]
        %v1226 = vld [vmem:[%s398 + $0x1628] sm:$0xff]
        %v1227 = vld [vmem:[%s398 + $0x1630] sm:$0xff]
        %v1228 = vld [vmem:[%s398 + $0x1638] sm:$0xff]
        %v1229 = vld [vmem:[%s398 + $0x1640] sm:$0xff]
        %v1230 = vld [vmem:[%s398 + $0x1648] sm:$0xff]
        %v1231 = vld [vmem:[%s398 + $0x1650] sm:$0xff]
        %v1232 = vld [vmem:[%s398 + $0x1658] sm:$0xff]
        %v1233 = vld [vmem:[%s398 + $0x1660] sm:$0xff]
        %v1234 = vld [vmem:[%s398 + $0x1668] sm:$0xff]
        %v1235 = vld [vmem:[%s398 + $0x1670] sm:$0xff]
        %v1236 = vld [vmem:[%s398 + $0x1678] sm:$0xff]
        %v1237 = vld [vmem:[%s398 + $0x1680] sm:$0xff]
        %v1238 = vld [vmem:[%s398 + $0x1688] sm:$0xff]
        %v1239 = vld [vmem:[%s398 + $0x1690] sm:$0xff]
        %v1240 = vld [vmem:[%s398 + $0x1698] sm:$0xff]
        %v1241 = vld [vmem:[%s398 + $0x16a0] sm:$0xff]
        %v1242 = vld [vmem:[%s398 + $0x16a8] sm:$0xff]
        %v1243 = vld [vmem:[%s398 + $0x16b0] sm:$0xff]
        %v1244 = vld [vmem:[%s398 + $0x16b8] sm:$0xff]
        %v1245 = vld [vmem:[%s398 + $0x16c0] sm:$0xff]
        %v1246 = vld [vmem:[%s398 + $0x16c8] sm:$0xff]
        %v1247 = vld [vmem:[%s398 + $0x16d0] sm:$0xff]
        %v1248 = vld [vmem:[%s398 + $0x16d8] sm:$0xff]
        %v1249 = vld [vmem:[%s398 + $0x16e0] sm:$0xff]
        %v1250 = vld [vmem:[%s398 + $0x16e8] sm:$0xff]
        %v1251 = vld [vmem:[%s398 + $0x16f0] sm:$0xff]
        %v1252 = vld [vmem:[%s398 + $0x16f8] sm:$0xff]
        %v1253 = vld [vmem:[%s398 + $0x1700] sm:$0xff]
        %v1254 = vld [vmem:[%s398 + $0x1708] sm:$0xff]
        %v1255 = vld [vmem:[%s398 + $0x1710] sm:$0xff]
        %v1256 = vld [vmem:[%s398 + $0x1718] sm:$0xff]
        %v1257 = vld [vmem:[%s398 + $0x1720] sm:$0xff]
        %v1258 = vld [vmem:[%s398 + $0x1728] sm:$0xff]
        %v1259 = vld [vmem:[%s398 + $0x1730] sm:$0xff]
        %v1260 = vld [vmem:[%s398 + $0x1738] sm:$0xff]
        %v1261 = vld [vmem:[%s398 + $0x1740] sm:$0xff]
        %v1262 = vld [vmem:[%s398 + $0x1748] sm:$0xff]
        %v1263 = vld [vmem:[%s398 + $0x1750] sm:$0xff]
        %v1264 = vld [vmem:[%s398 + $0x1758] sm:$0xff]
        %v1265 = vld [vmem:[%s398 + $0x1760] sm:$0xff]
        %v1266 = vld [vmem:[%s398 + $0x1768] sm:$0xff]
        %v1267 = vld [vmem:[%s398 + $0x1770] sm:$0xff]
        %v1268 = vld [vmem:[%s398 + $0x1778] sm:$0xff]
        %v1269 = vld [vmem:[%s398 + $0x1780] sm:$0xff]
        %v1270 = vld [vmem:[%s398 + $0x1788] sm:$0xff]
        %v1271 = vld [vmem:[%s398 + $0x1790] sm:$0xff]
        %v1272 = vld [vmem:[%s398 + $0x1798] sm:$0xff]
        %v1273 = vld [vmem:[%s398 + $0x17a0] sm:$0xff]
        %v1274 = vld [vmem:[%s398 + $0x17a8] sm:$0xff]
        %v1275 = vld [vmem:[%s398 + $0x17b0] sm:$0xff]
        %v1276 = vld [vmem:[%s398 + $0x17b8] sm:$0xff]
        %v1277 = vld [vmem:[%s398 + $0x17c0] sm:$0xff]
        %v1278 = vld [vmem:[%s398 + $0x17c8] sm:$0xff]
        %v1279 = vld [vmem:[%s398 + $0x17d0] sm:$0xff]
        %v1280 = vld [vmem:[%s398 + $0x17d8] sm:$0xff]
        %v1281 = vld [vmem:[%s398 + $0x17e0] sm:$0xff]
        %v1282 = vld [vmem:[%s398 + $0x17e8] sm:$0xff]
        %v1283 = vld [vmem:[%s398 + $0x17f0] sm:$0xff]
        %v1284 = vld [vmem:[%s398 + $0x17f8] sm:$0xff]
        %v1285 = vld [vmem:[%s398 + $0x1800] sm:$0xff]
        %v1286 = vld [vmem:[%s398 + $0x1808] sm:$0xff]
        %v1287 = vld [vmem:[%s398 + $0x1810] sm:$0xff]
        %v1288 = vld [vmem:[%s398 + $0x1818] sm:$0xff]
        %v1289 = vld [vmem:[%s398 + $0x1820] sm:$0xff]
        %v1290 = vld [vmem:[%s398 + $0x1828] sm:$0xff]
        %v1291 = vld [vmem:[%s398 + $0x1830] sm:$0xff]
        %v1292 = vld [vmem:[%s398 + $0x1838] sm:$0xff]
        %v1293 = vld [vmem:[%s398 + $0x1840] sm:$0xff]
        %v1294 = vld [vmem:[%s398 + $0x1848] sm:$0xff]
        %v1295 = vld [vmem:[%s398 + $0x1850] sm:$0xff]
        %v1296 = vld [vmem:[%s398 + $0x1858] sm:$0xff]
        %v1297 = vld [vmem:[%s398 + $0x1860] sm:$0xff]
        %v1298 = vld [vmem:[%s398 + $0x1868] sm:$0xff]
        %v1299 = vld [vmem:[%s398 + $0x1870] sm:$0xff]
        %v1300 = vld [vmem:[%s398 + $0x1878] sm:$0xff]
        %v1301 = vld [vmem:[%s398 + $0x1880] sm:$0xff]
        %v1302 = vld [vmem:[%s398 + $0x1888] sm:$0xff]
        %v1303 = vld [vmem:[%s398 + $0x1890] sm:$0xff]
        %v1304 = vld [vmem:[%s398 + $0x1898] sm:$0xff]
        %v1305 = vld [vmem:[%s398 + $0x18a0] sm:$0xff]
        %v1306 = vld [vmem:[%s398 + $0x18a8] sm:$0xff]
        %v1307 = vld [vmem:[%s398 + $0x18b0] sm:$0xff]
        %v1308 = vld [vmem:[%s398 + $0x18b8] sm:$0xff]
        %v1309 = vld [vmem:[%s398 + $0x18c0] sm:$0xff]
        %v1310 = vld [vmem:[%s398 + $0x18c8] sm:$0xff]
        %v1311 = vld [vmem:[%s398 + $0x18d0] sm:$0xff]
        %v1312 = vld [vmem:[%s398 + $0x18d8] sm:$0xff]
        %v1313 = vld [vmem:[%s398 + $0x18e0] sm:$0xff]
        %v1314 = vld [vmem:[%s398 + $0x18e8] sm:$0xff]
        %v1315 = vld [vmem:[%s398 + $0x18f0] sm:$0xff]
        %v1316 = vld [vmem:[%s398 + $0x18f8] sm:$0xff]
        %v1317 = vld [vmem:[%s398 + $0x1900] sm:$0xff]
        %v1318 = vld [vmem:[%s398 + $0x1908] sm:$0xff]
        %v1319 = vld [vmem:[%s398 + $0x1910] sm:$0xff]
        %v1320 = vld [vmem:[%s398 + $0x1918] sm:$0xff]
        %v1321 = vld [vmem:[%s398 + $0x1920] sm:$0xff]
        %v1322 = vld [vmem:[%s398 + $0x1928] sm:$0xff]
        %v1323 = vld [vmem:[%s398 + $0x1930] sm:$0xff]
        %v1324 = vld [vmem:[%s398 + $0x1938] sm:$0xff]
        %v1325 = vld [vmem:[%s398 + $0x1940] sm:$0xff]
        %v1326 = vld [vmem:[%s398 + $0x1948] sm:$0xff]
        %v1327 = vld [vmem:[%s398 + $0x1950] sm:$0xff]
        %v1328 = vld [vmem:[%s398 + $0x1958] sm:$0xff]
        %v1329 = vld [vmem:[%s398 + $0x1960] sm:$0xff]
        %v1330 = vld [vmem:[%s398 + $0x1968] sm:$0xff]
        %v1331 = vld [vmem:[%s398 + $0x1970] sm:$0xff]
        %v1332 = vld [vmem:[%s398 + $0x1978] sm:$0xff]
        %v1333 = vld [vmem:[%s398 + $0x1980] sm:$0xff]
        %v1334 = vld [vmem:[%s398 + $0x1988] sm:$0xff]
        %v1335 = vld [vmem:[%s398 + $0x1990] sm:$0xff]
        %v1336 = vld [vmem:[%s398 + $0x1998] sm:$0xff]
        %v1337 = vld [vmem:[%s398 + $0x19a0] sm:$0xff]
        %v1338 = vld [vmem:[%s398 + $0x19a8] sm:$0xff]
        %v1339 = vld [vmem:[%s398 + $0x19b0] sm:$0xff]
        %v1340 = vld [vmem:[%s398 + $0x19b8] sm:$0xff]
        %v1341 = vld [vmem:[%s398 + $0x19c0] sm:$0xff]
        %v1342 = vld [vmem:[%s398 + $0x19c8] sm:$0xff]
        %v1343 = vld [vmem:[%s398 + $0x19d0] sm:$0xff]
        %v1344 = vld [vmem:[%s398 + $0x19d8] sm:$0xff]
        %v1345 = vld [vmem:[%s398 + $0x19e0] sm:$0xff]
        %v1346 = vld [vmem:[%s398 + $0x19e8] sm:$0xff]
        %v1347 = vld [vmem:[%s398 + $0x19f0] sm:$0xff]
        %v1348 = vld [vmem:[%s398 + $0x19f8] sm:$0xff]
        %v1349 = vld [vmem:[%s398 + $0x1a00] sm:$0xff]
        %v1350 = vld [vmem:[%s398 + $0x1a08] sm:$0xff]
        %v1351 = vld [vmem:[%s398 + $0x1a10] sm:$0xff]
        %v1352 = vld [vmem:[%s398 + $0x1a18] sm:$0xff]
        %v1353 = vld [vmem:[%s398 + $0x1a20] sm:$0xff]
        %v1354 = vld [vmem:[%s398 + $0x1a28] sm:$0xff]
        %v1355 = vld [vmem:[%s398 + $0x1a30] sm:$0xff]
        %v1356 = vld [vmem:[%s398 + $0x1a38] sm:$0xff]
        %v1357 = vld [vmem:[%s398 + $0x1a40] sm:$0xff]
        %v1358 = vld [vmem:[%s398 + $0x1a48] sm:$0xff]
        %v1359 = vld [vmem:[%s398 + $0x1a50] sm:$0xff]
        %v1360 = vld [vmem:[%s398 + $0x1a58] sm:$0xff]
        %v1361 = vld [vmem:[%s398 + $0x1a60] sm:$0xff]
        %v1362 = vld [vmem:[%s398 + $0x1a68] sm:$0xff]
        %v1363 = vld [vmem:[%s398 + $0x1a70] sm:$0xff]
        %v1364 = vld [vmem:[%s398 + $0x1a78] sm:$0xff]
        %v1365 = vld [vmem:[%s398 + $0x1a80] sm:$0xff]
        %v1366 = vld [vmem:[%s398 + $0x1a88] sm:$0xff]
        %v1367 = vld [vmem:[%s398 + $0x1a90] sm:$0xff]
        %v1368 = vld [vmem:[%s398 + $0x1a98] sm:$0xff]
        %v1369 = vld [vmem:[%s398 + $0x1aa0] sm:$0xff]
        %v1370 = vld [vmem:[%s398 + $0x1aa8] sm:$0xff]
        %v1371 = vld [vmem:[%s398 + $0x1ab0] sm:$0xff]
        %v1372 = vld [vmem:[%s398 + $0x1ab8] sm:$0xff]
        %v1373 = vld [vmem:[%s398 + $0x1ac0] sm:$0xff]
        %v1374 = vld [vmem:[%s398 + $0x1ac8] sm:$0xff]
        %v1375 = vld [vmem:[%s398 + $0x1ad0] sm:$0xff]
        %v1376 = vld [vmem:[%s398 + $0x1ad8] sm:$0xff]
        %v1377 = vld [vmem:[%s398 + $0x1ae0] sm:$0xff]
        %v1378 = vld [vmem:[%s398 + $0x1ae8] sm:$0xff]
        %v1379 = vld [vmem:[%s398 + $0x1af0] sm:$0xff]
        %v1380 = vld [vmem:[%s398 + $0x1af8] sm:$0xff]
        %v1381 = vld [vmem:[%s398 + $0x1b00] sm:$0xff]
        %v1382 = vld [vmem:[%s398 + $0x1b08] sm:$0xff]
        %v1383 = vld [vmem:[%s398 + $0x1b10] sm:$0xff]
        %v1384 = vld [vmem:[%s398 + $0x1b18] sm:$0xff]
        %v1385 = vld [vmem:[%s398 + $0x1b20] sm:$0xff]
        %v1386 = vld [vmem:[%s398 + $0x1b28] sm:$0xff]
        %v1387 = vld [vmem:[%s398 + $0x1b30] sm:$0xff]
        %v1388 = vld [vmem:[%s398 + $0x1b38] sm:$0xff]
        %v1389 = vld [vmem:[%s398 + $0x1b40] sm:$0xff]
        %v1390 = vld [vmem:[%s398 + $0x1b48] sm:$0xff]
        %v1391 = vld [vmem:[%s398 + $0x1b50] sm:$0xff]
        %v1392 = vld [vmem:[%s398 + $0x1b58] sm:$0xff]
        %v1393 = vld [vmem:[%s398 + $0x1b60] sm:$0xff]
        %v1394 = vld [vmem:[%s398 + $0x1b68] sm:$0xff]
        %v1395 = vld [vmem:[%s398 + $0x1b70] sm:$0xff]
        %v1396 = vld [vmem:[%s398 + $0x1b78] sm:$0xff]
        %v1397 = vld [vmem:[%s398 + $0x1b80] sm:$0xff]
        %v1398 = vld [vmem:[%s398 + $0x1b88] sm:$0xff]
        %v1399 = vld [vmem:[%s398 + $0x1b90] sm:$0xff]
        %v1400 = vld [vmem:[%s398 + $0x1b98] sm:$0xff]
        %v1401 = vld [vmem:[%s398 + $0x1ba0] sm:$0xff]
        %v1402 = vld [vmem:[%s398 + $0x1ba8] sm:$0xff]
        %v1403 = vld [vmem:[%s398 + $0x1bb0] sm:$0xff]
        %v1404 = vld [vmem:[%s398 + $0x1bb8] sm:$0xff]
        %v1405 = vld [vmem:[%s398 + $0x1bc0] sm:$0xff]
        %v1406 = vld [vmem:[%s398 + $0x1bc8] sm:$0xff]
        %v1407 = vld [vmem:[%s398 + $0x1bd0] sm:$0xff]
        %v1408 = vld [vmem:[%s398 + $0x1bd8] sm:$0xff]
        %v1409 = vld [vmem:[%s398 + $0x1be0] sm:$0xff]
        %v1410 = vld [vmem:[%s398 + $0x1be8] sm:$0xff]
        %v1411 = vld [vmem:[%s398 + $0x1bf0] sm:$0xff]
        %v1412 = vld [vmem:[%s398 + $0x1bf8] sm:$0xff]
        %v1413 = vld [vmem:[%s398 + $0x1c00] sm:$0xff]
        %v1414 = vld [vmem:[%s398 + $0x1c08] sm:$0xff]
        %v1415 = vld [vmem:[%s398 + $0x1c10] sm:$0xff]
        %v1416 = vld [vmem:[%s398 + $0x1c18] sm:$0xff]
        %v1417 = vld [vmem:[%s398 + $0x1c20] sm:$0xff]
        %v1418 = vld [vmem:[%s398 + $0x1c28] sm:$0xff]
        %v1419 = vld [vmem:[%s398 + $0x1c30] sm:$0xff]
        %v1420 = vld [vmem:[%s398 + $0x1c38] sm:$0xff]
        %v1421 = vld [vmem:[%s398 + $0x1c40] sm:$0xff]
        %v1422 = vld [vmem:[%s398 + $0x1c48] sm:$0xff]
        %v1423 = vld [vmem:[%s398 + $0x1c50] sm:$0xff]
        %v1424 = vld [vmem:[%s398 + $0x1c58] sm:$0xff]
        %v1425 = vld [vmem:[%s398 + $0x1c60] sm:$0xff]
        %v1426 = vld [vmem:[%s398 + $0x1c68] sm:$0xff]
        %v1427 = vld [vmem:[%s398 + $0x1c70] sm:$0xff]
        %v1428 = vld [vmem:[%s398 + $0x1c78] sm:$0xff]
        %v1429 = vld [vmem:[%s398 + $0x1c80] sm:$0xff]
        %v1430 = vld [vmem:[%s398 + $0x1c88] sm:$0xff]
        %v1431 = vld [vmem:[%s398 + $0x1c90] sm:$0xff]
        %v1432 = vld [vmem:[%s398 + $0x1c98] sm:$0xff]
        %v1433 = vld [vmem:[%s398 + $0x1ca0] sm:$0xff]
        %v1434 = vld [vmem:[%s398 + $0x1ca8] sm:$0xff]
        %v1435 = vld [vmem:[%s398 + $0x1cb0] sm:$0xff]
        %v1436 = vld [vmem:[%s398 + $0x1cb8] sm:$0xff]
        %v1437 = vld [vmem:[%s398 + $0x1cc0] sm:$0xff]
        %v1438 = vld [vmem:[%s398 + $0x1cc8] sm:$0xff]
        %v1439 = vld [vmem:[%s398 + $0x1cd0] sm:$0xff]
        %v1440 = vld [vmem:[%s398 + $0x1cd8] sm:$0xff]
        %v1441 = vld [vmem:[%s398 + $0x1ce0] sm:$0xff]
        %v1442 = vld [vmem:[%s398 + $0x1ce8] sm:$0xff]
        %v1443 = vld [vmem:[%s398 + $0x1cf0] sm:$0xff]
        %v1444 = vld [vmem:[%s398 + $0x1cf8] sm:$0xff]
        %v1445 = vld [vmem:[%s398 + $0x1d00] sm:$0xff]
        %v1446 = vld [vmem:[%s398 + $0x1d08] sm:$0xff]
        %v1447 = vld [vmem:[%s398 + $0x1d10] sm:$0xff]
        %v1448 = vld [vmem:[%s398 + $0x1d18] sm:$0xff]
        %v1449 = vld [vmem:[%s398 + $0x1d20] sm:$0xff]
        %v1450 = vld [vmem:[%s398 + $0x1d28] sm:$0xff]
        %v1451 = vld [vmem:[%s398 + $0x1d30] sm:$0xff]
        %v1452 = vld [vmem:[%s398 + $0x1d38] sm:$0xff]
        %v1453 = vld [vmem:[%s398 + $0x1d40] sm:$0xff]
        %v1454 = vld [vmem:[%s398 + $0x1d48] sm:$0xff]
        %v1455 = vld [vmem:[%s398 + $0x1d50] sm:$0xff]
        %v1456 = vld [vmem:[%s398 + $0x1d58] sm:$0xff]
        %v1457 = vld [vmem:[%s398 + $0x1d60] sm:$0xff]
        %v1458 = vld [vmem:[%s398 + $0x1d68] sm:$0xff]
        %v1459 = vld [vmem:[%s398 + $0x1d70] sm:$0xff]
        %v1460 = vld [vmem:[%s398 + $0x1d78] sm:$0xff]
        %v1461 = vld [vmem:[%s398 + $0x1d80] sm:$0xff]
        %v1462 = vld [vmem:[%s398 + $0x1d88] sm:$0xff]
        %v1463 = vld [vmem:[%s398 + $0x1d90] sm:$0xff]
        %v1464 = vld [vmem:[%s398 + $0x1d98] sm:$0xff]
        %v1465 = vld [vmem:[%s398 + $0x1da0] sm:$0xff]
        %v1466 = vld [vmem:[%s398 + $0x1da8] sm:$0xff]
        %v1467 = vld [vmem:[%s398 + $0x1db0] sm:$0xff]
        %v1468 = vld [vmem:[%s398 + $0x1db8] sm:$0xff]
        %v1469 = vld [vmem:[%s398 + $0x1dc0] sm:$0xff]
        %v1470 = vld [vmem:[%s398 + $0x1dc8] sm:$0xff]
        %v1471 = vld [vmem:[%s398 + $0x1dd0] sm:$0xff]
        %v1472 = vld [vmem:[%s398 + $0x1dd8] sm:$0xff]
        %v1473 = vld [vmem:[%s398 + $0x1de0] sm:$0xff]
        %v1474 = vld [vmem:[%s398 + $0x1de8] sm:$0xff]
        %v1475 = vld [vmem:[%s398 + $0x1df0] sm:$0xff]
        %v1476 = vld [vmem:[%s398 + $0x1df8] sm:$0xff]
        %v1477 = vld [vmem:[%s398 + $0x1e00] sm:$0xff]
        %v1478 = vld [vmem:[%s398 + $0x1e08] sm:$0xff]
        %v1479 = vld [vmem:[%s398 + $0x1e10] sm:$0xff]
        %v1480 = vld [vmem:[%s398 + $0x1e18] sm:$0xff]
        %v1481 = vld [vmem:[%s398 + $0x1e20] sm:$0xff]
        %v1482 = vld [vmem:[%s398 + $0x1e28] sm:$0xff]
        %v1483 = vld [vmem:[%s398 + $0x1e30] sm:$0xff]
        %v1484 = vld [vmem:[%s398 + $0x1e38] sm:$0xff]
        %v1485 = vld [vmem:[%s398 + $0x1e40] sm:$0xff]
        %v1486 = vld [vmem:[%s398 + $0x1e48] sm:$0xff]
        %v1487 = vld [vmem:[%s398 + $0x1e50] sm:$0xff]
        %v1488 = vld [vmem:[%s398 + $0x1e58] sm:$0xff]
        %v1489 = vld [vmem:[%s398 + $0x1e60] sm:$0xff]
        %v1490 = vld [vmem:[%s398 + $0x1e68] sm:$0xff]
        %v1491 = vld [vmem:[%s398 + $0x1e70] sm:$0xff]
        %v1492 = vld [vmem:[%s398 + $0x1e78] sm:$0xff]
        %v1493 = vld [vmem:[%s398 + $0x1e80] sm:$0xff]
        %v1494 = vld [vmem:[%s398 + $0x1e88] sm:$0xff]
        %v1495 = vld [vmem:[%s398 + $0x1e90] sm:$0xff]
        %v1496 = vld [vmem:[%s398 + $0x1e98] sm:$0xff]
        %v1497 = vld [vmem:[%s398 + $0x1ea0] sm:$0xff]
        %v1498 = vld [vmem:[%s398 + $0x1ea8] sm:$0xff]
        %v1499 = vld [vmem:[%s398 + $0x1eb0] sm:$0xff]
        %v1500 = vld [vmem:[%s398 + $0x1eb8] sm:$0xff]
        %v1501 = vld [vmem:[%s398 + $0x1ec0] sm:$0xff]
        %v1502 = vld [vmem:[%s398 + $0x1ec8] sm:$0xff]
        %v1503 = vld [vmem:[%s398 + $0x1ed0] sm:$0xff]
        %v1504 = vld [vmem:[%s398 + $0x1ed8] sm:$0xff]
        %v1505 = vld [vmem:[%s398 + $0x1ee0] sm:$0xff]
        %v1506 = vld [vmem:[%s398 + $0x1ee8] sm:$0xff]
        %v1507 = vld [vmem:[%s398 + $0x1ef0] sm:$0xff]
        %v1508 = vld [vmem:[%s398 + $0x1ef8] sm:$0xff]
        %v1509 = vld [vmem:[%s398 + $0x1f00] sm:$0xff]
        %v1510 = vld [vmem:[%s398 + $0x1f08] sm:$0xff]
        %v1511 = vld [vmem:[%s398 + $0x1f10] sm:$0xff]
        %v1512 = vld [vmem:[%s398 + $0x1f18] sm:$0xff]
        %v1513 = vld [vmem:[%s398 + $0x1f20] sm:$0xff]
        %v1514 = vld [vmem:[%s398 + $0x1f28] sm:$0xff]
        %v1515 = vld [vmem:[%s398 + $0x1f30] sm:$0xff]
        %v1516 = vld [vmem:[%s398 + $0x1f38] sm:$0xff]
        %v1517 = vld [vmem:[%s398 + $0x1f40] sm:$0xff]
        %v1518 = vld [vmem:[%s398 + $0x1f48] sm:$0xff]
        %v1519 = vld [vmem:[%s398 + $0x1f50] sm:$0xff]
        %v1520 = vld [vmem:[%s398 + $0x1f58] sm:$0xff]
        %v1521 = vld [vmem:[%s398 + $0x1f60] sm:$0xff]
        %v1522 = vld [vmem:[%s398 + $0x1f68] sm:$0xff]
        %v1523 = vld [vmem:[%s398 + $0x1f70] sm:$0xff]
        %v1524 = vld [vmem:[%s398 + $0x1f78] sm:$0xff]
        %v1525 = vld [vmem:[%s398 + $0x1f80] sm:$0xff]
        %v1526 = vld [vmem:[%s398 + $0x1f88] sm:$0xff]
        %v1527 = vld [vmem:[%s398 + $0x1f90] sm:$0xff]
        %v1528 = vld [vmem:[%s398 + $0x1f98] sm:$0xff]
        %v1529 = vld [vmem:[%s398 + $0x1fa0] sm:$0xff]
        %v1530 = vld [vmem:[%s398 + $0x1fa8] sm:$0xff]
        %v1531 = vld [vmem:[%s398 + $0x1fb0] sm:$0xff]
        %v1532 = vld [vmem:[%s398 + $0x1fb8] sm:$0xff]
        %v1533 = vld [vmem:[%s398 + $0x1fc0] sm:$0xff]
        %v1534 = vld [vmem:[%s398 + $0x1fc8] sm:$0xff]
        %v1535 = vld [vmem:[%s398 + $0x1fd0] sm:$0xff]
        %v1536 = vld [vmem:[%s398 + $0x1fd8] sm:$0xff]
        %v1537 = vld [vmem:[%s398 + $0x1fe0] sm:$0xff]
        %v1538 = vld [vmem:[%s398 + $0x1fe8] sm:$0xff]
        %v1539 = vld [vmem:[%s398 + $0x1ff0] sm:$0xff]
        %v1540 = vld [vmem:[%s398 + $0x1ff8] sm:$0xff]
        %v1541 = vld [vmem:[%s398 + $0x2000] sm:$0xff]
        %v1542 = vld [vmem:[%s398 + $0x2008] sm:$0xff]
        %v1543 = vld [vmem:[%s398 + $0x2010] sm:$0xff]
        %v1544 = vld [vmem:[%s398 + $0x2018] sm:$0xff]
        %v1545 = vld [vmem:[%s398 + $0x2020] sm:$0xff]
        %v1546 = vld [vmem:[%s398 + $0x2028] sm:$0xff]
        %v1547 = vld [vmem:[%s398 + $0x2030] sm:$0xff]
        %v1548 = vld [vmem:[%s398 + $0x2038] sm:$0xff]
        %v1549 = vld [vmem:[%s398 + $0x2040] sm:$0xff]
        %v1550 = vld [vmem:[%s398 + $0x2048] sm:$0xff]
        %v1551 = vld [vmem:[%s398 + $0x2050] sm:$0xff]
        %v1552 = vld [vmem:[%s398 + $0x2058] sm:$0xff]
        %v1553 = vld [vmem:[%s398 + $0x2060] sm:$0xff]
        %v1554 = vld [vmem:[%s398 + $0x2068] sm:$0xff]
        %v1555 = vld [vmem:[%s398 + $0x2070] sm:$0xff]
        %v1556 = vld [vmem:[%s398 + $0x2078] sm:$0xff]
        %v1557 = vld [vmem:[%s398 + $0x2080] sm:$0xff]
        %v1558 = vld [vmem:[%s398 + $0x2088] sm:$0xff]
        %v1559 = vld [vmem:[%s398 + $0x2090] sm:$0xff]
        %v1560 = vld [vmem:[%s398 + $0x2098] sm:$0xff]
        %v1561 = vld [vmem:[%s398 + $0x20a0] sm:$0xff]
        %v1562 = vld [vmem:[%s398 + $0x20a8] sm:$0xff]
        %v1563 = vld [vmem:[%s398 + $0x20b0] sm:$0xff]
        %v1564 = vld [vmem:[%s398 + $0x20b8] sm:$0xff]
        %v1565 = vld [vmem:[%s398 + $0x20c0] sm:$0xff]
        %v1566 = vld [vmem:[%s398 + $0x20c8] sm:$0xff]
        %v1567 = vld [vmem:[%s398 + $0x20d0] sm:$0xff]
        %v1568 = vld [vmem:[%s398 + $0x20d8] sm:$0xff]
        %v1569 = vld [vmem:[%s398 + $0x20e0] sm:$0xff]
        %v1570 = vld [vmem:[%s398 + $0x20e8] sm:$0xff]
        %v1571 = vld [vmem:[%s398 + $0x20f0] sm:$0xff]
        %v1572 = vld [vmem:[%s398 + $0x20f8] sm:$0xff]
        %v1573 = vld [vmem:[%s398 + $0x2100] sm:$0xff]
        %v1574 = vld [vmem:[%s398 + $0x2108] sm:$0xff]
        %v1575 = vld [vmem:[%s398 + $0x2110] sm:$0xff]
        %v1576 = vld [vmem:[%s398 + $0x2118] sm:$0xff]
        %v1577 = vld [vmem:[%s398 + $0x2120] sm:$0xff]
        %v1578 = vld [vmem:[%s398 + $0x2128] sm:$0xff]
        %v1579 = vld [vmem:[%s398 + $0x2130] sm:$0xff]
        %v1580 = vld [vmem:[%s398 + $0x2138] sm:$0xff]
        %v1581 = vld [vmem:[%s398 + $0x2140] sm:$0xff]
        %v1582 = vld [vmem:[%s398 + $0x2148] sm:$0xff]
        %v1583 = vld [vmem:[%s398 + $0x2150] sm:$0xff]
        %v1584 = vld [vmem:[%s398 + $0x2158] sm:$0xff]
        %v1585 = vld [vmem:[%s398 + $0x2160] sm:$0xff]
        %v1586 = vld [vmem:[%s398 + $0x2168] sm:$0xff]
        %v1587 = vld [vmem:[%s398 + $0x2170] sm:$0xff]
        %v1588 = vld [vmem:[%s398 + $0x2178] sm:$0xff]
        %v1589 = vld [vmem:[%s398 + $0x2180] sm:$0xff]
        %v1590 = vld [vmem:[%s398 + $0x2188] sm:$0xff]
        %v1591 = vld [vmem:[%s398 + $0x2190] sm:$0xff]
        %v1592 = vld [vmem:[%s398 + $0x2198] sm:$0xff]
        %v1593 = vld [vmem:[%s398 + $0x21a0] sm:$0xff]
        %v1594 = vld [vmem:[%s398 + $0x21a8] sm:$0xff]
        %v1595 = vld [vmem:[%s398 + $0x21b0] sm:$0xff]
        %v1596 = vld [vmem:[%s398 + $0x21b8] sm:$0xff]
        %v1597 = vld [vmem:[%s398 + $0x21c0] sm:$0xff]
        %v1598 = vld [vmem:[%s398 + $0x21c8] sm:$0xff]
        %v1599 = vld [vmem:[%s398 + $0x21d0] sm:$0xff]
        %v1600 = vld [vmem:[%s398 + $0x21d8] sm:$0xff]
        %v1601 = vld [vmem:[%s398 + $0x21e0] sm:$0xff]
        %v1602 = vld [vmem:[%s398 + $0x21e8] sm:$0xff]
        %v1603 = vld [vmem:[%s398 + $0x21f0] sm:$0xff]
        %v1604 = vld [vmem:[%s398 + $0x21f8] sm:$0xff]
        %v1605 = vld [vmem:[%s398 + $0x2200] sm:$0xff]
        %v1606 = vld [vmem:[%s398 + $0x2208] sm:$0xff]
        %v1607 = vld [vmem:[%s398 + $0x2210] sm:$0xff]
        %v1608 = vld [vmem:[%s398 + $0x2218] sm:$0xff]
        %v1609 = vld [vmem:[%s398 + $0x2220] sm:$0xff]
        %v1610 = vld [vmem:[%s398 + $0x2228] sm:$0xff]
        %v1611 = vld [vmem:[%s398 + $0x2230] sm:$0xff]
        %v1612 = vld [vmem:[%s398 + $0x2238] sm:$0xff]
        %v1613 = vld [vmem:[%s398 + $0x2240] sm:$0xff]
        %v1614 = vld [vmem:[%s398 + $0x2248] sm:$0xff]
        %v1615 = vld [vmem:[%s398 + $0x2250] sm:$0xff]
        %v1616 = vld [vmem:[%s398 + $0x2258] sm:$0xff]
        %v1617 = vld [vmem:[%s398 + $0x2260] sm:$0xff]
        %v1618 = vld [vmem:[%s398 + $0x2268] sm:$0xff]
        %v1619 = vld [vmem:[%s398 + $0x2270] sm:$0xff]
        %v1620 = vld [vmem:[%s398 + $0x2278] sm:$0xff]
        %v1621 = vld [vmem:[%s398 + $0x2280] sm:$0xff]
        %v1622 = vld [vmem:[%s398 + $0x2288] sm:$0xff]
        %v1623 = vld [vmem:[%s398 + $0x2290] sm:$0xff]
        %v1624 = vld [vmem:[%s398 + $0x2298] sm:$0xff]
        %v1625 = vld [vmem:[%s398 + $0x22a0] sm:$0xff]
        %v1626 = vld [vmem:[%s398 + $0x22a8] sm:$0xff]
        %v1627 = vld [vmem:[%s398 + $0x22b0] sm:$0xff]
        %v1628 = vld [vmem:[%s398 + $0x22b8] sm:$0xff]
        %v1629 = vld [vmem:[%s398 + $0x22c0] sm:$0xff]
        %v1630 = vld [vmem:[%s398 + $0x22c8] sm:$0xff]
        %v1631 = vld [vmem:[%s398 + $0x22d0] sm:$0xff]
        %v1632 = vld [vmem:[%s398 + $0x22d8] sm:$0xff]
        %v1633 = vld [vmem:[%s398 + $0x22e0] sm:$0xff]
        %v1634 = vld [vmem:[%s398 + $0x22e8] sm:$0xff]
        %v1635 = vld [vmem:[%s398 + $0x22f0] sm:$0xff]
        %v1636 = vld [vmem:[%s398 + $0x22f8] sm:$0xff]
        %v1637 = vld [vmem:[%s398 + $0x2300] sm:$0xff]
        %v1638 = vld [vmem:[%s398 + $0x2308] sm:$0xff]
        %v1639 = vld [vmem:[%s398 + $0x2310] sm:$0xff]
        %v1640 = vld [vmem:[%s398 + $0x2318] sm:$0xff]
        %v1641 = vld [vmem:[%s398 + $0x2320] sm:$0xff]
        %v1642 = vld [vmem:[%s398 + $0x2328] sm:$0xff]
        %v1643 = vld [vmem:[%s398 + $0x2330] sm:$0xff]
        %v1644 = vld [vmem:[%s398 + $0x2338] sm:$0xff]
        %v1645 = vld [vmem:[%s398 + $0x2340] sm:$0xff]
        %v1646 = vld [vmem:[%s398 + $0x2348] sm:$0xff]
        %v1647 = vld [vmem:[%s398 + $0x2350] sm:$0xff]
        %v1648 = vld [vmem:[%s398 + $0x2358] sm:$0xff]
        %v1649 = vld [vmem:[%s398 + $0x2360] sm:$0xff]
        %v1650 = vld [vmem:[%s398 + $0x2368] sm:$0xff]
        %v1651 = vld [vmem:[%s398 + $0x2370] sm:$0xff]
        %v1652 = vld [vmem:[%s398 + $0x2378] sm:$0xff]
        %v1653 = vld [vmem:[%s398 + $0x2380] sm:$0xff]
        %v1654 = vld [vmem:[%s398 + $0x2388] sm:$0xff]
        %v1655 = vld [vmem:[%s398 + $0x2390] sm:$0xff]
        %v1656 = vld [vmem:[%s398 + $0x2398] sm:$0xff]
        %v1657 = vld [vmem:[%s398 + $0x23a0] sm:$0xff]
        %v1658 = vld [vmem:[%s398 + $0x23a8] sm:$0xff]
        %v1659 = vld [vmem:[%s398 + $0x23b0] sm:$0xff]
        %v1660 = vld [vmem:[%s398 + $0x23b8] sm:$0xff]
        %v1661 = vld [vmem:[%s398 + $0x23c0] sm:$0xff]
        %v1662 = vld [vmem:[%s398 + $0x23c8] sm:$0xff]
        %v1663 = vld [vmem:[%s398 + $0x23d0] sm:$0xff]
        %v1664 = vld [vmem:[%s398 + $0x23d8] sm:$0xff]
        %v1665 = vld [vmem:[%s398 + $0x23e0] sm:$0xff]
        %v1666 = vld [vmem:[%s398 + $0x23e8] sm:$0xff]
        %v1667 = vld [vmem:[%s398 + $0x23f0] sm:$0xff]
        %v1668 = vld [vmem:[%s398 + $0x23f8] sm:$0xff]
        %v1669 = vld [vmem:[%s398 + $0x2400] sm:$0xff]
        %v1670 = vld [vmem:[%s398 + $0x2408] sm:$0xff]
        %v1671 = vld [vmem:[%s398 + $0x2410] sm:$0xff]
        %v1672 = vld [vmem:[%s398 + $0x2418] sm:$0xff]
        %v1673 = vld [vmem:[%s398 + $0x2420] sm:$0xff]
        %v1674 = vld [vmem:[%s398 + $0x2428] sm:$0xff]
        %v1675 = vld [vmem:[%s398 + $0x2430] sm:$0xff]
        %v1676 = vld [vmem:[%s398 + $0x2438] sm:$0xff]
        %v1677 = vld [vmem:[%s398 + $0x2440] sm:$0xff]
        %v1678 = vld [vmem:[%s398 + $0x2448] sm:$0xff]
        %v1679 = vld [vmem:[%s398 + $0x2450] sm:$0xff]
        %v1680 = vld [vmem:[%s398 + $0x2458] sm:$0xff]
        %v1681 = vld [vmem:[%s398 + $0x2460] sm:$0xff]
        %v1682 = vld [vmem:[%s398 + $0x2468] sm:$0xff]
        %v1683 = vld [vmem:[%s398 + $0x2470] sm:$0xff]
        %v1684 = vld [vmem:[%s398 + $0x2478] sm:$0xff]
        %v1685 = vld [vmem:[%s398 + $0x2480] sm:$0xff]
        %v1686 = vld [vmem:[%s398 + $0x2488] sm:$0xff]
        %v1687 = vld [vmem:[%s398 + $0x2490] sm:$0xff]
        %v1688 = vld [vmem:[%s398 + $0x2498] sm:$0xff]
        %v1689 = vld [vmem:[%s398 + $0x24a0] sm:$0xff]
        %v1690 = vld [vmem:[%s398 + $0x24a8] sm:$0xff]
        %v1691 = vld [vmem:[%s398 + $0x24b0] sm:$0xff]
        %v1692 = vld [vmem:[%s398 + $0x24b8] sm:$0xff]
        %v1693 = vld [vmem:[%s398 + $0x24c0] sm:$0xff]
        %v1694 = vld [vmem:[%s398 + $0x24c8] sm:$0xff]
        %v1695 = vld [vmem:[%s398 + $0x24d0] sm:$0xff]
        %v1696 = vld [vmem:[%s398 + $0x24d8] sm:$0xff]
        %v1697 = vld [vmem:[%s398 + $0x24e0] sm:$0xff]
        %v1698 = vld [vmem:[%s398 + $0x24e8] sm:$0xff]
        %v1699 = vld [vmem:[%s398 + $0x24f0] sm:$0xff]
        %v1700 = vld [vmem:[%s398 + $0x24f8] sm:$0xff]
        %v1701 = vld [vmem:[%s398 + $0x2500] sm:$0xff]
        %v1702 = vld [vmem:[%s398 + $0x2508] sm:$0xff]
        %v1703 = vld [vmem:[%s398 + $0x2510] sm:$0xff]
        %v1704 = vld [vmem:[%s398 + $0x2518] sm:$0xff]
        %v1705 = vld [vmem:[%s398 + $0x2520] sm:$0xff]
        %v1706 = vld [vmem:[%s398 + $0x2528] sm:$0xff]
        %v1707 = vld [vmem:[%s398 + $0x2530] sm:$0xff]
        %v1708 = vld [vmem:[%s398 + $0x2538] sm:$0xff]
        %v1709 = vld [vmem:[%s398 + $0x2540] sm:$0xff]
        %v1710 = vld [vmem:[%s398 + $0x2548] sm:$0xff]
        %v1711 = vld [vmem:[%s398 + $0x2550] sm:$0xff]
        %v1712 = vld [vmem:[%s398 + $0x2558] sm:$0xff]
        %v1713 = vld [vmem:[%s398 + $0x2560] sm:$0xff]
        %v1714 = vld [vmem:[%s398 + $0x2568] sm:$0xff]
        %v1715 = vld [vmem:[%s398 + $0x2570] sm:$0xff]
        %v1716 = vld [vmem:[%s398 + $0x2578] sm:$0xff]
        %v1717 = vld [vmem:[%s398 + $0x2580] sm:$0xff]
        %v1718 = vld [vmem:[%s398 + $0x2588] sm:$0xff]
        %v1719 = vld [vmem:[%s398 + $0x2590] sm:$0xff]
        %v1720 = vld [vmem:[%s398 + $0x2598] sm:$0xff]
        %v1721 = vld [vmem:[%s398 + $0x25a0] sm:$0xff]
        %v1722 = vld [vmem:[%s398 + $0x25a8] sm:$0xff]
        %v1723 = vld [vmem:[%s398 + $0x25b0] sm:$0xff]
        %v1724 = vld [vmem:[%s398 + $0x25b8] sm:$0xff]
        %v1725 = vld [vmem:[%s398 + $0x25c0] sm:$0xff]
        %v1726 = vld [vmem:[%s398 + $0x25c8] sm:$0xff]
        %v1727 = vld [vmem:[%s398 + $0x25d0] sm:$0xff]
        %v1728 = vld [vmem:[%s398 + $0x25d8] sm:$0xff]
        %v1729 = vld [vmem:[%s398 + $0x25e0] sm:$0xff]
        %v1730 = vld [vmem:[%s398 + $0x25e8] sm:$0xff]
        %v1731 = vld [vmem:[%s398 + $0x25f0] sm:$0xff]
        %v1732 = vld [vmem:[%s398 + $0x25f8] sm:$0xff]
        %v1733 = vld [vmem:[%s398 + $0x2600] sm:$0xff]
        %v1734 = vld [vmem:[%s398 + $0x2608] sm:$0xff]
        %v1735 = vld [vmem:[%s398 + $0x2610] sm:$0xff]
        %v1736 = vld [vmem:[%s398 + $0x2618] sm:$0xff]
        %v1737 = vld [vmem:[%s398 + $0x2620] sm:$0xff]
        %v1738 = vld [vmem:[%s398 + $0x2628] sm:$0xff]
        %v1739 = vld [vmem:[%s398 + $0x2630] sm:$0xff]
        %v1740 = vld [vmem:[%s398 + $0x2638] sm:$0xff]
        %v1741 = vld [vmem:[%s398 + $0x2640] sm:$0xff]
        %v1742 = vld [vmem:[%s398 + $0x2648] sm:$0xff]
        %v1743 = vld [vmem:[%s398 + $0x2650] sm:$0xff]
        %v1744 = vld [vmem:[%s398 + $0x2658] sm:$0xff]
        %v1745 = vld [vmem:[%s398 + $0x2660] sm:$0xff]
        %v1746 = vld [vmem:[%s398 + $0x2668] sm:$0xff]
        %v1747 = vld [vmem:[%s398 + $0x2670] sm:$0xff]
        %v1748 = vld [vmem:[%s398 + $0x2678] sm:$0xff]
        %v1749 = vld [vmem:[%s398 + $0x2680] sm:$0xff]
        %v1750 = vld [vmem:[%s398 + $0x2688] sm:$0xff]
        %v1751 = vld [vmem:[%s398 + $0x2690] sm:$0xff]
        %v1752 = vld [vmem:[%s398 + $0x2698] sm:$0xff]
        %v1753 = vld [vmem:[%s398 + $0x26a0] sm:$0xff]
        %v1754 = vld [vmem:[%s398 + $0x26a8] sm:$0xff]
        %v1755 = vld [vmem:[%s398 + $0x26b0] sm:$0xff]
        %v1756 = vld [vmem:[%s398 + $0x26b8] sm:$0xff]
        %v1757 = vld [vmem:[%s398 + $0x26c0] sm:$0xff]
        %v1758 = vld [vmem:[%s398 + $0x26c8] sm:$0xff]
        %v1759 = vld [vmem:[%s398 + $0x26d0] sm:$0xff]
        %v1760 = vld [vmem:[%s398 + $0x26d8] sm:$0xff]
        %v1761 = vld [vmem:[%s398 + $0x26e0] sm:$0xff]
        %v1762 = vld [vmem:[%s398 + $0x26e8] sm:$0xff]
        %v1763 = vld [vmem:[%s398 + $0x26f0] sm:$0xff]
        %v1764 = vld [vmem:[%s398 + $0x26f8] sm:$0xff]
        %v1765 = vld [vmem:[%s398 + $0x2700] sm:$0xff]
        %v1766 = vld [vmem:[%s398 + $0x2708] sm:$0xff]
        %v1767 = vld [vmem:[%s398 + $0x2710] sm:$0xff]
        %v1768 = vld [vmem:[%s398 + $0x2718] sm:$0xff]
        %v1769 = vld [vmem:[%s398 + $0x2720] sm:$0xff]
        %v1770 = vld [vmem:[%s398 + $0x2728] sm:$0xff]
        %v1771 = vld [vmem:[%s398 + $0x2730] sm:$0xff]
        %v1772 = vld [vmem:[%s398 + $0x2738] sm:$0xff]
        %v1773 = vld [vmem:[%s398 + $0x2740] sm:$0xff]
        %v1774 = vld [vmem:[%s398 + $0x2748] sm:$0xff]
        %v1775 = vld [vmem:[%s398 + $0x2750] sm:$0xff]
        %v1776 = vld [vmem:[%s398 + $0x2758] sm:$0xff]
        %v1777 = vld [vmem:[%s398 + $0x2760] sm:$0xff]
        %v1778 = vld [vmem:[%s398 + $0x2768] sm:$0xff]
        %v1779 = vld [vmem:[%s398 + $0x2770] sm:$0xff]
        %v1780 = vld [vmem:[%s398 + $0x2778] sm:$0xff]
        %v1781 = vld [vmem:[%s398 + $0x2780] sm:$0xff]
        %v1782 = vld [vmem:[%s398 + $0x2788] sm:$0xff]
        %v1783 = vld [vmem:[%s398 + $0x2790] sm:$0xff]
        %v1784 = vld [vmem:[%s398 + $0x2798] sm:$0xff]
        %v1785 = vld [vmem:[%s398 + $0x27a0] sm:$0xff]
        %v1786 = vld [vmem:[%s398 + $0x27a8] sm:$0xff]
        %v1787 = vld [vmem:[%s398 + $0x27b0] sm:$0xff]
        %v1788 = vld [vmem:[%s398 + $0x27b8] sm:$0xff]
        %v1789 = vld [vmem:[%s398 + $0x27c0] sm:$0xff]
        %v1790 = vld [vmem:[%s398 + $0x27c8] sm:$0xff]
        %v1791 = vld [vmem:[%s398 + $0x27d0] sm:$0xff]
        %v1792 = vld [vmem:[%s398 + $0x27d8] sm:$0xff]
        %v1793 = vld [vmem:[%s398 + $0x27e0] sm:$0xff]
        %v1794 = vld [vmem:[%s398 + $0x27e8] sm:$0xff]
        %v1795 = vld [vmem:[%s398 + $0x27f0] sm:$0xff]
        %v1796 = vld [vmem:[%s398 + $0x27f8] sm:$0xff]
        %v1797 = vld [vmem:[%s398 + $0x2800] sm:$0xff]
        %v1798 = vld [vmem:[%s398 + $0x2808] sm:$0xff]
        %v1799 = vld [vmem:[%s398 + $0x2810] sm:$0xff]
        %v1800 = vld [vmem:[%s398 + $0x2818] sm:$0xff]
        %v1801 = vld [vmem:[%s398 + $0x2820] sm:$0xff]
        %v1802 = vld [vmem:[%s398 + $0x2828] sm:$0xff]
        %v1803 = vld [vmem:[%s398 + $0x2830] sm:$0xff]
        %v1804 = vld [vmem:[%s398 + $0x2838] sm:$0xff]
        %v1805 = vld [vmem:[%s398 + $0x2840] sm:$0xff]
        %v1806 = vld [vmem:[%s398 + $0x2848] sm:$0xff]
        %v1807 = vld [vmem:[%s398 + $0x2850] sm:$0xff]
        %v1808 = vld [vmem:[%s398 + $0x2858] sm:$0xff]
        %v1809 = vld [vmem:[%s398 + $0x2860] sm:$0xff]
        %v1810 = vld [vmem:[%s398 + $0x2868] sm:$0xff]
        %v1811 = vld [vmem:[%s398 + $0x2870] sm:$0xff]
        %v1812 = vld [vmem:[%s398 + $0x2878] sm:$0xff]
        %v1813 = vld [vmem:[%s398 + $0x2880] sm:$0xff]
        %v1814 = vld [vmem:[%s398 + $0x2888] sm:$0xff]
        %v1815 = vld [vmem:[%s398 + $0x2890] sm:$0xff]
        %v1816 = vld [vmem:[%s398 + $0x2898] sm:$0xff]
        %v1817 = vld [vmem:[%s398 + $0x28a0] sm:$0xff]
        %v1818 = vld [vmem:[%s398 + $0x28a8] sm:$0xff]
        %v1819 = vld [vmem:[%s398 + $0x28b0] sm:$0xff]
        %v1820 = vld [vmem:[%s398 + $0x28b8] sm:$0xff]
        %v1821 = vld [vmem:[%s398 + $0x28c0] sm:$0xff]
        %v1822 = vld [vmem:[%s398 + $0x28c8] sm:$0xff]
        %v1823 = vld [vmem:[%s398 + $0x28d0] sm:$0xff]
        %v1824 = vld [vmem:[%s398 + $0x28d8] sm:$0xff]
        %v1825 = vld [vmem:[%s398 + $0x28e0] sm:$0xff]
        %v1826 = vld [vmem:[%s398 + $0x28e8] sm:$0xff]
        %v1827 = vld [vmem:[%s398 + $0x28f0] sm:$0xff]
        %v1828 = vld [vmem:[%s398 + $0x28f8] sm:$0xff]
        %v1829 = vld [vmem:[%s398 + $0x2900] sm:$0xff]
        %v1830 = vld [vmem:[%s398 + $0x2908] sm:$0xff]
        %v1831 = vld [vmem:[%s398 + $0x2910] sm:$0xff]
        %v1832 = vld [vmem:[%s398 + $0x2918] sm:$0xff]
        %v1833 = vld [vmem:[%s398 + $0x2920] sm:$0xff]
        %v1834 = vld [vmem:[%s398 + $0x2928] sm:$0xff]
        %v1835 = vld [vmem:[%s398 + $0x2930] sm:$0xff]
        %v1836 = vld [vmem:[%s398 + $0x2938] sm:$0xff]
        %v1837 = vld [vmem:[%s398 + $0x2940] sm:$0xff]
        %v1838 = vld [vmem:[%s398 + $0x2948] sm:$0xff]
        %v1839 = vld [vmem:[%s398 + $0x2950] sm:$0xff]
        %v1840 = vld [vmem:[%s398 + $0x2958] sm:$0xff]
        %v1841 = vld [vmem:[%s398 + $0x2960] sm:$0xff]
        %v1842 = vld [vmem:[%s398 + $0x2968] sm:$0xff]
        %v1843 = vld [vmem:[%s398 + $0x2970] sm:$0xff]
        %v1844 = vld [vmem:[%s398 + $0x2978] sm:$0xff]
        %v1845 = vld [vmem:[%s398 + $0x2980] sm:$0xff]
        %v1846 = vld [vmem:[%s398 + $0x2988] sm:$0xff]
        %v1847 = vld [vmem:[%s398 + $0x2990] sm:$0xff]
        %v1848 = vld [vmem:[%s398 + $0x2998] sm:$0xff]
        %v1849 = vld [vmem:[%s398 + $0x29a0] sm:$0xff]
        %v1850 = vld [vmem:[%s398 + $0x29a8] sm:$0xff]
        %v1851 = vld [vmem:[%s398 + $0x29b0] sm:$0xff]
        %v1852 = vld [vmem:[%s398 + $0x29b8] sm:$0xff]
        %v1853 = vld [vmem:[%s398 + $0x29c0] sm:$0xff]
        %v1854 = vld [vmem:[%s398 + $0x29c8] sm:$0xff]
        %v1855 = vld [vmem:[%s398 + $0x29d0] sm:$0xff]
        %v1856 = vld [vmem:[%s398 + $0x29d8] sm:$0xff]
        %v1857 = vld [vmem:[%s398 + $0x29e0] sm:$0xff]
        %v1858 = vld [vmem:[%s398 + $0x29e8] sm:$0xff]
        %v1859 = vld [vmem:[%s398 + $0x29f0] sm:$0xff]
        %v1860 = vld [vmem:[%s398 + $0x29f8] sm:$0xff]
        %v1861 = vld [vmem:[%s398 + $0x2a00] sm:$0xff]
        %v1862 = vld [vmem:[%s398 + $0x2a08] sm:$0xff]
        %v1863 = vld [vmem:[%s398 + $0x2a10] sm:$0xff]
        %v1864 = vld [vmem:[%s398 + $0x2a18] sm:$0xff]
        %v1865 = vld [vmem:[%s398 + $0x2a20] sm:$0xff]
        %v1866 = vld [vmem:[%s398 + $0x2a28] sm:$0xff]
        %v1867 = vld [vmem:[%s398 + $0x2a30] sm:$0xff]
        %v1868 = vld [vmem:[%s398 + $0x2a38] sm:$0xff]
        %v1869 = vld [vmem:[%s398 + $0x2a40] sm:$0xff]
        %v1870 = vld [vmem:[%s398 + $0x2a48] sm:$0xff]
        %v1871 = vld [vmem:[%s398 + $0x2a50] sm:$0xff]
        %v1872 = vld [vmem:[%s398 + $0x2a58] sm:$0xff]
        %v1873 = vld [vmem:[%s398 + $0x2a60] sm:$0xff]
        %v1874 = vld [vmem:[%s398 + $0x2a68] sm:$0xff]
        %v1875 = vld [vmem:[%s398 + $0x2a70] sm:$0xff]
        %v1876 = vld [vmem:[%s398 + $0x2a78] sm:$0xff]
        %v1877 = vld [vmem:[%s398 + $0x2a80] sm:$0xff]
        %v1878 = vld [vmem:[%s398 + $0x2a88] sm:$0xff]
        %v1879 = vld [vmem:[%s398 + $0x2a90] sm:$0xff]
        %v1880 = vld [vmem:[%s398 + $0x2a98] sm:$0xff]
        %v1881 = vld [vmem:[%s398 + $0x2aa0] sm:$0xff]
        %v1882 = vld [vmem:[%s398 + $0x2aa8] sm:$0xff]
        %v1883 = vld [vmem:[%s398 + $0x2ab0] sm:$0xff]
        %v1884 = vld [vmem:[%s398 + $0x2ab8] sm:$0xff]
        %v1885 = vld [vmem:[%s398 + $0x2ac0] sm:$0xff]
        %v1886 = vld [vmem:[%s398 + $0x2ac8] sm:$0xff]
        %v1887 = vld [vmem:[%s398 + $0x2ad0] sm:$0xff]
        %v1888 = vld [vmem:[%s398 + $0x2ad8] sm:$0xff]
        %v1889 = vld [vmem:[%s398 + $0x2ae0] sm:$0xff]
        %v1890 = vld [vmem:[%s398 + $0x2ae8] sm:$0xff]
        %v1891 = vld [vmem:[%s398 + $0x2af0] sm:$0xff]
        %v1892 = vld [vmem:[%s398 + $0x2af8] sm:$0xff]
        %v1893 = vld [vmem:[%s398 + $0x2b00] sm:$0xff]
        %v1894 = vld [vmem:[%s398 + $0x2b08] sm:$0xff]
        %v1895 = vld [vmem:[%s398 + $0x2b10] sm:$0xff]
        %v1896 = vld [vmem:[%s398 + $0x2b18] sm:$0xff]
        %v1897 = vld [vmem:[%s398 + $0x2b20] sm:$0xff]
        %v1898 = vld [vmem:[%s398 + $0x2b28] sm:$0xff]
        %v1899 = vld [vmem:[%s398 + $0x2b30] sm:$0xff]
        %v1900 = vld [vmem:[%s398 + $0x2b38] sm:$0xff]
        %v1901 = vld [vmem:[%s398 + $0x2b40] sm:$0xff]
        %v1902 = vld [vmem:[%s398 + $0x2b48] sm:$0xff]
        %v1903 = vld [vmem:[%s398 + $0x2b50] sm:$0xff]
        %v1904 = vld [vmem:[%s398 + $0x2b58] sm:$0xff]
        %v1905 = vld [vmem:[%s398 + $0x2b60] sm:$0xff]
        %v1906 = vld [vmem:[%s398 + $0x2b68] sm:$0xff]
        %v1907 = vld [vmem:[%s398 + $0x2b70] sm:$0xff]
        %v1908 = vld [vmem:[%s398 + $0x2b78] sm:$0xff]
        %v1909 = vld [vmem:[%s398 + $0x2b80] sm:$0xff]
        %v1910 = vld [vmem:[%s398 + $0x2b88] sm:$0xff]
        %v1911 = vld [vmem:[%s398 + $0x2b90] sm:$0xff]
        %v1912 = vld [vmem:[%s398 + $0x2b98] sm:$0xff]
        %v1913 = vld [vmem:[%s398 + $0x2ba0] sm:$0xff]
        %v1914 = vld [vmem:[%s398 + $0x2ba8] sm:$0xff]
        %v1915 = vld [vmem:[%s398 + $0x2bb0] sm:$0xff]
        %v1916 = vld [vmem:[%s398 + $0x2bb8] sm:$0xff]
        %v1917 = vld [vmem:[%s398 + $0x2bc0] sm:$0xff]
        %v1918 = vld [vmem:[%s398 + $0x2bc8] sm:$0xff]
        %v1919 = vld [vmem:[%s398 + $0x2bd0] sm:$0xff]
        %v1920 = vld [vmem:[%s398 + $0x2bd8] sm:$0xff]
        %v1921 = vld [vmem:[%s398 + $0x2be0] sm:$0xff]
        %v1922 = vld [vmem:[%s398 + $0x2be8] sm:$0xff]
        %v1923 = vld [vmem:[%s398 + $0x2bf0] sm:$0xff]
        %v1924 = vld [vmem:[%s398 + $0x2bf8] sm:$0xff]
        %v1925 = vld [vmem:[%s398 + $0x2c00] sm:$0xff]
        %v1926 = vld [vmem:[%s398 + $0x2c08] sm:$0xff]
        %v1927 = vld [vmem:[%s398 + $0x2c10] sm:$0xff]
        %v1928 = vld [vmem:[%s398 + $0x2c18] sm:$0xff]
        %v1929 = vld [vmem:[%s398 + $0x2c20] sm:$0xff]
        %v1930 = vld [vmem:[%s398 + $0x2c28] sm:$0xff]
        %v1931 = vld [vmem:[%s398 + $0x2c30] sm:$0xff]
        %v1932 = vld [vmem:[%s398 + $0x2c38] sm:$0xff]
        %v1933 = vld [vmem:[%s398 + $0x2c40] sm:$0xff]
        %v1934 = vld [vmem:[%s398 + $0x2c48] sm:$0xff]
        %v1935 = vld [vmem:[%s398 + $0x2c50] sm:$0xff]
        %v1936 = vld [vmem:[%s398 + $0x2c58] sm:$0xff]
        %v1937 = vld [vmem:[%s398 + $0x2c60] sm:$0xff]
        %v1938 = vld [vmem:[%s398 + $0x2c68] sm:$0xff]
        %v1939 = vld [vmem:[%s398 + $0x2c70] sm:$0xff]
        %v1940 = vld [vmem:[%s398 + $0x2c78] sm:$0xff]
        %v1941 = vld [vmem:[%s398 + $0x2c80] sm:$0xff]
        %v1942 = vld [vmem:[%s398 + $0x2c88] sm:$0xff]
        %v1943 = vld [vmem:[%s398 + $0x2c90] sm:$0xff]
        %v1944 = vld [vmem:[%s398 + $0x2c98] sm:$0xff]
        %v1945 = vld [vmem:[%s398 + $0x2ca0] sm:$0xff]
        %v1946 = vld [vmem:[%s398 + $0x2ca8] sm:$0xff]
        %v1947 = vld [vmem:[%s398 + $0x2cb0] sm:$0xff]
        %v1948 = vld [vmem:[%s398 + $0x2cb8] sm:$0xff]
        %v1949 = vld [vmem:[%s398 + $0x2cc0] sm:$0xff]
        %v1950 = vld [vmem:[%s398 + $0x2cc8] sm:$0xff]
        %v1951 = vld [vmem:[%s398 + $0x2cd0] sm:$0xff]
        %v1952 = vld [vmem:[%s398 + $0x2cd8] sm:$0xff]
        %v1953 = vld [vmem:[%s398 + $0x2ce0] sm:$0xff]
        %v1954 = vld [vmem:[%s398 + $0x2ce8] sm:$0xff]
        %v1955 = vld [vmem:[%s398 + $0x2cf0] sm:$0xff]
        %v1956 = vld [vmem:[%s398 + $0x2cf8] sm:$0xff]
        %v1957 = vld [vmem:[%s398 + $0x2d00] sm:$0xff]
        %v1958 = vld [vmem:[%s398 + $0x2d08] sm:$0xff]
        %v1959 = vld [vmem:[%s398 + $0x2d10] sm:$0xff]
        %v1960 = vld [vmem:[%s398 + $0x2d18] sm:$0xff]
        %v1961 = vld [vmem:[%s398 + $0x2d20] sm:$0xff]
        %v1962 = vld [vmem:[%s398 + $0x2d28] sm:$0xff]
        %v1963 = vld [vmem:[%s398 + $0x2d30] sm:$0xff]
        %v1964 = vld [vmem:[%s398 + $0x2d38] sm:$0xff]
        %v1965 = vld [vmem:[%s398 + $0x2d40] sm:$0xff]
        %v1966 = vld [vmem:[%s398 + $0x2d48] sm:$0xff]
        %v1967 = vld [vmem:[%s398 + $0x2d50] sm:$0xff]
        %v1968 = vld [vmem:[%s398 + $0x2d58] sm:$0xff]
        %v1969 = vld [vmem:[%s398 + $0x2d60] sm:$0xff]
        %v1970 = vld [vmem:[%s398 + $0x2d68] sm:$0xff]
        %v1971 = vld [vmem:[%s398 + $0x2d70] sm:$0xff]
        %v1972 = vld [vmem:[%s398 + $0x2d78] sm:$0xff]
        %v1973 = vld [vmem:[%s398 + $0x2d80] sm:$0xff]
        %v1974 = vld [vmem:[%s398 + $0x2d88] sm:$0xff]
        %v1975 = vld [vmem:[%s398 + $0x2d90] sm:$0xff]
        %v1976 = vld [vmem:[%s398 + $0x2d98] sm:$0xff]
        %v1977 = vld [vmem:[%s398 + $0x2da0] sm:$0xff]
        %v1978 = vld [vmem:[%s398 + $0x2da8] sm:$0xff]
        %v1979 = vld [vmem:[%s398 + $0x2db0] sm:$0xff]
        %v1980 = vld [vmem:[%s398 + $0x2db8] sm:$0xff]
        %v1981 = vld [vmem:[%s398 + $0x2dc0] sm:$0xff]
        %v1982 = vld [vmem:[%s398 + $0x2dc8] sm:$0xff]
        %v1983 = vld [vmem:[%s398 + $0x2dd0] sm:$0xff]
        %v1984 = vld [vmem:[%s398 + $0x2dd8] sm:$0xff]
        %v1985 = vld [vmem:[%s398 + $0x2de0] sm:$0xff]
        %v1986 = vld [vmem:[%s398 + $0x2de8] sm:$0xff]
        %v1987 = vld [vmem:[%s398 + $0x2df0] sm:$0xff]
        %v1988 = vld [vmem:[%s398 + $0x2df8] sm:$0xff]
        %v1989 = vld [vmem:[%s398 + $0x2e00] sm:$0xff]
        %v1990 = vld [vmem:[%s398 + $0x2e08] sm:$0xff]
        %v1991 = vld [vmem:[%s398 + $0x2e10] sm:$0xff]
        %v1992 = vld [vmem:[%s398 + $0x2e18] sm:$0xff]
        %v1993 = vld [vmem:[%s398 + $0x2e20] sm:$0xff]
        %v1994 = vld [vmem:[%s398 + $0x2e28] sm:$0xff]
        %v1995 = vld [vmem:[%s398 + $0x2e30] sm:$0xff]
        %v1996 = vld [vmem:[%s398 + $0x2e38] sm:$0xff]
        %v1997 = vld [vmem:[%s398 + $0x2e40] sm:$0xff]
        %v1998 = vld [vmem:[%s398 + $0x2e48] sm:$0xff]
        %v1999 = vld [vmem:[%s398 + $0x2e50] sm:$0xff]
        %v2000 = vld [vmem:[%s398 + $0x2e58] sm:$0xff]
        %v2001 = vld [vmem:[%s398 + $0x2e60] sm:$0xff]
        %v2002 = vld [vmem:[%s398 + $0x2e68] sm:$0xff]
        %v2003 = vld [vmem:[%s398 + $0x2e70] sm:$0xff]
        %v2004 = vld [vmem:[%s398 + $0x2e78] sm:$0xff]
        %v2005 = vld [vmem:[%s398 + $0x2e80] sm:$0xff]
        %v2006 = vld [vmem:[%s398 + $0x2e88] sm:$0xff]
        %v2007 = vld [vmem:[%s398 + $0x2e90] sm:$0xff]
        %v2008 = vld [vmem:[%s398 + $0x2e98] sm:$0xff]
        %v2009 = vld [vmem:[%s398 + $0x2ea0] sm:$0xff]
        %v2010 = vld [vmem:[%s398 + $0x2ea8] sm:$0xff]
        %v2011 = vld [vmem:[%s398 + $0x2eb0] sm:$0xff]
        %v2012 = vld [vmem:[%s398 + $0x2eb8] sm:$0xff]
        %v2013 = vld [vmem:[%s398 + $0x2ec0] sm:$0xff]
        %v2014 = vld [vmem:[%s398 + $0x2ec8] sm:$0xff]
        %v2015 = vld [vmem:[%s398 + $0x2ed0] sm:$0xff]
        %v2016 = vld [vmem:[%s398 + $0x2ed8] sm:$0xff]
        %v2017 = vld [vmem:[%s398 + $0x2ee0] sm:$0xff]
        %v2018 = vld [vmem:[%s398 + $0x2ee8] sm:$0xff]
        %v2019 = vld [vmem:[%s398 + $0x2ef0] sm:$0xff]
        %v2020 = vld [vmem:[%s398 + $0x2ef8] sm:$0xff]
        %v2021 = vld [vmem:[%s398 + $0x2f00] sm:$0xff]
        %v2022 = vld [vmem:[%s398 + $0x2f08] sm:$0xff]
        %v2023 = vld [vmem:[%s398 + $0x2f10] sm:$0xff]
        %v2024 = vld [vmem:[%s398 + $0x2f18] sm:$0xff]
        %v2025 = vld [vmem:[%s398 + $0x2f20] sm:$0xff]
        %v2026 = vld [vmem:[%s398 + $0x2f28] sm:$0xff]
        %v2027 = vld [vmem:[%s398 + $0x2f30] sm:$0xff]
        %v2028 = vld [vmem:[%s398 + $0x2f38] sm:$0xff]
        %v2029 = vld [vmem:[%s398 + $0x2f40] sm:$0xff]
        %v2030 = vld [vmem:[%s398 + $0x2f48] sm:$0xff]
        %v2031 = vld [vmem:[%s398 + $0x2f50] sm:$0xff]
        %v2032 = vld [vmem:[%s398 + $0x2f58] sm:$0xff]
        %v2033 = vld [vmem:[%s398 + $0x2f60] sm:$0xff]
        %v2034 = vld [vmem:[%s398 + $0x2f68] sm:$0xff]
        %v2035 = vld [vmem:[%s398 + $0x2f70] sm:$0xff]
        %v2036 = vld [vmem:[%s398 + $0x2f78] sm:$0xff]
        %v2037 = vld [vmem:[%s398 + $0x2f80] sm:$0xff]
        %v2038 = vld [vmem:[%s398 + $0x2f88] sm:$0xff]
        %v2039 = vld [vmem:[%s398 + $0x2f90] sm:$0xff]
        %v2040 = vld [vmem:[%s398 + $0x2f98] sm:$0xff]
        %v2041 = vld [vmem:[%s398 + $0x2fa0] sm:$0xff]
        %v2042 = vld [vmem:[%s398 + $0x2fa8] sm:$0xff]
        %v2043 = vld [vmem:[%s398 + $0x2fb0] sm:$0xff]
        %v2044 = vld [vmem:[%s398 + $0x2fb8] sm:$0xff]
        %v2045 = vld [vmem:[%s398 + $0x2fc0] sm:$0xff]
        %v2046 = vld [vmem:[%s398 + $0x2fc8] sm:$0xff]
        %v2047 = vld [vmem:[%s398 + $0x2fd0] sm:$0xff]
        %v2048 = vld [vmem:[%s398 + $0x2fd8] sm:$0xff]
        %v2049 = vld [vmem:[%s398 + $0x2fe0] sm:$0xff]
        %v2050 = vld [vmem:[%s398 + $0x2fe8] sm:$0xff]
        %v2051 = vld [vmem:[%s398 + $0x2ff0] sm:$0xff]
        %v2052 = vld [vmem:[%s398 + $0x2ff8] sm:$0xff]
        %v2053 = vld [vmem:[%s398 + $0x3000] sm:$0xff]
        %v2054 = vld [vmem:[%s398 + $0x3008] sm:$0xff]
        %v2055 = vld [vmem:[%s398 + $0x3010] sm:$0xff]
        %v2056 = vld [vmem:[%s398 + $0x3018] sm:$0xff]
        %v2057 = vld [vmem:[%s398 + $0x3020] sm:$0xff]
        %v2058 = vld [vmem:[%s398 + $0x3028] sm:$0xff]
        %v2059 = vld [vmem:[%s398 + $0x3030] sm:$0xff]
        %v2060 = vld [vmem:[%s398 + $0x3038] sm:$0xff]
        %v2061 = vld [vmem:[%s398 + $0x3040] sm:$0xff]
        %v2062 = vld [vmem:[%s398 + $0x3048] sm:$0xff]
        %v2063 = vld [vmem:[%s398 + $0x3050] sm:$0xff]
        %v2064 = vld [vmem:[%s398 + $0x3058] sm:$0xff]
        %v2065 = vld [vmem:[%s398 + $0x3060] sm:$0xff]
        %v2066 = vld [vmem:[%s398 + $0x3068] sm:$0xff]
        %v2067 = vld [vmem:[%s398 + $0x3070] sm:$0xff]
        %v2068 = vld [vmem:[%s398 + $0x3078] sm:$0xff]
        %v2069 = vld [vmem:[%s398 + $0x3080] sm:$0xff]
        %v2070 = vld [vmem:[%s398 + $0x3088] sm:$0xff]
        %v2071 = vld [vmem:[%s398 + $0x3090] sm:$0xff]
        %v2072 = vld [vmem:[%s398 + $0x3098] sm:$0xff]
        %v2073 = vld [vmem:[%s398 + $0x30a0] sm:$0xff]
        %v2074 = vld [vmem:[%s398 + $0x30a8] sm:$0xff]
        %v2075 = vld [vmem:[%s398 + $0x30b0] sm:$0xff]
        %v2076 = vld [vmem:[%s398 + $0x30b8] sm:$0xff]
        %v2077 = vld [vmem:[%s398 + $0x30c0] sm:$0xff]
        %v2078 = vld [vmem:[%s398 + $0x30c8] sm:$0xff]
        %v2079 = vld [vmem:[%s398 + $0x30d0] sm:$0xff]
        %v2080 = vld [vmem:[%s398 + $0x30d8] sm:$0xff]
        %v2081 = vld [vmem:[%s398 + $0x30e0] sm:$0xff]
        %v2082 = vld [vmem:[%s398 + $0x30e8] sm:$0xff]
        %v2083 = vld [vmem:[%s398 + $0x30f0] sm:$0xff]
        %v2084 = vld [vmem:[%s398 + $0x30f8] sm:$0xff]
        %v2085 = vld [vmem:[%s398 + $0x3100] sm:$0xff]
        %v2086 = vld [vmem:[%s398 + $0x3108] sm:$0xff]
        %v2087 = vld [vmem:[%s398 + $0x3110] sm:$0xff]
        %v2088 = vld [vmem:[%s398 + $0x3118] sm:$0xff]
        %v2089 = vld [vmem:[%s398 + $0x3120] sm:$0xff]
        %v2090 = vld [vmem:[%s398 + $0x3128] sm:$0xff]
        %v2091 = vld [vmem:[%s398 + $0x3130] sm:$0xff]
        %v2092 = vld [vmem:[%s398 + $0x3138] sm:$0xff]
        %v2093 = vld [vmem:[%s398 + $0x3140] sm:$0xff]
        %v2094 = vld [vmem:[%s398 + $0x3148] sm:$0xff]
        %v2095 = vld [vmem:[%s398 + $0x3150] sm:$0xff]
        %v2096 = vld [vmem:[%s398 + $0x3158] sm:$0xff]
        %v2097 = vld [vmem:[%s398 + $0x3160] sm:$0xff]
        %v2098 = vld [vmem:[%s398 + $0x3168] sm:$0xff]
        %v2099 = vld [vmem:[%s398 + $0x3170] sm:$0xff]
        %v2100 = vld [vmem:[%s398 + $0x3178] sm:$0xff]
        %v2101 = vld [vmem:[%s398 + $0x3180] sm:$0xff]
        %v2102 = vld [vmem:[%s398 + $0x3188] sm:$0xff]
        %v2103 = vld [vmem:[%s398 + $0x3190] sm:$0xff]
        %v2104 = vld [vmem:[%s398 + $0x3198] sm:$0xff]
        %v2105 = vld [vmem:[%s398 + $0x31a0] sm:$0xff]
        %v2106 = vld [vmem:[%s398 + $0x31a8] sm:$0xff]
        %v2107 = vld [vmem:[%s398 + $0x31b0] sm:$0xff]
        %v2108 = vld [vmem:[%s398 + $0x31b8] sm:$0xff]
        %v2109 = vld [vmem:[%s398 + $0x31c0] sm:$0xff]
        %v2110 = vld [vmem:[%s398 + $0x31c8] sm:$0xff]
        %v2111 = vld [vmem:[%s398 + $0x31d0] sm:$0xff]
        %v2112 = vld [vmem:[%s398 + $0x31d8] sm:$0xff]
        %v2113 = vld [vmem:[%s398 + $0x31e0] sm:$0xff]
        %v2114 = vld [vmem:[%s398 + $0x31e8] sm:$0xff]
        %v2115 = vld [vmem:[%s398 + $0x31f0] sm:$0xff]
        %v2116 = vld [vmem:[%s398 + $0x31f8] sm:$0xff]
        %v2167 = vunpack.c.l.b16 %v467
        %v2168 = vunpack.c.h.b16 %v467
        %v2169 = vunpack.c.l.b16 %v468
        %v2170 = vunpack.c.h.b16 %v468
        %v2171 = vunpack.c.l.b16 %v469
        %v2172 = vunpack.c.h.b16 %v469
        %v2173 = vunpack.c.l.b16 %v470
        %v2174 = vunpack.c.h.b16 %v470
        %v2175 = vunpack.c.l.b16 %v471
        %v2176 = vunpack.c.h.b16 %v471
        %v2177 = vunpack.c.l.b16 %v472
        %v2178 = vunpack.c.h.b16 %v472
        %v2179 = vunpack.c.l.b16 %v473
        %v2180 = vunpack.c.h.b16 %v473
        %v2181 = vunpack.c.l.b16 %v474
        %v2182 = vunpack.c.h.b16 %v474
        %v2183 = vunpack.c.l.b16 %v475
        %v2184 = vunpack.c.h.b16 %v475
        %v2185 = vunpack.c.l.b16 %v476
        %v2186 = vunpack.c.h.b16 %v476
        %v2187 = vunpack.c.l.b16 %v477
        %v2188 = vunpack.c.h.b16 %v477
        %v2189 = vunpack.c.l.b16 %v478
        %v2190 = vunpack.c.h.b16 %v478
        %v2191 = vunpack.c.l.b16 %v479
        %v2192 = vunpack.c.h.b16 %v479
        %v2193 = vunpack.c.l.b16 %v480
        %v2194 = vunpack.c.h.b16 %v480
        %v2195 = vunpack.c.l.b16 %v481
        %v2196 = vunpack.c.h.b16 %v481
        %v2197 = vunpack.c.l.b16 %v482
        %v2198 = vunpack.c.h.b16 %v482
        %v2199 = vunpack.c.l.b16 %v483
        %v2200 = vunpack.c.h.b16 %v483
        %v2201 = vunpack.c.l.b16 %v484
        %v2202 = vunpack.c.h.b16 %v484
        %v2203 = vunpack.c.l.b16 %v485
        %v2204 = vunpack.c.h.b16 %v485
        %v2205 = vunpack.c.l.b16 %v486
        %v2206 = vunpack.c.h.b16 %v486
        %v2207 = vunpack.c.l.b16 %v487
        %v2208 = vunpack.c.h.b16 %v487
        %v2209 = vunpack.c.l.b16 %v488
        %v2210 = vunpack.c.h.b16 %v488
        %v2211 = vunpack.c.l.b16 %v489
        %v2212 = vunpack.c.h.b16 %v489
        %v2213 = vunpack.c.l.b16 %v490
        %v2214 = vunpack.c.h.b16 %v490
        %v2215 = vunpack.c.l.b16 %v491
        %v2216 = vunpack.c.h.b16 %v491
        %v2217 = vunpack.c.l.b16 %v492
        %v2218 = vunpack.c.h.b16 %v492
        %v2219 = vunpack.c.l.b16 %v493
        %v2220 = vunpack.c.h.b16 %v493
        %v2221 = vunpack.c.l.b16 %v494
        %v2222 = vunpack.c.h.b16 %v494
        %v2223 = vunpack.c.l.b16 %v495
        %v2224 = vunpack.c.h.b16 %v495
        %v2225 = vunpack.c.l.b16 %v496
        %v2226 = vunpack.c.h.b16 %v496
        %v2227 = vunpack.c.l.b16 %v497
        %v2228 = vunpack.c.h.b16 %v497
        %v2229 = vunpack.c.l.b16 %v498
        %v2230 = vunpack.c.h.b16 %v498
        %v2231 = vunpack.c.l.b16 %v499
        %v2232 = vunpack.c.h.b16 %v499
        %v2233 = vunpack.c.l.b16 %v500
        %v2234 = vunpack.c.h.b16 %v500
        %v2235 = vunpack.c.l.b16 %v501
        %v2236 = vunpack.c.h.b16 %v501
        %v2237 = vunpack.c.l.b16 %v502
        %v2238 = vunpack.c.h.b16 %v502
        %v2239 = vunpack.c.l.b16 %v503
        %v2240 = vunpack.c.h.b16 %v503
        %v2241 = vunpack.c.l.b16 %v504
        %v2242 = vunpack.c.h.b16 %v504
        %v2243 = vunpack.c.l.b16 %v505
        %v2244 = vunpack.c.h.b16 %v505
        %v2245 = vunpack.c.l.b16 %v506
        %v2246 = vunpack.c.h.b16 %v506
        %v2247 = vunpack.c.l.b16 %v507
        %v2248 = vunpack.c.h.b16 %v507
        %v2249 = vunpack.c.l.b16 %v508
        %v2250 = vunpack.c.h.b16 %v508
        %v2251 = vunpack.c.l.b16 %v509
        %v2252 = vunpack.c.h.b16 %v509
        %v2253 = vunpack.c.l.b16 %v510
        %v2254 = vunpack.c.h.b16 %v510
        %v2255 = vunpack.c.l.b16 %v511
        %v2256 = vunpack.c.h.b16 %v511
        %v2257 = vunpack.c.l.b16 %v512
        %v2258 = vunpack.c.h.b16 %v512
        %v2259 = vunpack.c.l.b16 %v513
        %v2260 = vunpack.c.h.b16 %v513
        %v2261 = vunpack.c.l.b16 %v514
        %v2262 = vunpack.c.h.b16 %v514
        %v2263 = vunpack.c.l.b16 %v515
        %v2264 = vunpack.c.h.b16 %v515
        %v2265 = vunpack.c.l.b16 %v516
        %v2266 = vunpack.c.h.b16 %v516
        %v2267 = vpack.c.b16 %v2167, %v2167
        %v2268 = vpack.c.b16 %v2168, %v2168
        %v2269 = vpack.c.b16 %v2169, %v2169
        %v2270 = vpack.c.b16 %v2170, %v2170
        %v2271 = vpack.c.b16 %v2171, %v2171
        %v2272 = vpack.c.b16 %v2172, %v2172
        %v2273 = vpack.c.b16 %v2173, %v2173
        %v2274 = vpack.c.b16 %v2174, %v2174
        %v2275 = vpack.c.b16 %v2175, %v2175
        %v2276 = vpack.c.b16 %v2176, %v2176
        %v2277 = vpack.c.b16 %v2177, %v2177
        %v2278 = vpack.c.b16 %v2178, %v2178
        %v2279 = vpack.c.b16 %v2179, %v2179
        %v2280 = vpack.c.b16 %v2180, %v2180
        %v2281 = vpack.c.b16 %v2181, %v2181
        %v2282 = vpack.c.b16 %v2182, %v2182
        %v2283 = vpack.c.b16 %v2183, %v2183
        %v2284 = vpack.c.b16 %v2184, %v2184
        %v2285 = vpack.c.b16 %v2185, %v2185
        %v2286 = vpack.c.b16 %v2186, %v2186
        %v2287 = vpack.c.b16 %v2187, %v2187
        %v2288 = vpack.c.b16 %v2188, %v2188
        %v2289 = vpack.c.b16 %v2189, %v2189
        %v2290 = vpack.c.b16 %v2190, %v2190
        %v2291 = vpack.c.b16 %v2191, %v2191
        %v2292 = vpack.c.b16 %v2192, %v2192
        %v2293 = vpack.c.b16 %v2193, %v2193
        %v2294 = vpack.c.b16 %v2194, %v2194
        %v2295 = vpack.c.b16 %v2195, %v2195
        %v2296 = vpack.c.b16 %v2196, %v2196
        %v2297 = vpack.c.b16 %v2197, %v2197
        %v2298 = vpack.c.b16 %v2198, %v2198
        %v2299 = vpack.c.b16 %v2199, %v2199
        %v2300 = vpack.c.b16 %v2200, %v2200
        %v2301 = vpack.c.b16 %v2201, %v2201
        %v2302 = vpack.c.b16 %v2202, %v2202
        %v2303 = vpack.c.b16 %v2203, %v2203
        %v2304 = vpack.c.b16 %v2204, %v2204
        %v2305 = vpack.c.b16 %v2205, %v2205
        %v2306 = vpack.c.b16 %v2206, %v2206
        %v2307 = vpack.c.b16 %v2207, %v2207
        %v2308 = vpack.c.b16 %v2208, %v2208
        %v2309 = vpack.c.b16 %v2209, %v2209
        %v2310 = vpack.c.b16 %v2210, %v2210
        %v2311 = vpack.c.b16 %v2211, %v2211
        %v2312 = vpack.c.b16 %v2212, %v2212
        %v2313 = vpack.c.b16 %v2213, %v2213
        %v2314 = vpack.c.b16 %v2214, %v2214
        %v2315 = vpack.c.b16 %v2215, %v2215
        %v2316 = vpack.c.b16 %v2216, %v2216
        %v2317 = vpack.c.b16 %v2217, %v2217
        %v2318 = vpack.c.b16 %v2218, %v2218
        %v2319 = vpack.c.b16 %v2219, %v2219
        %v2320 = vpack.c.b16 %v2220, %v2220
        %v2321 = vpack.c.b16 %v2221, %v2221
        %v2322 = vpack.c.b16 %v2222, %v2222
        %v2323 = vpack.c.b16 %v2223, %v2223
        %v2324 = vpack.c.b16 %v2224, %v2224
        %v2325 = vpack.c.b16 %v2225, %v2225
        %v2326 = vpack.c.b16 %v2226, %v2226
        %v2327 = vpack.c.b16 %v2227, %v2227
        %v2328 = vpack.c.b16 %v2228, %v2228
        %v2329 = vpack.c.b16 %v2229, %v2229
        %v2330 = vpack.c.b16 %v2230, %v2230
        %v2331 = vpack.c.b16 %v2231, %v2231
        %v2332 = vpack.c.b16 %v2232, %v2232
        %v2333 = vpack.c.b16 %v2233, %v2233
        %v2334 = vpack.c.b16 %v2234, %v2234
        %v2335 = vpack.c.b16 %v2235, %v2235
        %v2336 = vpack.c.b16 %v2236, %v2236
        %v2337 = vpack.c.b16 %v2237, %v2237
        %v2338 = vpack.c.b16 %v2238, %v2238
        %v2339 = vpack.c.b16 %v2239, %v2239
        %v2340 = vpack.c.b16 %v2240, %v2240
        %v2341 = vpack.c.b16 %v2241, %v2241
        %v2342 = vpack.c.b16 %v2242, %v2242
        %v2343 = vpack.c.b16 %v2243, %v2243
        %v2344 = vpack.c.b16 %v2244, %v2244
        %v2345 = vpack.c.b16 %v2245, %v2245
        %v2346 = vpack.c.b16 %v2246, %v2246
        %v2347 = vpack.c.b16 %v2247, %v2247
        %v2348 = vpack.c.b16 %v2248, %v2248
        %v2349 = vpack.c.b16 %v2249, %v2249
        %v2350 = vpack.c.b16 %v2250, %v2250
        %v2351 = vpack.c.b16 %v2251, %v2251
        %v2352 = vpack.c.b16 %v2252, %v2252
        %v2353 = vpack.c.b16 %v2253, %v2253
        %v2354 = vpack.c.b16 %v2254, %v2254
        %v2355 = vpack.c.b16 %v2255, %v2255
        %v2356 = vpack.c.b16 %v2256, %v2256
        %v2357 = vpack.c.b16 %v2257, %v2257
        %v2358 = vpack.c.b16 %v2258, %v2258
        %v2359 = vpack.c.b16 %v2259, %v2259
        %v2360 = vpack.c.b16 %v2260, %v2260
        %v2361 = vpack.c.b16 %v2261, %v2261
        %v2362 = vpack.c.b16 %v2262, %v2262
        %v2363 = vpack.c.b16 %v2263, %v2263
        %v2364 = vpack.c.b16 %v2264, %v2264
        %v2365 = vpack.c.b16 %v2265, %v2265
        %v2366 = vpack.c.b16 %v2266, %v2266
        %v4067 = vunpack.c.l.b16 %v517
        %v4068 = vunpack.c.h.b16 %v517
        %v4069 = vunpack.c.l.b16 %v518
        %v4070 = vunpack.c.h.b16 %v518
        %v4071 = vunpack.c.l.b16 %v519
        %v4072 = vunpack.c.h.b16 %v519
        %v4073 = vunpack.c.l.b16 %v520
        %v4074 = vunpack.c.h.b16 %v520
        %v4075 = vunpack.c.l.b16 %v521
        %v4076 = vunpack.c.h.b16 %v521
        %v4077 = vunpack.c.l.b16 %v522
        %v4078 = vunpack.c.h.b16 %v522
        %v4079 = vunpack.c.l.b16 %v523
        %v4080 = vunpack.c.h.b16 %v523
        %v4081 = vunpack.c.l.b16 %v524
        %v4082 = vunpack.c.h.b16 %v524
        %v4083 = vunpack.c.l.b16 %v525
        %v4084 = vunpack.c.h.b16 %v525
        %v4085 = vunpack.c.l.b16 %v526
        %v4086 = vunpack.c.h.b16 %v526
        %v4087 = vunpack.c.l.b16 %v527
        %v4088 = vunpack.c.h.b16 %v527
        %v4089 = vunpack.c.l.b16 %v528
        %v4090 = vunpack.c.h.b16 %v528
        %v4091 = vunpack.c.l.b16 %v529
        %v4092 = vunpack.c.h.b16 %v529
        %v4093 = vunpack.c.l.b16 %v530
        %v4094 = vunpack.c.h.b16 %v530
        %v4095 = vunpack.c.l.b16 %v531
        %v4096 = vunpack.c.h.b16 %v531
        %v4097 = vunpack.c.l.b16 %v532
        %v4098 = vunpack.c.h.b16 %v532
        %v4099 = vunpack.c.l.b16 %v533
        %v4100 = vunpack.c.h.b16 %v533
        %v4101 = vunpack.c.l.b16 %v534
        %v4102 = vunpack.c.h.b16 %v534
        %v4103 = vunpack.c.l.b16 %v535
        %v4104 = vunpack.c.h.b16 %v535
        %v4105 = vunpack.c.l.b16 %v536
        %v4106 = vunpack.c.h.b16 %v536
        %v4107 = vunpack.c.l.b16 %v537
        %v4108 = vunpack.c.h.b16 %v537
        %v4109 = vunpack.c.l.b16 %v538
        %v4110 = vunpack.c.h.b16 %v538
        %v4111 = vunpack.c.l.b16 %v539
        %v4112 = vunpack.c.h.b16 %v539
        %v4113 = vunpack.c.l.b16 %v540
        %v4114 = vunpack.c.h.b16 %v540
        %v4115 = vunpack.c.l.b16 %v541
        %v4116 = vunpack.c.h.b16 %v541
        %v4117 = vunpack.c.l.b16 %v542
        %v4118 = vunpack.c.h.b16 %v542
        %v4119 = vunpack.c.l.b16 %v543
        %v4120 = vunpack.c.h.b16 %v543
        %v4121 = vunpack.c.l.b16 %v544
        %v4122 = vunpack.c.h.b16 %v544
        %v4123 = vunpack.c.l.b16 %v545
        %v4124 = vunpack.c.h.b16 %v545
        %v4125 = vunpack.c.l.b16 %v546
        %v4126 = vunpack.c.h.b16 %v546
        %v4127 = vunpack.c.l.b16 %v547
        %v4128 = vunpack.c.h.b16 %v547
        %v4129 = vunpack.c.l.b16 %v548
        %v4130 = vunpack.c.h.b16 %v548
        %v4131 = vunpack.c.l.b16 %v549
        %v4132 = vunpack.c.h.b16 %v549
        %v4133 = vunpack.c.l.b16 %v550
        %v4134 = vunpack.c.h.b16 %v550
        %v4135 = vunpack.c.l.b16 %v551
        %v4136 = vunpack.c.h.b16 %v551
        %v4137 = vunpack.c.l.b16 %v552
        %v4138 = vunpack.c.h.b16 %v552
        %v4139 = vunpack.c.l.b16 %v553
        %v4140 = vunpack.c.h.b16 %v553
        %v4141 = vunpack.c.l.b16 %v554
        %v4142 = vunpack.c.h.b16 %v554
        %v4143 = vunpack.c.l.b16 %v555
        %v4144 = vunpack.c.h.b16 %v555
        %v4145 = vunpack.c.l.b16 %v556
        %v4146 = vunpack.c.h.b16 %v556
        %v4147 = vunpack.c.l.b16 %v557
        %v4148 = vunpack.c.h.b16 %v557
        %v4149 = vunpack.c.l.b16 %v558
        %v4150 = vunpack.c.h.b16 %v558
        %v4151 = vunpack.c.l.b16 %v559
        %v4152 = vunpack.c.h.b16 %v559
        %v4153 = vunpack.c.l.b16 %v560
        %v4154 = vunpack.c.h.b16 %v560
        %v4155 = vunpack.c.l.b16 %v561
        %v4156 = vunpack.c.h.b16 %v561
        %v4157 = vunpack.c.l.b16 %v562
        %v4158 = vunpack.c.h.b16 %v562
        %v4159 = vunpack.c.l.b16 %v563
        %v4160 = vunpack.c.h.b16 %v563
        %v4161 = vunpack.c.l.b16 %v564
        %v4162 = vunpack.c.h.b16 %v564
        %v4163 = vunpack.c.l.b16 %v565
        %v4164 = vunpack.c.h.b16 %v565
        %v4165 = vunpack.c.l.b16 %v566
        %v4166 = vunpack.c.h.b16 %v566
        %v4167 = vunpack.c.l.b16 %v567
        %v4168 = vunpack.c.h.b16 %v567
        %v4169 = vunpack.c.l.b16 %v568
        %v4170 = vunpack.c.h.b16 %v568
        %v4171 = vunpack.c.l.b16 %v569
        %v4172 = vunpack.c.h.b16 %v569
        %v4173 = vunpack.c.l.b16 %v570
        %v4174 = vunpack.c.h.b16 %v570
        %v4175 = vunpack.c.l.b16 %v571
        %v4176 = vunpack.c.h.b16 %v571
        %v4177 = vunpack.c.l.b16 %v572
        %v4178 = vunpack.c.h.b16 %v572
        %v4179 = vunpack.c.l.b16 %v573
        %v4180 = vunpack.c.h.b16 %v573
        %v4181 = vunpack.c.l.b16 %v574
        %v4182 = vunpack.c.h.b16 %v574
        %v4183 = vunpack.c.l.b16 %v575
        %v4184 = vunpack.c.h.b16 %v575
        %v4185 = vunpack.c.l.b16 %v576
        %v4186 = vunpack.c.h.b16 %v576
        %v4187 = vunpack.c.l.b16 %v577
        %v4188 = vunpack.c.h.b16 %v577
        %v4189 = vunpack.c.l.b16 %v578
        %v4190 = vunpack.c.h.b16 %v578
        %v4191 = vunpack.c.l.b16 %v579
        %v4192 = vunpack.c.h.b16 %v579
        %v4193 = vunpack.c.l.b16 %v580
        %v4194 = vunpack.c.h.b16 %v580
        %v4195 = vunpack.c.l.b16 %v581
        %v4196 = vunpack.c.h.b16 %v581
        %v4197 = vunpack.c.l.b16 %v582
        %v4198 = vunpack.c.h.b16 %v582
        %v4199 = vunpack.c.l.b16 %v583
        %v4200 = vunpack.c.h.b16 %v583
        %v4201 = vunpack.c.l.b16 %v584
        %v4202 = vunpack.c.h.b16 %v584
        %v4203 = vunpack.c.l.b16 %v585
        %v4204 = vunpack.c.h.b16 %v585
        %v4205 = vunpack.c.l.b16 %v586
        %v4206 = vunpack.c.h.b16 %v586
        %v4207 = vunpack.c.l.b16 %v587
        %v4208 = vunpack.c.h.b16 %v587
        %v4209 = vunpack.c.l.b16 %v588
        %v4210 = vunpack.c.h.b16 %v588
        %v4211 = vunpack.c.l.b16 %v589
        %v4212 = vunpack.c.h.b16 %v589
        %v4213 = vunpack.c.l.b16 %v590
        %v4214 = vunpack.c.h.b16 %v590
        %v4215 = vunpack.c.l.b16 %v591
        %v4216 = vunpack.c.h.b16 %v591
        %v4217 = vunpack.c.l.b16 %v592
        %v4218 = vunpack.c.h.b16 %v592
        %v4219 = vunpack.c.l.b16 %v593
        %v4220 = vunpack.c.h.b16 %v593
        %v4221 = vunpack.c.l.b16 %v594
        %v4222 = vunpack.c.h.b16 %v594
        %v4223 = vunpack.c.l.b16 %v595
        %v4224 = vunpack.c.h.b16 %v595
        %v4225 = vunpack.c.l.b16 %v596
        %v4226 = vunpack.c.h.b16 %v596
        %v4227 = vunpack.c.l.b16 %v597
        %v4228 = vunpack.c.h.b16 %v597
        %v4229 = vunpack.c.l.b16 %v598
        %v4230 = vunpack.c.h.b16 %v598
        %v4231 = vunpack.c.l.b16 %v599
        %v4232 = vunpack.c.h.b16 %v599
        %v4233 = vunpack.c.l.b16 %v600
        %v4234 = vunpack.c.h.b16 %v600
        %v4235 = vunpack.c.l.b16 %v601
        %v4236 = vunpack.c.h.b16 %v601
        %v4237 = vunpack.c.l.b16 %v602
        %v4238 = vunpack.c.h.b16 %v602
        %v4239 = vunpack.c.l.b16 %v603
        %v4240 = vunpack.c.h.b16 %v603
        %v4241 = vunpack.c.l.b16 %v604
        %v4242 = vunpack.c.h.b16 %v604
        %v4243 = vunpack.c.l.b16 %v605
        %v4244 = vunpack.c.h.b16 %v605
        %v4245 = vunpack.c.l.b16 %v606
        %v4246 = vunpack.c.h.b16 %v606
        %v4247 = vunpack.c.l.b16 %v607
        %v4248 = vunpack.c.h.b16 %v607
        %v4249 = vunpack.c.l.b16 %v608
        %v4250 = vunpack.c.h.b16 %v608
        %v4251 = vunpack.c.l.b16 %v609
        %v4252 = vunpack.c.h.b16 %v609
        %v4253 = vunpack.c.l.b16 %v610
        %v4254 = vunpack.c.h.b16 %v610
        %v4255 = vunpack.c.l.b16 %v611
        %v4256 = vunpack.c.h.b16 %v611
        %v4257 = vunpack.c.l.b16 %v612
        %v4258 = vunpack.c.h.b16 %v612
        %v4259 = vunpack.c.l.b16 %v613
        %v4260 = vunpack.c.h.b16 %v613
        %v4261 = vunpack.c.l.b16 %v614
        %v4262 = vunpack.c.h.b16 %v614
        %v4263 = vunpack.c.l.b16 %v615
        %v4264 = vunpack.c.h.b16 %v615
        %v4265 = vunpack.c.l.b16 %v616
        %v4266 = vunpack.c.h.b16 %v616
        %v4267 = vunpack.c.l.b16 %v617
        %v4268 = vunpack.c.h.b16 %v617
        %v4269 = vunpack.c.l.b16 %v618
        %v4270 = vunpack.c.h.b16 %v618
        %v4271 = vunpack.c.l.b16 %v619
        %v4272 = vunpack.c.h.b16 %v619
        %v4273 = vunpack.c.l.b16 %v620
        %v4274 = vunpack.c.h.b16 %v620
        %v4275 = vunpack.c.l.b16 %v621
        %v4276 = vunpack.c.h.b16 %v621
        %v4277 = vunpack.c.l.b16 %v622
        %v4278 = vunpack.c.h.b16 %v622
        %v4279 = vunpack.c.l.b16 %v623
        %v4280 = vunpack.c.h.b16 %v623
        %v4281 = vunpack.c.l.b16 %v624
        %v4282 = vunpack.c.h.b16 %v624
        %v4283 = vunpack.c.l.b16 %v625
        %v4284 = vunpack.c.h.b16 %v625
        %v4285 = vunpack.c.l.b16 %v626
        %v4286 = vunpack.c.h.b16 %v626
        %v4287 = vunpack.c.l.b16 %v627
        %v4288 = vunpack.c.h.b16 %v627
        %v4289 = vunpack.c.l.b16 %v628
        %v4290 = vunpack.c.h.b16 %v628
        %v4291 = vunpack.c.l.b16 %v629
        %v4292 = vunpack.c.h.b16 %v629
        %v4293 = vunpack.c.l.b16 %v630
        %v4294 = vunpack.c.h.b16 %v630
        %v4295 = vunpack.c.l.b16 %v631
        %v4296 = vunpack.c.h.b16 %v631
        %v4297 = vunpack.c.l.b16 %v632
        %v4298 = vunpack.c.h.b16 %v632
        %v4299 = vunpack.c.l.b16 %v633
        %v4300 = vunpack.c.h.b16 %v633
        %v4301 = vunpack.c.l.b16 %v634
        %v4302 = vunpack.c.h.b16 %v634
        %v4303 = vunpack.c.l.b16 %v635
        %v4304 = vunpack.c.h.b16 %v635
        %v4305 = vunpack.c.l.b16 %v636
        %v4306 = vunpack.c.h.b16 %v636
        %v4307 = vunpack.c.l.b16 %v637
        %v4308 = vunpack.c.h.b16 %v637
        %v4309 = vunpack.c.l.b16 %v638
        %v4310 = vunpack.c.h.b16 %v638
        %v4311 = vunpack.c.l.b16 %v639
        %v4312 = vunpack.c.h.b16 %v639
        %v4313 = vunpack.c.l.b16 %v640
        %v4314 = vunpack.c.h.b16 %v640
        %v4315 = vunpack.c.l.b16 %v641
        %v4316 = vunpack.c.h.b16 %v641
        %v4317 = vunpack.c.l.b16 %v642
        %v4318 = vunpack.c.h.b16 %v642
        %v4319 = vunpack.c.l.b16 %v643
        %v4320 = vunpack.c.h.b16 %v643
        %v4321 = vunpack.c.l.b16 %v644
        %v4322 = vunpack.c.h.b16 %v644
        %v4323 = vunpack.c.l.b16 %v645
        %v4324 = vunpack.c.h.b16 %v645
        %v4325 = vunpack.c.l.b16 %v646
        %v4326 = vunpack.c.h.b16 %v646
        %v4327 = vunpack.c.l.b16 %v647
        %v4328 = vunpack.c.h.b16 %v647
        %v4329 = vunpack.c.l.b16 %v648
        %v4330 = vunpack.c.h.b16 %v648
        %v4331 = vunpack.c.l.b16 %v649
        %v4332 = vunpack.c.h.b16 %v649
        %v4333 = vunpack.c.l.b16 %v650
        %v4334 = vunpack.c.h.b16 %v650
        %v4335 = vunpack.c.l.b16 %v651
        %v4336 = vunpack.c.h.b16 %v651
        %v4337 = vunpack.c.l.b16 %v652
        %v4338 = vunpack.c.h.b16 %v652
        %v4339 = vunpack.c.l.b16 %v653
        %v4340 = vunpack.c.h.b16 %v653
        %v4341 = vunpack.c.l.b16 %v654
        %v4342 = vunpack.c.h.b16 %v654
        %v4343 = vunpack.c.l.b16 %v655
        %v4344 = vunpack.c.h.b16 %v655
        %v4345 = vunpack.c.l.b16 %v656
        %v4346 = vunpack.c.h.b16 %v656
        %v4347 = vunpack.c.l.b16 %v657
        %v4348 = vunpack.c.h.b16 %v657
        %v4349 = vunpack.c.l.b16 %v658
        %v4350 = vunpack.c.h.b16 %v658
        %v4351 = vunpack.c.l.b16 %v659
        %v4352 = vunpack.c.h.b16 %v659
        %v4353 = vunpack.c.l.b16 %v660
        %v4354 = vunpack.c.h.b16 %v660
        %v4355 = vunpack.c.l.b16 %v661
        %v4356 = vunpack.c.h.b16 %v661
        %v4357 = vunpack.c.l.b16 %v662
        %v4358 = vunpack.c.h.b16 %v662
        %v4359 = vunpack.c.l.b16 %v663
        %v4360 = vunpack.c.h.b16 %v663
        %v4361 = vunpack.c.l.b16 %v664
        %v4362 = vunpack.c.h.b16 %v664
        %v4363 = vunpack.c.l.b16 %v665
        %v4364 = vunpack.c.h.b16 %v665
        %v4365 = vunpack.c.l.b16 %v666
        %v4366 = vunpack.c.h.b16 %v666
        %v4367 = vunpack.c.l.b16 %v667
        %v4368 = vunpack.c.h.b16 %v667
        %v4369 = vunpack.c.l.b16 %v668
        %v4370 = vunpack.c.h.b16 %v668
        %v4371 = vunpack.c.l.b16 %v669
        %v4372 = vunpack.c.h.b16 %v669
        %v4373 = vunpack.c.l.b16 %v670
        %v4374 = vunpack.c.h.b16 %v670
        %v4375 = vunpack.c.l.b16 %v671
        %v4376 = vunpack.c.h.b16 %v671
        %v4377 = vunpack.c.l.b16 %v672
        %v4378 = vunpack.c.h.b16 %v672
        %v4379 = vunpack.c.l.b16 %v673
        %v4380 = vunpack.c.h.b16 %v673
        %v4381 = vunpack.c.l.b16 %v674
        %v4382 = vunpack.c.h.b16 %v674
        %v4383 = vunpack.c.l.b16 %v675
        %v4384 = vunpack.c.h.b16 %v675
        %v4385 = vunpack.c.l.b16 %v676
        %v4386 = vunpack.c.h.b16 %v676
        %v4387 = vunpack.c.l.b16 %v677
        %v4388 = vunpack.c.h.b16 %v677
        %v4389 = vunpack.c.l.b16 %v678
        %v4390 = vunpack.c.h.b16 %v678
        %v4391 = vunpack.c.l.b16 %v679
        %v4392 = vunpack.c.h.b16 %v679
        %v4393 = vunpack.c.l.b16 %v680
        %v4394 = vunpack.c.h.b16 %v680
        %v4395 = vunpack.c.l.b16 %v681
        %v4396 = vunpack.c.h.b16 %v681
        %v4397 = vunpack.c.l.b16 %v682
        %v4398 = vunpack.c.h.b16 %v682
        %v4399 = vunpack.c.l.b16 %v683
        %v4400 = vunpack.c.h.b16 %v683
        %v4401 = vunpack.c.l.b16 %v684
        %v4402 = vunpack.c.h.b16 %v684
        %v4403 = vunpack.c.l.b16 %v685
        %v4404 = vunpack.c.h.b16 %v685
        %v4405 = vunpack.c.l.b16 %v686
        %v4406 = vunpack.c.h.b16 %v686
        %v4407 = vunpack.c.l.b16 %v687
        %v4408 = vunpack.c.h.b16 %v687
        %v4409 = vunpack.c.l.b16 %v688
        %v4410 = vunpack.c.h.b16 %v688
        %v4411 = vunpack.c.l.b16 %v689
        %v4412 = vunpack.c.h.b16 %v689
        %v4413 = vunpack.c.l.b16 %v690
        %v4414 = vunpack.c.h.b16 %v690
        %v4415 = vunpack.c.l.b16 %v691
        %v4416 = vunpack.c.h.b16 %v691
        %v4417 = vunpack.c.l.b16 %v692
        %v4418 = vunpack.c.h.b16 %v692
        %v4419 = vunpack.c.l.b16 %v693
        %v4420 = vunpack.c.h.b16 %v693
        %v4421 = vunpack.c.l.b16 %v694
        %v4422 = vunpack.c.h.b16 %v694
        %v4423 = vunpack.c.l.b16 %v695
        %v4424 = vunpack.c.h.b16 %v695
        %v4425 = vunpack.c.l.b16 %v696
        %v4426 = vunpack.c.h.b16 %v696
        %v4427 = vunpack.c.l.b16 %v697
        %v4428 = vunpack.c.h.b16 %v697
        %v4429 = vunpack.c.l.b16 %v698
        %v4430 = vunpack.c.h.b16 %v698
        %v4431 = vunpack.c.l.b16 %v699
        %v4432 = vunpack.c.h.b16 %v699
        %v4433 = vunpack.c.l.b16 %v700
        %v4434 = vunpack.c.h.b16 %v700
        %v4435 = vunpack.c.l.b16 %v701
        %v4436 = vunpack.c.h.b16 %v701
        %v4437 = vunpack.c.l.b16 %v702
        %v4438 = vunpack.c.h.b16 %v702
        %v4439 = vunpack.c.l.b16 %v703
        %v4440 = vunpack.c.h.b16 %v703
        %v4441 = vunpack.c.l.b16 %v704
        %v4442 = vunpack.c.h.b16 %v704
        %v4443 = vunpack.c.l.b16 %v705
        %v4444 = vunpack.c.h.b16 %v705
        %v4445 = vunpack.c.l.b16 %v706
        %v4446 = vunpack.c.h.b16 %v706
        %v4447 = vunpack.c.l.b16 %v707
        %v4448 = vunpack.c.h.b16 %v707
        %v4449 = vunpack.c.l.b16 %v708
        %v4450 = vunpack.c.h.b16 %v708
        %v4451 = vunpack.c.l.b16 %v709
        %v4452 = vunpack.c.h.b16 %v709
        %v4453 = vunpack.c.l.b16 %v710
        %v4454 = vunpack.c.h.b16 %v710
        %v4455 = vunpack.c.l.b16 %v711
        %v4456 = vunpack.c.h.b16 %v711
        %v4457 = vunpack.c.l.b16 %v712
        %v4458 = vunpack.c.h.b16 %v712
        %v4459 = vunpack.c.l.b16 %v713
        %v4460 = vunpack.c.h.b16 %v713
        %v4461 = vunpack.c.l.b16 %v714
        %v4462 = vunpack.c.h.b16 %v714
        %v4463 = vunpack.c.l.b16 %v715
        %v4464 = vunpack.c.h.b16 %v715
        %v4465 = vunpack.c.l.b16 %v716
        %v4466 = vunpack.c.h.b16 %v716
        %v4467 = vunpack.c.l.b16 %v717
        %v4468 = vunpack.c.h.b16 %v717
        %v4469 = vunpack.c.l.b16 %v718
        %v4470 = vunpack.c.h.b16 %v718
        %v4471 = vunpack.c.l.b16 %v719
        %v4472 = vunpack.c.h.b16 %v719
        %v4473 = vunpack.c.l.b16 %v720
        %v4474 = vunpack.c.h.b16 %v720
        %v4475 = vunpack.c.l.b16 %v721
        %v4476 = vunpack.c.h.b16 %v721
        %v4477 = vunpack.c.l.b16 %v722
        %v4478 = vunpack.c.h.b16 %v722
        %v4479 = vunpack.c.l.b16 %v723
        %v4480 = vunpack.c.h.b16 %v723
        %v4481 = vunpack.c.l.b16 %v724
        %v4482 = vunpack.c.h.b16 %v724
        %v4483 = vunpack.c.l.b16 %v725
        %v4484 = vunpack.c.h.b16 %v725
        %v4485 = vunpack.c.l.b16 %v726
        %v4486 = vunpack.c.h.b16 %v726
        %v4487 = vunpack.c.l.b16 %v727
        %v4488 = vunpack.c.h.b16 %v727
        %v4489 = vunpack.c.l.b16 %v728
        %v4490 = vunpack.c.h.b16 %v728
        %v4491 = vunpack.c.l.b16 %v729
        %v4492 = vunpack.c.h.b16 %v729
        %v4493 = vunpack.c.l.b16 %v730
        %v4494 = vunpack.c.h.b16 %v730
        %v4495 = vunpack.c.l.b16 %v731
        %v4496 = vunpack.c.h.b16 %v731
        %v4497 = vunpack.c.l.b16 %v732
        %v4498 = vunpack.c.h.b16 %v732
        %v4499 = vunpack.c.l.b16 %v733
        %v4500 = vunpack.c.h.b16 %v733
        %v4501 = vunpack.c.l.b16 %v734
        %v4502 = vunpack.c.h.b16 %v734
        %v4503 = vunpack.c.l.b16 %v735
        %v4504 = vunpack.c.h.b16 %v735
        %v4505 = vunpack.c.l.b16 %v736
        %v4506 = vunpack.c.h.b16 %v736
        %v4507 = vunpack.c.l.b16 %v737
        %v4508 = vunpack.c.h.b16 %v737
        %v4509 = vunpack.c.l.b16 %v738
        %v4510 = vunpack.c.h.b16 %v738
        %v4511 = vunpack.c.l.b16 %v739
        %v4512 = vunpack.c.h.b16 %v739
        %v4513 = vunpack.c.l.b16 %v740
        %v4514 = vunpack.c.h.b16 %v740
        %v4515 = vunpack.c.l.b16 %v741
        %v4516 = vunpack.c.h.b16 %v741
        %v4517 = vunpack.c.l.b16 %v742
        %v4518 = vunpack.c.h.b16 %v742
        %v4519 = vunpack.c.l.b16 %v743
        %v4520 = vunpack.c.h.b16 %v743
        %v4521 = vunpack.c.l.b16 %v744
        %v4522 = vunpack.c.h.b16 %v744
        %v4523 = vunpack.c.l.b16 %v745
        %v4524 = vunpack.c.h.b16 %v745
        %v4525 = vunpack.c.l.b16 %v746
        %v4526 = vunpack.c.h.b16 %v746
        %v4527 = vunpack.c.l.b16 %v747
        %v4528 = vunpack.c.h.b16 %v747
        %v4529 = vunpack.c.l.b16 %v748
        %v4530 = vunpack.c.h.b16 %v748
        %v4531 = vunpack.c.l.b16 %v749
        %v4532 = vunpack.c.h.b16 %v749
        %v4533 = vunpack.c.l.b16 %v750
        %v4534 = vunpack.c.h.b16 %v750
        %v4535 = vunpack.c.l.b16 %v751
        %v4536 = vunpack.c.h.b16 %v751
        %v4537 = vunpack.c.l.b16 %v752
        %v4538 = vunpack.c.h.b16 %v752
        %v4539 = vunpack.c.l.b16 %v753
        %v4540 = vunpack.c.h.b16 %v753
        %v4541 = vunpack.c.l.b16 %v754
        %v4542 = vunpack.c.h.b16 %v754
        %v4543 = vunpack.c.l.b16 %v755
        %v4544 = vunpack.c.h.b16 %v755
        %v4545 = vunpack.c.l.b16 %v756
        %v4546 = vunpack.c.h.b16 %v756
        %v4547 = vunpack.c.l.b16 %v757
        %v4548 = vunpack.c.h.b16 %v757
        %v4549 = vunpack.c.l.b16 %v758
        %v4550 = vunpack.c.h.b16 %v758
        %v4551 = vunpack.c.l.b16 %v759
        %v4552 = vunpack.c.h.b16 %v759
        %v4553 = vunpack.c.l.b16 %v760
        %v4554 = vunpack.c.h.b16 %v760
        %v4555 = vunpack.c.l.b16 %v761
        %v4556 = vunpack.c.h.b16 %v761
        %v4557 = vunpack.c.l.b16 %v762
        %v4558 = vunpack.c.h.b16 %v762
        %v4559 = vunpack.c.l.b16 %v763
        %v4560 = vunpack.c.h.b16 %v763
        %v4561 = vunpack.c.l.b16 %v764
        %v4562 = vunpack.c.h.b16 %v764
        %v4563 = vunpack.c.l.b16 %v765
        %v4564 = vunpack.c.h.b16 %v765
        %v4565 = vunpack.c.l.b16 %v766
        %v4566 = vunpack.c.h.b16 %v766
        %v4567 = vunpack.c.l.b16 %v767
        %v4568 = vunpack.c.h.b16 %v767
        %v4569 = vunpack.c.l.b16 %v768
        %v4570 = vunpack.c.h.b16 %v768
        %v4571 = vunpack.c.l.b16 %v769
        %v4572 = vunpack.c.h.b16 %v769
        %v4573 = vunpack.c.l.b16 %v770
        %v4574 = vunpack.c.h.b16 %v770
        %v4575 = vunpack.c.l.b16 %v771
        %v4576 = vunpack.c.h.b16 %v771
        %v4577 = vunpack.c.l.b16 %v772
        %v4578 = vunpack.c.h.b16 %v772
        %v4579 = vunpack.c.l.b16 %v773
        %v4580 = vunpack.c.h.b16 %v773
        %v4581 = vunpack.c.l.b16 %v774
        %v4582 = vunpack.c.h.b16 %v774
        %v4583 = vunpack.c.l.b16 %v775
        %v4584 = vunpack.c.h.b16 %v775
        %v4585 = vunpack.c.l.b16 %v776
        %v4586 = vunpack.c.h.b16 %v776
        %v4587 = vunpack.c.l.b16 %v777
        %v4588 = vunpack.c.h.b16 %v777
        %v4589 = vunpack.c.l.b16 %v778
        %v4590 = vunpack.c.h.b16 %v778
        %v4591 = vunpack.c.l.b16 %v779
        %v4592 = vunpack.c.h.b16 %v779
        %v4593 = vunpack.c.l.b16 %v780
        %v4594 = vunpack.c.h.b16 %v780
        %v4595 = vunpack.c.l.b16 %v781
        %v4596 = vunpack.c.h.b16 %v781
        %v4597 = vunpack.c.l.b16 %v782
        %v4598 = vunpack.c.h.b16 %v782
        %v4599 = vunpack.c.l.b16 %v783
        %v4600 = vunpack.c.h.b16 %v783
        %v4601 = vunpack.c.l.b16 %v784
        %v4602 = vunpack.c.h.b16 %v784
        %v4603 = vunpack.c.l.b16 %v785
        %v4604 = vunpack.c.h.b16 %v785
        %v4605 = vunpack.c.l.b16 %v786
        %v4606 = vunpack.c.h.b16 %v786
        %v4607 = vunpack.c.l.b16 %v787
        %v4608 = vunpack.c.h.b16 %v787
        %v4609 = vunpack.c.l.b16 %v788
        %v4610 = vunpack.c.h.b16 %v788
        %v4611 = vunpack.c.l.b16 %v789
        %v4612 = vunpack.c.h.b16 %v789
        %v4613 = vunpack.c.l.b16 %v790
        %v4614 = vunpack.c.h.b16 %v790
        %v4615 = vunpack.c.l.b16 %v791
        %v4616 = vunpack.c.h.b16 %v791
        %v4617 = vunpack.c.l.b16 %v792
        %v4618 = vunpack.c.h.b16 %v792
        %v4619 = vunpack.c.l.b16 %v793
        %v4620 = vunpack.c.h.b16 %v793
        %v4621 = vunpack.c.l.b16 %v794
        %v4622 = vunpack.c.h.b16 %v794
        %v4623 = vunpack.c.l.b16 %v795
        %v4624 = vunpack.c.h.b16 %v795
        %v4625 = vunpack.c.l.b16 %v796
        %v4626 = vunpack.c.h.b16 %v796
        %v4627 = vunpack.c.l.b16 %v797
        %v4628 = vunpack.c.h.b16 %v797
        %v4629 = vunpack.c.l.b16 %v798
        %v4630 = vunpack.c.h.b16 %v798
        %v4631 = vunpack.c.l.b16 %v799
        %v4632 = vunpack.c.h.b16 %v799
        %v4633 = vunpack.c.l.b16 %v800
        %v4634 = vunpack.c.h.b16 %v800
        %v4635 = vunpack.c.l.b16 %v801
        %v4636 = vunpack.c.h.b16 %v801
        %v4637 = vunpack.c.l.b16 %v802
        %v4638 = vunpack.c.h.b16 %v802
        %v4639 = vunpack.c.l.b16 %v803
        %v4640 = vunpack.c.h.b16 %v803
        %v4641 = vunpack.c.l.b16 %v804
        %v4642 = vunpack.c.h.b16 %v804
        %v4643 = vunpack.c.l.b16 %v805
        %v4644 = vunpack.c.h.b16 %v805
        %v4645 = vunpack.c.l.b16 %v806
        %v4646 = vunpack.c.h.b16 %v806
        %v4647 = vunpack.c.l.b16 %v807
        %v4648 = vunpack.c.h.b16 %v807
        %v4649 = vunpack.c.l.b16 %v808
        %v4650 = vunpack.c.h.b16 %v808
        %v4651 = vunpack.c.l.b16 %v809
        %v4652 = vunpack.c.h.b16 %v809
        %v4653 = vunpack.c.l.b16 %v810
        %v4654 = vunpack.c.h.b16 %v810
        %v4655 = vunpack.c.l.b16 %v811
        %v4656 = vunpack.c.h.b16 %v811
        %v4657 = vunpack.c.l.b16 %v812
        %v4658 = vunpack.c.h.b16 %v812
        %v4659 = vunpack.c.l.b16 %v813
        %v4660 = vunpack.c.h.b16 %v813
        %v4661 = vunpack.c.l.b16 %v814
        %v4662 = vunpack.c.h.b16 %v814
        %v4663 = vunpack.c.l.b16 %v815
        %v4664 = vunpack.c.h.b16 %v815
        %v4665 = vunpack.c.l.b16 %v816
        %v4666 = vunpack.c.h.b16 %v816
        %v4667 = vunpack.c.l.b16 %v817
        %v4668 = vunpack.c.h.b16 %v817
        %v4669 = vunpack.c.l.b16 %v818
        %v4670 = vunpack.c.h.b16 %v818
        %v4671 = vunpack.c.l.b16 %v819
        %v4672 = vunpack.c.h.b16 %v819
        %v4673 = vunpack.c.l.b16 %v820
        %v4674 = vunpack.c.h.b16 %v820
        %v4675 = vunpack.c.l.b16 %v821
        %v4676 = vunpack.c.h.b16 %v821
        %v4677 = vunpack.c.l.b16 %v822
        %v4678 = vunpack.c.h.b16 %v822
        %v4679 = vunpack.c.l.b16 %v823
        %v4680 = vunpack.c.h.b16 %v823
        %v4681 = vunpack.c.l.b16 %v824
        %v4682 = vunpack.c.h.b16 %v824
        %v4683 = vunpack.c.l.b16 %v825
        %v4684 = vunpack.c.h.b16 %v825
        %v4685 = vunpack.c.l.b16 %v826
        %v4686 = vunpack.c.h.b16 %v826
        %v4687 = vunpack.c.l.b16 %v827
        %v4688 = vunpack.c.h.b16 %v827
        %v4689 = vunpack.c.l.b16 %v828
        %v4690 = vunpack.c.h.b16 %v828
        %v4691 = vunpack.c.l.b16 %v829
        %v4692 = vunpack.c.h.b16 %v829
        %v4693 = vunpack.c.l.b16 %v830
        %v4694 = vunpack.c.h.b16 %v830
        %v4695 = vunpack.c.l.b16 %v831
        %v4696 = vunpack.c.h.b16 %v831
        %v4697 = vunpack.c.l.b16 %v832
        %v4698 = vunpack.c.h.b16 %v832
        %v4699 = vunpack.c.l.b16 %v833
        %v4700 = vunpack.c.h.b16 %v833
        %v4701 = vunpack.c.l.b16 %v834
        %v4702 = vunpack.c.h.b16 %v834
        %v4703 = vunpack.c.l.b16 %v835
        %v4704 = vunpack.c.h.b16 %v835
        %v4705 = vunpack.c.l.b16 %v836
        %v4706 = vunpack.c.h.b16 %v836
        %v4707 = vunpack.c.l.b16 %v837
        %v4708 = vunpack.c.h.b16 %v837
        %v4709 = vunpack.c.l.b16 %v838
        %v4710 = vunpack.c.h.b16 %v838
        %v4711 = vunpack.c.l.b16 %v839
        %v4712 = vunpack.c.h.b16 %v839
        %v4713 = vunpack.c.l.b16 %v840
        %v4714 = vunpack.c.h.b16 %v840
        %v4715 = vunpack.c.l.b16 %v841
        %v4716 = vunpack.c.h.b16 %v841
        %v4717 = vunpack.c.l.b16 %v842
        %v4718 = vunpack.c.h.b16 %v842
        %v4719 = vunpack.c.l.b16 %v843
        %v4720 = vunpack.c.h.b16 %v843
        %v4721 = vunpack.c.l.b16 %v844
        %v4722 = vunpack.c.h.b16 %v844
        %v4723 = vunpack.c.l.b16 %v845
        %v4724 = vunpack.c.h.b16 %v845
        %v4725 = vunpack.c.l.b16 %v846
        %v4726 = vunpack.c.h.b16 %v846
        %v4727 = vunpack.c.l.b16 %v847
        %v4728 = vunpack.c.h.b16 %v847
        %v4729 = vunpack.c.l.b16 %v848
        %v4730 = vunpack.c.h.b16 %v848
        %v4731 = vunpack.c.l.b16 %v849
        %v4732 = vunpack.c.h.b16 %v849
        %v4733 = vunpack.c.l.b16 %v850
        %v4734 = vunpack.c.h.b16 %v850
        %v4735 = vunpack.c.l.b16 %v851
        %v4736 = vunpack.c.h.b16 %v851
        %v4737 = vunpack.c.l.b16 %v852
        %v4738 = vunpack.c.h.b16 %v852
        %v4739 = vunpack.c.l.b16 %v853
        %v4740 = vunpack.c.h.b16 %v853
        %v4741 = vunpack.c.l.b16 %v854
        %v4742 = vunpack.c.h.b16 %v854
        %v4743 = vunpack.c.l.b16 %v855
        %v4744 = vunpack.c.h.b16 %v855
        %v4745 = vunpack.c.l.b16 %v856
        %v4746 = vunpack.c.h.b16 %v856
        %v4747 = vunpack.c.l.b16 %v857
        %v4748 = vunpack.c.h.b16 %v857
        %v4749 = vunpack.c.l.b16 %v858
        %v4750 = vunpack.c.h.b16 %v858
        %v4751 = vunpack.c.l.b16 %v859
        %v4752 = vunpack.c.h.b16 %v859
        %v4753 = vunpack.c.l.b16 %v860
        %v4754 = vunpack.c.h.b16 %v860
        %v4755 = vunpack.c.l.b16 %v861
        %v4756 = vunpack.c.h.b16 %v861
        %v4757 = vunpack.c.l.b16 %v862
        %v4758 = vunpack.c.h.b16 %v862
        %v4759 = vunpack.c.l.b16 %v863
        %v4760 = vunpack.c.h.b16 %v863
        %v4761 = vunpack.c.l.b16 %v864
        %v4762 = vunpack.c.h.b16 %v864
        %v4763 = vunpack.c.l.b16 %v865
        %v4764 = vunpack.c.h.b16 %v865
        %v4765 = vunpack.c.l.b16 %v866
        %v4766 = vunpack.c.h.b16 %v866
        %v4767 = vunpack.c.l.b16 %v867
        %v4768 = vunpack.c.h.b16 %v867
        %v4769 = vunpack.c.l.b16 %v868
        %v4770 = vunpack.c.h.b16 %v868
        %v4771 = vunpack.c.l.b16 %v869
        %v4772 = vunpack.c.h.b16 %v869
        %v4773 = vunpack.c.l.b16 %v870
        %v4774 = vunpack.c.h.b16 %v870
        %v4775 = vunpack.c.l.b16 %v871
        %v4776 = vunpack.c.h.b16 %v871
        %v4777 = vunpack.c.l.b16 %v872
        %v4778 = vunpack.c.h.b16 %v872
        %v4779 = vunpack.c.l.b16 %v873
        %v4780 = vunpack.c.h.b16 %v873
        %v4781 = vunpack.c.l.b16 %v874
        %v4782 = vunpack.c.h.b16 %v874
        %v4783 = vunpack.c.l.b16 %v875
        %v4784 = vunpack.c.h.b16 %v875
        %v4785 = vunpack.c.l.b16 %v876
        %v4786 = vunpack.c.h.b16 %v876
        %v4787 = vunpack.c.l.b16 %v877
        %v4788 = vunpack.c.h.b16 %v877
        %v4789 = vunpack.c.l.b16 %v878
        %v4790 = vunpack.c.h.b16 %v878
        %v4791 = vunpack.c.l.b16 %v879
        %v4792 = vunpack.c.h.b16 %v879
        %v4793 = vunpack.c.l.b16 %v880
        %v4794 = vunpack.c.h.b16 %v880
        %v4795 = vunpack.c.l.b16 %v881
        %v4796 = vunpack.c.h.b16 %v881
        %v4797 = vunpack.c.l.b16 %v882
        %v4798 = vunpack.c.h.b16 %v882
        %v4799 = vunpack.c.l.b16 %v883
        %v4800 = vunpack.c.h.b16 %v883
        %v4801 = vunpack.c.l.b16 %v884
        %v4802 = vunpack.c.h.b16 %v884
        %v4803 = vunpack.c.l.b16 %v885
        %v4804 = vunpack.c.h.b16 %v885
        %v4805 = vunpack.c.l.b16 %v886
        %v4806 = vunpack.c.h.b16 %v886
        %v4807 = vunpack.c.l.b16 %v887
        %v4808 = vunpack.c.h.b16 %v887
        %v4809 = vunpack.c.l.b16 %v888
        %v4810 = vunpack.c.h.b16 %v888
        %v4811 = vunpack.c.l.b16 %v889
        %v4812 = vunpack.c.h.b16 %v889
        %v4813 = vunpack.c.l.b16 %v890
        %v4814 = vunpack.c.h.b16 %v890
        %v4815 = vunpack.c.l.b16 %v891
        %v4816 = vunpack.c.h.b16 %v891
        %v4817 = vunpack.c.l.b16 %v892
        %v4818 = vunpack.c.h.b16 %v892
        %v4819 = vunpack.c.l.b16 %v893
        %v4820 = vunpack.c.h.b16 %v893
        %v4821 = vunpack.c.l.b16 %v894
        %v4822 = vunpack.c.h.b16 %v894
        %v4823 = vunpack.c.l.b16 %v895
        %v4824 = vunpack.c.h.b16 %v895
        %v4825 = vunpack.c.l.b16 %v896
        %v4826 = vunpack.c.h.b16 %v896
        %v4827 = vunpack.c.l.b16 %v897
        %v4828 = vunpack.c.h.b16 %v897
        %v4829 = vunpack.c.l.b16 %v898
        %v4830 = vunpack.c.h.b16 %v898
        %v4831 = vunpack.c.l.b16 %v899
        %v4832 = vunpack.c.h.b16 %v899
        %v4833 = vunpack.c.l.b16 %v900
        %v4834 = vunpack.c.h.b16 %v900
        %v4835 = vunpack.c.l.b16 %v901
        %v4836 = vunpack.c.h.b16 %v901
        %v4837 = vunpack.c.l.b16 %v902
        %v4838 = vunpack.c.h.b16 %v902
        %v4839 = vunpack.c.l.b16 %v903
        %v4840 = vunpack.c.h.b16 %v903
        %v4841 = vunpack.c.l.b16 %v904
        %v4842 = vunpack.c.h.b16 %v904
        %v4843 = vunpack.c.l.b16 %v905
        %v4844 = vunpack.c.h.b16 %v905
        %v4845 = vunpack.c.l.b16 %v906
        %v4846 = vunpack.c.h.b16 %v906
        %v4847 = vunpack.c.l.b16 %v907
        %v4848 = vunpack.c.h.b16 %v907
        %v4849 = vunpack.c.l.b16 %v908
        %v4850 = vunpack.c.h.b16 %v908
        %v4851 = vunpack.c.l.b16 %v909
        %v4852 = vunpack.c.h.b16 %v909
        %v4853 = vunpack.c.l.b16 %v910
        %v4854 = vunpack.c.h.b16 %v910
        %v4855 = vunpack.c.l.b16 %v911
        %v4856 = vunpack.c.h.b16 %v911
        %v4857 = vunpack.c.l.b16 %v912
        %v4858 = vunpack.c.h.b16 %v912
        %v4859 = vunpack.c.l.b16 %v913
        %v4860 = vunpack.c.h.b16 %v913
        %v4861 = vunpack.c.l.b16 %v914
        %v4862 = vunpack.c.h.b16 %v914
        %v4863 = vunpack.c.l.b16 %v915
        %v4864 = vunpack.c.h.b16 %v915
        %v4865 = vunpack.c.l.b16 %v916
        %v4866 = vunpack.c.h.b16 %v916
        %v4867 = vunpack.c.l.b16 %v917
        %v4868 = vunpack.c.h.b16 %v917
        %v4869 = vunpack.c.l.b16 %v918
        %v4870 = vunpack.c.h.b16 %v918
        %v4871 = vunpack.c.l.b16 %v919
        %v4872 = vunpack.c.h.b16 %v919
        %v4873 = vunpack.c.l.b16 %v920
        %v4874 = vunpack.c.h.b16 %v920
        %v4875 = vunpack.c.l.b16 %v921
        %v4876 = vunpack.c.h.b16 %v921
        %v4877 = vunpack.c.l.b16 %v922
        %v4878 = vunpack.c.h.b16 %v922
        %v4879 = vunpack.c.l.b16 %v923
        %v4880 = vunpack.c.h.b16 %v923
        %v4881 = vunpack.c.l.b16 %v924
        %v4882 = vunpack.c.h.b16 %v924
        %v4883 = vunpack.c.l.b16 %v925
        %v4884 = vunpack.c.h.b16 %v925
        %v4885 = vunpack.c.l.b16 %v926
        %v4886 = vunpack.c.h.b16 %v926
        %v4887 = vunpack.c.l.b16 %v927
        %v4888 = vunpack.c.h.b16 %v927
        %v4889 = vunpack.c.l.b16 %v928
        %v4890 = vunpack.c.h.b16 %v928
        %v4891 = vunpack.c.l.b16 %v929
        %v4892 = vunpack.c.h.b16 %v929
        %v4893 = vunpack.c.l.b16 %v930
        %v4894 = vunpack.c.h.b16 %v930
        %v4895 = vunpack.c.l.b16 %v931
        %v4896 = vunpack.c.h.b16 %v931
        %v4897 = vunpack.c.l.b16 %v932
        %v4898 = vunpack.c.h.b16 %v932
        %v4899 = vunpack.c.l.b16 %v933
        %v4900 = vunpack.c.h.b16 %v933
        %v4901 = vunpack.c.l.b16 %v934
        %v4902 = vunpack.c.h.b16 %v934
        %v4903 = vunpack.c.l.b16 %v935
        %v4904 = vunpack.c.h.b16 %v935
        %v4905 = vunpack.c.l.b16 %v936
        %v4906 = vunpack.c.h.b16 %v936
        %v4907 = vunpack.c.l.b16 %v937
        %v4908 = vunpack.c.h.b16 %v937
        %v4909 = vunpack.c.l.b16 %v938
        %v4910 = vunpack.c.h.b16 %v938
        %v4911 = vunpack.c.l.b16 %v939
        %v4912 = vunpack.c.h.b16 %v939
        %v4913 = vunpack.c.l.b16 %v940
        %v4914 = vunpack.c.h.b16 %v940
        %v4915 = vunpack.c.l.b16 %v941
        %v4916 = vunpack.c.h.b16 %v941
        %v4917 = vunpack.c.l.b16 %v942
        %v4918 = vunpack.c.h.b16 %v942
        %v4919 = vunpack.c.l.b16 %v943
        %v4920 = vunpack.c.h.b16 %v943
        %v4921 = vunpack.c.l.b16 %v944
        %v4922 = vunpack.c.h.b16 %v944
        %v4923 = vunpack.c.l.b16 %v945
        %v4924 = vunpack.c.h.b16 %v945
        %v4925 = vunpack.c.l.b16 %v946
        %v4926 = vunpack.c.h.b16 %v946
        %v4927 = vunpack.c.l.b16 %v947
        %v4928 = vunpack.c.h.b16 %v947
        %v4929 = vunpack.c.l.b16 %v948
        %v4930 = vunpack.c.h.b16 %v948
        %v4931 = vunpack.c.l.b16 %v949
        %v4932 = vunpack.c.h.b16 %v949
        %v4933 = vunpack.c.l.b16 %v950
        %v4934 = vunpack.c.h.b16 %v950
        %v4935 = vunpack.c.l.b16 %v951
        %v4936 = vunpack.c.h.b16 %v951
        %v4937 = vunpack.c.l.b16 %v952
        %v4938 = vunpack.c.h.b16 %v952
        %v4939 = vunpack.c.l.b16 %v953
        %v4940 = vunpack.c.h.b16 %v953
        %v4941 = vunpack.c.l.b16 %v954
        %v4942 = vunpack.c.h.b16 %v954
        %v4943 = vunpack.c.l.b16 %v955
        %v4944 = vunpack.c.h.b16 %v955
        %v4945 = vunpack.c.l.b16 %v956
        %v4946 = vunpack.c.h.b16 %v956
        %v4947 = vunpack.c.l.b16 %v957
        %v4948 = vunpack.c.h.b16 %v957
        %v4949 = vunpack.c.l.b16 %v958
        %v4950 = vunpack.c.h.b16 %v958
        %v4951 = vunpack.c.l.b16 %v959
        %v4952 = vunpack.c.h.b16 %v959
        %v4953 = vunpack.c.l.b16 %v960
        %v4954 = vunpack.c.h.b16 %v960
        %v4955 = vunpack.c.l.b16 %v961
        %v4956 = vunpack.c.h.b16 %v961
        %v4957 = vunpack.c.l.b16 %v962
        %v4958 = vunpack.c.h.b16 %v962
        %v4959 = vunpack.c.l.b16 %v963
        %v4960 = vunpack.c.h.b16 %v963
        %v4961 = vunpack.c.l.b16 %v964
        %v4962 = vunpack.c.h.b16 %v964
        %v4963 = vunpack.c.l.b16 %v965
        %v4964 = vunpack.c.h.b16 %v965
        %v4965 = vunpack.c.l.b16 %v966
        %v4966 = vunpack.c.h.b16 %v966
        %v4967 = vunpack.c.l.b16 %v967
        %v4968 = vunpack.c.h.b16 %v967
        %v4969 = vunpack.c.l.b16 %v968
        %v4970 = vunpack.c.h.b16 %v968
        %v4971 = vunpack.c.l.b16 %v969
        %v4972 = vunpack.c.h.b16 %v969
        %v4973 = vunpack.c.l.b16 %v970
        %v4974 = vunpack.c.h.b16 %v970
        %v4975 = vunpack.c.l.b16 %v971
        %v4976 = vunpack.c.h.b16 %v971
        %v4977 = vunpack.c.l.b16 %v972
        %v4978 = vunpack.c.h.b16 %v972
        %v4979 = vunpack.c.l.b16 %v973
        %v4980 = vunpack.c.h.b16 %v973
        %v4981 = vunpack.c.l.b16 %v974
        %v4982 = vunpack.c.h.b16 %v974
        %v4983 = vunpack.c.l.b16 %v975
        %v4984 = vunpack.c.h.b16 %v975
        %v4985 = vunpack.c.l.b16 %v976
        %v4986 = vunpack.c.h.b16 %v976
        %v4987 = vunpack.c.l.b16 %v977
        %v4988 = vunpack.c.h.b16 %v977
        %v4989 = vunpack.c.l.b16 %v978
        %v4990 = vunpack.c.h.b16 %v978
        %v4991 = vunpack.c.l.b16 %v979
        %v4992 = vunpack.c.h.b16 %v979
        %v4993 = vunpack.c.l.b16 %v980
        %v4994 = vunpack.c.h.b16 %v980
        %v4995 = vunpack.c.l.b16 %v981
        %v4996 = vunpack.c.h.b16 %v981
        %v4997 = vunpack.c.l.b16 %v982
        %v4998 = vunpack.c.h.b16 %v982
        %v4999 = vunpack.c.l.b16 %v983
        %v5000 = vunpack.c.h.b16 %v983
        %v5001 = vunpack.c.l.b16 %v984
        %v5002 = vunpack.c.h.b16 %v984
        %v5003 = vunpack.c.l.b16 %v985
        %v5004 = vunpack.c.h.b16 %v985
        %v5005 = vunpack.c.l.b16 %v986
        %v5006 = vunpack.c.h.b16 %v986
        %v5007 = vunpack.c.l.b16 %v987
        %v5008 = vunpack.c.h.b16 %v987
        %v5009 = vunpack.c.l.b16 %v988
        %v5010 = vunpack.c.h.b16 %v988
        %v5011 = vunpack.c.l.b16 %v989
        %v5012 = vunpack.c.h.b16 %v989
        %v5013 = vunpack.c.l.b16 %v990
        %v5014 = vunpack.c.h.b16 %v990
        %v5015 = vunpack.c.l.b16 %v991
        %v5016 = vunpack.c.h.b16 %v991
        %v5017 = vunpack.c.l.b16 %v992
        %v5018 = vunpack.c.h.b16 %v992
        %v5019 = vunpack.c.l.b16 %v993
        %v5020 = vunpack.c.h.b16 %v993
        %v5021 = vunpack.c.l.b16 %v994
        %v5022 = vunpack.c.h.b16 %v994
        %v5023 = vunpack.c.l.b16 %v995
        %v5024 = vunpack.c.h.b16 %v995
        %v5025 = vunpack.c.l.b16 %v996
        %v5026 = vunpack.c.h.b16 %v996
        %v5027 = vunpack.c.l.b16 %v997
        %v5028 = vunpack.c.h.b16 %v997
        %v5029 = vunpack.c.l.b16 %v998
        %v5030 = vunpack.c.h.b16 %v998
        %v5031 = vunpack.c.l.b16 %v999
        %v5032 = vunpack.c.h.b16 %v999
        %v5033 = vunpack.c.l.b16 %v1000
        %v5034 = vunpack.c.h.b16 %v1000
        %v5035 = vunpack.c.l.b16 %v1001
        %v5036 = vunpack.c.h.b16 %v1001
        %v5037 = vunpack.c.l.b16 %v1002
        %v5038 = vunpack.c.h.b16 %v1002
        %v5039 = vunpack.c.l.b16 %v1003
        %v5040 = vunpack.c.h.b16 %v1003
        %v5041 = vunpack.c.l.b16 %v1004
        %v5042 = vunpack.c.h.b16 %v1004
        %v5043 = vunpack.c.l.b16 %v1005
        %v5044 = vunpack.c.h.b16 %v1005
        %v5045 = vunpack.c.l.b16 %v1006
        %v5046 = vunpack.c.h.b16 %v1006
        %v5047 = vunpack.c.l.b16 %v1007
        %v5048 = vunpack.c.h.b16 %v1007
        %v5049 = vunpack.c.l.b16 %v1008
        %v5050 = vunpack.c.h.b16 %v1008
        %v5051 = vunpack.c.l.b16 %v1009
        %v5052 = vunpack.c.h.b16 %v1009
        %v5053 = vunpack.c.l.b16 %v1010
        %v5054 = vunpack.c.h.b16 %v1010
        %v5055 = vunpack.c.l.b16 %v1011
        %v5056 = vunpack.c.h.b16 %v1011
        %v5057 = vunpack.c.l.b16 %v1012
        %v5058 = vunpack.c.h.b16 %v1012
        %v5059 = vunpack.c.l.b16 %v1013
        %v5060 = vunpack.c.h.b16 %v1013
        %v5061 = vunpack.c.l.b16 %v1014
        %v5062 = vunpack.c.h.b16 %v1014
        %v5063 = vunpack.c.l.b16 %v1015
        %v5064 = vunpack.c.h.b16 %v1015
        %v5065 = vunpack.c.l.b16 %v1016
        %v5066 = vunpack.c.h.b16 %v1016
        %v5067 = vunpack.c.l.b16 %v1017
        %v5068 = vunpack.c.h.b16 %v1017
        %v5069 = vunpack.c.l.b16 %v1018
        %v5070 = vunpack.c.h.b16 %v1018
        %v5071 = vunpack.c.l.b16 %v1019
        %v5072 = vunpack.c.h.b16 %v1019
        %v5073 = vunpack.c.l.b16 %v1020
        %v5074 = vunpack.c.h.b16 %v1020
        %v5075 = vunpack.c.l.b16 %v1021
        %v5076 = vunpack.c.h.b16 %v1021
        %v5077 = vunpack.c.l.b16 %v1022
        %v5078 = vunpack.c.h.b16 %v1022
        %v5079 = vunpack.c.l.b16 %v1023
        %v5080 = vunpack.c.h.b16 %v1023
        %v5081 = vunpack.c.l.b16 %v1024
        %v5082 = vunpack.c.h.b16 %v1024
        %v5083 = vunpack.c.l.b16 %v1025
        %v5084 = vunpack.c.h.b16 %v1025
        %v5085 = vunpack.c.l.b16 %v1026
        %v5086 = vunpack.c.h.b16 %v1026
        %v5087 = vunpack.c.l.b16 %v1027
        %v5088 = vunpack.c.h.b16 %v1027
        %v5089 = vunpack.c.l.b16 %v1028
        %v5090 = vunpack.c.h.b16 %v1028
        %v5091 = vunpack.c.l.b16 %v1029
        %v5092 = vunpack.c.h.b16 %v1029
        %v5093 = vunpack.c.l.b16 %v1030
        %v5094 = vunpack.c.h.b16 %v1030
        %v5095 = vunpack.c.l.b16 %v1031
        %v5096 = vunpack.c.h.b16 %v1031
        %v5097 = vunpack.c.l.b16 %v1032
        %v5098 = vunpack.c.h.b16 %v1032
        %v5099 = vunpack.c.l.b16 %v1033
        %v5100 = vunpack.c.h.b16 %v1033
        %v5101 = vunpack.c.l.b16 %v1034
        %v5102 = vunpack.c.h.b16 %v1034
        %v5103 = vunpack.c.l.b16 %v1035
        %v5104 = vunpack.c.h.b16 %v1035
        %v5105 = vunpack.c.l.b16 %v1036
        %v5106 = vunpack.c.h.b16 %v1036
        %v5107 = vunpack.c.l.b16 %v1037
        %v5108 = vunpack.c.h.b16 %v1037
        %v5109 = vunpack.c.l.b16 %v1038
        %v5110 = vunpack.c.h.b16 %v1038
        %v5111 = vunpack.c.l.b16 %v1039
        %v5112 = vunpack.c.h.b16 %v1039
        %v5113 = vunpack.c.l.b16 %v1040
        %v5114 = vunpack.c.h.b16 %v1040
        %v5115 = vunpack.c.l.b16 %v1041
        %v5116 = vunpack.c.h.b16 %v1041
        %v5117 = vunpack.c.l.b16 %v1042
        %v5118 = vunpack.c.h.b16 %v1042
        %v5119 = vunpack.c.l.b16 %v1043
        %v5120 = vunpack.c.h.b16 %v1043
        %v5121 = vunpack.c.l.b16 %v1044
        %v5122 = vunpack.c.h.b16 %v1044
        %v5123 = vunpack.c.l.b16 %v1045
        %v5124 = vunpack.c.h.b16 %v1045
        %v5125 = vunpack.c.l.b16 %v1046
        %v5126 = vunpack.c.h.b16 %v1046
        %v5127 = vunpack.c.l.b16 %v1047
        %v5128 = vunpack.c.h.b16 %v1047
        %v5129 = vunpack.c.l.b16 %v1048
        %v5130 = vunpack.c.h.b16 %v1048
        %v5131 = vunpack.c.l.b16 %v1049
        %v5132 = vunpack.c.h.b16 %v1049
        %v5133 = vunpack.c.l.b16 %v1050
        %v5134 = vunpack.c.h.b16 %v1050
        %v5135 = vunpack.c.l.b16 %v1051
        %v5136 = vunpack.c.h.b16 %v1051
        %v5137 = vunpack.c.l.b16 %v1052
        %v5138 = vunpack.c.h.b16 %v1052
        %v5139 = vunpack.c.l.b16 %v1053
        %v5140 = vunpack.c.h.b16 %v1053
        %v5141 = vunpack.c.l.b16 %v1054
        %v5142 = vunpack.c.h.b16 %v1054
        %v5143 = vunpack.c.l.b16 %v1055
        %v5144 = vunpack.c.h.b16 %v1055
        %v5145 = vunpack.c.l.b16 %v1056
        %v5146 = vunpack.c.h.b16 %v1056
        %v5147 = vunpack.c.l.b16 %v1057
        %v5148 = vunpack.c.h.b16 %v1057
        %v5149 = vunpack.c.l.b16 %v1058
        %v5150 = vunpack.c.h.b16 %v1058
        %v5151 = vunpack.c.l.b16 %v1059
        %v5152 = vunpack.c.h.b16 %v1059
        %v5153 = vunpack.c.l.b16 %v1060
        %v5154 = vunpack.c.h.b16 %v1060
        %v5155 = vunpack.c.l.b16 %v1061
        %v5156 = vunpack.c.h.b16 %v1061
        %v5157 = vunpack.c.l.b16 %v1062
        %v5158 = vunpack.c.h.b16 %v1062
        %v5159 = vunpack.c.l.b16 %v1063
        %v5160 = vunpack.c.h.b16 %v1063
        %v5161 = vunpack.c.l.b16 %v1064
        %v5162 = vunpack.c.h.b16 %v1064
        %v5163 = vunpack.c.l.b16 %v1065
        %v5164 = vunpack.c.h.b16 %v1065
        %v5165 = vunpack.c.l.b16 %v1066
        %v5166 = vunpack.c.h.b16 %v1066
        %v5167 = vunpack.c.l.b16 %v1067
        %v5168 = vunpack.c.h.b16 %v1067
        %v5169 = vunpack.c.l.b16 %v1068
        %v5170 = vunpack.c.h.b16 %v1068
        %v5171 = vunpack.c.l.b16 %v1069
        %v5172 = vunpack.c.h.b16 %v1069
        %v5173 = vunpack.c.l.b16 %v1070
        %v5174 = vunpack.c.h.b16 %v1070
        %v5175 = vunpack.c.l.b16 %v1071
        %v5176 = vunpack.c.h.b16 %v1071
        %v5177 = vunpack.c.l.b16 %v1072
        %v5178 = vunpack.c.h.b16 %v1072
        %v5179 = vunpack.c.l.b16 %v1073
        %v5180 = vunpack.c.h.b16 %v1073
        %v5181 = vunpack.c.l.b16 %v1074
        %v5182 = vunpack.c.h.b16 %v1074
        %v5183 = vunpack.c.l.b16 %v1075
        %v5184 = vunpack.c.h.b16 %v1075
        %v5185 = vunpack.c.l.b16 %v1076
        %v5186 = vunpack.c.h.b16 %v1076
        %v5187 = vunpack.c.l.b16 %v1077
        %v5188 = vunpack.c.h.b16 %v1077
        %v5189 = vunpack.c.l.b16 %v1078
        %v5190 = vunpack.c.h.b16 %v1078
        %v5191 = vunpack.c.l.b16 %v1079
        %v5192 = vunpack.c.h.b16 %v1079
        %v5193 = vunpack.c.l.b16 %v1080
        %v5194 = vunpack.c.h.b16 %v1080
        %v5195 = vunpack.c.l.b16 %v1081
        %v5196 = vunpack.c.h.b16 %v1081
        %v5197 = vunpack.c.l.b16 %v1082
        %v5198 = vunpack.c.h.b16 %v1082
        %v5199 = vunpack.c.l.b16 %v1083
        %v5200 = vunpack.c.h.b16 %v1083
        %v5201 = vunpack.c.l.b16 %v1084
        %v5202 = vunpack.c.h.b16 %v1084
        %v5203 = vunpack.c.l.b16 %v1085
        %v5204 = vunpack.c.h.b16 %v1085
        %v5205 = vunpack.c.l.b16 %v1086
        %v5206 = vunpack.c.h.b16 %v1086
        %v5207 = vunpack.c.l.b16 %v1087
        %v5208 = vunpack.c.h.b16 %v1087
        %v5209 = vunpack.c.l.b16 %v1088
        %v5210 = vunpack.c.h.b16 %v1088
        %v5211 = vunpack.c.l.b16 %v1089
        %v5212 = vunpack.c.h.b16 %v1089
        %v5213 = vunpack.c.l.b16 %v1090
        %v5214 = vunpack.c.h.b16 %v1090
        %v5215 = vunpack.c.l.b16 %v1091
        %v5216 = vunpack.c.h.b16 %v1091
        %v5217 = vunpack.c.l.b16 %v1092
        %v5218 = vunpack.c.h.b16 %v1092
        %v5219 = vunpack.c.l.b16 %v1093
        %v5220 = vunpack.c.h.b16 %v1093
        %v5221 = vunpack.c.l.b16 %v1094
        %v5222 = vunpack.c.h.b16 %v1094
        %v5223 = vunpack.c.l.b16 %v1095
        %v5224 = vunpack.c.h.b16 %v1095
        %v5225 = vunpack.c.l.b16 %v1096
        %v5226 = vunpack.c.h.b16 %v1096
        %v5227 = vunpack.c.l.b16 %v1097
        %v5228 = vunpack.c.h.b16 %v1097
        %v5229 = vunpack.c.l.b16 %v1098
        %v5230 = vunpack.c.h.b16 %v1098
        %v5231 = vunpack.c.l.b16 %v1099
        %v5232 = vunpack.c.h.b16 %v1099
        %v5233 = vunpack.c.l.b16 %v1100
        %v5234 = vunpack.c.h.b16 %v1100
        %v5235 = vunpack.c.l.b16 %v1101
        %v5236 = vunpack.c.h.b16 %v1101
        %v5237 = vunpack.c.l.b16 %v1102
        %v5238 = vunpack.c.h.b16 %v1102
        %v5239 = vunpack.c.l.b16 %v1103
        %v5240 = vunpack.c.h.b16 %v1103
        %v5241 = vunpack.c.l.b16 %v1104
        %v5242 = vunpack.c.h.b16 %v1104
        %v5243 = vunpack.c.l.b16 %v1105
        %v5244 = vunpack.c.h.b16 %v1105
        %v5245 = vunpack.c.l.b16 %v1106
        %v5246 = vunpack.c.h.b16 %v1106
        %v5247 = vunpack.c.l.b16 %v1107
        %v5248 = vunpack.c.h.b16 %v1107
        %v5249 = vunpack.c.l.b16 %v1108
        %v5250 = vunpack.c.h.b16 %v1108
        %v5251 = vunpack.c.l.b16 %v1109
        %v5252 = vunpack.c.h.b16 %v1109
        %v5253 = vunpack.c.l.b16 %v1110
        %v5254 = vunpack.c.h.b16 %v1110
        %v5255 = vunpack.c.l.b16 %v1111
        %v5256 = vunpack.c.h.b16 %v1111
        %v5257 = vunpack.c.l.b16 %v1112
        %v5258 = vunpack.c.h.b16 %v1112
        %v5259 = vunpack.c.l.b16 %v1113
        %v5260 = vunpack.c.h.b16 %v1113
        %v5261 = vunpack.c.l.b16 %v1114
        %v5262 = vunpack.c.h.b16 %v1114
        %v5263 = vunpack.c.l.b16 %v1115
        %v5264 = vunpack.c.h.b16 %v1115
        %v5265 = vunpack.c.l.b16 %v1116
        %v5266 = vunpack.c.h.b16 %v1116
        %v5267 = vunpack.c.l.b16 %v1117
        %v5268 = vunpack.c.h.b16 %v1117
        %v5269 = vunpack.c.l.b16 %v1118
        %v5270 = vunpack.c.h.b16 %v1118
        %v5271 = vunpack.c.l.b16 %v1119
        %v5272 = vunpack.c.h.b16 %v1119
        %v5273 = vunpack.c.l.b16 %v1120
        %v5274 = vunpack.c.h.b16 %v1120
        %v5275 = vunpack.c.l.b16 %v1121
        %v5276 = vunpack.c.h.b16 %v1121
        %v5277 = vunpack.c.l.b16 %v1122
        %v5278 = vunpack.c.h.b16 %v1122
        %v5279 = vunpack.c.l.b16 %v1123
        %v5280 = vunpack.c.h.b16 %v1123
        %v5281 = vunpack.c.l.b16 %v1124
        %v5282 = vunpack.c.h.b16 %v1124
        %v5283 = vunpack.c.l.b16 %v1125
        %v5284 = vunpack.c.h.b16 %v1125
        %v5285 = vunpack.c.l.b16 %v1126
        %v5286 = vunpack.c.h.b16 %v1126
        %v5287 = vunpack.c.l.b16 %v1127
        %v5288 = vunpack.c.h.b16 %v1127
        %v5289 = vunpack.c.l.b16 %v1128
        %v5290 = vunpack.c.h.b16 %v1128
        %v5291 = vunpack.c.l.b16 %v1129
        %v5292 = vunpack.c.h.b16 %v1129
        %v5293 = vunpack.c.l.b16 %v1130
        %v5294 = vunpack.c.h.b16 %v1130
        %v5295 = vunpack.c.l.b16 %v1131
        %v5296 = vunpack.c.h.b16 %v1131
        %v5297 = vunpack.c.l.b16 %v1132
        %v5298 = vunpack.c.h.b16 %v1132
        %v5299 = vunpack.c.l.b16 %v1133
        %v5300 = vunpack.c.h.b16 %v1133
        %v5301 = vunpack.c.l.b16 %v1134
        %v5302 = vunpack.c.h.b16 %v1134
        %v5303 = vunpack.c.l.b16 %v1135
        %v5304 = vunpack.c.h.b16 %v1135
        %v5305 = vunpack.c.l.b16 %v1136
        %v5306 = vunpack.c.h.b16 %v1136
        %v5307 = vunpack.c.l.b16 %v1137
        %v5308 = vunpack.c.h.b16 %v1137
        %v5309 = vunpack.c.l.b16 %v1138
        %v5310 = vunpack.c.h.b16 %v1138
        %v5311 = vunpack.c.l.b16 %v1139
        %v5312 = vunpack.c.h.b16 %v1139
        %v5313 = vunpack.c.l.b16 %v1140
        %v5314 = vunpack.c.h.b16 %v1140
        %v5315 = vunpack.c.l.b16 %v1141
        %v5316 = vunpack.c.h.b16 %v1141
        %v5317 = vunpack.c.l.b16 %v1142
        %v5318 = vunpack.c.h.b16 %v1142
        %v5319 = vunpack.c.l.b16 %v1143
        %v5320 = vunpack.c.h.b16 %v1143
        %v5321 = vunpack.c.l.b16 %v1144
        %v5322 = vunpack.c.h.b16 %v1144
        %v5323 = vunpack.c.l.b16 %v1145
        %v5324 = vunpack.c.h.b16 %v1145
        %v5325 = vunpack.c.l.b16 %v1146
        %v5326 = vunpack.c.h.b16 %v1146
        %v5327 = vunpack.c.l.b16 %v1147
        %v5328 = vunpack.c.h.b16 %v1147
        %v5329 = vunpack.c.l.b16 %v1148
        %v5330 = vunpack.c.h.b16 %v1148
        %v5331 = vunpack.c.l.b16 %v1149
        %v5332 = vunpack.c.h.b16 %v1149
        %v5333 = vunpack.c.l.b16 %v1150
        %v5334 = vunpack.c.h.b16 %v1150
        %v5335 = vunpack.c.l.b16 %v1151
        %v5336 = vunpack.c.h.b16 %v1151
        %v5337 = vunpack.c.l.b16 %v1152
        %v5338 = vunpack.c.h.b16 %v1152
        %v5339 = vunpack.c.l.b16 %v1153
        %v5340 = vunpack.c.h.b16 %v1153
        %v5341 = vunpack.c.l.b16 %v1154
        %v5342 = vunpack.c.h.b16 %v1154
        %v5343 = vunpack.c.l.b16 %v1155
        %v5344 = vunpack.c.h.b16 %v1155
        %v5345 = vunpack.c.l.b16 %v1156
        %v5346 = vunpack.c.h.b16 %v1156
        %v5347 = vunpack.c.l.b16 %v1157
        %v5348 = vunpack.c.h.b16 %v1157
        %v5349 = vunpack.c.l.b16 %v1158
        %v5350 = vunpack.c.h.b16 %v1158
        %v5351 = vunpack.c.l.b16 %v1159
        %v5352 = vunpack.c.h.b16 %v1159
        %v5353 = vunpack.c.l.b16 %v1160
        %v5354 = vunpack.c.h.b16 %v1160
        %v5355 = vunpack.c.l.b16 %v1161
        %v5356 = vunpack.c.h.b16 %v1161
        %v5357 = vunpack.c.l.b16 %v1162
        %v5358 = vunpack.c.h.b16 %v1162
        %v5359 = vunpack.c.l.b16 %v1163
        %v5360 = vunpack.c.h.b16 %v1163
        %v5361 = vunpack.c.l.b16 %v1164
        %v5362 = vunpack.c.h.b16 %v1164
        %v5363 = vunpack.c.l.b16 %v1165
        %v5364 = vunpack.c.h.b16 %v1165
        %v5365 = vunpack.c.l.b16 %v1166
        %v5366 = vunpack.c.h.b16 %v1166
        %v5367 = vunpack.c.l.b16 %v1167
        %v5368 = vunpack.c.h.b16 %v1167
        %v5369 = vunpack.c.l.b16 %v1168
        %v5370 = vunpack.c.h.b16 %v1168
        %v5371 = vunpack.c.l.b16 %v1169
        %v5372 = vunpack.c.h.b16 %v1169
        %v5373 = vunpack.c.l.b16 %v1170
        %v5374 = vunpack.c.h.b16 %v1170
        %v5375 = vunpack.c.l.b16 %v1171
        %v5376 = vunpack.c.h.b16 %v1171
        %v5377 = vunpack.c.l.b16 %v1172
        %v5378 = vunpack.c.h.b16 %v1172
        %v5379 = vunpack.c.l.b16 %v1173
        %v5380 = vunpack.c.h.b16 %v1173
        %v5381 = vunpack.c.l.b16 %v1174
        %v5382 = vunpack.c.h.b16 %v1174
        %v5383 = vunpack.c.l.b16 %v1175
        %v5384 = vunpack.c.h.b16 %v1175
        %v5385 = vunpack.c.l.b16 %v1176
        %v5386 = vunpack.c.h.b16 %v1176
        %v5387 = vunpack.c.l.b16 %v1177
        %v5388 = vunpack.c.h.b16 %v1177
        %v5389 = vunpack.c.l.b16 %v1178
        %v5390 = vunpack.c.h.b16 %v1178
        %v5391 = vunpack.c.l.b16 %v1179
        %v5392 = vunpack.c.h.b16 %v1179
        %v5393 = vunpack.c.l.b16 %v1180
        %v5394 = vunpack.c.h.b16 %v1180
        %v5395 = vunpack.c.l.b16 %v1181
        %v5396 = vunpack.c.h.b16 %v1181
        %v5397 = vunpack.c.l.b16 %v1182
        %v5398 = vunpack.c.h.b16 %v1182
        %v5399 = vunpack.c.l.b16 %v1183
        %v5400 = vunpack.c.h.b16 %v1183
        %v5401 = vunpack.c.l.b16 %v1184
        %v5402 = vunpack.c.h.b16 %v1184
        %v5403 = vunpack.c.l.b16 %v1185
        %v5404 = vunpack.c.h.b16 %v1185
        %v5405 = vunpack.c.l.b16 %v1186
        %v5406 = vunpack.c.h.b16 %v1186
        %v5407 = vunpack.c.l.b16 %v1187
        %v5408 = vunpack.c.h.b16 %v1187
        %v5409 = vunpack.c.l.b16 %v1188
        %v5410 = vunpack.c.h.b16 %v1188
        %v5411 = vunpack.c.l.b16 %v1189
        %v5412 = vunpack.c.h.b16 %v1189
        %v5413 = vunpack.c.l.b16 %v1190
        %v5414 = vunpack.c.h.b16 %v1190
        %v5415 = vunpack.c.l.b16 %v1191
        %v5416 = vunpack.c.h.b16 %v1191
        %v5417 = vunpack.c.l.b16 %v1192
        %v5418 = vunpack.c.h.b16 %v1192
        %v5419 = vunpack.c.l.b16 %v1193
        %v5420 = vunpack.c.h.b16 %v1193
        %v5421 = vunpack.c.l.b16 %v1194
        %v5422 = vunpack.c.h.b16 %v1194
        %v5423 = vunpack.c.l.b16 %v1195
        %v5424 = vunpack.c.h.b16 %v1195
        %v5425 = vunpack.c.l.b16 %v1196
        %v5426 = vunpack.c.h.b16 %v1196
        %v5427 = vunpack.c.l.b16 %v1197
        %v5428 = vunpack.c.h.b16 %v1197
        %v5429 = vunpack.c.l.b16 %v1198
        %v5430 = vunpack.c.h.b16 %v1198
        %v5431 = vunpack.c.l.b16 %v1199
        %v5432 = vunpack.c.h.b16 %v1199
        %v5433 = vunpack.c.l.b16 %v1200
        %v5434 = vunpack.c.h.b16 %v1200
        %v5435 = vunpack.c.l.b16 %v1201
        %v5436 = vunpack.c.h.b16 %v1201
        %v5437 = vunpack.c.l.b16 %v1202
        %v5438 = vunpack.c.h.b16 %v1202
        %v5439 = vunpack.c.l.b16 %v1203
        %v5440 = vunpack.c.h.b16 %v1203
        %v5441 = vunpack.c.l.b16 %v1204
        %v5442 = vunpack.c.h.b16 %v1204
        %v5443 = vunpack.c.l.b16 %v1205
        %v5444 = vunpack.c.h.b16 %v1205
        %v5445 = vunpack.c.l.b16 %v1206
        %v5446 = vunpack.c.h.b16 %v1206
        %v5447 = vunpack.c.l.b16 %v1207
        %v5448 = vunpack.c.h.b16 %v1207
        %v5449 = vunpack.c.l.b16 %v1208
        %v5450 = vunpack.c.h.b16 %v1208
        %v5451 = vunpack.c.l.b16 %v1209
        %v5452 = vunpack.c.h.b16 %v1209
        %v5453 = vunpack.c.l.b16 %v1210
        %v5454 = vunpack.c.h.b16 %v1210
        %v5455 = vunpack.c.l.b16 %v1211
        %v5456 = vunpack.c.h.b16 %v1211
        %v5457 = vunpack.c.l.b16 %v1212
        %v5458 = vunpack.c.h.b16 %v1212
        %v5459 = vunpack.c.l.b16 %v1213
        %v5460 = vunpack.c.h.b16 %v1213
        %v5461 = vunpack.c.l.b16 %v1214
        %v5462 = vunpack.c.h.b16 %v1214
        %v5463 = vunpack.c.l.b16 %v1215
        %v5464 = vunpack.c.h.b16 %v1215
        %v5465 = vunpack.c.l.b16 %v1216
        %v5466 = vunpack.c.h.b16 %v1216
        %v5467 = vunpack.c.l.b16 %v1217
        %v5468 = vunpack.c.h.b16 %v1217
        %v5469 = vunpack.c.l.b16 %v1218
        %v5470 = vunpack.c.h.b16 %v1218
        %v5471 = vunpack.c.l.b16 %v1219
        %v5472 = vunpack.c.h.b16 %v1219
        %v5473 = vunpack.c.l.b16 %v1220
        %v5474 = vunpack.c.h.b16 %v1220
        %v5475 = vunpack.c.l.b16 %v1221
        %v5476 = vunpack.c.h.b16 %v1221
        %v5477 = vunpack.c.l.b16 %v1222
        %v5478 = vunpack.c.h.b16 %v1222
        %v5479 = vunpack.c.l.b16 %v1223
        %v5480 = vunpack.c.h.b16 %v1223
        %v5481 = vunpack.c.l.b16 %v1224
        %v5482 = vunpack.c.h.b16 %v1224
        %v5483 = vunpack.c.l.b16 %v1225
        %v5484 = vunpack.c.h.b16 %v1225
        %v5485 = vunpack.c.l.b16 %v1226
        %v5486 = vunpack.c.h.b16 %v1226
        %v5487 = vunpack.c.l.b16 %v1227
        %v5488 = vunpack.c.h.b16 %v1227
        %v5489 = vunpack.c.l.b16 %v1228
        %v5490 = vunpack.c.h.b16 %v1228
        %v5491 = vunpack.c.l.b16 %v1229
        %v5492 = vunpack.c.h.b16 %v1229
        %v5493 = vunpack.c.l.b16 %v1230
        %v5494 = vunpack.c.h.b16 %v1230
        %v5495 = vunpack.c.l.b16 %v1231
        %v5496 = vunpack.c.h.b16 %v1231
        %v5497 = vunpack.c.l.b16 %v1232
        %v5498 = vunpack.c.h.b16 %v1232
        %v5499 = vunpack.c.l.b16 %v1233
        %v5500 = vunpack.c.h.b16 %v1233
        %v5501 = vunpack.c.l.b16 %v1234
        %v5502 = vunpack.c.h.b16 %v1234
        %v5503 = vunpack.c.l.b16 %v1235
        %v5504 = vunpack.c.h.b16 %v1235
        %v5505 = vunpack.c.l.b16 %v1236
        %v5506 = vunpack.c.h.b16 %v1236
        %v5507 = vunpack.c.l.b16 %v1237
        %v5508 = vunpack.c.h.b16 %v1237
        %v5509 = vunpack.c.l.b16 %v1238
        %v5510 = vunpack.c.h.b16 %v1238
        %v5511 = vunpack.c.l.b16 %v1239
        %v5512 = vunpack.c.h.b16 %v1239
        %v5513 = vunpack.c.l.b16 %v1240
        %v5514 = vunpack.c.h.b16 %v1240
        %v5515 = vunpack.c.l.b16 %v1241
        %v5516 = vunpack.c.h.b16 %v1241
        %v5517 = vunpack.c.l.b16 %v1242
        %v5518 = vunpack.c.h.b16 %v1242
        %v5519 = vunpack.c.l.b16 %v1243
        %v5520 = vunpack.c.h.b16 %v1243
        %v5521 = vunpack.c.l.b16 %v1244
        %v5522 = vunpack.c.h.b16 %v1244
        %v5523 = vunpack.c.l.b16 %v1245
        %v5524 = vunpack.c.h.b16 %v1245
        %v5525 = vunpack.c.l.b16 %v1246
        %v5526 = vunpack.c.h.b16 %v1246
        %v5527 = vunpack.c.l.b16 %v1247
        %v5528 = vunpack.c.h.b16 %v1247
        %v5529 = vunpack.c.l.b16 %v1248
        %v5530 = vunpack.c.h.b16 %v1248
        %v5531 = vunpack.c.l.b16 %v1249
        %v5532 = vunpack.c.h.b16 %v1249
        %v5533 = vunpack.c.l.b16 %v1250
        %v5534 = vunpack.c.h.b16 %v1250
        %v5535 = vunpack.c.l.b16 %v1251
        %v5536 = vunpack.c.h.b16 %v1251
        %v5537 = vunpack.c.l.b16 %v1252
        %v5538 = vunpack.c.h.b16 %v1252
        %v5539 = vunpack.c.l.b16 %v1253
        %v5540 = vunpack.c.h.b16 %v1253
        %v5541 = vunpack.c.l.b16 %v1254
        %v5542 = vunpack.c.h.b16 %v1254
        %v5543 = vunpack.c.l.b16 %v1255
        %v5544 = vunpack.c.h.b16 %v1255
        %v5545 = vunpack.c.l.b16 %v1256
        %v5546 = vunpack.c.h.b16 %v1256
        %v5547 = vunpack.c.l.b16 %v1257
        %v5548 = vunpack.c.h.b16 %v1257
        %v5549 = vunpack.c.l.b16 %v1258
        %v5550 = vunpack.c.h.b16 %v1258
        %v5551 = vunpack.c.l.b16 %v1259
        %v5552 = vunpack.c.h.b16 %v1259
        %v5553 = vunpack.c.l.b16 %v1260
        %v5554 = vunpack.c.h.b16 %v1260
        %v5555 = vunpack.c.l.b16 %v1261
        %v5556 = vunpack.c.h.b16 %v1261
        %v5557 = vunpack.c.l.b16 %v1262
        %v5558 = vunpack.c.h.b16 %v1262
        %v5559 = vunpack.c.l.b16 %v1263
        %v5560 = vunpack.c.h.b16 %v1263
        %v5561 = vunpack.c.l.b16 %v1264
        %v5562 = vunpack.c.h.b16 %v1264
        %v5563 = vunpack.c.l.b16 %v1265
        %v5564 = vunpack.c.h.b16 %v1265
        %v5565 = vunpack.c.l.b16 %v1266
        %v5566 = vunpack.c.h.b16 %v1266
        %v5567 = vunpack.c.l.b16 %v1267
        %v5568 = vunpack.c.h.b16 %v1267
        %v5569 = vunpack.c.l.b16 %v1268
        %v5570 = vunpack.c.h.b16 %v1268
        %v5571 = vunpack.c.l.b16 %v1269
        %v5572 = vunpack.c.h.b16 %v1269
        %v5573 = vunpack.c.l.b16 %v1270
        %v5574 = vunpack.c.h.b16 %v1270
        %v5575 = vunpack.c.l.b16 %v1271
        %v5576 = vunpack.c.h.b16 %v1271
        %v5577 = vunpack.c.l.b16 %v1272
        %v5578 = vunpack.c.h.b16 %v1272
        %v5579 = vunpack.c.l.b16 %v1273
        %v5580 = vunpack.c.h.b16 %v1273
        %v5581 = vunpack.c.l.b16 %v1274
        %v5582 = vunpack.c.h.b16 %v1274
        %v5583 = vunpack.c.l.b16 %v1275
        %v5584 = vunpack.c.h.b16 %v1275
        %v5585 = vunpack.c.l.b16 %v1276
        %v5586 = vunpack.c.h.b16 %v1276
        %v5587 = vunpack.c.l.b16 %v1277
        %v5588 = vunpack.c.h.b16 %v1277
        %v5589 = vunpack.c.l.b16 %v1278
        %v5590 = vunpack.c.h.b16 %v1278
        %v5591 = vunpack.c.l.b16 %v1279
        %v5592 = vunpack.c.h.b16 %v1279
        %v5593 = vunpack.c.l.b16 %v1280
        %v5594 = vunpack.c.h.b16 %v1280
        %v5595 = vunpack.c.l.b16 %v1281
        %v5596 = vunpack.c.h.b16 %v1281
        %v5597 = vunpack.c.l.b16 %v1282
        %v5598 = vunpack.c.h.b16 %v1282
        %v5599 = vunpack.c.l.b16 %v1283
        %v5600 = vunpack.c.h.b16 %v1283
        %v5601 = vunpack.c.l.b16 %v1284
        %v5602 = vunpack.c.h.b16 %v1284
        %v5603 = vunpack.c.l.b16 %v1285
        %v5604 = vunpack.c.h.b16 %v1285
        %v5605 = vunpack.c.l.b16 %v1286
        %v5606 = vunpack.c.h.b16 %v1286
        %v5607 = vunpack.c.l.b16 %v1287
        %v5608 = vunpack.c.h.b16 %v1287
        %v5609 = vunpack.c.l.b16 %v1288
        %v5610 = vunpack.c.h.b16 %v1288
        %v5611 = vunpack.c.l.b16 %v1289
        %v5612 = vunpack.c.h.b16 %v1289
        %v5613 = vunpack.c.l.b16 %v1290
        %v5614 = vunpack.c.h.b16 %v1290
        %v5615 = vunpack.c.l.b16 %v1291
        %v5616 = vunpack.c.h.b16 %v1291
        %v5617 = vunpack.c.l.b16 %v1292
        %v5618 = vunpack.c.h.b16 %v1292
        %v5619 = vunpack.c.l.b16 %v1293
        %v5620 = vunpack.c.h.b16 %v1293
        %v5621 = vunpack.c.l.b16 %v1294
        %v5622 = vunpack.c.h.b16 %v1294
        %v5623 = vunpack.c.l.b16 %v1295
        %v5624 = vunpack.c.h.b16 %v1295
        %v5625 = vunpack.c.l.b16 %v1296
        %v5626 = vunpack.c.h.b16 %v1296
        %v5627 = vunpack.c.l.b16 %v1297
        %v5628 = vunpack.c.h.b16 %v1297
        %v5629 = vunpack.c.l.b16 %v1298
        %v5630 = vunpack.c.h.b16 %v1298
        %v5631 = vunpack.c.l.b16 %v1299
        %v5632 = vunpack.c.h.b16 %v1299
        %v5633 = vunpack.c.l.b16 %v1300
        %v5634 = vunpack.c.h.b16 %v1300
        %v5635 = vunpack.c.l.b16 %v1301
        %v5636 = vunpack.c.h.b16 %v1301
        %v5637 = vunpack.c.l.b16 %v1302
        %v5638 = vunpack.c.h.b16 %v1302
        %v5639 = vunpack.c.l.b16 %v1303
        %v5640 = vunpack.c.h.b16 %v1303
        %v5641 = vunpack.c.l.b16 %v1304
        %v5642 = vunpack.c.h.b16 %v1304
        %v5643 = vunpack.c.l.b16 %v1305
        %v5644 = vunpack.c.h.b16 %v1305
        %v5645 = vunpack.c.l.b16 %v1306
        %v5646 = vunpack.c.h.b16 %v1306
        %v5647 = vunpack.c.l.b16 %v1307
        %v5648 = vunpack.c.h.b16 %v1307
        %v5649 = vunpack.c.l.b16 %v1308
        %v5650 = vunpack.c.h.b16 %v1308
        %v5651 = vunpack.c.l.b16 %v1309
        %v5652 = vunpack.c.h.b16 %v1309
        %v5653 = vunpack.c.l.b16 %v1310
        %v5654 = vunpack.c.h.b16 %v1310
        %v5655 = vunpack.c.l.b16 %v1311
        %v5656 = vunpack.c.h.b16 %v1311
        %v5657 = vunpack.c.l.b16 %v1312
        %v5658 = vunpack.c.h.b16 %v1312
        %v5659 = vunpack.c.l.b16 %v1313
        %v5660 = vunpack.c.h.b16 %v1313
        %v5661 = vunpack.c.l.b16 %v1314
        %v5662 = vunpack.c.h.b16 %v1314
        %v5663 = vunpack.c.l.b16 %v1315
        %v5664 = vunpack.c.h.b16 %v1315
        %v5665 = vunpack.c.l.b16 %v1316
        %v5666 = vunpack.c.h.b16 %v1316
        %v5667 = vunpack.c.l.b16 %v1317
        %v5668 = vunpack.c.h.b16 %v1317
        %v5669 = vunpack.c.l.b16 %v1318
        %v5670 = vunpack.c.h.b16 %v1318
        %v5671 = vunpack.c.l.b16 %v1319
        %v5672 = vunpack.c.h.b16 %v1319
        %v5673 = vunpack.c.l.b16 %v1320
        %v5674 = vunpack.c.h.b16 %v1320
        %v5675 = vunpack.c.l.b16 %v1321
        %v5676 = vunpack.c.h.b16 %v1321
        %v5677 = vunpack.c.l.b16 %v1322
        %v5678 = vunpack.c.h.b16 %v1322
        %v5679 = vunpack.c.l.b16 %v1323
        %v5680 = vunpack.c.h.b16 %v1323
        %v5681 = vunpack.c.l.b16 %v1324
        %v5682 = vunpack.c.h.b16 %v1324
        %v5683 = vunpack.c.l.b16 %v1325
        %v5684 = vunpack.c.h.b16 %v1325
        %v5685 = vunpack.c.l.b16 %v1326
        %v5686 = vunpack.c.h.b16 %v1326
        %v5687 = vunpack.c.l.b16 %v1327
        %v5688 = vunpack.c.h.b16 %v1327
        %v5689 = vunpack.c.l.b16 %v1328
        %v5690 = vunpack.c.h.b16 %v1328
        %v5691 = vunpack.c.l.b16 %v1329
        %v5692 = vunpack.c.h.b16 %v1329
        %v5693 = vunpack.c.l.b16 %v1330
        %v5694 = vunpack.c.h.b16 %v1330
        %v5695 = vunpack.c.l.b16 %v1331
        %v5696 = vunpack.c.h.b16 %v1331
        %v5697 = vunpack.c.l.b16 %v1332
        %v5698 = vunpack.c.h.b16 %v1332
        %v5699 = vunpack.c.l.b16 %v1333
        %v5700 = vunpack.c.h.b16 %v1333
        %v5701 = vunpack.c.l.b16 %v1334
        %v5702 = vunpack.c.h.b16 %v1334
        %v5703 = vunpack.c.l.b16 %v1335
        %v5704 = vunpack.c.h.b16 %v1335
        %v5705 = vunpack.c.l.b16 %v1336
        %v5706 = vunpack.c.h.b16 %v1336
        %v5707 = vunpack.c.l.b16 %v1337
        %v5708 = vunpack.c.h.b16 %v1337
        %v5709 = vunpack.c.l.b16 %v1338
        %v5710 = vunpack.c.h.b16 %v1338
        %v5711 = vunpack.c.l.b16 %v1339
        %v5712 = vunpack.c.h.b16 %v1339
        %v5713 = vunpack.c.l.b16 %v1340
        %v5714 = vunpack.c.h.b16 %v1340
        %v5715 = vunpack.c.l.b16 %v1341
        %v5716 = vunpack.c.h.b16 %v1341
        %v5717 = vunpack.c.l.b16 %v1342
        %v5718 = vunpack.c.h.b16 %v1342
        %v5719 = vunpack.c.l.b16 %v1343
        %v5720 = vunpack.c.h.b16 %v1343
        %v5721 = vunpack.c.l.b16 %v1344
        %v5722 = vunpack.c.h.b16 %v1344
        %v5723 = vunpack.c.l.b16 %v1345
        %v5724 = vunpack.c.h.b16 %v1345
        %v5725 = vunpack.c.l.b16 %v1346
        %v5726 = vunpack.c.h.b16 %v1346
        %v5727 = vunpack.c.l.b16 %v1347
        %v5728 = vunpack.c.h.b16 %v1347
        %v5729 = vunpack.c.l.b16 %v1348
        %v5730 = vunpack.c.h.b16 %v1348
        %v5731 = vunpack.c.l.b16 %v1349
        %v5732 = vunpack.c.h.b16 %v1349
        %v5733 = vunpack.c.l.b16 %v1350
        %v5734 = vunpack.c.h.b16 %v1350
        %v5735 = vunpack.c.l.b16 %v1351
        %v5736 = vunpack.c.h.b16 %v1351
        %v5737 = vunpack.c.l.b16 %v1352
        %v5738 = vunpack.c.h.b16 %v1352
        %v5739 = vunpack.c.l.b16 %v1353
        %v5740 = vunpack.c.h.b16 %v1353
        %v5741 = vunpack.c.l.b16 %v1354
        %v5742 = vunpack.c.h.b16 %v1354
        %v5743 = vunpack.c.l.b16 %v1355
        %v5744 = vunpack.c.h.b16 %v1355
        %v5745 = vunpack.c.l.b16 %v1356
        %v5746 = vunpack.c.h.b16 %v1356
        %v5747 = vunpack.c.l.b16 %v1357
        %v5748 = vunpack.c.h.b16 %v1357
        %v5749 = vunpack.c.l.b16 %v1358
        %v5750 = vunpack.c.h.b16 %v1358
        %v5751 = vunpack.c.l.b16 %v1359
        %v5752 = vunpack.c.h.b16 %v1359
        %v5753 = vunpack.c.l.b16 %v1360
        %v5754 = vunpack.c.h.b16 %v1360
        %v5755 = vunpack.c.l.b16 %v1361
        %v5756 = vunpack.c.h.b16 %v1361
        %v5757 = vunpack.c.l.b16 %v1362
        %v5758 = vunpack.c.h.b16 %v1362
        %v5759 = vunpack.c.l.b16 %v1363
        %v5760 = vunpack.c.h.b16 %v1363
        %v5761 = vunpack.c.l.b16 %v1364
        %v5762 = vunpack.c.h.b16 %v1364
        %v5763 = vunpack.c.l.b16 %v1365
        %v5764 = vunpack.c.h.b16 %v1365
        %v5765 = vunpack.c.l.b16 %v1366
        %v5766 = vunpack.c.h.b16 %v1366
        %v5767 = vunpack.c.l.b16 %v1367
        %v5768 = vunpack.c.h.b16 %v1367
        %v5769 = vunpack.c.l.b16 %v1368
        %v5770 = vunpack.c.h.b16 %v1368
        %v5771 = vunpack.c.l.b16 %v1369
        %v5772 = vunpack.c.h.b16 %v1369
        %v5773 = vunpack.c.l.b16 %v1370
        %v5774 = vunpack.c.h.b16 %v1370
        %v5775 = vunpack.c.l.b16 %v1371
        %v5776 = vunpack.c.h.b16 %v1371
        %v5777 = vunpack.c.l.b16 %v1372
        %v5778 = vunpack.c.h.b16 %v1372
        %v5779 = vunpack.c.l.b16 %v1373
        %v5780 = vunpack.c.h.b16 %v1373
        %v5781 = vunpack.c.l.b16 %v1374
        %v5782 = vunpack.c.h.b16 %v1374
        %v5783 = vunpack.c.l.b16 %v1375
        %v5784 = vunpack.c.h.b16 %v1375
        %v5785 = vunpack.c.l.b16 %v1376
        %v5786 = vunpack.c.h.b16 %v1376
        %v5787 = vunpack.c.l.b16 %v1377
        %v5788 = vunpack.c.h.b16 %v1377
        %v5789 = vunpack.c.l.b16 %v1378
        %v5790 = vunpack.c.h.b16 %v1378
        %v5791 = vunpack.c.l.b16 %v1379
        %v5792 = vunpack.c.h.b16 %v1379
        %v5793 = vunpack.c.l.b16 %v1380
        %v5794 = vunpack.c.h.b16 %v1380
        %v5795 = vunpack.c.l.b16 %v1381
        %v5796 = vunpack.c.h.b16 %v1381
        %v5797 = vunpack.c.l.b16 %v1382
        %v5798 = vunpack.c.h.b16 %v1382
        %v5799 = vunpack.c.l.b16 %v1383
        %v5800 = vunpack.c.h.b16 %v1383
        %v5801 = vunpack.c.l.b16 %v1384
        %v5802 = vunpack.c.h.b16 %v1384
        %v5803 = vunpack.c.l.b16 %v1385
        %v5804 = vunpack.c.h.b16 %v1385
        %v5805 = vunpack.c.l.b16 %v1386
        %v5806 = vunpack.c.h.b16 %v1386
        %v5807 = vunpack.c.l.b16 %v1387
        %v5808 = vunpack.c.h.b16 %v1387
        %v5809 = vunpack.c.l.b16 %v1388
        %v5810 = vunpack.c.h.b16 %v1388
        %v5811 = vunpack.c.l.b16 %v1389
        %v5812 = vunpack.c.h.b16 %v1389
        %v5813 = vunpack.c.l.b16 %v1390
        %v5814 = vunpack.c.h.b16 %v1390
        %v5815 = vunpack.c.l.b16 %v1391
        %v5816 = vunpack.c.h.b16 %v1391
        %v5817 = vunpack.c.l.b16 %v1392
        %v5818 = vunpack.c.h.b16 %v1392
        %v5819 = vunpack.c.l.b16 %v1393
        %v5820 = vunpack.c.h.b16 %v1393
        %v5821 = vunpack.c.l.b16 %v1394
        %v5822 = vunpack.c.h.b16 %v1394
        %v5823 = vunpack.c.l.b16 %v1395
        %v5824 = vunpack.c.h.b16 %v1395
        %v5825 = vunpack.c.l.b16 %v1396
        %v5826 = vunpack.c.h.b16 %v1396
        %v5827 = vunpack.c.l.b16 %v1397
        %v5828 = vunpack.c.h.b16 %v1397
        %v5829 = vunpack.c.l.b16 %v1398
        %v5830 = vunpack.c.h.b16 %v1398
        %v5831 = vunpack.c.l.b16 %v1399
        %v5832 = vunpack.c.h.b16 %v1399
        %v5833 = vunpack.c.l.b16 %v1400
        %v5834 = vunpack.c.h.b16 %v1400
        %v5835 = vunpack.c.l.b16 %v1401
        %v5836 = vunpack.c.h.b16 %v1401
        %v5837 = vunpack.c.l.b16 %v1402
        %v5838 = vunpack.c.h.b16 %v1402
        %v5839 = vunpack.c.l.b16 %v1403
        %v5840 = vunpack.c.h.b16 %v1403
        %v5841 = vunpack.c.l.b16 %v1404
        %v5842 = vunpack.c.h.b16 %v1404
        %v5843 = vunpack.c.l.b16 %v1405
        %v5844 = vunpack.c.h.b16 %v1405
        %v5845 = vunpack.c.l.b16 %v1406
        %v5846 = vunpack.c.h.b16 %v1406
        %v5847 = vunpack.c.l.b16 %v1407
        %v5848 = vunpack.c.h.b16 %v1407
        %v5849 = vunpack.c.l.b16 %v1408
        %v5850 = vunpack.c.h.b16 %v1408
        %v5851 = vunpack.c.l.b16 %v1409
        %v5852 = vunpack.c.h.b16 %v1409
        %v5853 = vunpack.c.l.b16 %v1410
        %v5854 = vunpack.c.h.b16 %v1410
        %v5855 = vunpack.c.l.b16 %v1411
        %v5856 = vunpack.c.h.b16 %v1411
        %v5857 = vunpack.c.l.b16 %v1412
        %v5858 = vunpack.c.h.b16 %v1412
        %v5859 = vunpack.c.l.b16 %v1413
        %v5860 = vunpack.c.h.b16 %v1413
        %v5861 = vunpack.c.l.b16 %v1414
        %v5862 = vunpack.c.h.b16 %v1414
        %v5863 = vunpack.c.l.b16 %v1415
        %v5864 = vunpack.c.h.b16 %v1415
        %v5865 = vunpack.c.l.b16 %v1416
        %v5866 = vunpack.c.h.b16 %v1416
        %v5867 = vunpack.c.l.b16 %v1417
        %v5868 = vunpack.c.h.b16 %v1417
        %v5869 = vunpack.c.l.b16 %v1418
        %v5870 = vunpack.c.h.b16 %v1418
        %v5871 = vunpack.c.l.b16 %v1419
        %v5872 = vunpack.c.h.b16 %v1419
        %v5873 = vunpack.c.l.b16 %v1420
        %v5874 = vunpack.c.h.b16 %v1420
        %v5875 = vunpack.c.l.b16 %v1421
        %v5876 = vunpack.c.h.b16 %v1421
        %v5877 = vunpack.c.l.b16 %v1422
        %v5878 = vunpack.c.h.b16 %v1422
        %v5879 = vunpack.c.l.b16 %v1423
        %v5880 = vunpack.c.h.b16 %v1423
        %v5881 = vunpack.c.l.b16 %v1424
        %v5882 = vunpack.c.h.b16 %v1424
        %v5883 = vunpack.c.l.b16 %v1425
        %v5884 = vunpack.c.h.b16 %v1425
        %v5885 = vunpack.c.l.b16 %v1426
        %v5886 = vunpack.c.h.b16 %v1426
        %v5887 = vunpack.c.l.b16 %v1427
        %v5888 = vunpack.c.h.b16 %v1427
        %v5889 = vunpack.c.l.b16 %v1428
        %v5890 = vunpack.c.h.b16 %v1428
        %v5891 = vunpack.c.l.b16 %v1429
        %v5892 = vunpack.c.h.b16 %v1429
        %v5893 = vunpack.c.l.b16 %v1430
        %v5894 = vunpack.c.h.b16 %v1430
        %v5895 = vunpack.c.l.b16 %v1431
        %v5896 = vunpack.c.h.b16 %v1431
        %v5897 = vunpack.c.l.b16 %v1432
        %v5898 = vunpack.c.h.b16 %v1432
        %v5899 = vunpack.c.l.b16 %v1433
        %v5900 = vunpack.c.h.b16 %v1433
        %v5901 = vunpack.c.l.b16 %v1434
        %v5902 = vunpack.c.h.b16 %v1434
        %v5903 = vunpack.c.l.b16 %v1435
        %v5904 = vunpack.c.h.b16 %v1435
        %v5905 = vunpack.c.l.b16 %v1436
        %v5906 = vunpack.c.h.b16 %v1436
        %v5907 = vunpack.c.l.b16 %v1437
        %v5908 = vunpack.c.h.b16 %v1437
        %v5909 = vunpack.c.l.b16 %v1438
        %v5910 = vunpack.c.h.b16 %v1438
        %v5911 = vunpack.c.l.b16 %v1439
        %v5912 = vunpack.c.h.b16 %v1439
        %v5913 = vunpack.c.l.b16 %v1440
        %v5914 = vunpack.c.h.b16 %v1440
        %v5915 = vunpack.c.l.b16 %v1441
        %v5916 = vunpack.c.h.b16 %v1441
        %v5917 = vunpack.c.l.b16 %v1442
        %v5918 = vunpack.c.h.b16 %v1442
        %v5919 = vunpack.c.l.b16 %v1443
        %v5920 = vunpack.c.h.b16 %v1443
        %v5921 = vunpack.c.l.b16 %v1444
        %v5922 = vunpack.c.h.b16 %v1444
        %v5923 = vunpack.c.l.b16 %v1445
        %v5924 = vunpack.c.h.b16 %v1445
        %v5925 = vunpack.c.l.b16 %v1446
        %v5926 = vunpack.c.h.b16 %v1446
        %v5927 = vunpack.c.l.b16 %v1447
        %v5928 = vunpack.c.h.b16 %v1447
        %v5929 = vunpack.c.l.b16 %v1448
        %v5930 = vunpack.c.h.b16 %v1448
        %v5931 = vunpack.c.l.b16 %v1449
        %v5932 = vunpack.c.h.b16 %v1449
        %v5933 = vunpack.c.l.b16 %v1450
        %v5934 = vunpack.c.h.b16 %v1450
        %v5935 = vunpack.c.l.b16 %v1451
        %v5936 = vunpack.c.h.b16 %v1451
        %v5937 = vunpack.c.l.b16 %v1452
        %v5938 = vunpack.c.h.b16 %v1452
        %v5939 = vunpack.c.l.b16 %v1453
        %v5940 = vunpack.c.h.b16 %v1453
        %v5941 = vunpack.c.l.b16 %v1454
        %v5942 = vunpack.c.h.b16 %v1454
        %v5943 = vunpack.c.l.b16 %v1455
        %v5944 = vunpack.c.h.b16 %v1455
        %v5945 = vunpack.c.l.b16 %v1456
        %v5946 = vunpack.c.h.b16 %v1456
        %v5947 = vunpack.c.l.b16 %v1457
        %v5948 = vunpack.c.h.b16 %v1457
        %v5949 = vunpack.c.l.b16 %v1458
        %v5950 = vunpack.c.h.b16 %v1458
        %v5951 = vunpack.c.l.b16 %v1459
        %v5952 = vunpack.c.h.b16 %v1459
        %v5953 = vunpack.c.l.b16 %v1460
        %v5954 = vunpack.c.h.b16 %v1460
        %v5955 = vunpack.c.l.b16 %v1461
        %v5956 = vunpack.c.h.b16 %v1461
        %v5957 = vunpack.c.l.b16 %v1462
        %v5958 = vunpack.c.h.b16 %v1462
        %v5959 = vunpack.c.l.b16 %v1463
        %v5960 = vunpack.c.h.b16 %v1463
        %v5961 = vunpack.c.l.b16 %v1464
        %v5962 = vunpack.c.h.b16 %v1464
        %v5963 = vunpack.c.l.b16 %v1465
        %v5964 = vunpack.c.h.b16 %v1465
        %v5965 = vunpack.c.l.b16 %v1466
        %v5966 = vunpack.c.h.b16 %v1466
        %v5967 = vunpack.c.l.b16 %v1467
        %v5968 = vunpack.c.h.b16 %v1467
        %v5969 = vunpack.c.l.b16 %v1468
        %v5970 = vunpack.c.h.b16 %v1468
        %v5971 = vunpack.c.l.b16 %v1469
        %v5972 = vunpack.c.h.b16 %v1469
        %v5973 = vunpack.c.l.b16 %v1470
        %v5974 = vunpack.c.h.b16 %v1470
        %v5975 = vunpack.c.l.b16 %v1471
        %v5976 = vunpack.c.h.b16 %v1471
        %v5977 = vunpack.c.l.b16 %v1472
        %v5978 = vunpack.c.h.b16 %v1472
        %v5979 = vunpack.c.l.b16 %v1473
        %v5980 = vunpack.c.h.b16 %v1473
        %v5981 = vunpack.c.l.b16 %v1474
        %v5982 = vunpack.c.h.b16 %v1474
        %v5983 = vunpack.c.l.b16 %v1475
        %v5984 = vunpack.c.h.b16 %v1475
        %v5985 = vunpack.c.l.b16 %v1476
        %v5986 = vunpack.c.h.b16 %v1476
        %v5987 = vunpack.c.l.b16 %v1477
        %v5988 = vunpack.c.h.b16 %v1477
        %v5989 = vunpack.c.l.b16 %v1478
        %v5990 = vunpack.c.h.b16 %v1478
        %v5991 = vunpack.c.l.b16 %v1479
        %v5992 = vunpack.c.h.b16 %v1479
        %v5993 = vunpack.c.l.b16 %v1480
        %v5994 = vunpack.c.h.b16 %v1480
        %v5995 = vunpack.c.l.b16 %v1481
        %v5996 = vunpack.c.h.b16 %v1481
        %v5997 = vunpack.c.l.b16 %v1482
        %v5998 = vunpack.c.h.b16 %v1482
        %v5999 = vunpack.c.l.b16 %v1483
        %v6000 = vunpack.c.h.b16 %v1483
        %v6001 = vunpack.c.l.b16 %v1484
        %v6002 = vunpack.c.h.b16 %v1484
        %v6003 = vunpack.c.l.b16 %v1485
        %v6004 = vunpack.c.h.b16 %v1485
        %v6005 = vunpack.c.l.b16 %v1486
        %v6006 = vunpack.c.h.b16 %v1486
        %v6007 = vunpack.c.l.b16 %v1487
        %v6008 = vunpack.c.h.b16 %v1487
        %v6009 = vunpack.c.l.b16 %v1488
        %v6010 = vunpack.c.h.b16 %v1488
        %v6011 = vunpack.c.l.b16 %v1489
        %v6012 = vunpack.c.h.b16 %v1489
        %v6013 = vunpack.c.l.b16 %v1490
        %v6014 = vunpack.c.h.b16 %v1490
        %v6015 = vunpack.c.l.b16 %v1491
        %v6016 = vunpack.c.h.b16 %v1491
        %v6017 = vunpack.c.l.b16 %v1492
        %v6018 = vunpack.c.h.b16 %v1492
        %v6019 = vunpack.c.l.b16 %v1493
        %v6020 = vunpack.c.h.b16 %v1493
        %v6021 = vunpack.c.l.b16 %v1494
        %v6022 = vunpack.c.h.b16 %v1494
        %v6023 = vunpack.c.l.b16 %v1495
        %v6024 = vunpack.c.h.b16 %v1495
        %v6025 = vunpack.c.l.b16 %v1496
        %v6026 = vunpack.c.h.b16 %v1496
        %v6027 = vunpack.c.l.b16 %v1497
        %v6028 = vunpack.c.h.b16 %v1497
        %v6029 = vunpack.c.l.b16 %v1498
        %v6030 = vunpack.c.h.b16 %v1498
        %v6031 = vunpack.c.l.b16 %v1499
        %v6032 = vunpack.c.h.b16 %v1499
        %v6033 = vunpack.c.l.b16 %v1500
        %v6034 = vunpack.c.h.b16 %v1500
        %v6035 = vunpack.c.l.b16 %v1501
        %v6036 = vunpack.c.h.b16 %v1501
        %v6037 = vunpack.c.l.b16 %v1502
        %v6038 = vunpack.c.h.b16 %v1502
        %v6039 = vunpack.c.l.b16 %v1503
        %v6040 = vunpack.c.h.b16 %v1503
        %v6041 = vunpack.c.l.b16 %v1504
        %v6042 = vunpack.c.h.b16 %v1504
        %v6043 = vunpack.c.l.b16 %v1505
        %v6044 = vunpack.c.h.b16 %v1505
        %v6045 = vunpack.c.l.b16 %v1506
        %v6046 = vunpack.c.h.b16 %v1506
        %v6047 = vunpack.c.l.b16 %v1507
        %v6048 = vunpack.c.h.b16 %v1507
        %v6049 = vunpack.c.l.b16 %v1508
        %v6050 = vunpack.c.h.b16 %v1508
        %v6051 = vunpack.c.l.b16 %v1509
        %v6052 = vunpack.c.h.b16 %v1509
        %v6053 = vunpack.c.l.b16 %v1510
        %v6054 = vunpack.c.h.b16 %v1510
        %v6055 = vunpack.c.l.b16 %v1511
        %v6056 = vunpack.c.h.b16 %v1511
        %v6057 = vunpack.c.l.b16 %v1512
        %v6058 = vunpack.c.h.b16 %v1512
        %v6059 = vunpack.c.l.b16 %v1513
        %v6060 = vunpack.c.h.b16 %v1513
        %v6061 = vunpack.c.l.b16 %v1514
        %v6062 = vunpack.c.h.b16 %v1514
        %v6063 = vunpack.c.l.b16 %v1515
        %v6064 = vunpack.c.h.b16 %v1515
        %v6065 = vunpack.c.l.b16 %v1516
        %v6066 = vunpack.c.h.b16 %v1516
        %v6067 = vunpack.c.l.b16 %v1517
        %v6068 = vunpack.c.h.b16 %v1517
        %v6069 = vunpack.c.l.b16 %v1518
        %v6070 = vunpack.c.h.b16 %v1518
        %v6071 = vunpack.c.l.b16 %v1519
        %v6072 = vunpack.c.h.b16 %v1519
        %v6073 = vunpack.c.l.b16 %v1520
        %v6074 = vunpack.c.h.b16 %v1520
        %v6075 = vunpack.c.l.b16 %v1521
        %v6076 = vunpack.c.h.b16 %v1521
        %v6077 = vunpack.c.l.b16 %v1522
        %v6078 = vunpack.c.h.b16 %v1522
        %v6079 = vunpack.c.l.b16 %v1523
        %v6080 = vunpack.c.h.b16 %v1523
        %v6081 = vunpack.c.l.b16 %v1524
        %v6082 = vunpack.c.h.b16 %v1524
        %v6083 = vunpack.c.l.b16 %v1525
        %v6084 = vunpack.c.h.b16 %v1525
        %v6085 = vunpack.c.l.b16 %v1526
        %v6086 = vunpack.c.h.b16 %v1526
        %v6087 = vunpack.c.l.b16 %v1527
        %v6088 = vunpack.c.h.b16 %v1527
        %v6089 = vunpack.c.l.b16 %v1528
        %v6090 = vunpack.c.h.b16 %v1528
        %v6091 = vunpack.c.l.b16 %v1529
        %v6092 = vunpack.c.h.b16 %v1529
        %v6093 = vunpack.c.l.b16 %v1530
        %v6094 = vunpack.c.h.b16 %v1530
        %v6095 = vunpack.c.l.b16 %v1531
        %v6096 = vunpack.c.h.b16 %v1531
        %v6097 = vunpack.c.l.b16 %v1532
        %v6098 = vunpack.c.h.b16 %v1532
        %v6099 = vunpack.c.l.b16 %v1533
        %v6100 = vunpack.c.h.b16 %v1533
        %v6101 = vunpack.c.l.b16 %v1534
        %v6102 = vunpack.c.h.b16 %v1534
        %v6103 = vunpack.c.l.b16 %v1535
        %v6104 = vunpack.c.h.b16 %v1535
        %v6105 = vunpack.c.l.b16 %v1536
        %v6106 = vunpack.c.h.b16 %v1536
        %v6107 = vunpack.c.l.b16 %v1537
        %v6108 = vunpack.c.h.b16 %v1537
        %v6109 = vunpack.c.l.b16 %v1538
        %v6110 = vunpack.c.h.b16 %v1538
        %v6111 = vunpack.c.l.b16 %v1539
        %v6112 = vunpack.c.h.b16 %v1539
        %v6113 = vunpack.c.l.b16 %v1540
        %v6114 = vunpack.c.h.b16 %v1540
        %v6115 = vunpack.c.l.b16 %v1541
        %v6116 = vunpack.c.h.b16 %v1541
        %v6117 = vunpack.c.l.b16 %v1542
        %v6118 = vunpack.c.h.b16 %v1542
        %v6119 = vunpack.c.l.b16 %v1543
        %v6120 = vunpack.c.h.b16 %v1543
        %v6121 = vunpack.c.l.b16 %v1544
        %v6122 = vunpack.c.h.b16 %v1544
        %v6123 = vunpack.c.l.b16 %v1545
        %v6124 = vunpack.c.h.b16 %v1545
        %v6125 = vunpack.c.l.b16 %v1546
        %v6126 = vunpack.c.h.b16 %v1546
        %v6127 = vunpack.c.l.b16 %v1547
        %v6128 = vunpack.c.h.b16 %v1547
        %v6129 = vunpack.c.l.b16 %v1548
        %v6130 = vunpack.c.h.b16 %v1548
        %v6131 = vunpack.c.l.b16 %v1549
        %v6132 = vunpack.c.h.b16 %v1549
        %v6133 = vunpack.c.l.b16 %v1550
        %v6134 = vunpack.c.h.b16 %v1550
        %v6135 = vunpack.c.l.b16 %v1551
        %v6136 = vunpack.c.h.b16 %v1551
        %v6137 = vunpack.c.l.b16 %v1552
        %v6138 = vunpack.c.h.b16 %v1552
        %v6139 = vunpack.c.l.b16 %v1553
        %v6140 = vunpack.c.h.b16 %v1553
        %v6141 = vunpack.c.l.b16 %v1554
        %v6142 = vunpack.c.h.b16 %v1554
        %v6143 = vunpack.c.l.b16 %v1555
        %v6144 = vunpack.c.h.b16 %v1555
        %v6145 = vunpack.c.l.b16 %v1556
        %v6146 = vunpack.c.h.b16 %v1556
        %v6147 = vunpack.c.l.b16 %v1557
        %v6148 = vunpack.c.h.b16 %v1557
        %v6149 = vunpack.c.l.b16 %v1558
        %v6150 = vunpack.c.h.b16 %v1558
        %v6151 = vunpack.c.l.b16 %v1559
        %v6152 = vunpack.c.h.b16 %v1559
        %v6153 = vunpack.c.l.b16 %v1560
        %v6154 = vunpack.c.h.b16 %v1560
        %v6155 = vunpack.c.l.b16 %v1561
        %v6156 = vunpack.c.h.b16 %v1561
        %v6157 = vunpack.c.l.b16 %v1562
        %v6158 = vunpack.c.h.b16 %v1562
        %v6159 = vunpack.c.l.b16 %v1563
        %v6160 = vunpack.c.h.b16 %v1563
        %v6161 = vunpack.c.l.b16 %v1564
        %v6162 = vunpack.c.h.b16 %v1564
        %v6163 = vunpack.c.l.b16 %v1565
        %v6164 = vunpack.c.h.b16 %v1565
        %v6165 = vunpack.c.l.b16 %v1566
        %v6166 = vunpack.c.h.b16 %v1566
        %v6167 = vunpack.c.l.b16 %v1567
        %v6168 = vunpack.c.h.b16 %v1567
        %v6169 = vunpack.c.l.b16 %v1568
        %v6170 = vunpack.c.h.b16 %v1568
        %v6171 = vunpack.c.l.b16 %v1569
        %v6172 = vunpack.c.h.b16 %v1569
        %v6173 = vunpack.c.l.b16 %v1570
        %v6174 = vunpack.c.h.b16 %v1570
        %v6175 = vunpack.c.l.b16 %v1571
        %v6176 = vunpack.c.h.b16 %v1571
        %v6177 = vunpack.c.l.b16 %v1572
        %v6178 = vunpack.c.h.b16 %v1572
        %v6179 = vunpack.c.l.b16 %v1573
        %v6180 = vunpack.c.h.b16 %v1573
        %v6181 = vunpack.c.l.b16 %v1574
        %v6182 = vunpack.c.h.b16 %v1574
        %v6183 = vunpack.c.l.b16 %v1575
        %v6184 = vunpack.c.h.b16 %v1575
        %v6185 = vunpack.c.l.b16 %v1576
        %v6186 = vunpack.c.h.b16 %v1576
        %v6187 = vunpack.c.l.b16 %v1577
        %v6188 = vunpack.c.h.b16 %v1577
        %v6189 = vunpack.c.l.b16 %v1578
        %v6190 = vunpack.c.h.b16 %v1578
        %v6191 = vunpack.c.l.b16 %v1579
        %v6192 = vunpack.c.h.b16 %v1579
        %v6193 = vunpack.c.l.b16 %v1580
        %v6194 = vunpack.c.h.b16 %v1580
        %v6195 = vunpack.c.l.b16 %v1581
        %v6196 = vunpack.c.h.b16 %v1581
        %v6197 = vunpack.c.l.b16 %v1582
        %v6198 = vunpack.c.h.b16 %v1582
        %v6199 = vunpack.c.l.b16 %v1583
        %v6200 = vunpack.c.h.b16 %v1583
        %v6201 = vunpack.c.l.b16 %v1584
        %v6202 = vunpack.c.h.b16 %v1584
        %v6203 = vunpack.c.l.b16 %v1585
        %v6204 = vunpack.c.h.b16 %v1585
        %v6205 = vunpack.c.l.b16 %v1586
        %v6206 = vunpack.c.h.b16 %v1586
        %v6207 = vunpack.c.l.b16 %v1587
        %v6208 = vunpack.c.h.b16 %v1587
        %v6209 = vunpack.c.l.b16 %v1588
        %v6210 = vunpack.c.h.b16 %v1588
        %v6211 = vunpack.c.l.b16 %v1589
        %v6212 = vunpack.c.h.b16 %v1589
        %v6213 = vunpack.c.l.b16 %v1590
        %v6214 = vunpack.c.h.b16 %v1590
        %v6215 = vunpack.c.l.b16 %v1591
        %v6216 = vunpack.c.h.b16 %v1591
        %v6217 = vunpack.c.l.b16 %v1592
        %v6218 = vunpack.c.h.b16 %v1592
        %v6219 = vunpack.c.l.b16 %v1593
        %v6220 = vunpack.c.h.b16 %v1593
        %v6221 = vunpack.c.l.b16 %v1594
        %v6222 = vunpack.c.h.b16 %v1594
        %v6223 = vunpack.c.l.b16 %v1595
        %v6224 = vunpack.c.h.b16 %v1595
        %v6225 = vunpack.c.l.b16 %v1596
        %v6226 = vunpack.c.h.b16 %v1596
        %v6227 = vunpack.c.l.b16 %v1597
        %v6228 = vunpack.c.h.b16 %v1597
        %v6229 = vunpack.c.l.b16 %v1598
        %v6230 = vunpack.c.h.b16 %v1598
        %v6231 = vunpack.c.l.b16 %v1599
        %v6232 = vunpack.c.h.b16 %v1599
        %v6233 = vunpack.c.l.b16 %v1600
        %v6234 = vunpack.c.h.b16 %v1600
        %v6235 = vunpack.c.l.b16 %v1601
        %v6236 = vunpack.c.h.b16 %v1601
        %v6237 = vunpack.c.l.b16 %v1602
        %v6238 = vunpack.c.h.b16 %v1602
        %v6239 = vunpack.c.l.b16 %v1603
        %v6240 = vunpack.c.h.b16 %v1603
        %v6241 = vunpack.c.l.b16 %v1604
        %v6242 = vunpack.c.h.b16 %v1604
        %v6243 = vunpack.c.l.b16 %v1605
        %v6244 = vunpack.c.h.b16 %v1605
        %v6245 = vunpack.c.l.b16 %v1606
        %v6246 = vunpack.c.h.b16 %v1606
        %v6247 = vunpack.c.l.b16 %v1607
        %v6248 = vunpack.c.h.b16 %v1607
        %v6249 = vunpack.c.l.b16 %v1608
        %v6250 = vunpack.c.h.b16 %v1608
        %v6251 = vunpack.c.l.b16 %v1609
        %v6252 = vunpack.c.h.b16 %v1609
        %v6253 = vunpack.c.l.b16 %v1610
        %v6254 = vunpack.c.h.b16 %v1610
        %v6255 = vunpack.c.l.b16 %v1611
        %v6256 = vunpack.c.h.b16 %v1611
        %v6257 = vunpack.c.l.b16 %v1612
        %v6258 = vunpack.c.h.b16 %v1612
        %v6259 = vunpack.c.l.b16 %v1613
        %v6260 = vunpack.c.h.b16 %v1613
        %v6261 = vunpack.c.l.b16 %v1614
        %v6262 = vunpack.c.h.b16 %v1614
        %v6263 = vunpack.c.l.b16 %v1615
        %v6264 = vunpack.c.h.b16 %v1615
        %v6265 = vunpack.c.l.b16 %v1616
        %v6266 = vunpack.c.h.b16 %v1616
        %v6267 = vunpack.c.l.b16 %v1617
        %v6268 = vunpack.c.h.b16 %v1617
        %v6269 = vunpack.c.l.b16 %v1618
        %v6270 = vunpack.c.h.b16 %v1618
        %v6271 = vunpack.c.l.b16 %v1619
        %v6272 = vunpack.c.h.b16 %v1619
        %v6273 = vunpack.c.l.b16 %v1620
        %v6274 = vunpack.c.h.b16 %v1620
        %v6275 = vunpack.c.l.b16 %v1621
        %v6276 = vunpack.c.h.b16 %v1621
        %v6277 = vunpack.c.l.b16 %v1622
        %v6278 = vunpack.c.h.b16 %v1622
        %v6279 = vunpack.c.l.b16 %v1623
        %v6280 = vunpack.c.h.b16 %v1623
        %v6281 = vunpack.c.l.b16 %v1624
        %v6282 = vunpack.c.h.b16 %v1624
        %v6283 = vunpack.c.l.b16 %v1625
        %v6284 = vunpack.c.h.b16 %v1625
        %v6285 = vunpack.c.l.b16 %v1626
        %v6286 = vunpack.c.h.b16 %v1626
        %v6287 = vunpack.c.l.b16 %v1627
        %v6288 = vunpack.c.h.b16 %v1627
        %v6289 = vunpack.c.l.b16 %v1628
        %v6290 = vunpack.c.h.b16 %v1628
        %v6291 = vunpack.c.l.b16 %v1629
        %v6292 = vunpack.c.h.b16 %v1629
        %v6293 = vunpack.c.l.b16 %v1630
        %v6294 = vunpack.c.h.b16 %v1630
        %v6295 = vunpack.c.l.b16 %v1631
        %v6296 = vunpack.c.h.b16 %v1631
        %v6297 = vunpack.c.l.b16 %v1632
        %v6298 = vunpack.c.h.b16 %v1632
        %v6299 = vunpack.c.l.b16 %v1633
        %v6300 = vunpack.c.h.b16 %v1633
        %v6301 = vunpack.c.l.b16 %v1634
        %v6302 = vunpack.c.h.b16 %v1634
        %v6303 = vunpack.c.l.b16 %v1635
        %v6304 = vunpack.c.h.b16 %v1635
        %v6305 = vunpack.c.l.b16 %v1636
        %v6306 = vunpack.c.h.b16 %v1636
        %v6307 = vunpack.c.l.b16 %v1637
        %v6308 = vunpack.c.h.b16 %v1637
        %v6309 = vunpack.c.l.b16 %v1638
        %v6310 = vunpack.c.h.b16 %v1638
        %v6311 = vunpack.c.l.b16 %v1639
        %v6312 = vunpack.c.h.b16 %v1639
        %v6313 = vunpack.c.l.b16 %v1640
        %v6314 = vunpack.c.h.b16 %v1640
        %v6315 = vunpack.c.l.b16 %v1641
        %v6316 = vunpack.c.h.b16 %v1641
        %v6317 = vunpack.c.l.b16 %v1642
        %v6318 = vunpack.c.h.b16 %v1642
        %v6319 = vunpack.c.l.b16 %v1643
        %v6320 = vunpack.c.h.b16 %v1643
        %v6321 = vunpack.c.l.b16 %v1644
        %v6322 = vunpack.c.h.b16 %v1644
        %v6323 = vunpack.c.l.b16 %v1645
        %v6324 = vunpack.c.h.b16 %v1645
        %v6325 = vunpack.c.l.b16 %v1646
        %v6326 = vunpack.c.h.b16 %v1646
        %v6327 = vunpack.c.l.b16 %v1647
        %v6328 = vunpack.c.h.b16 %v1647
        %v6329 = vunpack.c.l.b16 %v1648
        %v6330 = vunpack.c.h.b16 %v1648
        %v6331 = vunpack.c.l.b16 %v1649
        %v6332 = vunpack.c.h.b16 %v1649
        %v6333 = vunpack.c.l.b16 %v1650
        %v6334 = vunpack.c.h.b16 %v1650
        %v6335 = vunpack.c.l.b16 %v1651
        %v6336 = vunpack.c.h.b16 %v1651
        %v6337 = vunpack.c.l.b16 %v1652
        %v6338 = vunpack.c.h.b16 %v1652
        %v6339 = vunpack.c.l.b16 %v1653
        %v6340 = vunpack.c.h.b16 %v1653
        %v6341 = vunpack.c.l.b16 %v1654
        %v6342 = vunpack.c.h.b16 %v1654
        %v6343 = vunpack.c.l.b16 %v1655
        %v6344 = vunpack.c.h.b16 %v1655
        %v6345 = vunpack.c.l.b16 %v1656
        %v6346 = vunpack.c.h.b16 %v1656
        %v6347 = vunpack.c.l.b16 %v1657
        %v6348 = vunpack.c.h.b16 %v1657
        %v6349 = vunpack.c.l.b16 %v1658
        %v6350 = vunpack.c.h.b16 %v1658
        %v6351 = vunpack.c.l.b16 %v1659
        %v6352 = vunpack.c.h.b16 %v1659
        %v6353 = vunpack.c.l.b16 %v1660
        %v6354 = vunpack.c.h.b16 %v1660
        %v6355 = vunpack.c.l.b16 %v1661
        %v6356 = vunpack.c.h.b16 %v1661
        %v6357 = vunpack.c.l.b16 %v1662
        %v6358 = vunpack.c.h.b16 %v1662
        %v6359 = vunpack.c.l.b16 %v1663
        %v6360 = vunpack.c.h.b16 %v1663
        %v6361 = vunpack.c.l.b16 %v1664
        %v6362 = vunpack.c.h.b16 %v1664
        %v6363 = vunpack.c.l.b16 %v1665
        %v6364 = vunpack.c.h.b16 %v1665
        %v6365 = vunpack.c.l.b16 %v1666
        %v6366 = vunpack.c.h.b16 %v1666
        %v6367 = vunpack.c.l.b16 %v1667
        %v6368 = vunpack.c.h.b16 %v1667
        %v6369 = vunpack.c.l.b16 %v1668
        %v6370 = vunpack.c.h.b16 %v1668
        %v6371 = vunpack.c.l.b16 %v1669
        %v6372 = vunpack.c.h.b16 %v1669
        %v6373 = vunpack.c.l.b16 %v1670
        %v6374 = vunpack.c.h.b16 %v1670
        %v6375 = vunpack.c.l.b16 %v1671
        %v6376 = vunpack.c.h.b16 %v1671
        %v6377 = vunpack.c.l.b16 %v1672
        %v6378 = vunpack.c.h.b16 %v1672
        %v6379 = vunpack.c.l.b16 %v1673
        %v6380 = vunpack.c.h.b16 %v1673
        %v6381 = vunpack.c.l.b16 %v1674
        %v6382 = vunpack.c.h.b16 %v1674
        %v6383 = vunpack.c.l.b16 %v1675
        %v6384 = vunpack.c.h.b16 %v1675
        %v6385 = vunpack.c.l.b16 %v1676
        %v6386 = vunpack.c.h.b16 %v1676
        %v6387 = vunpack.c.l.b16 %v1677
        %v6388 = vunpack.c.h.b16 %v1677
        %v6389 = vunpack.c.l.b16 %v1678
        %v6390 = vunpack.c.h.b16 %v1678
        %v6391 = vunpack.c.l.b16 %v1679
        %v6392 = vunpack.c.h.b16 %v1679
        %v6393 = vunpack.c.l.b16 %v1680
        %v6394 = vunpack.c.h.b16 %v1680
        %v6395 = vunpack.c.l.b16 %v1681
        %v6396 = vunpack.c.h.b16 %v1681
        %v6397 = vunpack.c.l.b16 %v1682
        %v6398 = vunpack.c.h.b16 %v1682
        %v6399 = vunpack.c.l.b16 %v1683
        %v6400 = vunpack.c.h.b16 %v1683
        %v6401 = vunpack.c.l.b16 %v1684
        %v6402 = vunpack.c.h.b16 %v1684
        %v6403 = vunpack.c.l.b16 %v1685
        %v6404 = vunpack.c.h.b16 %v1685
        %v6405 = vunpack.c.l.b16 %v1686
        %v6406 = vunpack.c.h.b16 %v1686
        %v6407 = vunpack.c.l.b16 %v1687
        %v6408 = vunpack.c.h.b16 %v1687
        %v6409 = vunpack.c.l.b16 %v1688
        %v6410 = vunpack.c.h.b16 %v1688
        %v6411 = vunpack.c.l.b16 %v1689
        %v6412 = vunpack.c.h.b16 %v1689
        %v6413 = vunpack.c.l.b16 %v1690
        %v6414 = vunpack.c.h.b16 %v1690
        %v6415 = vunpack.c.l.b16 %v1691
        %v6416 = vunpack.c.h.b16 %v1691
        %v6417 = vunpack.c.l.b16 %v1692
        %v6418 = vunpack.c.h.b16 %v1692
        %v6419 = vunpack.c.l.b16 %v1693
        %v6420 = vunpack.c.h.b16 %v1693
        %v6421 = vunpack.c.l.b16 %v1694
        %v6422 = vunpack.c.h.b16 %v1694
        %v6423 = vunpack.c.l.b16 %v1695
        %v6424 = vunpack.c.h.b16 %v1695
        %v6425 = vunpack.c.l.b16 %v1696
        %v6426 = vunpack.c.h.b16 %v1696
        %v6427 = vunpack.c.l.b16 %v1697
        %v6428 = vunpack.c.h.b16 %v1697
        %v6429 = vunpack.c.l.b16 %v1698
        %v6430 = vunpack.c.h.b16 %v1698
        %v6431 = vunpack.c.l.b16 %v1699
        %v6432 = vunpack.c.h.b16 %v1699
        %v6433 = vunpack.c.l.b16 %v1700
        %v6434 = vunpack.c.h.b16 %v1700
        %v6435 = vunpack.c.l.b16 %v1701
        %v6436 = vunpack.c.h.b16 %v1701
        %v6437 = vunpack.c.l.b16 %v1702
        %v6438 = vunpack.c.h.b16 %v1702
        %v6439 = vunpack.c.l.b16 %v1703
        %v6440 = vunpack.c.h.b16 %v1703
        %v6441 = vunpack.c.l.b16 %v1704
        %v6442 = vunpack.c.h.b16 %v1704
        %v6443 = vunpack.c.l.b16 %v1705
        %v6444 = vunpack.c.h.b16 %v1705
        %v6445 = vunpack.c.l.b16 %v1706
        %v6446 = vunpack.c.h.b16 %v1706
        %v6447 = vunpack.c.l.b16 %v1707
        %v6448 = vunpack.c.h.b16 %v1707
        %v6449 = vunpack.c.l.b16 %v1708
        %v6450 = vunpack.c.h.b16 %v1708
        %v6451 = vunpack.c.l.b16 %v1709
        %v6452 = vunpack.c.h.b16 %v1709
        %v6453 = vunpack.c.l.b16 %v1710
        %v6454 = vunpack.c.h.b16 %v1710
        %v6455 = vunpack.c.l.b16 %v1711
        %v6456 = vunpack.c.h.b16 %v1711
        %v6457 = vunpack.c.l.b16 %v1712
        %v6458 = vunpack.c.h.b16 %v1712
        %v6459 = vunpack.c.l.b16 %v1713
        %v6460 = vunpack.c.h.b16 %v1713
        %v6461 = vunpack.c.l.b16 %v1714
        %v6462 = vunpack.c.h.b16 %v1714
        %v6463 = vunpack.c.l.b16 %v1715
        %v6464 = vunpack.c.h.b16 %v1715
        %v6465 = vunpack.c.l.b16 %v1716
        %v6466 = vunpack.c.h.b16 %v1716
        %v6467 = vunpack.c.l.b16 %v1717
        %v6468 = vunpack.c.h.b16 %v1717
        %v6469 = vunpack.c.l.b16 %v1718
        %v6470 = vunpack.c.h.b16 %v1718
        %v6471 = vunpack.c.l.b16 %v1719
        %v6472 = vunpack.c.h.b16 %v1719
        %v6473 = vunpack.c.l.b16 %v1720
        %v6474 = vunpack.c.h.b16 %v1720
        %v6475 = vunpack.c.l.b16 %v1721
        %v6476 = vunpack.c.h.b16 %v1721
        %v6477 = vunpack.c.l.b16 %v1722
        %v6478 = vunpack.c.h.b16 %v1722
        %v6479 = vunpack.c.l.b16 %v1723
        %v6480 = vunpack.c.h.b16 %v1723
        %v6481 = vunpack.c.l.b16 %v1724
        %v6482 = vunpack.c.h.b16 %v1724
        %v6483 = vunpack.c.l.b16 %v1725
        %v6484 = vunpack.c.h.b16 %v1725
        %v6485 = vunpack.c.l.b16 %v1726
        %v6486 = vunpack.c.h.b16 %v1726
        %v6487 = vunpack.c.l.b16 %v1727
        %v6488 = vunpack.c.h.b16 %v1727
        %v6489 = vunpack.c.l.b16 %v1728
        %v6490 = vunpack.c.h.b16 %v1728
        %v6491 = vunpack.c.l.b16 %v1729
        %v6492 = vunpack.c.h.b16 %v1729
        %v6493 = vunpack.c.l.b16 %v1730
        %v6494 = vunpack.c.h.b16 %v1730
        %v6495 = vunpack.c.l.b16 %v1731
        %v6496 = vunpack.c.h.b16 %v1731
        %v6497 = vunpack.c.l.b16 %v1732
        %v6498 = vunpack.c.h.b16 %v1732
        %v6499 = vunpack.c.l.b16 %v1733
        %v6500 = vunpack.c.h.b16 %v1733
        %v6501 = vunpack.c.l.b16 %v1734
        %v6502 = vunpack.c.h.b16 %v1734
        %v6503 = vunpack.c.l.b16 %v1735
        %v6504 = vunpack.c.h.b16 %v1735
        %v6505 = vunpack.c.l.b16 %v1736
        %v6506 = vunpack.c.h.b16 %v1736
        %v6507 = vunpack.c.l.b16 %v1737
        %v6508 = vunpack.c.h.b16 %v1737
        %v6509 = vunpack.c.l.b16 %v1738
        %v6510 = vunpack.c.h.b16 %v1738
        %v6511 = vunpack.c.l.b16 %v1739
        %v6512 = vunpack.c.h.b16 %v1739
        %v6513 = vunpack.c.l.b16 %v1740
        %v6514 = vunpack.c.h.b16 %v1740
        %v6515 = vunpack.c.l.b16 %v1741
        %v6516 = vunpack.c.h.b16 %v1741
        %v6517 = vunpack.c.l.b16 %v1742
        %v6518 = vunpack.c.h.b16 %v1742
        %v6519 = vunpack.c.l.b16 %v1743
        %v6520 = vunpack.c.h.b16 %v1743
        %v6521 = vunpack.c.l.b16 %v1744
        %v6522 = vunpack.c.h.b16 %v1744
        %v6523 = vunpack.c.l.b16 %v1745
        %v6524 = vunpack.c.h.b16 %v1745
        %v6525 = vunpack.c.l.b16 %v1746
        %v6526 = vunpack.c.h.b16 %v1746
        %v6527 = vunpack.c.l.b16 %v1747
        %v6528 = vunpack.c.h.b16 %v1747
        %v6529 = vunpack.c.l.b16 %v1748
        %v6530 = vunpack.c.h.b16 %v1748
        %v6531 = vunpack.c.l.b16 %v1749
        %v6532 = vunpack.c.h.b16 %v1749
        %v6533 = vunpack.c.l.b16 %v1750
        %v6534 = vunpack.c.h.b16 %v1750
        %v6535 = vunpack.c.l.b16 %v1751
        %v6536 = vunpack.c.h.b16 %v1751
        %v6537 = vunpack.c.l.b16 %v1752
        %v6538 = vunpack.c.h.b16 %v1752
        %v6539 = vunpack.c.l.b16 %v1753
        %v6540 = vunpack.c.h.b16 %v1753
        %v6541 = vunpack.c.l.b16 %v1754
        %v6542 = vunpack.c.h.b16 %v1754
        %v6543 = vunpack.c.l.b16 %v1755
        %v6544 = vunpack.c.h.b16 %v1755
        %v6545 = vunpack.c.l.b16 %v1756
        %v6546 = vunpack.c.h.b16 %v1756
        %v6547 = vunpack.c.l.b16 %v1757
        %v6548 = vunpack.c.h.b16 %v1757
        %v6549 = vunpack.c.l.b16 %v1758
        %v6550 = vunpack.c.h.b16 %v1758
        %v6551 = vunpack.c.l.b16 %v1759
        %v6552 = vunpack.c.h.b16 %v1759
        %v6553 = vunpack.c.l.b16 %v1760
        %v6554 = vunpack.c.h.b16 %v1760
        %v6555 = vunpack.c.l.b16 %v1761
        %v6556 = vunpack.c.h.b16 %v1761
        %v6557 = vunpack.c.l.b16 %v1762
        %v6558 = vunpack.c.h.b16 %v1762
        %v6559 = vunpack.c.l.b16 %v1763
        %v6560 = vunpack.c.h.b16 %v1763
        %v6561 = vunpack.c.l.b16 %v1764
        %v6562 = vunpack.c.h.b16 %v1764
        %v6563 = vunpack.c.l.b16 %v1765
        %v6564 = vunpack.c.h.b16 %v1765
        %v6565 = vunpack.c.l.b16 %v1766
        %v6566 = vunpack.c.h.b16 %v1766
        %v6567 = vunpack.c.l.b16 %v1767
        %v6568 = vunpack.c.h.b16 %v1767
        %v6569 = vunpack.c.l.b16 %v1768
        %v6570 = vunpack.c.h.b16 %v1768
        %v6571 = vunpack.c.l.b16 %v1769
        %v6572 = vunpack.c.h.b16 %v1769
        %v6573 = vunpack.c.l.b16 %v1770
        %v6574 = vunpack.c.h.b16 %v1770
        %v6575 = vunpack.c.l.b16 %v1771
        %v6576 = vunpack.c.h.b16 %v1771
        %v6577 = vunpack.c.l.b16 %v1772
        %v6578 = vunpack.c.h.b16 %v1772
        %v6579 = vunpack.c.l.b16 %v1773
        %v6580 = vunpack.c.h.b16 %v1773
        %v6581 = vunpack.c.l.b16 %v1774
        %v6582 = vunpack.c.h.b16 %v1774
        %v6583 = vunpack.c.l.b16 %v1775
        %v6584 = vunpack.c.h.b16 %v1775
        %v6585 = vunpack.c.l.b16 %v1776
        %v6586 = vunpack.c.h.b16 %v1776
        %v6587 = vunpack.c.l.b16 %v1777
        %v6588 = vunpack.c.h.b16 %v1777
        %v6589 = vunpack.c.l.b16 %v1778
        %v6590 = vunpack.c.h.b16 %v1778
        %v6591 = vunpack.c.l.b16 %v1779
        %v6592 = vunpack.c.h.b16 %v1779
        %v6593 = vunpack.c.l.b16 %v1780
        %v6594 = vunpack.c.h.b16 %v1780
        %v6595 = vunpack.c.l.b16 %v1781
        %v6596 = vunpack.c.h.b16 %v1781
        %v6597 = vunpack.c.l.b16 %v1782
        %v6598 = vunpack.c.h.b16 %v1782
        %v6599 = vunpack.c.l.b16 %v1783
        %v6600 = vunpack.c.h.b16 %v1783
        %v6601 = vunpack.c.l.b16 %v1784
        %v6602 = vunpack.c.h.b16 %v1784
        %v6603 = vunpack.c.l.b16 %v1785
        %v6604 = vunpack.c.h.b16 %v1785
        %v6605 = vunpack.c.l.b16 %v1786
        %v6606 = vunpack.c.h.b16 %v1786
        %v6607 = vunpack.c.l.b16 %v1787
        %v6608 = vunpack.c.h.b16 %v1787
        %v6609 = vunpack.c.l.b16 %v1788
        %v6610 = vunpack.c.h.b16 %v1788
        %v6611 = vunpack.c.l.b16 %v1789
        %v6612 = vunpack.c.h.b16 %v1789
        %v6613 = vunpack.c.l.b16 %v1790
        %v6614 = vunpack.c.h.b16 %v1790
        %v6615 = vunpack.c.l.b16 %v1791
        %v6616 = vunpack.c.h.b16 %v1791
        %v6617 = vunpack.c.l.b16 %v1792
        %v6618 = vunpack.c.h.b16 %v1792
        %v6619 = vunpack.c.l.b16 %v1793
        %v6620 = vunpack.c.h.b16 %v1793
        %v6621 = vunpack.c.l.b16 %v1794
        %v6622 = vunpack.c.h.b16 %v1794
        %v6623 = vunpack.c.l.b16 %v1795
        %v6624 = vunpack.c.h.b16 %v1795
        %v6625 = vunpack.c.l.b16 %v1796
        %v6626 = vunpack.c.h.b16 %v1796
        %v6627 = vunpack.c.l.b16 %v1797
        %v6628 = vunpack.c.h.b16 %v1797
        %v6629 = vunpack.c.l.b16 %v1798
        %v6630 = vunpack.c.h.b16 %v1798
        %v6631 = vunpack.c.l.b16 %v1799
        %v6632 = vunpack.c.h.b16 %v1799
        %v6633 = vunpack.c.l.b16 %v1800
        %v6634 = vunpack.c.h.b16 %v1800
        %v6635 = vunpack.c.l.b16 %v1801
        %v6636 = vunpack.c.h.b16 %v1801
        %v6637 = vunpack.c.l.b16 %v1802
        %v6638 = vunpack.c.h.b16 %v1802
        %v6639 = vunpack.c.l.b16 %v1803
        %v6640 = vunpack.c.h.b16 %v1803
        %v6641 = vunpack.c.l.b16 %v1804
        %v6642 = vunpack.c.h.b16 %v1804
        %v6643 = vunpack.c.l.b16 %v1805
        %v6644 = vunpack.c.h.b16 %v1805
        %v6645 = vunpack.c.l.b16 %v1806
        %v6646 = vunpack.c.h.b16 %v1806
        %v6647 = vunpack.c.l.b16 %v1807
        %v6648 = vunpack.c.h.b16 %v1807
        %v6649 = vunpack.c.l.b16 %v1808
        %v6650 = vunpack.c.h.b16 %v1808
        %v6651 = vunpack.c.l.b16 %v1809
        %v6652 = vunpack.c.h.b16 %v1809
        %v6653 = vunpack.c.l.b16 %v1810
        %v6654 = vunpack.c.h.b16 %v1810
        %v6655 = vunpack.c.l.b16 %v1811
        %v6656 = vunpack.c.h.b16 %v1811
        %v6657 = vunpack.c.l.b16 %v1812
        %v6658 = vunpack.c.h.b16 %v1812
        %v6659 = vunpack.c.l.b16 %v1813
        %v6660 = vunpack.c.h.b16 %v1813
        %v6661 = vunpack.c.l.b16 %v1814
        %v6662 = vunpack.c.h.b16 %v1814
        %v6663 = vunpack.c.l.b16 %v1815
        %v6664 = vunpack.c.h.b16 %v1815
        %v6665 = vunpack.c.l.b16 %v1816
        %v6666 = vunpack.c.h.b16 %v1816
        %v6667 = vunpack.c.l.b16 %v1817
        %v6668 = vunpack.c.h.b16 %v1817
        %v6669 = vunpack.c.l.b16 %v1818
        %v6670 = vunpack.c.h.b16 %v1818
        %v6671 = vunpack.c.l.b16 %v1819
        %v6672 = vunpack.c.h.b16 %v1819
        %v6673 = vunpack.c.l.b16 %v1820
        %v6674 = vunpack.c.h.b16 %v1820
        %v6675 = vunpack.c.l.b16 %v1821
        %v6676 = vunpack.c.h.b16 %v1821
        %v6677 = vunpack.c.l.b16 %v1822
        %v6678 = vunpack.c.h.b16 %v1822
        %v6679 = vunpack.c.l.b16 %v1823
        %v6680 = vunpack.c.h.b16 %v1823
        %v6681 = vunpack.c.l.b16 %v1824
        %v6682 = vunpack.c.h.b16 %v1824
        %v6683 = vunpack.c.l.b16 %v1825
        %v6684 = vunpack.c.h.b16 %v1825
        %v6685 = vunpack.c.l.b16 %v1826
        %v6686 = vunpack.c.h.b16 %v1826
        %v6687 = vunpack.c.l.b16 %v1827
        %v6688 = vunpack.c.h.b16 %v1827
        %v6689 = vunpack.c.l.b16 %v1828
        %v6690 = vunpack.c.h.b16 %v1828
        %v6691 = vunpack.c.l.b16 %v1829
        %v6692 = vunpack.c.h.b16 %v1829
        %v6693 = vunpack.c.l.b16 %v1830
        %v6694 = vunpack.c.h.b16 %v1830
        %v6695 = vunpack.c.l.b16 %v1831
        %v6696 = vunpack.c.h.b16 %v1831
        %v6697 = vunpack.c.l.b16 %v1832
        %v6698 = vunpack.c.h.b16 %v1832
        %v6699 = vunpack.c.l.b16 %v1833
        %v6700 = vunpack.c.h.b16 %v1833
        %v6701 = vunpack.c.l.b16 %v1834
        %v6702 = vunpack.c.h.b16 %v1834
        %v6703 = vunpack.c.l.b16 %v1835
        %v6704 = vunpack.c.h.b16 %v1835
        %v6705 = vunpack.c.l.b16 %v1836
        %v6706 = vunpack.c.h.b16 %v1836
        %v6707 = vunpack.c.l.b16 %v1837
        %v6708 = vunpack.c.h.b16 %v1837
        %v6709 = vunpack.c.l.b16 %v1838
        %v6710 = vunpack.c.h.b16 %v1838
        %v6711 = vunpack.c.l.b16 %v1839
        %v6712 = vunpack.c.h.b16 %v1839
        %v6713 = vunpack.c.l.b16 %v1840
        %v6714 = vunpack.c.h.b16 %v1840
        %v6715 = vunpack.c.l.b16 %v1841
        %v6716 = vunpack.c.h.b16 %v1841
        %v6717 = vunpack.c.l.b16 %v1842
        %v6718 = vunpack.c.h.b16 %v1842
        %v6719 = vunpack.c.l.b16 %v1843
        %v6720 = vunpack.c.h.b16 %v1843
        %v6721 = vunpack.c.l.b16 %v1844
        %v6722 = vunpack.c.h.b16 %v1844
        %v6723 = vunpack.c.l.b16 %v1845
        %v6724 = vunpack.c.h.b16 %v1845
        %v6725 = vunpack.c.l.b16 %v1846
        %v6726 = vunpack.c.h.b16 %v1846
        %v6727 = vunpack.c.l.b16 %v1847
        %v6728 = vunpack.c.h.b16 %v1847
        %v6729 = vunpack.c.l.b16 %v1848
        %v6730 = vunpack.c.h.b16 %v1848
        %v6731 = vunpack.c.l.b16 %v1849
        %v6732 = vunpack.c.h.b16 %v1849
        %v6733 = vunpack.c.l.b16 %v1850
        %v6734 = vunpack.c.h.b16 %v1850
        %v6735 = vunpack.c.l.b16 %v1851
        %v6736 = vunpack.c.h.b16 %v1851
        %v6737 = vunpack.c.l.b16 %v1852
        %v6738 = vunpack.c.h.b16 %v1852
        %v6739 = vunpack.c.l.b16 %v1853
        %v6740 = vunpack.c.h.b16 %v1853
        %v6741 = vunpack.c.l.b16 %v1854
        %v6742 = vunpack.c.h.b16 %v1854
        %v6743 = vunpack.c.l.b16 %v1855
        %v6744 = vunpack.c.h.b16 %v1855
        %v6745 = vunpack.c.l.b16 %v1856
        %v6746 = vunpack.c.h.b16 %v1856
        %v6747 = vunpack.c.l.b16 %v1857
        %v6748 = vunpack.c.h.b16 %v1857
        %v6749 = vunpack.c.l.b16 %v1858
        %v6750 = vunpack.c.h.b16 %v1858
        %v6751 = vunpack.c.l.b16 %v1859
        %v6752 = vunpack.c.h.b16 %v1859
        %v6753 = vunpack.c.l.b16 %v1860
        %v6754 = vunpack.c.h.b16 %v1860
        %v6755 = vunpack.c.l.b16 %v1861
        %v6756 = vunpack.c.h.b16 %v1861
        %v6757 = vunpack.c.l.b16 %v1862
        %v6758 = vunpack.c.h.b16 %v1862
        %v6759 = vunpack.c.l.b16 %v1863
        %v6760 = vunpack.c.h.b16 %v1863
        %v6761 = vunpack.c.l.b16 %v1864
        %v6762 = vunpack.c.h.b16 %v1864
        %v6763 = vunpack.c.l.b16 %v1865
        %v6764 = vunpack.c.h.b16 %v1865
        %v6765 = vunpack.c.l.b16 %v1866
        %v6766 = vunpack.c.h.b16 %v1866
        %v6767 = vunpack.c.l.b16 %v1867
        %v6768 = vunpack.c.h.b16 %v1867
        %v6769 = vunpack.c.l.b16 %v1868
        %v6770 = vunpack.c.h.b16 %v1868
        %v6771 = vunpack.c.l.b16 %v1869
        %v6772 = vunpack.c.h.b16 %v1869
        %v6773 = vunpack.c.l.b16 %v1870
        %v6774 = vunpack.c.h.b16 %v1870
        %v6775 = vunpack.c.l.b16 %v1871
        %v6776 = vunpack.c.h.b16 %v1871
        %v6777 = vunpack.c.l.b16 %v1872
        %v6778 = vunpack.c.h.b16 %v1872
        %v6779 = vunpack.c.l.b16 %v1873
        %v6780 = vunpack.c.h.b16 %v1873
        %v6781 = vunpack.c.l.b16 %v1874
        %v6782 = vunpack.c.h.b16 %v1874
        %v6783 = vunpack.c.l.b16 %v1875
        %v6784 = vunpack.c.h.b16 %v1875
        %v6785 = vunpack.c.l.b16 %v1876
        %v6786 = vunpack.c.h.b16 %v1876
        %v6787 = vunpack.c.l.b16 %v1877
        %v6788 = vunpack.c.h.b16 %v1877
        %v6789 = vunpack.c.l.b16 %v1878
        %v6790 = vunpack.c.h.b16 %v1878
        %v6791 = vunpack.c.l.b16 %v1879
        %v6792 = vunpack.c.h.b16 %v1879
        %v6793 = vunpack.c.l.b16 %v1880
        %v6794 = vunpack.c.h.b16 %v1880
        %v6795 = vunpack.c.l.b16 %v1881
        %v6796 = vunpack.c.h.b16 %v1881
        %v6797 = vunpack.c.l.b16 %v1882
        %v6798 = vunpack.c.h.b16 %v1882
        %v6799 = vunpack.c.l.b16 %v1883
        %v6800 = vunpack.c.h.b16 %v1883
        %v6801 = vunpack.c.l.b16 %v1884
        %v6802 = vunpack.c.h.b16 %v1884
        %v6803 = vunpack.c.l.b16 %v1885
        %v6804 = vunpack.c.h.b16 %v1885
        %v6805 = vunpack.c.l.b16 %v1886
        %v6806 = vunpack.c.h.b16 %v1886
        %v6807 = vunpack.c.l.b16 %v1887
        %v6808 = vunpack.c.h.b16 %v1887
        %v6809 = vunpack.c.l.b16 %v1888
        %v6810 = vunpack.c.h.b16 %v1888
        %v6811 = vunpack.c.l.b16 %v1889
        %v6812 = vunpack.c.h.b16 %v1889
        %v6813 = vunpack.c.l.b16 %v1890
        %v6814 = vunpack.c.h.b16 %v1890
        %v6815 = vunpack.c.l.b16 %v1891
        %v6816 = vunpack.c.h.b16 %v1891
        %v6817 = vunpack.c.l.b16 %v1892
        %v6818 = vunpack.c.h.b16 %v1892
        %v6819 = vunpack.c.l.b16 %v1893
        %v6820 = vunpack.c.h.b16 %v1893
        %v6821 = vunpack.c.l.b16 %v1894
        %v6822 = vunpack.c.h.b16 %v1894
        %v6823 = vunpack.c.l.b16 %v1895
        %v6824 = vunpack.c.h.b16 %v1895
        %v6825 = vunpack.c.l.b16 %v1896
        %v6826 = vunpack.c.h.b16 %v1896
        %v6827 = vunpack.c.l.b16 %v1897
        %v6828 = vunpack.c.h.b16 %v1897
        %v6829 = vunpack.c.l.b16 %v1898
        %v6830 = vunpack.c.h.b16 %v1898
        %v6831 = vunpack.c.l.b16 %v1899
        %v6832 = vunpack.c.h.b16 %v1899
        %v6833 = vunpack.c.l.b16 %v1900
        %v6834 = vunpack.c.h.b16 %v1900
        %v6835 = vunpack.c.l.b16 %v1901
        %v6836 = vunpack.c.h.b16 %v1901
        %v6837 = vunpack.c.l.b16 %v1902
        %v6838 = vunpack.c.h.b16 %v1902
        %v6839 = vunpack.c.l.b16 %v1903
        %v6840 = vunpack.c.h.b16 %v1903
        %v6841 = vunpack.c.l.b16 %v1904
        %v6842 = vunpack.c.h.b16 %v1904
        %v6843 = vunpack.c.l.b16 %v1905
        %v6844 = vunpack.c.h.b16 %v1905
        %v6845 = vunpack.c.l.b16 %v1906
        %v6846 = vunpack.c.h.b16 %v1906
        %v6847 = vunpack.c.l.b16 %v1907
        %v6848 = vunpack.c.h.b16 %v1907
        %v6849 = vunpack.c.l.b16 %v1908
        %v6850 = vunpack.c.h.b16 %v1908
        %v6851 = vunpack.c.l.b16 %v1909
        %v6852 = vunpack.c.h.b16 %v1909
        %v6853 = vunpack.c.l.b16 %v1910
        %v6854 = vunpack.c.h.b16 %v1910
        %v6855 = vunpack.c.l.b16 %v1911
        %v6856 = vunpack.c.h.b16 %v1911
        %v6857 = vunpack.c.l.b16 %v1912
        %v6858 = vunpack.c.h.b16 %v1912
        %v6859 = vunpack.c.l.b16 %v1913
        %v6860 = vunpack.c.h.b16 %v1913
        %v6861 = vunpack.c.l.b16 %v1914
        %v6862 = vunpack.c.h.b16 %v1914
        %v6863 = vunpack.c.l.b16 %v1915
        %v6864 = vunpack.c.h.b16 %v1915
        %v6865 = vunpack.c.l.b16 %v1916
        %v6866 = vunpack.c.h.b16 %v1916
        %v6867 = vunpack.c.l.b16 %v1917
        %v6868 = vunpack.c.h.b16 %v1917
        %v6869 = vunpack.c.l.b16 %v1918
        %v6870 = vunpack.c.h.b16 %v1918
        %v6871 = vunpack.c.l.b16 %v1919
        %v6872 = vunpack.c.h.b16 %v1919
        %v6873 = vunpack.c.l.b16 %v1920
        %v6874 = vunpack.c.h.b16 %v1920
        %v6875 = vunpack.c.l.b16 %v1921
        %v6876 = vunpack.c.h.b16 %v1921
        %v6877 = vunpack.c.l.b16 %v1922
        %v6878 = vunpack.c.h.b16 %v1922
        %v6879 = vunpack.c.l.b16 %v1923
        %v6880 = vunpack.c.h.b16 %v1923
        %v6881 = vunpack.c.l.b16 %v1924
        %v6882 = vunpack.c.h.b16 %v1924
        %v6883 = vunpack.c.l.b16 %v1925
        %v6884 = vunpack.c.h.b16 %v1925
        %v6885 = vunpack.c.l.b16 %v1926
        %v6886 = vunpack.c.h.b16 %v1926
        %v6887 = vunpack.c.l.b16 %v1927
        %v6888 = vunpack.c.h.b16 %v1927
        %v6889 = vunpack.c.l.b16 %v1928
        %v6890 = vunpack.c.h.b16 %v1928
        %v6891 = vunpack.c.l.b16 %v1929
        %v6892 = vunpack.c.h.b16 %v1929
        %v6893 = vunpack.c.l.b16 %v1930
        %v6894 = vunpack.c.h.b16 %v1930
        %v6895 = vunpack.c.l.b16 %v1931
        %v6896 = vunpack.c.h.b16 %v1931
        %v6897 = vunpack.c.l.b16 %v1932
        %v6898 = vunpack.c.h.b16 %v1932
        %v6899 = vunpack.c.l.b16 %v1933
        %v6900 = vunpack.c.h.b16 %v1933
        %v6901 = vunpack.c.l.b16 %v1934
        %v6902 = vunpack.c.h.b16 %v1934
        %v6903 = vunpack.c.l.b16 %v1935
        %v6904 = vunpack.c.h.b16 %v1935
        %v6905 = vunpack.c.l.b16 %v1936
        %v6906 = vunpack.c.h.b16 %v1936
        %v6907 = vunpack.c.l.b16 %v1937
        %v6908 = vunpack.c.h.b16 %v1937
        %v6909 = vunpack.c.l.b16 %v1938
        %v6910 = vunpack.c.h.b16 %v1938
        %v6911 = vunpack.c.l.b16 %v1939
        %v6912 = vunpack.c.h.b16 %v1939
        %v6913 = vunpack.c.l.b16 %v1940
        %v6914 = vunpack.c.h.b16 %v1940
        %v6915 = vunpack.c.l.b16 %v1941
        %v6916 = vunpack.c.h.b16 %v1941
        %v6917 = vunpack.c.l.b16 %v1942
        %v6918 = vunpack.c.h.b16 %v1942
        %v6919 = vunpack.c.l.b16 %v1943
        %v6920 = vunpack.c.h.b16 %v1943
        %v6921 = vunpack.c.l.b16 %v1944
        %v6922 = vunpack.c.h.b16 %v1944
        %v6923 = vunpack.c.l.b16 %v1945
        %v6924 = vunpack.c.h.b16 %v1945
        %v6925 = vunpack.c.l.b16 %v1946
        %v6926 = vunpack.c.h.b16 %v1946
        %v6927 = vunpack.c.l.b16 %v1947
        %v6928 = vunpack.c.h.b16 %v1947
        %v6929 = vunpack.c.l.b16 %v1948
        %v6930 = vunpack.c.h.b16 %v1948
        %v6931 = vunpack.c.l.b16 %v1949
        %v6932 = vunpack.c.h.b16 %v1949
        %v6933 = vunpack.c.l.b16 %v1950
        %v6934 = vunpack.c.h.b16 %v1950
        %v6935 = vunpack.c.l.b16 %v1951
        %v6936 = vunpack.c.h.b16 %v1951
        %v6937 = vunpack.c.l.b16 %v1952
        %v6938 = vunpack.c.h.b16 %v1952
        %v6939 = vunpack.c.l.b16 %v1953
        %v6940 = vunpack.c.h.b16 %v1953
        %v6941 = vunpack.c.l.b16 %v1954
        %v6942 = vunpack.c.h.b16 %v1954
        %v6943 = vunpack.c.l.b16 %v1955
        %v6944 = vunpack.c.h.b16 %v1955
        %v6945 = vunpack.c.l.b16 %v1956
        %v6946 = vunpack.c.h.b16 %v1956
        %v6947 = vunpack.c.l.b16 %v1957
        %v6948 = vunpack.c.h.b16 %v1957
        %v6949 = vunpack.c.l.b16 %v1958
        %v6950 = vunpack.c.h.b16 %v1958
        %v6951 = vunpack.c.l.b16 %v1959
        %v6952 = vunpack.c.h.b16 %v1959
        %v6953 = vunpack.c.l.b16 %v1960
        %v6954 = vunpack.c.h.b16 %v1960
        %v6955 = vunpack.c.l.b16 %v1961
        %v6956 = vunpack.c.h.b16 %v1961
        %v6957 = vunpack.c.l.b16 %v1962
        %v6958 = vunpack.c.h.b16 %v1962
        %v6959 = vunpack.c.l.b16 %v1963
        %v6960 = vunpack.c.h.b16 %v1963
        %v6961 = vunpack.c.l.b16 %v1964
        %v6962 = vunpack.c.h.b16 %v1964
        %v6963 = vunpack.c.l.b16 %v1965
        %v6964 = vunpack.c.h.b16 %v1965
        %v6965 = vunpack.c.l.b16 %v1966
        %v6966 = vunpack.c.h.b16 %v1966
        %v6967 = vunpack.c.l.b16 %v1967
        %v6968 = vunpack.c.h.b16 %v1967
        %v6969 = vunpack.c.l.b16 %v1968
        %v6970 = vunpack.c.h.b16 %v1968
        %v6971 = vunpack.c.l.b16 %v1969
        %v6972 = vunpack.c.h.b16 %v1969
        %v6973 = vunpack.c.l.b16 %v1970
        %v6974 = vunpack.c.h.b16 %v1970
        %v6975 = vunpack.c.l.b16 %v1971
        %v6976 = vunpack.c.h.b16 %v1971
        %v6977 = vunpack.c.l.b16 %v1972
        %v6978 = vunpack.c.h.b16 %v1972
        %v6979 = vunpack.c.l.b16 %v1973
        %v6980 = vunpack.c.h.b16 %v1973
        %v6981 = vunpack.c.l.b16 %v1974
        %v6982 = vunpack.c.h.b16 %v1974
        %v6983 = vunpack.c.l.b16 %v1975
        %v6984 = vunpack.c.h.b16 %v1975
        %v6985 = vunpack.c.l.b16 %v1976
        %v6986 = vunpack.c.h.b16 %v1976
        %v6987 = vunpack.c.l.b16 %v1977
        %v6988 = vunpack.c.h.b16 %v1977
        %v6989 = vunpack.c.l.b16 %v1978
        %v6990 = vunpack.c.h.b16 %v1978
        %v6991 = vunpack.c.l.b16 %v1979
        %v6992 = vunpack.c.h.b16 %v1979
        %v6993 = vunpack.c.l.b16 %v1980
        %v6994 = vunpack.c.h.b16 %v1980
        %v6995 = vunpack.c.l.b16 %v1981
        %v6996 = vunpack.c.h.b16 %v1981
        %v6997 = vunpack.c.l.b16 %v1982
        %v6998 = vunpack.c.h.b16 %v1982
        %v6999 = vunpack.c.l.b16 %v1983
        %v7000 = vunpack.c.h.b16 %v1983
        %v7001 = vunpack.c.l.b16 %v1984
        %v7002 = vunpack.c.h.b16 %v1984
        %v7003 = vunpack.c.l.b16 %v1985
        %v7004 = vunpack.c.h.b16 %v1985
        %v7005 = vunpack.c.l.b16 %v1986
        %v7006 = vunpack.c.h.b16 %v1986
        %v7007 = vunpack.c.l.b16 %v1987
        %v7008 = vunpack.c.h.b16 %v1987
        %v7009 = vunpack.c.l.b16 %v1988
        %v7010 = vunpack.c.h.b16 %v1988
        %v7011 = vunpack.c.l.b16 %v1989
        %v7012 = vunpack.c.h.b16 %v1989
        %v7013 = vunpack.c.l.b16 %v1990
        %v7014 = vunpack.c.h.b16 %v1990
        %v7015 = vunpack.c.l.b16 %v1991
        %v7016 = vunpack.c.h.b16 %v1991
        %v7017 = vunpack.c.l.b16 %v1992
        %v7018 = vunpack.c.h.b16 %v1992
        %v7019 = vunpack.c.l.b16 %v1993
        %v7020 = vunpack.c.h.b16 %v1993
        %v7021 = vunpack.c.l.b16 %v1994
        %v7022 = vunpack.c.h.b16 %v1994
        %v7023 = vunpack.c.l.b16 %v1995
        %v7024 = vunpack.c.h.b16 %v1995
        %v7025 = vunpack.c.l.b16 %v1996
        %v7026 = vunpack.c.h.b16 %v1996
        %v7027 = vunpack.c.l.b16 %v1997
        %v7028 = vunpack.c.h.b16 %v1997
        %v7029 = vunpack.c.l.b16 %v1998
        %v7030 = vunpack.c.h.b16 %v1998
        %v7031 = vunpack.c.l.b16 %v1999
        %v7032 = vunpack.c.h.b16 %v1999
        %v7033 = vunpack.c.l.b16 %v2000
        %v7034 = vunpack.c.h.b16 %v2000
        %v7035 = vunpack.c.l.b16 %v2001
        %v7036 = vunpack.c.h.b16 %v2001
        %v7037 = vunpack.c.l.b16 %v2002
        %v7038 = vunpack.c.h.b16 %v2002
        %v7039 = vunpack.c.l.b16 %v2003
        %v7040 = vunpack.c.h.b16 %v2003
        %v7041 = vunpack.c.l.b16 %v2004
        %v7042 = vunpack.c.h.b16 %v2004
        %v7043 = vunpack.c.l.b16 %v2005
        %v7044 = vunpack.c.h.b16 %v2005
        %v7045 = vunpack.c.l.b16 %v2006
        %v7046 = vunpack.c.h.b16 %v2006
        %v7047 = vunpack.c.l.b16 %v2007
        %v7048 = vunpack.c.h.b16 %v2007
        %v7049 = vunpack.c.l.b16 %v2008
        %v7050 = vunpack.c.h.b16 %v2008
        %v7051 = vunpack.c.l.b16 %v2009
        %v7052 = vunpack.c.h.b16 %v2009
        %v7053 = vunpack.c.l.b16 %v2010
        %v7054 = vunpack.c.h.b16 %v2010
        %v7055 = vunpack.c.l.b16 %v2011
        %v7056 = vunpack.c.h.b16 %v2011
        %v7057 = vunpack.c.l.b16 %v2012
        %v7058 = vunpack.c.h.b16 %v2012
        %v7059 = vunpack.c.l.b16 %v2013
        %v7060 = vunpack.c.h.b16 %v2013
        %v7061 = vunpack.c.l.b16 %v2014
        %v7062 = vunpack.c.h.b16 %v2014
        %v7063 = vunpack.c.l.b16 %v2015
        %v7064 = vunpack.c.h.b16 %v2015
        %v7065 = vunpack.c.l.b16 %v2016
        %v7066 = vunpack.c.h.b16 %v2016
        %v7067 = vunpack.c.l.b16 %v2017
        %v7068 = vunpack.c.h.b16 %v2017
        %v7069 = vunpack.c.l.b16 %v2018
        %v7070 = vunpack.c.h.b16 %v2018
        %v7071 = vunpack.c.l.b16 %v2019
        %v7072 = vunpack.c.h.b16 %v2019
        %v7073 = vunpack.c.l.b16 %v2020
        %v7074 = vunpack.c.h.b16 %v2020
        %v7075 = vunpack.c.l.b16 %v2021
        %v7076 = vunpack.c.h.b16 %v2021
        %v7077 = vunpack.c.l.b16 %v2022
        %v7078 = vunpack.c.h.b16 %v2022
        %v7079 = vunpack.c.l.b16 %v2023
        %v7080 = vunpack.c.h.b16 %v2023
        %v7081 = vunpack.c.l.b16 %v2024
        %v7082 = vunpack.c.h.b16 %v2024
        %v7083 = vunpack.c.l.b16 %v2025
        %v7084 = vunpack.c.h.b16 %v2025
        %v7085 = vunpack.c.l.b16 %v2026
        %v7086 = vunpack.c.h.b16 %v2026
        %v7087 = vunpack.c.l.b16 %v2027
        %v7088 = vunpack.c.h.b16 %v2027
        %v7089 = vunpack.c.l.b16 %v2028
        %v7090 = vunpack.c.h.b16 %v2028
        %v7091 = vunpack.c.l.b16 %v2029
        %v7092 = vunpack.c.h.b16 %v2029
        %v7093 = vunpack.c.l.b16 %v2030
        %v7094 = vunpack.c.h.b16 %v2030
        %v7095 = vunpack.c.l.b16 %v2031
        %v7096 = vunpack.c.h.b16 %v2031
        %v7097 = vunpack.c.l.b16 %v2032
        %v7098 = vunpack.c.h.b16 %v2032
        %v7099 = vunpack.c.l.b16 %v2033
        %v7100 = vunpack.c.h.b16 %v2033
        %v7101 = vunpack.c.l.b16 %v2034
        %v7102 = vunpack.c.h.b16 %v2034
        %v7103 = vunpack.c.l.b16 %v2035
        %v7104 = vunpack.c.h.b16 %v2035
        %v7105 = vunpack.c.l.b16 %v2036
        %v7106 = vunpack.c.h.b16 %v2036
        %v7107 = vunpack.c.l.b16 %v2037
        %v7108 = vunpack.c.h.b16 %v2037
        %v7109 = vunpack.c.l.b16 %v2038
        %v7110 = vunpack.c.h.b16 %v2038
        %v7111 = vunpack.c.l.b16 %v2039
        %v7112 = vunpack.c.h.b16 %v2039
        %v7113 = vunpack.c.l.b16 %v2040
        %v7114 = vunpack.c.h.b16 %v2040
        %v7115 = vunpack.c.l.b16 %v2041
        %v7116 = vunpack.c.h.b16 %v2041
        %v7117 = vunpack.c.l.b16 %v2042
        %v7118 = vunpack.c.h.b16 %v2042
        %v7119 = vunpack.c.l.b16 %v2043
        %v7120 = vunpack.c.h.b16 %v2043
        %v7121 = vunpack.c.l.b16 %v2044
        %v7122 = vunpack.c.h.b16 %v2044
        %v7123 = vunpack.c.l.b16 %v2045
        %v7124 = vunpack.c.h.b16 %v2045
        %v7125 = vunpack.c.l.b16 %v2046
        %v7126 = vunpack.c.h.b16 %v2046
        %v7127 = vunpack.c.l.b16 %v2047
        %v7128 = vunpack.c.h.b16 %v2047
        %v7129 = vunpack.c.l.b16 %v2048
        %v7130 = vunpack.c.h.b16 %v2048
        %v7131 = vunpack.c.l.b16 %v2049
        %v7132 = vunpack.c.h.b16 %v2049
        %v7133 = vunpack.c.l.b16 %v2050
        %v7134 = vunpack.c.h.b16 %v2050
        %v7135 = vunpack.c.l.b16 %v2051
        %v7136 = vunpack.c.h.b16 %v2051
        %v7137 = vunpack.c.l.b16 %v2052
        %v7138 = vunpack.c.h.b16 %v2052
        %v7139 = vunpack.c.l.b16 %v2053
        %v7140 = vunpack.c.h.b16 %v2053
        %v7141 = vunpack.c.l.b16 %v2054
        %v7142 = vunpack.c.h.b16 %v2054
        %v7143 = vunpack.c.l.b16 %v2055
        %v7144 = vunpack.c.h.b16 %v2055
        %v7145 = vunpack.c.l.b16 %v2056
        %v7146 = vunpack.c.h.b16 %v2056
        %v7147 = vunpack.c.l.b16 %v2057
        %v7148 = vunpack.c.h.b16 %v2057
        %v7149 = vunpack.c.l.b16 %v2058
        %v7150 = vunpack.c.h.b16 %v2058
        %v7151 = vunpack.c.l.b16 %v2059
        %v7152 = vunpack.c.h.b16 %v2059
        %v7153 = vunpack.c.l.b16 %v2060
        %v7154 = vunpack.c.h.b16 %v2060
        %v7155 = vunpack.c.l.b16 %v2061
        %v7156 = vunpack.c.h.b16 %v2061
        %v7157 = vunpack.c.l.b16 %v2062
        %v7158 = vunpack.c.h.b16 %v2062
        %v7159 = vunpack.c.l.b16 %v2063
        %v7160 = vunpack.c.h.b16 %v2063
        %v7161 = vunpack.c.l.b16 %v2064
        %v7162 = vunpack.c.h.b16 %v2064
        %v7163 = vunpack.c.l.b16 %v2065
        %v7164 = vunpack.c.h.b16 %v2065
        %v7165 = vunpack.c.l.b16 %v2066
        %v7166 = vunpack.c.h.b16 %v2066
        %v7167 = vunpack.c.l.b16 %v2067
        %v7168 = vunpack.c.h.b16 %v2067
        %v7169 = vunpack.c.l.b16 %v2068
        %v7170 = vunpack.c.h.b16 %v2068
        %v7171 = vunpack.c.l.b16 %v2069
        %v7172 = vunpack.c.h.b16 %v2069
        %v7173 = vunpack.c.l.b16 %v2070
        %v7174 = vunpack.c.h.b16 %v2070
        %v7175 = vunpack.c.l.b16 %v2071
        %v7176 = vunpack.c.h.b16 %v2071
        %v7177 = vunpack.c.l.b16 %v2072
        %v7178 = vunpack.c.h.b16 %v2072
        %v7179 = vunpack.c.l.b16 %v2073
        %v7180 = vunpack.c.h.b16 %v2073
        %v7181 = vunpack.c.l.b16 %v2074
        %v7182 = vunpack.c.h.b16 %v2074
        %v7183 = vunpack.c.l.b16 %v2075
        %v7184 = vunpack.c.h.b16 %v2075
        %v7185 = vunpack.c.l.b16 %v2076
        %v7186 = vunpack.c.h.b16 %v2076
        %v7187 = vunpack.c.l.b16 %v2077
        %v7188 = vunpack.c.h.b16 %v2077
        %v7189 = vunpack.c.l.b16 %v2078
        %v7190 = vunpack.c.h.b16 %v2078
        %v7191 = vunpack.c.l.b16 %v2079
        %v7192 = vunpack.c.h.b16 %v2079
        %v7193 = vunpack.c.l.b16 %v2080
        %v7194 = vunpack.c.h.b16 %v2080
        %v7195 = vunpack.c.l.b16 %v2081
        %v7196 = vunpack.c.h.b16 %v2081
        %v7197 = vunpack.c.l.b16 %v2082
        %v7198 = vunpack.c.h.b16 %v2082
        %v7199 = vunpack.c.l.b16 %v2083
        %v7200 = vunpack.c.h.b16 %v2083
        %v7201 = vunpack.c.l.b16 %v2084
        %v7202 = vunpack.c.h.b16 %v2084
        %v7203 = vunpack.c.l.b16 %v2085
        %v7204 = vunpack.c.h.b16 %v2085
        %v7205 = vunpack.c.l.b16 %v2086
        %v7206 = vunpack.c.h.b16 %v2086
        %v7207 = vunpack.c.l.b16 %v2087
        %v7208 = vunpack.c.h.b16 %v2087
        %v7209 = vunpack.c.l.b16 %v2088
        %v7210 = vunpack.c.h.b16 %v2088
        %v7211 = vunpack.c.l.b16 %v2089
        %v7212 = vunpack.c.h.b16 %v2089
        %v7213 = vunpack.c.l.b16 %v2090
        %v7214 = vunpack.c.h.b16 %v2090
        %v7215 = vunpack.c.l.b16 %v2091
        %v7216 = vunpack.c.h.b16 %v2091
        %v7217 = vunpack.c.l.b16 %v2092
        %v7218 = vunpack.c.h.b16 %v2092
        %v7219 = vunpack.c.l.b16 %v2093
        %v7220 = vunpack.c.h.b16 %v2093
        %v7221 = vunpack.c.l.b16 %v2094
        %v7222 = vunpack.c.h.b16 %v2094
        %v7223 = vunpack.c.l.b16 %v2095
        %v7224 = vunpack.c.h.b16 %v2095
        %v7225 = vunpack.c.l.b16 %v2096
        %v7226 = vunpack.c.h.b16 %v2096
        %v7227 = vunpack.c.l.b16 %v2097
        %v7228 = vunpack.c.h.b16 %v2097
        %v7229 = vunpack.c.l.b16 %v2098
        %v7230 = vunpack.c.h.b16 %v2098
        %v7231 = vunpack.c.l.b16 %v2099
        %v7232 = vunpack.c.h.b16 %v2099
        %v7233 = vunpack.c.l.b16 %v2100
        %v7234 = vunpack.c.h.b16 %v2100
        %v7235 = vunpack.c.l.b16 %v2101
        %v7236 = vunpack.c.h.b16 %v2101
        %v7237 = vunpack.c.l.b16 %v2102
        %v7238 = vunpack.c.h.b16 %v2102
        %v7239 = vunpack.c.l.b16 %v2103
        %v7240 = vunpack.c.h.b16 %v2103
        %v7241 = vunpack.c.l.b16 %v2104
        %v7242 = vunpack.c.h.b16 %v2104
        %v7243 = vunpack.c.l.b16 %v2105
        %v7244 = vunpack.c.h.b16 %v2105
        %v7245 = vunpack.c.l.b16 %v2106
        %v7246 = vunpack.c.h.b16 %v2106
        %v7247 = vunpack.c.l.b16 %v2107
        %v7248 = vunpack.c.h.b16 %v2107
        %v7249 = vunpack.c.l.b16 %v2108
        %v7250 = vunpack.c.h.b16 %v2108
        %v7251 = vunpack.c.l.b16 %v2109
        %v7252 = vunpack.c.h.b16 %v2109
        %v7253 = vunpack.c.l.b16 %v2110
        %v7254 = vunpack.c.h.b16 %v2110
        %v7255 = vunpack.c.l.b16 %v2111
        %v7256 = vunpack.c.h.b16 %v2111
        %v7257 = vunpack.c.l.b16 %v2112
        %v7258 = vunpack.c.h.b16 %v2112
        %v7259 = vunpack.c.l.b16 %v2113
        %v7260 = vunpack.c.h.b16 %v2113
        %v7261 = vunpack.c.l.b16 %v2114
        %v7262 = vunpack.c.h.b16 %v2114
        %v7263 = vunpack.c.l.b16 %v2115
        %v7264 = vunpack.c.h.b16 %v2115
        %v7265 = vunpack.c.l.b16 %v2116
        %v7266 = vunpack.c.h.b16 %v2116
        %v7267 = vpack.c.b16 %v4069, %v4067
        %v7268 = vpack.c.b16 %v4070, %v4068
        %v7269 = vpack.c.b16 %v4073, %v4071
        %v7270 = vpack.c.b16 %v4074, %v4072
        %v7271 = vpack.c.b16 %v4077, %v4075
        %v7272 = vpack.c.b16 %v4078, %v4076
        %v7273 = vpack.c.b16 %v4081, %v4079
        %v7274 = vpack.c.b16 %v4082, %v4080
        %v7275 = vpack.c.b16 %v4085, %v4083
        %v7276 = vpack.c.b16 %v4086, %v4084
        %v7277 = vpack.c.b16 %v4089, %v4087
        %v7278 = vpack.c.b16 %v4090, %v4088
        %v7279 = vpack.c.b16 %v4093, %v4091
        %v7280 = vpack.c.b16 %v4094, %v4092
        %v7281 = vpack.c.b16 %v4097, %v4095
        %v7282 = vpack.c.b16 %v4098, %v4096
        %v7283 = vpack.c.b16 %v4101, %v4099
        %v7284 = vpack.c.b16 %v4102, %v4100
        %v7285 = vpack.c.b16 %v4105, %v4103
        %v7286 = vpack.c.b16 %v4106, %v4104
        %v7287 = vpack.c.b16 %v4109, %v4107
        %v7288 = vpack.c.b16 %v4110, %v4108
        %v7289 = vpack.c.b16 %v4113, %v4111
        %v7290 = vpack.c.b16 %v4114, %v4112
        %v7291 = vpack.c.b16 %v4117, %v4115
        %v7292 = vpack.c.b16 %v4118, %v4116
        %v7293 = vpack.c.b16 %v4121, %v4119
        %v7294 = vpack.c.b16 %v4122, %v4120
        %v7295 = vpack.c.b16 %v4125, %v4123
        %v7296 = vpack.c.b16 %v4126, %v4124
        %v7297 = vpack.c.b16 %v4129, %v4127
        %v7298 = vpack.c.b16 %v4130, %v4128
        %v7299 = vpack.c.b16 %v4133, %v4131
        %v7300 = vpack.c.b16 %v4134, %v4132
        %v7301 = vpack.c.b16 %v4137, %v4135
        %v7302 = vpack.c.b16 %v4138, %v4136
        %v7303 = vpack.c.b16 %v4141, %v4139
        %v7304 = vpack.c.b16 %v4142, %v4140
        %v7305 = vpack.c.b16 %v4145, %v4143
        %v7306 = vpack.c.b16 %v4146, %v4144
        %v7307 = vpack.c.b16 %v4149, %v4147
        %v7308 = vpack.c.b16 %v4150, %v4148
        %v7309 = vpack.c.b16 %v4153, %v4151
        %v7310 = vpack.c.b16 %v4154, %v4152
        %v7311 = vpack.c.b16 %v4157, %v4155
        %v7312 = vpack.c.b16 %v4158, %v4156
        %v7313 = vpack.c.b16 %v4161, %v4159
        %v7314 = vpack.c.b16 %v4162, %v4160
        %v7315 = vpack.c.b16 %v4165, %v4163
        %v7316 = vpack.c.b16 %v4166, %v4164
        %v7317 = vpack.c.b16 %v4169, %v4167
        %v7318 = vpack.c.b16 %v4170, %v4168
        %v7319 = vpack.c.b16 %v4173, %v4171
        %v7320 = vpack.c.b16 %v4174, %v4172
        %v7321 = vpack.c.b16 %v4177, %v4175
        %v7322 = vpack.c.b16 %v4178, %v4176
        %v7323 = vpack.c.b16 %v4181, %v4179
        %v7324 = vpack.c.b16 %v4182, %v4180
        %v7325 = vpack.c.b16 %v4185, %v4183
        %v7326 = vpack.c.b16 %v4186, %v4184
        %v7327 = vpack.c.b16 %v4189, %v4187
        %v7328 = vpack.c.b16 %v4190, %v4188
        %v7329 = vpack.c.b16 %v4193, %v4191
        %v7330 = vpack.c.b16 %v4194, %v4192
        %v7331 = vpack.c.b16 %v4197, %v4195
        %v7332 = vpack.c.b16 %v4198, %v4196
        %v7333 = vpack.c.b16 %v4201, %v4199
        %v7334 = vpack.c.b16 %v4202, %v4200
        %v7335 = vpack.c.b16 %v4205, %v4203
        %v7336 = vpack.c.b16 %v4206, %v4204
        %v7337 = vpack.c.b16 %v4209, %v4207
        %v7338 = vpack.c.b16 %v4210, %v4208
        %v7339 = vpack.c.b16 %v4213, %v4211
        %v7340 = vpack.c.b16 %v4214, %v4212
        %v7341 = vpack.c.b16 %v4217, %v4215
        %v7342 = vpack.c.b16 %v4218, %v4216
        %v7343 = vpack.c.b16 %v4221, %v4219
        %v7344 = vpack.c.b16 %v4222, %v4220
        %v7345 = vpack.c.b16 %v4225, %v4223
        %v7346 = vpack.c.b16 %v4226, %v4224
        %v7347 = vpack.c.b16 %v4229, %v4227
        %v7348 = vpack.c.b16 %v4230, %v4228
        %v7349 = vpack.c.b16 %v4233, %v4231
        %v7350 = vpack.c.b16 %v4234, %v4232
        %v7351 = vpack.c.b16 %v4237, %v4235
        %v7352 = vpack.c.b16 %v4238, %v4236
        %v7353 = vpack.c.b16 %v4241, %v4239
        %v7354 = vpack.c.b16 %v4242, %v4240
        %v7355 = vpack.c.b16 %v4245, %v4243
        %v7356 = vpack.c.b16 %v4246, %v4244
        %v7357 = vpack.c.b16 %v4249, %v4247
        %v7358 = vpack.c.b16 %v4250, %v4248
        %v7359 = vpack.c.b16 %v4253, %v4251
        %v7360 = vpack.c.b16 %v4254, %v4252
        %v7361 = vpack.c.b16 %v4257, %v4255
        %v7362 = vpack.c.b16 %v4258, %v4256
        %v7363 = vpack.c.b16 %v4261, %v4259
        %v7364 = vpack.c.b16 %v4262, %v4260
        %v7365 = vpack.c.b16 %v4265, %v4263
        %v7366 = vpack.c.b16 %v4266, %v4264
        %v7367 = vpack.c.b16 %v4269, %v4267
        %v7368 = vpack.c.b16 %v4270, %v4268
        %v7369 = vpack.c.b16 %v4273, %v4271
        %v7370 = vpack.c.b16 %v4274, %v4272
        %v7371 = vpack.c.b16 %v4277, %v4275
        %v7372 = vpack.c.b16 %v4278, %v4276
        %v7373 = vpack.c.b16 %v4281, %v4279
        %v7374 = vpack.c.b16 %v4282, %v4280
        %v7375 = vpack.c.b16 %v4285, %v4283
        %v7376 = vpack.c.b16 %v4286, %v4284
        %v7377 = vpack.c.b16 %v4289, %v4287
        %v7378 = vpack.c.b16 %v4290, %v4288
        %v7379 = vpack.c.b16 %v4293, %v4291
        %v7380 = vpack.c.b16 %v4294, %v4292
        %v7381 = vpack.c.b16 %v4297, %v4295
        %v7382 = vpack.c.b16 %v4298, %v4296
        %v7383 = vpack.c.b16 %v4301, %v4299
        %v7384 = vpack.c.b16 %v4302, %v4300
        %v7385 = vpack.c.b16 %v4305, %v4303
        %v7386 = vpack.c.b16 %v4306, %v4304
        %v7387 = vpack.c.b16 %v4309, %v4307
        %v7388 = vpack.c.b16 %v4310, %v4308
        %v7389 = vpack.c.b16 %v4313, %v4311
        %v7390 = vpack.c.b16 %v4314, %v4312
        %v7391 = vpack.c.b16 %v4317, %v4315
        %v7392 = vpack.c.b16 %v4318, %v4316
        %v7393 = vpack.c.b16 %v4321, %v4319
        %v7394 = vpack.c.b16 %v4322, %v4320
        %v7395 = vpack.c.b16 %v4325, %v4323
        %v7396 = vpack.c.b16 %v4326, %v4324
        %v7397 = vpack.c.b16 %v4329, %v4327
        %v7398 = vpack.c.b16 %v4330, %v4328
        %v7399 = vpack.c.b16 %v4333, %v4331
        %v7400 = vpack.c.b16 %v4334, %v4332
        %v7401 = vpack.c.b16 %v4337, %v4335
        %v7402 = vpack.c.b16 %v4338, %v4336
        %v7403 = vpack.c.b16 %v4341, %v4339
        %v7404 = vpack.c.b16 %v4342, %v4340
        %v7405 = vpack.c.b16 %v4345, %v4343
        %v7406 = vpack.c.b16 %v4346, %v4344
        %v7407 = vpack.c.b16 %v4349, %v4347
        %v7408 = vpack.c.b16 %v4350, %v4348
        %v7409 = vpack.c.b16 %v4353, %v4351
        %v7410 = vpack.c.b16 %v4354, %v4352
        %v7411 = vpack.c.b16 %v4357, %v4355
        %v7412 = vpack.c.b16 %v4358, %v4356
        %v7413 = vpack.c.b16 %v4361, %v4359
        %v7414 = vpack.c.b16 %v4362, %v4360
        %v7415 = vpack.c.b16 %v4365, %v4363
        %v7416 = vpack.c.b16 %v4366, %v4364
        %v7417 = vpack.c.b16 %v4369, %v4367
        %v7418 = vpack.c.b16 %v4370, %v4368
        %v7419 = vpack.c.b16 %v4373, %v4371
        %v7420 = vpack.c.b16 %v4374, %v4372
        %v7421 = vpack.c.b16 %v4377, %v4375
        %v7422 = vpack.c.b16 %v4378, %v4376
        %v7423 = vpack.c.b16 %v4381, %v4379
        %v7424 = vpack.c.b16 %v4382, %v4380
        %v7425 = vpack.c.b16 %v4385, %v4383
        %v7426 = vpack.c.b16 %v4386, %v4384
        %v7427 = vpack.c.b16 %v4389, %v4387
        %v7428 = vpack.c.b16 %v4390, %v4388
        %v7429 = vpack.c.b16 %v4393, %v4391
        %v7430 = vpack.c.b16 %v4394, %v4392
        %v7431 = vpack.c.b16 %v4397, %v4395
        %v7432 = vpack.c.b16 %v4398, %v4396
        %v7433 = vpack.c.b16 %v4401, %v4399
        %v7434 = vpack.c.b16 %v4402, %v4400
        %v7435 = vpack.c.b16 %v4405, %v4403
        %v7436 = vpack.c.b16 %v4406, %v4404
        %v7437 = vpack.c.b16 %v4409, %v4407
        %v7438 = vpack.c.b16 %v4410, %v4408
        %v7439 = vpack.c.b16 %v4413, %v4411
        %v7440 = vpack.c.b16 %v4414, %v4412
        %v7441 = vpack.c.b16 %v4417, %v4415
        %v7442 = vpack.c.b16 %v4418, %v4416
        %v7443 = vpack.c.b16 %v4421, %v4419
        %v7444 = vpack.c.b16 %v4422, %v4420
        %v7445 = vpack.c.b16 %v4425, %v4423
        %v7446 = vpack.c.b16 %v4426, %v4424
        %v7447 = vpack.c.b16 %v4429, %v4427
        %v7448 = vpack.c.b16 %v4430, %v4428
        %v7449 = vpack.c.b16 %v4433, %v4431
        %v7450 = vpack.c.b16 %v4434, %v4432
        %v7451 = vpack.c.b16 %v4437, %v4435
        %v7452 = vpack.c.b16 %v4438, %v4436
        %v7453 = vpack.c.b16 %v4441, %v4439
        %v7454 = vpack.c.b16 %v4442, %v4440
        %v7455 = vpack.c.b16 %v4445, %v4443
        %v7456 = vpack.c.b16 %v4446, %v4444
        %v7457 = vpack.c.b16 %v4449, %v4447
        %v7458 = vpack.c.b16 %v4450, %v4448
        %v7459 = vpack.c.b16 %v4453, %v4451
        %v7460 = vpack.c.b16 %v4454, %v4452
        %v7461 = vpack.c.b16 %v4457, %v4455
        %v7462 = vpack.c.b16 %v4458, %v4456
        %v7463 = vpack.c.b16 %v4461, %v4459
        %v7464 = vpack.c.b16 %v4462, %v4460
        %v7465 = vpack.c.b16 %v4465, %v4463
        %v7466 = vpack.c.b16 %v4466, %v4464
        %v7467 = vpack.c.b16 %v4469, %v4467
        %v7468 = vpack.c.b16 %v4470, %v4468
        %v7469 = vpack.c.b16 %v4473, %v4471
        %v7470 = vpack.c.b16 %v4474, %v4472
        %v7471 = vpack.c.b16 %v4477, %v4475
        %v7472 = vpack.c.b16 %v4478, %v4476
        %v7473 = vpack.c.b16 %v4481, %v4479
        %v7474 = vpack.c.b16 %v4482, %v4480
        %v7475 = vpack.c.b16 %v4485, %v4483
        %v7476 = vpack.c.b16 %v4486, %v4484
        %v7477 = vpack.c.b16 %v4489, %v4487
        %v7478 = vpack.c.b16 %v4490, %v4488
        %v7479 = vpack.c.b16 %v4493, %v4491
        %v7480 = vpack.c.b16 %v4494, %v4492
        %v7481 = vpack.c.b16 %v4497, %v4495
        %v7482 = vpack.c.b16 %v4498, %v4496
        %v7483 = vpack.c.b16 %v4501, %v4499
        %v7484 = vpack.c.b16 %v4502, %v4500
        %v7485 = vpack.c.b16 %v4505, %v4503
        %v7486 = vpack.c.b16 %v4506, %v4504
        %v7487 = vpack.c.b16 %v4509, %v4507
        %v7488 = vpack.c.b16 %v4510, %v4508
        %v7489 = vpack.c.b16 %v4513, %v4511
        %v7490 = vpack.c.b16 %v4514, %v4512
        %v7491 = vpack.c.b16 %v4517, %v4515
        %v7492 = vpack.c.b16 %v4518, %v4516
        %v7493 = vpack.c.b16 %v4521, %v4519
        %v7494 = vpack.c.b16 %v4522, %v4520
        %v7495 = vpack.c.b16 %v4525, %v4523
        %v7496 = vpack.c.b16 %v4526, %v4524
        %v7497 = vpack.c.b16 %v4529, %v4527
        %v7498 = vpack.c.b16 %v4530, %v4528
        %v7499 = vpack.c.b16 %v4533, %v4531
        %v7500 = vpack.c.b16 %v4534, %v4532
        %v7501 = vpack.c.b16 %v4537, %v4535
        %v7502 = vpack.c.b16 %v4538, %v4536
        %v7503 = vpack.c.b16 %v4541, %v4539
        %v7504 = vpack.c.b16 %v4542, %v4540
        %v7505 = vpack.c.b16 %v4545, %v4543
        %v7506 = vpack.c.b16 %v4546, %v4544
        %v7507 = vpack.c.b16 %v4549, %v4547
        %v7508 = vpack.c.b16 %v4550, %v4548
        %v7509 = vpack.c.b16 %v4553, %v4551
        %v7510 = vpack.c.b16 %v4554, %v4552
        %v7511 = vpack.c.b16 %v4557, %v4555
        %v7512 = vpack.c.b16 %v4558, %v4556
        %v7513 = vpack.c.b16 %v4561, %v4559
        %v7514 = vpack.c.b16 %v4562, %v4560
        %v7515 = vpack.c.b16 %v4565, %v4563
        %v7516 = vpack.c.b16 %v4566, %v4564
        %v7517 = vpack.c.b16 %v4569, %v4567
        %v7518 = vpack.c.b16 %v4570, %v4568
        %v7519 = vpack.c.b16 %v4573, %v4571
        %v7520 = vpack.c.b16 %v4574, %v4572
        %v7521 = vpack.c.b16 %v4577, %v4575
        %v7522 = vpack.c.b16 %v4578, %v4576
        %v7523 = vpack.c.b16 %v4581, %v4579
        %v7524 = vpack.c.b16 %v4582, %v4580
        %v7525 = vpack.c.b16 %v4585, %v4583
        %v7526 = vpack.c.b16 %v4586, %v4584
        %v7527 = vpack.c.b16 %v4589, %v4587
        %v7528 = vpack.c.b16 %v4590, %v4588
        %v7529 = vpack.c.b16 %v4593, %v4591
        %v7530 = vpack.c.b16 %v4594, %v4592
        %v7531 = vpack.c.b16 %v4597, %v4595
        %v7532 = vpack.c.b16 %v4598, %v4596
        %v7533 = vpack.c.b16 %v4601, %v4599
        %v7534 = vpack.c.b16 %v4602, %v4600
        %v7535 = vpack.c.b16 %v4605, %v4603
        %v7536 = vpack.c.b16 %v4606, %v4604
        %v7537 = vpack.c.b16 %v4609, %v4607
        %v7538 = vpack.c.b16 %v4610, %v4608
        %v7539 = vpack.c.b16 %v4613, %v4611
        %v7540 = vpack.c.b16 %v4614, %v4612
        %v7541 = vpack.c.b16 %v4617, %v4615
        %v7542 = vpack.c.b16 %v4618, %v4616
        %v7543 = vpack.c.b16 %v4621, %v4619
        %v7544 = vpack.c.b16 %v4622, %v4620
        %v7545 = vpack.c.b16 %v4625, %v4623
        %v7546 = vpack.c.b16 %v4626, %v4624
        %v7547 = vpack.c.b16 %v4629, %v4627
        %v7548 = vpack.c.b16 %v4630, %v4628
        %v7549 = vpack.c.b16 %v4633, %v4631
        %v7550 = vpack.c.b16 %v4634, %v4632
        %v7551 = vpack.c.b16 %v4637, %v4635
        %v7552 = vpack.c.b16 %v4638, %v4636
        %v7553 = vpack.c.b16 %v4641, %v4639
        %v7554 = vpack.c.b16 %v4642, %v4640
        %v7555 = vpack.c.b16 %v4645, %v4643
        %v7556 = vpack.c.b16 %v4646, %v4644
        %v7557 = vpack.c.b16 %v4649, %v4647
        %v7558 = vpack.c.b16 %v4650, %v4648
        %v7559 = vpack.c.b16 %v4653, %v4651
        %v7560 = vpack.c.b16 %v4654, %v4652
        %v7561 = vpack.c.b16 %v4657, %v4655
        %v7562 = vpack.c.b16 %v4658, %v4656
        %v7563 = vpack.c.b16 %v4661, %v4659
        %v7564 = vpack.c.b16 %v4662, %v4660
        %v7565 = vpack.c.b16 %v4665, %v4663
        %v7566 = vpack.c.b16 %v4666, %v4664
        %v7567 = vpack.c.b16 %v4669, %v4667
        %v7568 = vpack.c.b16 %v4670, %v4668
        %v7569 = vpack.c.b16 %v4673, %v4671
        %v7570 = vpack.c.b16 %v4674, %v4672
        %v7571 = vpack.c.b16 %v4677, %v4675
        %v7572 = vpack.c.b16 %v4678, %v4676
        %v7573 = vpack.c.b16 %v4681, %v4679
        %v7574 = vpack.c.b16 %v4682, %v4680
        %v7575 = vpack.c.b16 %v4685, %v4683
        %v7576 = vpack.c.b16 %v4686, %v4684
        %v7577 = vpack.c.b16 %v4689, %v4687
        %v7578 = vpack.c.b16 %v4690, %v4688
        %v7579 = vpack.c.b16 %v4693, %v4691
        %v7580 = vpack.c.b16 %v4694, %v4692
        %v7581 = vpack.c.b16 %v4697, %v4695
        %v7582 = vpack.c.b16 %v4698, %v4696
        %v7583 = vpack.c.b16 %v4701, %v4699
        %v7584 = vpack.c.b16 %v4702, %v4700
        %v7585 = vpack.c.b16 %v4705, %v4703
        %v7586 = vpack.c.b16 %v4706, %v4704
        %v7587 = vpack.c.b16 %v4709, %v4707
        %v7588 = vpack.c.b16 %v4710, %v4708
        %v7589 = vpack.c.b16 %v4713, %v4711
        %v7590 = vpack.c.b16 %v4714, %v4712
        %v7591 = vpack.c.b16 %v4717, %v4715
        %v7592 = vpack.c.b16 %v4718, %v4716
        %v7593 = vpack.c.b16 %v4721, %v4719
        %v7594 = vpack.c.b16 %v4722, %v4720
        %v7595 = vpack.c.b16 %v4725, %v4723
        %v7596 = vpack.c.b16 %v4726, %v4724
        %v7597 = vpack.c.b16 %v4729, %v4727
        %v7598 = vpack.c.b16 %v4730, %v4728
        %v7599 = vpack.c.b16 %v4733, %v4731
        %v7600 = vpack.c.b16 %v4734, %v4732
        %v7601 = vpack.c.b16 %v4737, %v4735
        %v7602 = vpack.c.b16 %v4738, %v4736
        %v7603 = vpack.c.b16 %v4741, %v4739
        %v7604 = vpack.c.b16 %v4742, %v4740
        %v7605 = vpack.c.b16 %v4745, %v4743
        %v7606 = vpack.c.b16 %v4746, %v4744
        %v7607 = vpack.c.b16 %v4749, %v4747
        %v7608 = vpack.c.b16 %v4750, %v4748
        %v7609 = vpack.c.b16 %v4753, %v4751
        %v7610 = vpack.c.b16 %v4754, %v4752
        %v7611 = vpack.c.b16 %v4757, %v4755
        %v7612 = vpack.c.b16 %v4758, %v4756
        %v7613 = vpack.c.b16 %v4761, %v4759
        %v7614 = vpack.c.b16 %v4762, %v4760
        %v7615 = vpack.c.b16 %v4765, %v4763
        %v7616 = vpack.c.b16 %v4766, %v4764
        %v7617 = vpack.c.b16 %v4769, %v4767
        %v7618 = vpack.c.b16 %v4770, %v4768
        %v7619 = vpack.c.b16 %v4773, %v4771
        %v7620 = vpack.c.b16 %v4774, %v4772
        %v7621 = vpack.c.b16 %v4777, %v4775
        %v7622 = vpack.c.b16 %v4778, %v4776
        %v7623 = vpack.c.b16 %v4781, %v4779
        %v7624 = vpack.c.b16 %v4782, %v4780
        %v7625 = vpack.c.b16 %v4785, %v4783
        %v7626 = vpack.c.b16 %v4786, %v4784
        %v7627 = vpack.c.b16 %v4789, %v4787
        %v7628 = vpack.c.b16 %v4790, %v4788
        %v7629 = vpack.c.b16 %v4793, %v4791
        %v7630 = vpack.c.b16 %v4794, %v4792
        %v7631 = vpack.c.b16 %v4797, %v4795
        %v7632 = vpack.c.b16 %v4798, %v4796
        %v7633 = vpack.c.b16 %v4801, %v4799
        %v7634 = vpack.c.b16 %v4802, %v4800
        %v7635 = vpack.c.b16 %v4805, %v4803
        %v7636 = vpack.c.b16 %v4806, %v4804
        %v7637 = vpack.c.b16 %v4809, %v4807
        %v7638 = vpack.c.b16 %v4810, %v4808
        %v7639 = vpack.c.b16 %v4813, %v4811
        %v7640 = vpack.c.b16 %v4814, %v4812
        %v7641 = vpack.c.b16 %v4817, %v4815
        %v7642 = vpack.c.b16 %v4818, %v4816
        %v7643 = vpack.c.b16 %v4821, %v4819
        %v7644 = vpack.c.b16 %v4822, %v4820
        %v7645 = vpack.c.b16 %v4825, %v4823
        %v7646 = vpack.c.b16 %v4826, %v4824
        %v7647 = vpack.c.b16 %v4829, %v4827
        %v7648 = vpack.c.b16 %v4830, %v4828
        %v7649 = vpack.c.b16 %v4833, %v4831
        %v7650 = vpack.c.b16 %v4834, %v4832
        %v7651 = vpack.c.b16 %v4837, %v4835
        %v7652 = vpack.c.b16 %v4838, %v4836
        %v7653 = vpack.c.b16 %v4841, %v4839
        %v7654 = vpack.c.b16 %v4842, %v4840
        %v7655 = vpack.c.b16 %v4845, %v4843
        %v7656 = vpack.c.b16 %v4846, %v4844
        %v7657 = vpack.c.b16 %v4849, %v4847
        %v7658 = vpack.c.b16 %v4850, %v4848
        %v7659 = vpack.c.b16 %v4853, %v4851
        %v7660 = vpack.c.b16 %v4854, %v4852
        %v7661 = vpack.c.b16 %v4857, %v4855
        %v7662 = vpack.c.b16 %v4858, %v4856
        %v7663 = vpack.c.b16 %v4861, %v4859
        %v7664 = vpack.c.b16 %v4862, %v4860
        %v7665 = vpack.c.b16 %v4865, %v4863
        %v7666 = vpack.c.b16 %v4866, %v4864
        %v7667 = vpack.c.b16 %v4869, %v4867
        %v7668 = vpack.c.b16 %v4870, %v4868
        %v7669 = vpack.c.b16 %v4873, %v4871
        %v7670 = vpack.c.b16 %v4874, %v4872
        %v7671 = vpack.c.b16 %v4877, %v4875
        %v7672 = vpack.c.b16 %v4878, %v4876
        %v7673 = vpack.c.b16 %v4881, %v4879
        %v7674 = vpack.c.b16 %v4882, %v4880
        %v7675 = vpack.c.b16 %v4885, %v4883
        %v7676 = vpack.c.b16 %v4886, %v4884
        %v7677 = vpack.c.b16 %v4889, %v4887
        %v7678 = vpack.c.b16 %v4890, %v4888
        %v7679 = vpack.c.b16 %v4893, %v4891
        %v7680 = vpack.c.b16 %v4894, %v4892
        %v7681 = vpack.c.b16 %v4897, %v4895
        %v7682 = vpack.c.b16 %v4898, %v4896
        %v7683 = vpack.c.b16 %v4901, %v4899
        %v7684 = vpack.c.b16 %v4902, %v4900
        %v7685 = vpack.c.b16 %v4905, %v4903
        %v7686 = vpack.c.b16 %v4906, %v4904
        %v7687 = vpack.c.b16 %v4909, %v4907
        %v7688 = vpack.c.b16 %v4910, %v4908
        %v7689 = vpack.c.b16 %v4913, %v4911
        %v7690 = vpack.c.b16 %v4914, %v4912
        %v7691 = vpack.c.b16 %v4917, %v4915
        %v7692 = vpack.c.b16 %v4918, %v4916
        %v7693 = vpack.c.b16 %v4921, %v4919
        %v7694 = vpack.c.b16 %v4922, %v4920
        %v7695 = vpack.c.b16 %v4925, %v4923
        %v7696 = vpack.c.b16 %v4926, %v4924
        %v7697 = vpack.c.b16 %v4929, %v4927
        %v7698 = vpack.c.b16 %v4930, %v4928
        %v7699 = vpack.c.b16 %v4933, %v4931
        %v7700 = vpack.c.b16 %v4934, %v4932
        %v7701 = vpack.c.b16 %v4937, %v4935
        %v7702 = vpack.c.b16 %v4938, %v4936
        %v7703 = vpack.c.b16 %v4941, %v4939
        %v7704 = vpack.c.b16 %v4942, %v4940
        %v7705 = vpack.c.b16 %v4945, %v4943
        %v7706 = vpack.c.b16 %v4946, %v4944
        %v7707 = vpack.c.b16 %v4949, %v4947
        %v7708 = vpack.c.b16 %v4950, %v4948
        %v7709 = vpack.c.b16 %v4953, %v4951
        %v7710 = vpack.c.b16 %v4954, %v4952
        %v7711 = vpack.c.b16 %v4957, %v4955
        %v7712 = vpack.c.b16 %v4958, %v4956
        %v7713 = vpack.c.b16 %v4961, %v4959
        %v7714 = vpack.c.b16 %v4962, %v4960
        %v7715 = vpack.c.b16 %v4965, %v4963
        %v7716 = vpack.c.b16 %v4966, %v4964
        %v7717 = vpack.c.b16 %v4969, %v4967
        %v7718 = vpack.c.b16 %v4970, %v4968
        %v7719 = vpack.c.b16 %v4973, %v4971
        %v7720 = vpack.c.b16 %v4974, %v4972
        %v7721 = vpack.c.b16 %v4977, %v4975
        %v7722 = vpack.c.b16 %v4978, %v4976
        %v7723 = vpack.c.b16 %v4981, %v4979
        %v7724 = vpack.c.b16 %v4982, %v4980
        %v7725 = vpack.c.b16 %v4985, %v4983
        %v7726 = vpack.c.b16 %v4986, %v4984
        %v7727 = vpack.c.b16 %v4989, %v4987
        %v7728 = vpack.c.b16 %v4990, %v4988
        %v7729 = vpack.c.b16 %v4993, %v4991
        %v7730 = vpack.c.b16 %v4994, %v4992
        %v7731 = vpack.c.b16 %v4997, %v4995
        %v7732 = vpack.c.b16 %v4998, %v4996
        %v7733 = vpack.c.b16 %v5001, %v4999
        %v7734 = vpack.c.b16 %v5002, %v5000
        %v7735 = vpack.c.b16 %v5005, %v5003
        %v7736 = vpack.c.b16 %v5006, %v5004
        %v7737 = vpack.c.b16 %v5009, %v5007
        %v7738 = vpack.c.b16 %v5010, %v5008
        %v7739 = vpack.c.b16 %v5013, %v5011
        %v7740 = vpack.c.b16 %v5014, %v5012
        %v7741 = vpack.c.b16 %v5017, %v5015
        %v7742 = vpack.c.b16 %v5018, %v5016
        %v7743 = vpack.c.b16 %v5021, %v5019
        %v7744 = vpack.c.b16 %v5022, %v5020
        %v7745 = vpack.c.b16 %v5025, %v5023
        %v7746 = vpack.c.b16 %v5026, %v5024
        %v7747 = vpack.c.b16 %v5029, %v5027
        %v7748 = vpack.c.b16 %v5030, %v5028
        %v7749 = vpack.c.b16 %v5033, %v5031
        %v7750 = vpack.c.b16 %v5034, %v5032
        %v7751 = vpack.c.b16 %v5037, %v5035
        %v7752 = vpack.c.b16 %v5038, %v5036
        %v7753 = vpack.c.b16 %v5041, %v5039
        %v7754 = vpack.c.b16 %v5042, %v5040
        %v7755 = vpack.c.b16 %v5045, %v5043
        %v7756 = vpack.c.b16 %v5046, %v5044
        %v7757 = vpack.c.b16 %v5049, %v5047
        %v7758 = vpack.c.b16 %v5050, %v5048
        %v7759 = vpack.c.b16 %v5053, %v5051
        %v7760 = vpack.c.b16 %v5054, %v5052
        %v7761 = vpack.c.b16 %v5057, %v5055
        %v7762 = vpack.c.b16 %v5058, %v5056
        %v7763 = vpack.c.b16 %v5061, %v5059
        %v7764 = vpack.c.b16 %v5062, %v5060
        %v7765 = vpack.c.b16 %v5065, %v5063
        %v7766 = vpack.c.b16 %v5066, %v5064
        %v7767 = vpack.c.b16 %v5069, %v5067
        %v7768 = vpack.c.b16 %v5070, %v5068
        %v7769 = vpack.c.b16 %v5073, %v5071
        %v7770 = vpack.c.b16 %v5074, %v5072
        %v7771 = vpack.c.b16 %v5077, %v5075
        %v7772 = vpack.c.b16 %v5078, %v5076
        %v7773 = vpack.c.b16 %v5081, %v5079
        %v7774 = vpack.c.b16 %v5082, %v5080
        %v7775 = vpack.c.b16 %v5085, %v5083
        %v7776 = vpack.c.b16 %v5086, %v5084
        %v7777 = vpack.c.b16 %v5089, %v5087
        %v7778 = vpack.c.b16 %v5090, %v5088
        %v7779 = vpack.c.b16 %v5093, %v5091
        %v7780 = vpack.c.b16 %v5094, %v5092
        %v7781 = vpack.c.b16 %v5097, %v5095
        %v7782 = vpack.c.b16 %v5098, %v5096
        %v7783 = vpack.c.b16 %v5101, %v5099
        %v7784 = vpack.c.b16 %v5102, %v5100
        %v7785 = vpack.c.b16 %v5105, %v5103
        %v7786 = vpack.c.b16 %v5106, %v5104
        %v7787 = vpack.c.b16 %v5109, %v5107
        %v7788 = vpack.c.b16 %v5110, %v5108
        %v7789 = vpack.c.b16 %v5113, %v5111
        %v7790 = vpack.c.b16 %v5114, %v5112
        %v7791 = vpack.c.b16 %v5117, %v5115
        %v7792 = vpack.c.b16 %v5118, %v5116
        %v7793 = vpack.c.b16 %v5121, %v5119
        %v7794 = vpack.c.b16 %v5122, %v5120
        %v7795 = vpack.c.b16 %v5125, %v5123
        %v7796 = vpack.c.b16 %v5126, %v5124
        %v7797 = vpack.c.b16 %v5129, %v5127
        %v7798 = vpack.c.b16 %v5130, %v5128
        %v7799 = vpack.c.b16 %v5133, %v5131
        %v7800 = vpack.c.b16 %v5134, %v5132
        %v7801 = vpack.c.b16 %v5137, %v5135
        %v7802 = vpack.c.b16 %v5138, %v5136
        %v7803 = vpack.c.b16 %v5141, %v5139
        %v7804 = vpack.c.b16 %v5142, %v5140
        %v7805 = vpack.c.b16 %v5145, %v5143
        %v7806 = vpack.c.b16 %v5146, %v5144
        %v7807 = vpack.c.b16 %v5149, %v5147
        %v7808 = vpack.c.b16 %v5150, %v5148
        %v7809 = vpack.c.b16 %v5153, %v5151
        %v7810 = vpack.c.b16 %v5154, %v5152
        %v7811 = vpack.c.b16 %v5157, %v5155
        %v7812 = vpack.c.b16 %v5158, %v5156
        %v7813 = vpack.c.b16 %v5161, %v5159
        %v7814 = vpack.c.b16 %v5162, %v5160
        %v7815 = vpack.c.b16 %v5165, %v5163
        %v7816 = vpack.c.b16 %v5166, %v5164
        %v7817 = vpack.c.b16 %v5169, %v5167
        %v7818 = vpack.c.b16 %v5170, %v5168
        %v7819 = vpack.c.b16 %v5173, %v5171
        %v7820 = vpack.c.b16 %v5174, %v5172
        %v7821 = vpack.c.b16 %v5177, %v5175
        %v7822 = vpack.c.b16 %v5178, %v5176
        %v7823 = vpack.c.b16 %v5181, %v5179
        %v7824 = vpack.c.b16 %v5182, %v5180
        %v7825 = vpack.c.b16 %v5185, %v5183
        %v7826 = vpack.c.b16 %v5186, %v5184
        %v7827 = vpack.c.b16 %v5189, %v5187
        %v7828 = vpack.c.b16 %v5190, %v5188
        %v7829 = vpack.c.b16 %v5193, %v5191
        %v7830 = vpack.c.b16 %v5194, %v5192
        %v7831 = vpack.c.b16 %v5197, %v5195
        %v7832 = vpack.c.b16 %v5198, %v5196
        %v7833 = vpack.c.b16 %v5201, %v5199
        %v7834 = vpack.c.b16 %v5202, %v5200
        %v7835 = vpack.c.b16 %v5205, %v5203
        %v7836 = vpack.c.b16 %v5206, %v5204
        %v7837 = vpack.c.b16 %v5209, %v5207
        %v7838 = vpack.c.b16 %v5210, %v5208
        %v7839 = vpack.c.b16 %v5213, %v5211
        %v7840 = vpack.c.b16 %v5214, %v5212
        %v7841 = vpack.c.b16 %v5217, %v5215
        %v7842 = vpack.c.b16 %v5218, %v5216
        %v7843 = vpack.c.b16 %v5221, %v5219
        %v7844 = vpack.c.b16 %v5222, %v5220
        %v7845 = vpack.c.b16 %v5225, %v5223
        %v7846 = vpack.c.b16 %v5226, %v5224
        %v7847 = vpack.c.b16 %v5229, %v5227
        %v7848 = vpack.c.b16 %v5230, %v5228
        %v7849 = vpack.c.b16 %v5233, %v5231
        %v7850 = vpack.c.b16 %v5234, %v5232
        %v7851 = vpack.c.b16 %v5237, %v5235
        %v7852 = vpack.c.b16 %v5238, %v5236
        %v7853 = vpack.c.b16 %v5241, %v5239
        %v7854 = vpack.c.b16 %v5242, %v5240
        %v7855 = vpack.c.b16 %v5245, %v5243
        %v7856 = vpack.c.b16 %v5246, %v5244
        %v7857 = vpack.c.b16 %v5249, %v5247
        %v7858 = vpack.c.b16 %v5250, %v5248
        %v7859 = vpack.c.b16 %v5253, %v5251
        %v7860 = vpack.c.b16 %v5254, %v5252
        %v7861 = vpack.c.b16 %v5257, %v5255
        %v7862 = vpack.c.b16 %v5258, %v5256
        %v7863 = vpack.c.b16 %v5261, %v5259
        %v7864 = vpack.c.b16 %v5262, %v5260
        %v7865 = vpack.c.b16 %v5265, %v5263
        %v7866 = vpack.c.b16 %v5266, %v5264
        %v7867 = vpack.c.b16 %v5269, %v5267
        %v7868 = vpack.c.b16 %v5270, %v5268
        %v7869 = vpack.c.b16 %v5273, %v5271
        %v7870 = vpack.c.b16 %v5274, %v5272
        %v7871 = vpack.c.b16 %v5277, %v5275
        %v7872 = vpack.c.b16 %v5278, %v5276
        %v7873 = vpack.c.b16 %v5281, %v5279
        %v7874 = vpack.c.b16 %v5282, %v5280
        %v7875 = vpack.c.b16 %v5285, %v5283
        %v7876 = vpack.c.b16 %v5286, %v5284
        %v7877 = vpack.c.b16 %v5289, %v5287
        %v7878 = vpack.c.b16 %v5290, %v5288
        %v7879 = vpack.c.b16 %v5293, %v5291
        %v7880 = vpack.c.b16 %v5294, %v5292
        %v7881 = vpack.c.b16 %v5297, %v5295
        %v7882 = vpack.c.b16 %v5298, %v5296
        %v7883 = vpack.c.b16 %v5301, %v5299
        %v7884 = vpack.c.b16 %v5302, %v5300
        %v7885 = vpack.c.b16 %v5305, %v5303
        %v7886 = vpack.c.b16 %v5306, %v5304
        %v7887 = vpack.c.b16 %v5309, %v5307
        %v7888 = vpack.c.b16 %v5310, %v5308
        %v7889 = vpack.c.b16 %v5313, %v5311
        %v7890 = vpack.c.b16 %v5314, %v5312
        %v7891 = vpack.c.b16 %v5317, %v5315
        %v7892 = vpack.c.b16 %v5318, %v5316
        %v7893 = vpack.c.b16 %v5321, %v5319
        %v7894 = vpack.c.b16 %v5322, %v5320
        %v7895 = vpack.c.b16 %v5325, %v5323
        %v7896 = vpack.c.b16 %v5326, %v5324
        %v7897 = vpack.c.b16 %v5329, %v5327
        %v7898 = vpack.c.b16 %v5330, %v5328
        %v7899 = vpack.c.b16 %v5333, %v5331
        %v7900 = vpack.c.b16 %v5334, %v5332
        %v7901 = vpack.c.b16 %v5337, %v5335
        %v7902 = vpack.c.b16 %v5338, %v5336
        %v7903 = vpack.c.b16 %v5341, %v5339
        %v7904 = vpack.c.b16 %v5342, %v5340
        %v7905 = vpack.c.b16 %v5345, %v5343
        %v7906 = vpack.c.b16 %v5346, %v5344
        %v7907 = vpack.c.b16 %v5349, %v5347
        %v7908 = vpack.c.b16 %v5350, %v5348
        %v7909 = vpack.c.b16 %v5353, %v5351
        %v7910 = vpack.c.b16 %v5354, %v5352
        %v7911 = vpack.c.b16 %v5357, %v5355
        %v7912 = vpack.c.b16 %v5358, %v5356
        %v7913 = vpack.c.b16 %v5361, %v5359
        %v7914 = vpack.c.b16 %v5362, %v5360
        %v7915 = vpack.c.b16 %v5365, %v5363
        %v7916 = vpack.c.b16 %v5366, %v5364
        %v7917 = vpack.c.b16 %v5369, %v5367
        %v7918 = vpack.c.b16 %v5370, %v5368
        %v7919 = vpack.c.b16 %v5373, %v5371
        %v7920 = vpack.c.b16 %v5374, %v5372
        %v7921 = vpack.c.b16 %v5377, %v5375
        %v7922 = vpack.c.b16 %v5378, %v5376
        %v7923 = vpack.c.b16 %v5381, %v5379
        %v7924 = vpack.c.b16 %v5382, %v5380
        %v7925 = vpack.c.b16 %v5385, %v5383
        %v7926 = vpack.c.b16 %v5386, %v5384
        %v7927 = vpack.c.b16 %v5389, %v5387
        %v7928 = vpack.c.b16 %v5390, %v5388
        %v7929 = vpack.c.b16 %v5393, %v5391
        %v7930 = vpack.c.b16 %v5394, %v5392
        %v7931 = vpack.c.b16 %v5397, %v5395
        %v7932 = vpack.c.b16 %v5398, %v5396
        %v7933 = vpack.c.b16 %v5401, %v5399
        %v7934 = vpack.c.b16 %v5402, %v5400
        %v7935 = vpack.c.b16 %v5405, %v5403
        %v7936 = vpack.c.b16 %v5406, %v5404
        %v7937 = vpack.c.b16 %v5409, %v5407
        %v7938 = vpack.c.b16 %v5410, %v5408
        %v7939 = vpack.c.b16 %v5413, %v5411
        %v7940 = vpack.c.b16 %v5414, %v5412
        %v7941 = vpack.c.b16 %v5417, %v5415
        %v7942 = vpack.c.b16 %v5418, %v5416
        %v7943 = vpack.c.b16 %v5421, %v5419
        %v7944 = vpack.c.b16 %v5422, %v5420
        %v7945 = vpack.c.b16 %v5425, %v5423
        %v7946 = vpack.c.b16 %v5426, %v5424
        %v7947 = vpack.c.b16 %v5429, %v5427
        %v7948 = vpack.c.b16 %v5430, %v5428
        %v7949 = vpack.c.b16 %v5433, %v5431
        %v7950 = vpack.c.b16 %v5434, %v5432
        %v7951 = vpack.c.b16 %v5437, %v5435
        %v7952 = vpack.c.b16 %v5438, %v5436
        %v7953 = vpack.c.b16 %v5441, %v5439
        %v7954 = vpack.c.b16 %v5442, %v5440
        %v7955 = vpack.c.b16 %v5445, %v5443
        %v7956 = vpack.c.b16 %v5446, %v5444
        %v7957 = vpack.c.b16 %v5449, %v5447
        %v7958 = vpack.c.b16 %v5450, %v5448
        %v7959 = vpack.c.b16 %v5453, %v5451
        %v7960 = vpack.c.b16 %v5454, %v5452
        %v7961 = vpack.c.b16 %v5457, %v5455
        %v7962 = vpack.c.b16 %v5458, %v5456
        %v7963 = vpack.c.b16 %v5461, %v5459
        %v7964 = vpack.c.b16 %v5462, %v5460
        %v7965 = vpack.c.b16 %v5465, %v5463
        %v7966 = vpack.c.b16 %v5466, %v5464
        %v7967 = vpack.c.b16 %v5469, %v5467
        %v7968 = vpack.c.b16 %v5470, %v5468
        %v7969 = vpack.c.b16 %v5473, %v5471
        %v7970 = vpack.c.b16 %v5474, %v5472
        %v7971 = vpack.c.b16 %v5477, %v5475
        %v7972 = vpack.c.b16 %v5478, %v5476
        %v7973 = vpack.c.b16 %v5481, %v5479
        %v7974 = vpack.c.b16 %v5482, %v5480
        %v7975 = vpack.c.b16 %v5485, %v5483
        %v7976 = vpack.c.b16 %v5486, %v5484
        %v7977 = vpack.c.b16 %v5489, %v5487
        %v7978 = vpack.c.b16 %v5490, %v5488
        %v7979 = vpack.c.b16 %v5493, %v5491
        %v7980 = vpack.c.b16 %v5494, %v5492
        %v7981 = vpack.c.b16 %v5497, %v5495
        %v7982 = vpack.c.b16 %v5498, %v5496
        %v7983 = vpack.c.b16 %v5501, %v5499
        %v7984 = vpack.c.b16 %v5502, %v5500
        %v7985 = vpack.c.b16 %v5505, %v5503
        %v7986 = vpack.c.b16 %v5506, %v5504
        %v7987 = vpack.c.b16 %v5509, %v5507
        %v7988 = vpack.c.b16 %v5510, %v5508
        %v7989 = vpack.c.b16 %v5513, %v5511
        %v7990 = vpack.c.b16 %v5514, %v5512
        %v7991 = vpack.c.b16 %v5517, %v5515
        %v7992 = vpack.c.b16 %v5518, %v5516
        %v7993 = vpack.c.b16 %v5521, %v5519
        %v7994 = vpack.c.b16 %v5522, %v5520
        %v7995 = vpack.c.b16 %v5525, %v5523
        %v7996 = vpack.c.b16 %v5526, %v5524
        %v7997 = vpack.c.b16 %v5529, %v5527
        %v7998 = vpack.c.b16 %v5530, %v5528
        %v7999 = vpack.c.b16 %v5533, %v5531
        %v8000 = vpack.c.b16 %v5534, %v5532
        %v8001 = vpack.c.b16 %v5537, %v5535
        %v8002 = vpack.c.b16 %v5538, %v5536
        %v8003 = vpack.c.b16 %v5541, %v5539
        %v8004 = vpack.c.b16 %v5542, %v5540
        %v8005 = vpack.c.b16 %v5545, %v5543
        %v8006 = vpack.c.b16 %v5546, %v5544
        %v8007 = vpack.c.b16 %v5549, %v5547
        %v8008 = vpack.c.b16 %v5550, %v5548
        %v8009 = vpack.c.b16 %v5553, %v5551
        %v8010 = vpack.c.b16 %v5554, %v5552
        %v8011 = vpack.c.b16 %v5557, %v5555
        %v8012 = vpack.c.b16 %v5558, %v5556
        %v8013 = vpack.c.b16 %v5561, %v5559
        %v8014 = vpack.c.b16 %v5562, %v5560
        %v8015 = vpack.c.b16 %v5565, %v5563
        %v8016 = vpack.c.b16 %v5566, %v5564
        %v8017 = vpack.c.b16 %v5569, %v5567
        %v8018 = vpack.c.b16 %v5570, %v5568
        %v8019 = vpack.c.b16 %v5573, %v5571
        %v8020 = vpack.c.b16 %v5574, %v5572
        %v8021 = vpack.c.b16 %v5577, %v5575
        %v8022 = vpack.c.b16 %v5578, %v5576
        %v8023 = vpack.c.b16 %v5581, %v5579
        %v8024 = vpack.c.b16 %v5582, %v5580
        %v8025 = vpack.c.b16 %v5585, %v5583
        %v8026 = vpack.c.b16 %v5586, %v5584
        %v8027 = vpack.c.b16 %v5589, %v5587
        %v8028 = vpack.c.b16 %v5590, %v5588
        %v8029 = vpack.c.b16 %v5593, %v5591
        %v8030 = vpack.c.b16 %v5594, %v5592
        %v8031 = vpack.c.b16 %v5597, %v5595
        %v8032 = vpack.c.b16 %v5598, %v5596
        %v8033 = vpack.c.b16 %v5601, %v5599
        %v8034 = vpack.c.b16 %v5602, %v5600
        %v8035 = vpack.c.b16 %v5605, %v5603
        %v8036 = vpack.c.b16 %v5606, %v5604
        %v8037 = vpack.c.b16 %v5609, %v5607
        %v8038 = vpack.c.b16 %v5610, %v5608
        %v8039 = vpack.c.b16 %v5613, %v5611
        %v8040 = vpack.c.b16 %v5614, %v5612
        %v8041 = vpack.c.b16 %v5617, %v5615
        %v8042 = vpack.c.b16 %v5618, %v5616
        %v8043 = vpack.c.b16 %v5621, %v5619
        %v8044 = vpack.c.b16 %v5622, %v5620
        %v8045 = vpack.c.b16 %v5625, %v5623
        %v8046 = vpack.c.b16 %v5626, %v5624
        %v8047 = vpack.c.b16 %v5629, %v5627
        %v8048 = vpack.c.b16 %v5630, %v5628
        %v8049 = vpack.c.b16 %v5633, %v5631
        %v8050 = vpack.c.b16 %v5634, %v5632
        %v8051 = vpack.c.b16 %v5637, %v5635
        %v8052 = vpack.c.b16 %v5638, %v5636
        %v8053 = vpack.c.b16 %v5641, %v5639
        %v8054 = vpack.c.b16 %v5642, %v5640
        %v8055 = vpack.c.b16 %v5645, %v5643
        %v8056 = vpack.c.b16 %v5646, %v5644
        %v8057 = vpack.c.b16 %v5649, %v5647
        %v8058 = vpack.c.b16 %v5650, %v5648
        %v8059 = vpack.c.b16 %v5653, %v5651
        %v8060 = vpack.c.b16 %v5654, %v5652
        %v8061 = vpack.c.b16 %v5657, %v5655
        %v8062 = vpack.c.b16 %v5658, %v5656
        %v8063 = vpack.c.b16 %v5661, %v5659
        %v8064 = vpack.c.b16 %v5662, %v5660
        %v8065 = vpack.c.b16 %v5665, %v5663
        %v8066 = vpack.c.b16 %v5666, %v5664
        %v8067 = vpack.c.b16 %v5669, %v5667
        %v8068 = vpack.c.b16 %v5670, %v5668
        %v8069 = vpack.c.b16 %v5673, %v5671
        %v8070 = vpack.c.b16 %v5674, %v5672
        %v8071 = vpack.c.b16 %v5677, %v5675
        %v8072 = vpack.c.b16 %v5678, %v5676
        %v8073 = vpack.c.b16 %v5681, %v5679
        %v8074 = vpack.c.b16 %v5682, %v5680
        %v8075 = vpack.c.b16 %v5685, %v5683
        %v8076 = vpack.c.b16 %v5686, %v5684
        %v8077 = vpack.c.b16 %v5689, %v5687
        %v8078 = vpack.c.b16 %v5690, %v5688
        %v8079 = vpack.c.b16 %v5693, %v5691
        %v8080 = vpack.c.b16 %v5694, %v5692
        %v8081 = vpack.c.b16 %v5697, %v5695
        %v8082 = vpack.c.b16 %v5698, %v5696
        %v8083 = vpack.c.b16 %v5701, %v5699
        %v8084 = vpack.c.b16 %v5702, %v5700
        %v8085 = vpack.c.b16 %v5705, %v5703
        %v8086 = vpack.c.b16 %v5706, %v5704
        %v8087 = vpack.c.b16 %v5709, %v5707
        %v8088 = vpack.c.b16 %v5710, %v5708
        %v8089 = vpack.c.b16 %v5713, %v5711
        %v8090 = vpack.c.b16 %v5714, %v5712
        %v8091 = vpack.c.b16 %v5717, %v5715
        %v8092 = vpack.c.b16 %v5718, %v5716
        %v8093 = vpack.c.b16 %v5721, %v5719
        %v8094 = vpack.c.b16 %v5722, %v5720
        %v8095 = vpack.c.b16 %v5725, %v5723
        %v8096 = vpack.c.b16 %v5726, %v5724
        %v8097 = vpack.c.b16 %v5729, %v5727
        %v8098 = vpack.c.b16 %v5730, %v5728
        %v8099 = vpack.c.b16 %v5733, %v5731
        %v8100 = vpack.c.b16 %v5734, %v5732
        %v8101 = vpack.c.b16 %v5737, %v5735
        %v8102 = vpack.c.b16 %v5738, %v5736
        %v8103 = vpack.c.b16 %v5741, %v5739
        %v8104 = vpack.c.b16 %v5742, %v5740
        %v8105 = vpack.c.b16 %v5745, %v5743
        %v8106 = vpack.c.b16 %v5746, %v5744
        %v8107 = vpack.c.b16 %v5749, %v5747
        %v8108 = vpack.c.b16 %v5750, %v5748
        %v8109 = vpack.c.b16 %v5753, %v5751
        %v8110 = vpack.c.b16 %v5754, %v5752
        %v8111 = vpack.c.b16 %v5757, %v5755
        %v8112 = vpack.c.b16 %v5758, %v5756
        %v8113 = vpack.c.b16 %v5761, %v5759
        %v8114 = vpack.c.b16 %v5762, %v5760
        %v8115 = vpack.c.b16 %v5765, %v5763
        %v8116 = vpack.c.b16 %v5766, %v5764
        %v8117 = vpack.c.b16 %v5769, %v5767
        %v8118 = vpack.c.b16 %v5770, %v5768
        %v8119 = vpack.c.b16 %v5773, %v5771
        %v8120 = vpack.c.b16 %v5774, %v5772
        %v8121 = vpack.c.b16 %v5777, %v5775
        %v8122 = vpack.c.b16 %v5778, %v5776
        %v8123 = vpack.c.b16 %v5781, %v5779
        %v8124 = vpack.c.b16 %v5782, %v5780
        %v8125 = vpack.c.b16 %v5785, %v5783
        %v8126 = vpack.c.b16 %v5786, %v5784
        %v8127 = vpack.c.b16 %v5789, %v5787
        %v8128 = vpack.c.b16 %v5790, %v5788
        %v8129 = vpack.c.b16 %v5793, %v5791
        %v8130 = vpack.c.b16 %v5794, %v5792
        %v8131 = vpack.c.b16 %v5797, %v5795
        %v8132 = vpack.c.b16 %v5798, %v5796
        %v8133 = vpack.c.b16 %v5801, %v5799
        %v8134 = vpack.c.b16 %v5802, %v5800
        %v8135 = vpack.c.b16 %v5805, %v5803
        %v8136 = vpack.c.b16 %v5806, %v5804
        %v8137 = vpack.c.b16 %v5809, %v5807
        %v8138 = vpack.c.b16 %v5810, %v5808
        %v8139 = vpack.c.b16 %v5813, %v5811
        %v8140 = vpack.c.b16 %v5814, %v5812
        %v8141 = vpack.c.b16 %v5817, %v5815
        %v8142 = vpack.c.b16 %v5818, %v5816
        %v8143 = vpack.c.b16 %v5821, %v5819
        %v8144 = vpack.c.b16 %v5822, %v5820
        %v8145 = vpack.c.b16 %v5825, %v5823
        %v8146 = vpack.c.b16 %v5826, %v5824
        %v8147 = vpack.c.b16 %v5829, %v5827
        %v8148 = vpack.c.b16 %v5830, %v5828
        %v8149 = vpack.c.b16 %v5833, %v5831
        %v8150 = vpack.c.b16 %v5834, %v5832
        %v8151 = vpack.c.b16 %v5837, %v5835
        %v8152 = vpack.c.b16 %v5838, %v5836
        %v8153 = vpack.c.b16 %v5841, %v5839
        %v8154 = vpack.c.b16 %v5842, %v5840
        %v8155 = vpack.c.b16 %v5845, %v5843
        %v8156 = vpack.c.b16 %v5846, %v5844
        %v8157 = vpack.c.b16 %v5849, %v5847
        %v8158 = vpack.c.b16 %v5850, %v5848
        %v8159 = vpack.c.b16 %v5853, %v5851
        %v8160 = vpack.c.b16 %v5854, %v5852
        %v8161 = vpack.c.b16 %v5857, %v5855
        %v8162 = vpack.c.b16 %v5858, %v5856
        %v8163 = vpack.c.b16 %v5861, %v5859
        %v8164 = vpack.c.b16 %v5862, %v5860
        %v8165 = vpack.c.b16 %v5865, %v5863
        %v8166 = vpack.c.b16 %v5866, %v5864
        %v8167 = vpack.c.b16 %v5869, %v5867
        %v8168 = vpack.c.b16 %v5870, %v5868
        %v8169 = vpack.c.b16 %v5873, %v5871
        %v8170 = vpack.c.b16 %v5874, %v5872
        %v8171 = vpack.c.b16 %v5877, %v5875
        %v8172 = vpack.c.b16 %v5878, %v5876
        %v8173 = vpack.c.b16 %v5881, %v5879
        %v8174 = vpack.c.b16 %v5882, %v5880
        %v8175 = vpack.c.b16 %v5885, %v5883
        %v8176 = vpack.c.b16 %v5886, %v5884
        %v8177 = vpack.c.b16 %v5889, %v5887
        %v8178 = vpack.c.b16 %v5890, %v5888
        %v8179 = vpack.c.b16 %v5893, %v5891
        %v8180 = vpack.c.b16 %v5894, %v5892
        %v8181 = vpack.c.b16 %v5897, %v5895
        %v8182 = vpack.c.b16 %v5898, %v5896
        %v8183 = vpack.c.b16 %v5901, %v5899
        %v8184 = vpack.c.b16 %v5902, %v5900
        %v8185 = vpack.c.b16 %v5905, %v5903
        %v8186 = vpack.c.b16 %v5906, %v5904
        %v8187 = vpack.c.b16 %v5909, %v5907
        %v8188 = vpack.c.b16 %v5910, %v5908
        %v8189 = vpack.c.b16 %v5913, %v5911
        %v8190 = vpack.c.b16 %v5914, %v5912
        %v8191 = vpack.c.b16 %v5917, %v5915
        %v8192 = vpack.c.b16 %v5918, %v5916
        %v8193 = vpack.c.b16 %v5921, %v5919
        %v8194 = vpack.c.b16 %v5922, %v5920
        %v8195 = vpack.c.b16 %v5925, %v5923
        %v8196 = vpack.c.b16 %v5926, %v5924
        %v8197 = vpack.c.b16 %v5929, %v5927
        %v8198 = vpack.c.b16 %v5930, %v5928
        %v8199 = vpack.c.b16 %v5933, %v5931
        %v8200 = vpack.c.b16 %v5934, %v5932
        %v8201 = vpack.c.b16 %v5937, %v5935
        %v8202 = vpack.c.b16 %v5938, %v5936
        %v8203 = vpack.c.b16 %v5941, %v5939
        %v8204 = vpack.c.b16 %v5942, %v5940
        %v8205 = vpack.c.b16 %v5945, %v5943
        %v8206 = vpack.c.b16 %v5946, %v5944
        %v8207 = vpack.c.b16 %v5949, %v5947
        %v8208 = vpack.c.b16 %v5950, %v5948
        %v8209 = vpack.c.b16 %v5953, %v5951
        %v8210 = vpack.c.b16 %v5954, %v5952
        %v8211 = vpack.c.b16 %v5957, %v5955
        %v8212 = vpack.c.b16 %v5958, %v5956
        %v8213 = vpack.c.b16 %v5961, %v5959
        %v8214 = vpack.c.b16 %v5962, %v5960
        %v8215 = vpack.c.b16 %v5965, %v5963
        %v8216 = vpack.c.b16 %v5966, %v5964
        %v8217 = vpack.c.b16 %v5969, %v5967
        %v8218 = vpack.c.b16 %v5970, %v5968
        %v8219 = vpack.c.b16 %v5973, %v5971
        %v8220 = vpack.c.b16 %v5974, %v5972
        %v8221 = vpack.c.b16 %v5977, %v5975
        %v8222 = vpack.c.b16 %v5978, %v5976
        %v8223 = vpack.c.b16 %v5981, %v5979
        %v8224 = vpack.c.b16 %v5982, %v5980
        %v8225 = vpack.c.b16 %v5985, %v5983
        %v8226 = vpack.c.b16 %v5986, %v5984
        %v8227 = vpack.c.b16 %v5989, %v5987
        %v8228 = vpack.c.b16 %v5990, %v5988
        %v8229 = vpack.c.b16 %v5993, %v5991
        %v8230 = vpack.c.b16 %v5994, %v5992
        %v8231 = vpack.c.b16 %v5997, %v5995
        %v8232 = vpack.c.b16 %v5998, %v5996
        %v8233 = vpack.c.b16 %v6001, %v5999
        %v8234 = vpack.c.b16 %v6002, %v6000
        %v8235 = vpack.c.b16 %v6005, %v6003
        %v8236 = vpack.c.b16 %v6006, %v6004
        %v8237 = vpack.c.b16 %v6009, %v6007
        %v8238 = vpack.c.b16 %v6010, %v6008
        %v8239 = vpack.c.b16 %v6013, %v6011
        %v8240 = vpack.c.b16 %v6014, %v6012
        %v8241 = vpack.c.b16 %v6017, %v6015
        %v8242 = vpack.c.b16 %v6018, %v6016
        %v8243 = vpack.c.b16 %v6021, %v6019
        %v8244 = vpack.c.b16 %v6022, %v6020
        %v8245 = vpack.c.b16 %v6025, %v6023
        %v8246 = vpack.c.b16 %v6026, %v6024
        %v8247 = vpack.c.b16 %v6029, %v6027
        %v8248 = vpack.c.b16 %v6030, %v6028
        %v8249 = vpack.c.b16 %v6033, %v6031
        %v8250 = vpack.c.b16 %v6034, %v6032
        %v8251 = vpack.c.b16 %v6037, %v6035
        %v8252 = vpack.c.b16 %v6038, %v6036
        %v8253 = vpack.c.b16 %v6041, %v6039
        %v8254 = vpack.c.b16 %v6042, %v6040
        %v8255 = vpack.c.b16 %v6045, %v6043
        %v8256 = vpack.c.b16 %v6046, %v6044
        %v8257 = vpack.c.b16 %v6049, %v6047
        %v8258 = vpack.c.b16 %v6050, %v6048
        %v8259 = vpack.c.b16 %v6053, %v6051
        %v8260 = vpack.c.b16 %v6054, %v6052
        %v8261 = vpack.c.b16 %v6057, %v6055
        %v8262 = vpack.c.b16 %v6058, %v6056
        %v8263 = vpack.c.b16 %v6061, %v6059
        %v8264 = vpack.c.b16 %v6062, %v6060
        %v8265 = vpack.c.b16 %v6065, %v6063
        %v8266 = vpack.c.b16 %v6066, %v6064
        %v8267 = vpack.c.b16 %v6069, %v6067
        %v8268 = vpack.c.b16 %v6070, %v6068
        %v8269 = vpack.c.b16 %v6073, %v6071
        %v8270 = vpack.c.b16 %v6074, %v6072
        %v8271 = vpack.c.b16 %v6077, %v6075
        %v8272 = vpack.c.b16 %v6078, %v6076
        %v8273 = vpack.c.b16 %v6081, %v6079
        %v8274 = vpack.c.b16 %v6082, %v6080
        %v8275 = vpack.c.b16 %v6085, %v6083
        %v8276 = vpack.c.b16 %v6086, %v6084
        %v8277 = vpack.c.b16 %v6089, %v6087
        %v8278 = vpack.c.b16 %v6090, %v6088
        %v8279 = vpack.c.b16 %v6093, %v6091
        %v8280 = vpack.c.b16 %v6094, %v6092
        %v8281 = vpack.c.b16 %v6097, %v6095
        %v8282 = vpack.c.b16 %v6098, %v6096
        %v8283 = vpack.c.b16 %v6101, %v6099
        %v8284 = vpack.c.b16 %v6102, %v6100
        %v8285 = vpack.c.b16 %v6105, %v6103
        %v8286 = vpack.c.b16 %v6106, %v6104
        %v8287 = vpack.c.b16 %v6109, %v6107
        %v8288 = vpack.c.b16 %v6110, %v6108
        %v8289 = vpack.c.b16 %v6113, %v6111
        %v8290 = vpack.c.b16 %v6114, %v6112
        %v8291 = vpack.c.b16 %v6117, %v6115
        %v8292 = vpack.c.b16 %v6118, %v6116
        %v8293 = vpack.c.b16 %v6121, %v6119
        %v8294 = vpack.c.b16 %v6122, %v6120
        %v8295 = vpack.c.b16 %v6125, %v6123
        %v8296 = vpack.c.b16 %v6126, %v6124
        %v8297 = vpack.c.b16 %v6129, %v6127
        %v8298 = vpack.c.b16 %v6130, %v6128
        %v8299 = vpack.c.b16 %v6133, %v6131
        %v8300 = vpack.c.b16 %v6134, %v6132
        %v8301 = vpack.c.b16 %v6137, %v6135
        %v8302 = vpack.c.b16 %v6138, %v6136
        %v8303 = vpack.c.b16 %v6141, %v6139
        %v8304 = vpack.c.b16 %v6142, %v6140
        %v8305 = vpack.c.b16 %v6145, %v6143
        %v8306 = vpack.c.b16 %v6146, %v6144
        %v8307 = vpack.c.b16 %v6149, %v6147
        %v8308 = vpack.c.b16 %v6150, %v6148
        %v8309 = vpack.c.b16 %v6153, %v6151
        %v8310 = vpack.c.b16 %v6154, %v6152
        %v8311 = vpack.c.b16 %v6157, %v6155
        %v8312 = vpack.c.b16 %v6158, %v6156
        %v8313 = vpack.c.b16 %v6161, %v6159
        %v8314 = vpack.c.b16 %v6162, %v6160
        %v8315 = vpack.c.b16 %v6165, %v6163
        %v8316 = vpack.c.b16 %v6166, %v6164
        %v8317 = vpack.c.b16 %v6169, %v6167
        %v8318 = vpack.c.b16 %v6170, %v6168
        %v8319 = vpack.c.b16 %v6173, %v6171
        %v8320 = vpack.c.b16 %v6174, %v6172
        %v8321 = vpack.c.b16 %v6177, %v6175
        %v8322 = vpack.c.b16 %v6178, %v6176
        %v8323 = vpack.c.b16 %v6181, %v6179
        %v8324 = vpack.c.b16 %v6182, %v6180
        %v8325 = vpack.c.b16 %v6185, %v6183
        %v8326 = vpack.c.b16 %v6186, %v6184
        %v8327 = vpack.c.b16 %v6189, %v6187
        %v8328 = vpack.c.b16 %v6190, %v6188
        %v8329 = vpack.c.b16 %v6193, %v6191
        %v8330 = vpack.c.b16 %v6194, %v6192
        %v8331 = vpack.c.b16 %v6197, %v6195
        %v8332 = vpack.c.b16 %v6198, %v6196
        %v8333 = vpack.c.b16 %v6201, %v6199
        %v8334 = vpack.c.b16 %v6202, %v6200
        %v8335 = vpack.c.b16 %v6205, %v6203
        %v8336 = vpack.c.b16 %v6206, %v6204
        %v8337 = vpack.c.b16 %v6209, %v6207
        %v8338 = vpack.c.b16 %v6210, %v6208
        %v8339 = vpack.c.b16 %v6213, %v6211
        %v8340 = vpack.c.b16 %v6214, %v6212
        %v8341 = vpack.c.b16 %v6217, %v6215
        %v8342 = vpack.c.b16 %v6218, %v6216
        %v8343 = vpack.c.b16 %v6221, %v6219
        %v8344 = vpack.c.b16 %v6222, %v6220
        %v8345 = vpack.c.b16 %v6225, %v6223
        %v8346 = vpack.c.b16 %v6226, %v6224
        %v8347 = vpack.c.b16 %v6229, %v6227
        %v8348 = vpack.c.b16 %v6230, %v6228
        %v8349 = vpack.c.b16 %v6233, %v6231
        %v8350 = vpack.c.b16 %v6234, %v6232
        %v8351 = vpack.c.b16 %v6237, %v6235
        %v8352 = vpack.c.b16 %v6238, %v6236
        %v8353 = vpack.c.b16 %v6241, %v6239
        %v8354 = vpack.c.b16 %v6242, %v6240
        %v8355 = vpack.c.b16 %v6245, %v6243
        %v8356 = vpack.c.b16 %v6246, %v6244
        %v8357 = vpack.c.b16 %v6249, %v6247
        %v8358 = vpack.c.b16 %v6250, %v6248
        %v8359 = vpack.c.b16 %v6253, %v6251
        %v8360 = vpack.c.b16 %v6254, %v6252
        %v8361 = vpack.c.b16 %v6257, %v6255
        %v8362 = vpack.c.b16 %v6258, %v6256
        %v8363 = vpack.c.b16 %v6261, %v6259
        %v8364 = vpack.c.b16 %v6262, %v6260
        %v8365 = vpack.c.b16 %v6265, %v6263
        %v8366 = vpack.c.b16 %v6266, %v6264
        %v8367 = vpack.c.b16 %v6269, %v6267
        %v8368 = vpack.c.b16 %v6270, %v6268
        %v8369 = vpack.c.b16 %v6273, %v6271
        %v8370 = vpack.c.b16 %v6274, %v6272
        %v8371 = vpack.c.b16 %v6277, %v6275
        %v8372 = vpack.c.b16 %v6278, %v6276
        %v8373 = vpack.c.b16 %v6281, %v6279
        %v8374 = vpack.c.b16 %v6282, %v6280
        %v8375 = vpack.c.b16 %v6285, %v6283
        %v8376 = vpack.c.b16 %v6286, %v6284
        %v8377 = vpack.c.b16 %v6289, %v6287
        %v8378 = vpack.c.b16 %v6290, %v6288
        %v8379 = vpack.c.b16 %v6293, %v6291
        %v8380 = vpack.c.b16 %v6294, %v6292
        %v8381 = vpack.c.b16 %v6297, %v6295
        %v8382 = vpack.c.b16 %v6298, %v6296
        %v8383 = vpack.c.b16 %v6301, %v6299
        %v8384 = vpack.c.b16 %v6302, %v6300
        %v8385 = vpack.c.b16 %v6305, %v6303
        %v8386 = vpack.c.b16 %v6306, %v6304
        %v8387 = vpack.c.b16 %v6309, %v6307
        %v8388 = vpack.c.b16 %v6310, %v6308
        %v8389 = vpack.c.b16 %v6313, %v6311
        %v8390 = vpack.c.b16 %v6314, %v6312
        %v8391 = vpack.c.b16 %v6317, %v6315
        %v8392 = vpack.c.b16 %v6318, %v6316
        %v8393 = vpack.c.b16 %v6321, %v6319
        %v8394 = vpack.c.b16 %v6322, %v6320
        %v8395 = vpack.c.b16 %v6325, %v6323
        %v8396 = vpack.c.b16 %v6326, %v6324
        %v8397 = vpack.c.b16 %v6329, %v6327
        %v8398 = vpack.c.b16 %v6330, %v6328
        %v8399 = vpack.c.b16 %v6333, %v6331
        %v8400 = vpack.c.b16 %v6334, %v6332
        %v8401 = vpack.c.b16 %v6337, %v6335
        %v8402 = vpack.c.b16 %v6338, %v6336
        %v8403 = vpack.c.b16 %v6341, %v6339
        %v8404 = vpack.c.b16 %v6342, %v6340
        %v8405 = vpack.c.b16 %v6345, %v6343
        %v8406 = vpack.c.b16 %v6346, %v6344
        %v8407 = vpack.c.b16 %v6349, %v6347
        %v8408 = vpack.c.b16 %v6350, %v6348
        %v8409 = vpack.c.b16 %v6353, %v6351
        %v8410 = vpack.c.b16 %v6354, %v6352
        %v8411 = vpack.c.b16 %v6357, %v6355
        %v8412 = vpack.c.b16 %v6358, %v6356
        %v8413 = vpack.c.b16 %v6361, %v6359
        %v8414 = vpack.c.b16 %v6362, %v6360
        %v8415 = vpack.c.b16 %v6365, %v6363
        %v8416 = vpack.c.b16 %v6366, %v6364
        %v8417 = vpack.c.b16 %v6369, %v6367
        %v8418 = vpack.c.b16 %v6370, %v6368
        %v8419 = vpack.c.b16 %v6373, %v6371
        %v8420 = vpack.c.b16 %v6374, %v6372
        %v8421 = vpack.c.b16 %v6377, %v6375
        %v8422 = vpack.c.b16 %v6378, %v6376
        %v8423 = vpack.c.b16 %v6381, %v6379
        %v8424 = vpack.c.b16 %v6382, %v6380
        %v8425 = vpack.c.b16 %v6385, %v6383
        %v8426 = vpack.c.b16 %v6386, %v6384
        %v8427 = vpack.c.b16 %v6389, %v6387
        %v8428 = vpack.c.b16 %v6390, %v6388
        %v8429 = vpack.c.b16 %v6393, %v6391
        %v8430 = vpack.c.b16 %v6394, %v6392
        %v8431 = vpack.c.b16 %v6397, %v6395
        %v8432 = vpack.c.b16 %v6398, %v6396
        %v8433 = vpack.c.b16 %v6401, %v6399
        %v8434 = vpack.c.b16 %v6402, %v6400
        %v8435 = vpack.c.b16 %v6405, %v6403
        %v8436 = vpack.c.b16 %v6406, %v6404
        %v8437 = vpack.c.b16 %v6409, %v6407
        %v8438 = vpack.c.b16 %v6410, %v6408
        %v8439 = vpack.c.b16 %v6413, %v6411
        %v8440 = vpack.c.b16 %v6414, %v6412
        %v8441 = vpack.c.b16 %v6417, %v6415
        %v8442 = vpack.c.b16 %v6418, %v6416
        %v8443 = vpack.c.b16 %v6421, %v6419
        %v8444 = vpack.c.b16 %v6422, %v6420
        %v8445 = vpack.c.b16 %v6425, %v6423
        %v8446 = vpack.c.b16 %v6426, %v6424
        %v8447 = vpack.c.b16 %v6429, %v6427
        %v8448 = vpack.c.b16 %v6430, %v6428
        %v8449 = vpack.c.b16 %v6433, %v6431
        %v8450 = vpack.c.b16 %v6434, %v6432
        %v8451 = vpack.c.b16 %v6437, %v6435
        %v8452 = vpack.c.b16 %v6438, %v6436
        %v8453 = vpack.c.b16 %v6441, %v6439
        %v8454 = vpack.c.b16 %v6442, %v6440
        %v8455 = vpack.c.b16 %v6445, %v6443
        %v8456 = vpack.c.b16 %v6446, %v6444
        %v8457 = vpack.c.b16 %v6449, %v6447
        %v8458 = vpack.c.b16 %v6450, %v6448
        %v8459 = vpack.c.b16 %v6453, %v6451
        %v8460 = vpack.c.b16 %v6454, %v6452
        %v8461 = vpack.c.b16 %v6457, %v6455
        %v8462 = vpack.c.b16 %v6458, %v6456
        %v8463 = vpack.c.b16 %v6461, %v6459
        %v8464 = vpack.c.b16 %v6462, %v6460
        %v8465 = vpack.c.b16 %v6465, %v6463
        %v8466 = vpack.c.b16 %v6466, %v6464
        %v8467 = vpack.c.b16 %v6469, %v6467
        %v8468 = vpack.c.b16 %v6470, %v6468
        %v8469 = vpack.c.b16 %v6473, %v6471
        %v8470 = vpack.c.b16 %v6474, %v6472
        %v8471 = vpack.c.b16 %v6477, %v6475
        %v8472 = vpack.c.b16 %v6478, %v6476
        %v8473 = vpack.c.b16 %v6481, %v6479
        %v8474 = vpack.c.b16 %v6482, %v6480
        %v8475 = vpack.c.b16 %v6485, %v6483
        %v8476 = vpack.c.b16 %v6486, %v6484
        %v8477 = vpack.c.b16 %v6489, %v6487
        %v8478 = vpack.c.b16 %v6490, %v6488
        %v8479 = vpack.c.b16 %v6493, %v6491
        %v8480 = vpack.c.b16 %v6494, %v6492
        %v8481 = vpack.c.b16 %v6497, %v6495
        %v8482 = vpack.c.b16 %v6498, %v6496
        %v8483 = vpack.c.b16 %v6501, %v6499
        %v8484 = vpack.c.b16 %v6502, %v6500
        %v8485 = vpack.c.b16 %v6505, %v6503
        %v8486 = vpack.c.b16 %v6506, %v6504
        %v8487 = vpack.c.b16 %v6509, %v6507
        %v8488 = vpack.c.b16 %v6510, %v6508
        %v8489 = vpack.c.b16 %v6513, %v6511
        %v8490 = vpack.c.b16 %v6514, %v6512
        %v8491 = vpack.c.b16 %v6517, %v6515
        %v8492 = vpack.c.b16 %v6518, %v6516
        %v8493 = vpack.c.b16 %v6521, %v6519
        %v8494 = vpack.c.b16 %v6522, %v6520
        %v8495 = vpack.c.b16 %v6525, %v6523
        %v8496 = vpack.c.b16 %v6526, %v6524
        %v8497 = vpack.c.b16 %v6529, %v6527
        %v8498 = vpack.c.b16 %v6530, %v6528
        %v8499 = vpack.c.b16 %v6533, %v6531
        %v8500 = vpack.c.b16 %v6534, %v6532
        %v8501 = vpack.c.b16 %v6537, %v6535
        %v8502 = vpack.c.b16 %v6538, %v6536
        %v8503 = vpack.c.b16 %v6541, %v6539
        %v8504 = vpack.c.b16 %v6542, %v6540
        %v8505 = vpack.c.b16 %v6545, %v6543
        %v8506 = vpack.c.b16 %v6546, %v6544
        %v8507 = vpack.c.b16 %v6549, %v6547
        %v8508 = vpack.c.b16 %v6550, %v6548
        %v8509 = vpack.c.b16 %v6553, %v6551
        %v8510 = vpack.c.b16 %v6554, %v6552
        %v8511 = vpack.c.b16 %v6557, %v6555
        %v8512 = vpack.c.b16 %v6558, %v6556
        %v8513 = vpack.c.b16 %v6561, %v6559
        %v8514 = vpack.c.b16 %v6562, %v6560
        %v8515 = vpack.c.b16 %v6565, %v6563
        %v8516 = vpack.c.b16 %v6566, %v6564
        %v8517 = vpack.c.b16 %v6569, %v6567
        %v8518 = vpack.c.b16 %v6570, %v6568
        %v8519 = vpack.c.b16 %v6573, %v6571
        %v8520 = vpack.c.b16 %v6574, %v6572
        %v8521 = vpack.c.b16 %v6577, %v6575
        %v8522 = vpack.c.b16 %v6578, %v6576
        %v8523 = vpack.c.b16 %v6581, %v6579
        %v8524 = vpack.c.b16 %v6582, %v6580
        %v8525 = vpack.c.b16 %v6585, %v6583
        %v8526 = vpack.c.b16 %v6586, %v6584
        %v8527 = vpack.c.b16 %v6589, %v6587
        %v8528 = vpack.c.b16 %v6590, %v6588
        %v8529 = vpack.c.b16 %v6593, %v6591
        %v8530 = vpack.c.b16 %v6594, %v6592
        %v8531 = vpack.c.b16 %v6597, %v6595
        %v8532 = vpack.c.b16 %v6598, %v6596
        %v8533 = vpack.c.b16 %v6601, %v6599
        %v8534 = vpack.c.b16 %v6602, %v6600
        %v8535 = vpack.c.b16 %v6605, %v6603
        %v8536 = vpack.c.b16 %v6606, %v6604
        %v8537 = vpack.c.b16 %v6609, %v6607
        %v8538 = vpack.c.b16 %v6610, %v6608
        %v8539 = vpack.c.b16 %v6613, %v6611
        %v8540 = vpack.c.b16 %v6614, %v6612
        %v8541 = vpack.c.b16 %v6617, %v6615
        %v8542 = vpack.c.b16 %v6618, %v6616
        %v8543 = vpack.c.b16 %v6621, %v6619
        %v8544 = vpack.c.b16 %v6622, %v6620
        %v8545 = vpack.c.b16 %v6625, %v6623
        %v8546 = vpack.c.b16 %v6626, %v6624
        %v8547 = vpack.c.b16 %v6629, %v6627
        %v8548 = vpack.c.b16 %v6630, %v6628
        %v8549 = vpack.c.b16 %v6633, %v6631
        %v8550 = vpack.c.b16 %v6634, %v6632
        %v8551 = vpack.c.b16 %v6637, %v6635
        %v8552 = vpack.c.b16 %v6638, %v6636
        %v8553 = vpack.c.b16 %v6641, %v6639
        %v8554 = vpack.c.b16 %v6642, %v6640
        %v8555 = vpack.c.b16 %v6645, %v6643
        %v8556 = vpack.c.b16 %v6646, %v6644
        %v8557 = vpack.c.b16 %v6649, %v6647
        %v8558 = vpack.c.b16 %v6650, %v6648
        %v8559 = vpack.c.b16 %v6653, %v6651
        %v8560 = vpack.c.b16 %v6654, %v6652
        %v8561 = vpack.c.b16 %v6657, %v6655
        %v8562 = vpack.c.b16 %v6658, %v6656
        %v8563 = vpack.c.b16 %v6661, %v6659
        %v8564 = vpack.c.b16 %v6662, %v6660
        %v8565 = vpack.c.b16 %v6665, %v6663
        %v8566 = vpack.c.b16 %v6666, %v6664
        %v8567 = vpack.c.b16 %v6669, %v6667
        %v8568 = vpack.c.b16 %v6670, %v6668
        %v8569 = vpack.c.b16 %v6673, %v6671
        %v8570 = vpack.c.b16 %v6674, %v6672
        %v8571 = vpack.c.b16 %v6677, %v6675
        %v8572 = vpack.c.b16 %v6678, %v6676
        %v8573 = vpack.c.b16 %v6681, %v6679
        %v8574 = vpack.c.b16 %v6682, %v6680
        %v8575 = vpack.c.b16 %v6685, %v6683
        %v8576 = vpack.c.b16 %v6686, %v6684
        %v8577 = vpack.c.b16 %v6689, %v6687
        %v8578 = vpack.c.b16 %v6690, %v6688
        %v8579 = vpack.c.b16 %v6693, %v6691
        %v8580 = vpack.c.b16 %v6694, %v6692
        %v8581 = vpack.c.b16 %v6697, %v6695
        %v8582 = vpack.c.b16 %v6698, %v6696
        %v8583 = vpack.c.b16 %v6701, %v6699
        %v8584 = vpack.c.b16 %v6702, %v6700
        %v8585 = vpack.c.b16 %v6705, %v6703
        %v8586 = vpack.c.b16 %v6706, %v6704
        %v8587 = vpack.c.b16 %v6709, %v6707
        %v8588 = vpack.c.b16 %v6710, %v6708
        %v8589 = vpack.c.b16 %v6713, %v6711
        %v8590 = vpack.c.b16 %v6714, %v6712
        %v8591 = vpack.c.b16 %v6717, %v6715
        %v8592 = vpack.c.b16 %v6718, %v6716
        %v8593 = vpack.c.b16 %v6721, %v6719
        %v8594 = vpack.c.b16 %v6722, %v6720
        %v8595 = vpack.c.b16 %v6725, %v6723
        %v8596 = vpack.c.b16 %v6726, %v6724
        %v8597 = vpack.c.b16 %v6729, %v6727
        %v8598 = vpack.c.b16 %v6730, %v6728
        %v8599 = vpack.c.b16 %v6733, %v6731
        %v8600 = vpack.c.b16 %v6734, %v6732
        %v8601 = vpack.c.b16 %v6737, %v6735
        %v8602 = vpack.c.b16 %v6738, %v6736
        %v8603 = vpack.c.b16 %v6741, %v6739
        %v8604 = vpack.c.b16 %v6742, %v6740
        %v8605 = vpack.c.b16 %v6745, %v6743
        %v8606 = vpack.c.b16 %v6746, %v6744
        %v8607 = vpack.c.b16 %v6749, %v6747
        %v8608 = vpack.c.b16 %v6750, %v6748
        %v8609 = vpack.c.b16 %v6753, %v6751
        %v8610 = vpack.c.b16 %v6754, %v6752
        %v8611 = vpack.c.b16 %v6757, %v6755
        %v8612 = vpack.c.b16 %v6758, %v6756
        %v8613 = vpack.c.b16 %v6761, %v6759
        %v8614 = vpack.c.b16 %v6762, %v6760
        %v8615 = vpack.c.b16 %v6765, %v6763
        %v8616 = vpack.c.b16 %v6766, %v6764
        %v8617 = vpack.c.b16 %v6769, %v6767
        %v8618 = vpack.c.b16 %v6770, %v6768
        %v8619 = vpack.c.b16 %v6773, %v6771
        %v8620 = vpack.c.b16 %v6774, %v6772
        %v8621 = vpack.c.b16 %v6777, %v6775
        %v8622 = vpack.c.b16 %v6778, %v6776
        %v8623 = vpack.c.b16 %v6781, %v6779
        %v8624 = vpack.c.b16 %v6782, %v6780
        %v8625 = vpack.c.b16 %v6785, %v6783
        %v8626 = vpack.c.b16 %v6786, %v6784
        %v8627 = vpack.c.b16 %v6789, %v6787
        %v8628 = vpack.c.b16 %v6790, %v6788
        %v8629 = vpack.c.b16 %v6793, %v6791
        %v8630 = vpack.c.b16 %v6794, %v6792
        %v8631 = vpack.c.b16 %v6797, %v6795
        %v8632 = vpack.c.b16 %v6798, %v6796
        %v8633 = vpack.c.b16 %v6801, %v6799
        %v8634 = vpack.c.b16 %v6802, %v6800
        %v8635 = vpack.c.b16 %v6805, %v6803
        %v8636 = vpack.c.b16 %v6806, %v6804
        %v8637 = vpack.c.b16 %v6809, %v6807
        %v8638 = vpack.c.b16 %v6810, %v6808
        %v8639 = vpack.c.b16 %v6813, %v6811
        %v8640 = vpack.c.b16 %v6814, %v6812
        %v8641 = vpack.c.b16 %v6817, %v6815
        %v8642 = vpack.c.b16 %v6818, %v6816
        %v8643 = vpack.c.b16 %v6821, %v6819
        %v8644 = vpack.c.b16 %v6822, %v6820
        %v8645 = vpack.c.b16 %v6825, %v6823
        %v8646 = vpack.c.b16 %v6826, %v6824
        %v8647 = vpack.c.b16 %v6829, %v6827
        %v8648 = vpack.c.b16 %v6830, %v6828
        %v8649 = vpack.c.b16 %v6833, %v6831
        %v8650 = vpack.c.b16 %v6834, %v6832
        %v8651 = vpack.c.b16 %v6837, %v6835
        %v8652 = vpack.c.b16 %v6838, %v6836
        %v8653 = vpack.c.b16 %v6841, %v6839
        %v8654 = vpack.c.b16 %v6842, %v6840
        %v8655 = vpack.c.b16 %v6845, %v6843
        %v8656 = vpack.c.b16 %v6846, %v6844
        %v8657 = vpack.c.b16 %v6849, %v6847
        %v8658 = vpack.c.b16 %v6850, %v6848
        %v8659 = vpack.c.b16 %v6853, %v6851
        %v8660 = vpack.c.b16 %v6854, %v6852
        %v8661 = vpack.c.b16 %v6857, %v6855
        %v8662 = vpack.c.b16 %v6858, %v6856
        %v8663 = vpack.c.b16 %v6861, %v6859
        %v8664 = vpack.c.b16 %v6862, %v6860
        %v8665 = vpack.c.b16 %v6865, %v6863
        %v8666 = vpack.c.b16 %v6866, %v6864
        %v8667 = vpack.c.b16 %v6869, %v6867
        %v8668 = vpack.c.b16 %v6870, %v6868
        %v8669 = vpack.c.b16 %v6873, %v6871
        %v8670 = vpack.c.b16 %v6874, %v6872
        %v8671 = vpack.c.b16 %v6877, %v6875
        %v8672 = vpack.c.b16 %v6878, %v6876
        %v8673 = vpack.c.b16 %v6881, %v6879
        %v8674 = vpack.c.b16 %v6882, %v6880
        %v8675 = vpack.c.b16 %v6885, %v6883
        %v8676 = vpack.c.b16 %v6886, %v6884
        %v8677 = vpack.c.b16 %v6889, %v6887
        %v8678 = vpack.c.b16 %v6890, %v6888
        %v8679 = vpack.c.b16 %v6893, %v6891
        %v8680 = vpack.c.b16 %v6894, %v6892
        %v8681 = vpack.c.b16 %v6897, %v6895
        %v8682 = vpack.c.b16 %v6898, %v6896
        %v8683 = vpack.c.b16 %v6901, %v6899
        %v8684 = vpack.c.b16 %v6902, %v6900
        %v8685 = vpack.c.b16 %v6905, %v6903
        %v8686 = vpack.c.b16 %v6906, %v6904
        %v8687 = vpack.c.b16 %v6909, %v6907
        %v8688 = vpack.c.b16 %v6910, %v6908
        %v8689 = vpack.c.b16 %v6913, %v6911
        %v8690 = vpack.c.b16 %v6914, %v6912
        %v8691 = vpack.c.b16 %v6917, %v6915
        %v8692 = vpack.c.b16 %v6918, %v6916
        %v8693 = vpack.c.b16 %v6921, %v6919
        %v8694 = vpack.c.b16 %v6922, %v6920
        %v8695 = vpack.c.b16 %v6925, %v6923
        %v8696 = vpack.c.b16 %v6926, %v6924
        %v8697 = vpack.c.b16 %v6929, %v6927
        %v8698 = vpack.c.b16 %v6930, %v6928
        %v8699 = vpack.c.b16 %v6933, %v6931
        %v8700 = vpack.c.b16 %v6934, %v6932
        %v8701 = vpack.c.b16 %v6937, %v6935
        %v8702 = vpack.c.b16 %v6938, %v6936
        %v8703 = vpack.c.b16 %v6941, %v6939
        %v8704 = vpack.c.b16 %v6942, %v6940
        %v8705 = vpack.c.b16 %v6945, %v6943
        %v8706 = vpack.c.b16 %v6946, %v6944
        %v8707 = vpack.c.b16 %v6949, %v6947
        %v8708 = vpack.c.b16 %v6950, %v6948
        %v8709 = vpack.c.b16 %v6953, %v6951
        %v8710 = vpack.c.b16 %v6954, %v6952
        %v8711 = vpack.c.b16 %v6957, %v6955
        %v8712 = vpack.c.b16 %v6958, %v6956
        %v8713 = vpack.c.b16 %v6961, %v6959
        %v8714 = vpack.c.b16 %v6962, %v6960
        %v8715 = vpack.c.b16 %v6965, %v6963
        %v8716 = vpack.c.b16 %v6966, %v6964
        %v8717 = vpack.c.b16 %v6969, %v6967
        %v8718 = vpack.c.b16 %v6970, %v6968
        %v8719 = vpack.c.b16 %v6973, %v6971
        %v8720 = vpack.c.b16 %v6974, %v6972
        %v8721 = vpack.c.b16 %v6977, %v6975
        %v8722 = vpack.c.b16 %v6978, %v6976
        %v8723 = vpack.c.b16 %v6981, %v6979
        %v8724 = vpack.c.b16 %v6982, %v6980
        %v8725 = vpack.c.b16 %v6985, %v6983
        %v8726 = vpack.c.b16 %v6986, %v6984
        %v8727 = vpack.c.b16 %v6989, %v6987
        %v8728 = vpack.c.b16 %v6990, %v6988
        %v8729 = vpack.c.b16 %v6993, %v6991
        %v8730 = vpack.c.b16 %v6994, %v6992
        %v8731 = vpack.c.b16 %v6997, %v6995
        %v8732 = vpack.c.b16 %v6998, %v6996
        %v8733 = vpack.c.b16 %v7001, %v6999
        %v8734 = vpack.c.b16 %v7002, %v7000
        %v8735 = vpack.c.b16 %v7005, %v7003
        %v8736 = vpack.c.b16 %v7006, %v7004
        %v8737 = vpack.c.b16 %v7009, %v7007
        %v8738 = vpack.c.b16 %v7010, %v7008
        %v8739 = vpack.c.b16 %v7013, %v7011
        %v8740 = vpack.c.b16 %v7014, %v7012
        %v8741 = vpack.c.b16 %v7017, %v7015
        %v8742 = vpack.c.b16 %v7018, %v7016
        %v8743 = vpack.c.b16 %v7021, %v7019
        %v8744 = vpack.c.b16 %v7022, %v7020
        %v8745 = vpack.c.b16 %v7025, %v7023
        %v8746 = vpack.c.b16 %v7026, %v7024
        %v8747 = vpack.c.b16 %v7029, %v7027
        %v8748 = vpack.c.b16 %v7030, %v7028
        %v8749 = vpack.c.b16 %v7033, %v7031
        %v8750 = vpack.c.b16 %v7034, %v7032
        %v8751 = vpack.c.b16 %v7037, %v7035
        %v8752 = vpack.c.b16 %v7038, %v7036
        %v8753 = vpack.c.b16 %v7041, %v7039
        %v8754 = vpack.c.b16 %v7042, %v7040
        %v8755 = vpack.c.b16 %v7045, %v7043
        %v8756 = vpack.c.b16 %v7046, %v7044
        %v8757 = vpack.c.b16 %v7049, %v7047
        %v8758 = vpack.c.b16 %v7050, %v7048
        %v8759 = vpack.c.b16 %v7053, %v7051
        %v8760 = vpack.c.b16 %v7054, %v7052
        %v8761 = vpack.c.b16 %v7057, %v7055
        %v8762 = vpack.c.b16 %v7058, %v7056
        %v8763 = vpack.c.b16 %v7061, %v7059
        %v8764 = vpack.c.b16 %v7062, %v7060
        %v8765 = vpack.c.b16 %v7065, %v7063
        %v8766 = vpack.c.b16 %v7066, %v7064
        %v8767 = vpack.c.b16 %v7069, %v7067
        %v8768 = vpack.c.b16 %v7070, %v7068
        %v8769 = vpack.c.b16 %v7073, %v7071
        %v8770 = vpack.c.b16 %v7074, %v7072
        %v8771 = vpack.c.b16 %v7077, %v7075
        %v8772 = vpack.c.b16 %v7078, %v7076
        %v8773 = vpack.c.b16 %v7081, %v7079
        %v8774 = vpack.c.b16 %v7082, %v7080
        %v8775 = vpack.c.b16 %v7085, %v7083
        %v8776 = vpack.c.b16 %v7086, %v7084
        %v8777 = vpack.c.b16 %v7089, %v7087
        %v8778 = vpack.c.b16 %v7090, %v7088
        %v8779 = vpack.c.b16 %v7093, %v7091
        %v8780 = vpack.c.b16 %v7094, %v7092
        %v8781 = vpack.c.b16 %v7097, %v7095
        %v8782 = vpack.c.b16 %v7098, %v7096
        %v8783 = vpack.c.b16 %v7101, %v7099
        %v8784 = vpack.c.b16 %v7102, %v7100
        %v8785 = vpack.c.b16 %v7105, %v7103
        %v8786 = vpack.c.b16 %v7106, %v7104
        %v8787 = vpack.c.b16 %v7109, %v7107
        %v8788 = vpack.c.b16 %v7110, %v7108
        %v8789 = vpack.c.b16 %v7113, %v7111
        %v8790 = vpack.c.b16 %v7114, %v7112
        %v8791 = vpack.c.b16 %v7117, %v7115
        %v8792 = vpack.c.b16 %v7118, %v7116
        %v8793 = vpack.c.b16 %v7121, %v7119
        %v8794 = vpack.c.b16 %v7122, %v7120
        %v8795 = vpack.c.b16 %v7125, %v7123
        %v8796 = vpack.c.b16 %v7126, %v7124
        %v8797 = vpack.c.b16 %v7129, %v7127
        %v8798 = vpack.c.b16 %v7130, %v7128
        %v8799 = vpack.c.b16 %v7133, %v7131
        %v8800 = vpack.c.b16 %v7134, %v7132
        %v8801 = vpack.c.b16 %v7137, %v7135
        %v8802 = vpack.c.b16 %v7138, %v7136
        %v8803 = vpack.c.b16 %v7141, %v7139
        %v8804 = vpack.c.b16 %v7142, %v7140
        %v8805 = vpack.c.b16 %v7145, %v7143
        %v8806 = vpack.c.b16 %v7146, %v7144
        %v8807 = vpack.c.b16 %v7149, %v7147
        %v8808 = vpack.c.b16 %v7150, %v7148
        %v8809 = vpack.c.b16 %v7153, %v7151
        %v8810 = vpack.c.b16 %v7154, %v7152
        %v8811 = vpack.c.b16 %v7157, %v7155
        %v8812 = vpack.c.b16 %v7158, %v7156
        %v8813 = vpack.c.b16 %v7161, %v7159
        %v8814 = vpack.c.b16 %v7162, %v7160
        %v8815 = vpack.c.b16 %v7165, %v7163
        %v8816 = vpack.c.b16 %v7166, %v7164
        %v8817 = vpack.c.b16 %v7169, %v7167
        %v8818 = vpack.c.b16 %v7170, %v7168
        %v8819 = vpack.c.b16 %v7173, %v7171
        %v8820 = vpack.c.b16 %v7174, %v7172
        %v8821 = vpack.c.b16 %v7177, %v7175
        %v8822 = vpack.c.b16 %v7178, %v7176
        %v8823 = vpack.c.b16 %v7181, %v7179
        %v8824 = vpack.c.b16 %v7182, %v7180
        %v8825 = vpack.c.b16 %v7185, %v7183
        %v8826 = vpack.c.b16 %v7186, %v7184
        %v8827 = vpack.c.b16 %v7189, %v7187
        %v8828 = vpack.c.b16 %v7190, %v7188
        %v8829 = vpack.c.b16 %v7193, %v7191
        %v8830 = vpack.c.b16 %v7194, %v7192
        %v8831 = vpack.c.b16 %v7197, %v7195
        %v8832 = vpack.c.b16 %v7198, %v7196
        %v8833 = vpack.c.b16 %v7201, %v7199
        %v8834 = vpack.c.b16 %v7202, %v7200
        %v8835 = vpack.c.b16 %v7205, %v7203
        %v8836 = vpack.c.b16 %v7206, %v7204
        %v8837 = vpack.c.b16 %v7209, %v7207
        %v8838 = vpack.c.b16 %v7210, %v7208
        %v8839 = vpack.c.b16 %v7213, %v7211
        %v8840 = vpack.c.b16 %v7214, %v7212
        %v8841 = vpack.c.b16 %v7217, %v7215
        %v8842 = vpack.c.b16 %v7218, %v7216
        %v8843 = vpack.c.b16 %v7221, %v7219
        %v8844 = vpack.c.b16 %v7222, %v7220
        %v8845 = vpack.c.b16 %v7225, %v7223
        %v8846 = vpack.c.b16 %v7226, %v7224
        %v8847 = vpack.c.b16 %v7229, %v7227
        %v8848 = vpack.c.b16 %v7230, %v7228
        %v8849 = vpack.c.b16 %v7233, %v7231
        %v8850 = vpack.c.b16 %v7234, %v7232
        %v8851 = vpack.c.b16 %v7237, %v7235
        %v8852 = vpack.c.b16 %v7238, %v7236
        %v8853 = vpack.c.b16 %v7241, %v7239
        %v8854 = vpack.c.b16 %v7242, %v7240
        %v8855 = vpack.c.b16 %v7245, %v7243
        %v8856 = vpack.c.b16 %v7246, %v7244
        %v8857 = vpack.c.b16 %v7249, %v7247
        %v8858 = vpack.c.b16 %v7250, %v7248
        %v8859 = vpack.c.b16 %v7253, %v7251
        %v8860 = vpack.c.b16 %v7254, %v7252
        %v8861 = vpack.c.b16 %v7257, %v7255
        %v8862 = vpack.c.b16 %v7258, %v7256
        %v8863 = vpack.c.b16 %v7261, %v7259
        %v8864 = vpack.c.b16 %v7262, %v7260
        %v8865 = vpack.c.b16 %v7265, %v7263
        %v8866 = vpack.c.b16 %v7266, %v7264
        %10467 = vmatprep.subr.bf16.mxu0 %v7268
        %10468 = vmatpush1.bf16.msra.mxu0 %v7267
        %10469 = vmatprep.subr.bf16.mxu0 %v7270
        %10470 = vmatpush1.bf16.msra.mxu0 %v7269
        %10471 = vmatprep.subr.bf16.mxu0 %v7272
        %10472 = vmatpush1.bf16.msra.mxu0 %v7271
        %10473 = vmatprep.subr.bf16.mxu0 %v7274
        %10474 = vmatpush1.bf16.msra.mxu0 %v7273
        %10475 = vmatprep.subr.bf16.mxu0 %v7276
        %10476 = vmatpush1.bf16.msra.mxu0 %v7275
        %10477 = vmatprep.subr.bf16.mxu0 %v7278
        %10478 = vmatpush1.bf16.msra.mxu0 %v7277
        %10479 = vmatprep.subr.bf16.mxu0 %v7280
        %10480 = vmatpush1.bf16.msra.mxu0 %v7279
        %10481 = vmatprep.subr.bf16.mxu0 %v7282
        %10482 = vmatpush1.bf16.msra.mxu0 %v7281
        %10483 = vmatprep.subr.bf16.mxu0 %v7284
        %10484 = vmatpush1.bf16.msra.mxu0 %v7283
        %10485 = vmatprep.subr.bf16.mxu0 %v7286
        %10486 = vmatpush1.bf16.msra.mxu0 %v7285
        %10487 = vmatprep.subr.bf16.mxu0 %v7288
        %10488 = vmatpush1.bf16.msra.mxu0 %v7287
        %10489 = vmatprep.subr.bf16.mxu0 %v7290
        %10490 = vmatpush1.bf16.msra.mxu0 %v7289
        %10491 = vmatprep.subr.bf16.mxu0 %v7292
        %10492 = vmatpush1.bf16.msra.mxu0 %v7291
        %10493 = vmatprep.subr.bf16.mxu0 %v7294
        %10494 = vmatpush1.bf16.msra.mxu0 %v7293
        %10495 = vmatprep.subr.bf16.mxu0 %v7296
        %10496 = vmatpush1.bf16.msra.mxu0 %v7295
        %10497 = vmatprep.subr.bf16.mxu0 %v7298
        %10498 = vmatpush1.bf16.msra.mxu0 %v7297
        %10499 = vmatprep.mubr.bf16.mxu0 %v2268
        %10500 = vmatmul.mubr.bf16.gmra.mrb[0].mxu0 %v2267
        %v10501 = vpop.f32.mrb[0].mxu0
        %v10502 = vadd.f32 0.0, %v10501
        %v10503 = vpop.f32.mrb[0].mxu0
        %v10504 = vadd.f32 0.0, %v10503
        %v10505 = vpop.f32.mrb[0].mxu0
        %v10506 = vpop.f32.mrb[0].mxu0
        %10507 = vdwg.mxu0
        %10508 = vmatprep.subr.bf16.mxu0 %v7300
        %10509 = vmatpush1.bf16.msra.mxu0 %v7299
        %10510 = vmatprep.subr.bf16.mxu0 %v7302
        %10511 = vmatpush1.bf16.msra.mxu0 %v7301
        %10512 = vmatprep.subr.bf16.mxu0 %v7304
        %10513 = vmatpush1.bf16.msra.mxu0 %v7303
        %10514 = vmatprep.subr.bf16.mxu0 %v7306
        %10515 = vmatpush1.bf16.msra.mxu0 %v7305
        %10516 = vmatprep.subr.bf16.mxu0 %v7308
        %10517 = vmatpush1.bf16.msra.mxu0 %v7307
        %10518 = vmatprep.subr.bf16.mxu0 %v7310
        %10519 = vmatpush1.bf16.msra.mxu0 %v7309
        %10520 = vmatprep.subr.bf16.mxu0 %v7312
        %10521 = vmatpush1.bf16.msra.mxu0 %v7311
        %10522 = vmatprep.subr.bf16.mxu0 %v7314
        %10523 = vmatpush1.bf16.msra.mxu0 %v7313
        %10524 = vmatprep.subr.bf16.mxu0 %v7316
        %10525 = vmatpush1.bf16.msra.mxu0 %v7315
        %10526 = vmatprep.subr.bf16.mxu0 %v7318
        %10527 = vmatpush1.bf16.msra.mxu0 %v7317
        %10528 = vmatprep.subr.bf16.mxu0 %v7320
        %10529 = vmatpush1.bf16.msra.mxu0 %v7319
        %10530 = vmatprep.subr.bf16.mxu0 %v7322
        %10531 = vmatpush1.bf16.msra.mxu0 %v7321
        %10532 = vmatprep.subr.bf16.mxu0 %v7324
        %10533 = vmatpush1.bf16.msra.mxu0 %v7323
        %10534 = vmatprep.subr.bf16.mxu0 %v7326
        %10535 = vmatpush1.bf16.msra.mxu0 %v7325
        %10536 = vmatprep.subr.bf16.mxu0 %v7328
        %10537 = vmatpush1.bf16.msra.mxu0 %v7327
        %10538 = vmatprep.subr.bf16.mxu0 %v7330
        %10539 = vmatpush1.bf16.msra.mxu0 %v7329
        %10540 = vmatprep.mubr.bf16.mxu0 %v2270
        %10541 = vmatmul.mubr.bf16.gmra.mrb[0].mxu0 %v2269
        %v10542 = vpop.f32.mrb[0].mxu0
        %v10543 = vadd.f32 %v10502, %v10542
        %v10544 = vpop.f32.mrb[0].mxu0
        %v10545 = vadd.f32 %v10504, %v10544
        %v10546 = vpop.f32.mrb[0].mxu0
        %v10547 = vpop.f32.mrb[0].mxu0
        %10548 = vdwg.mxu0
        %10549 = vmatprep.subr.bf16.mxu0 %v7332
        %10550 = vmatpush1.bf16.msra.mxu0 %v7331
        %10551 = vmatprep.subr.bf16.mxu0 %v7334
        %10552 = vmatpush1.bf16.msra.mxu0 %v7333
        %10553 = vmatprep.subr.bf16.mxu0 %v7336
        %10554 = vmatpush1.bf16.msra.mxu0 %v7335
        %10555 = vmatprep.subr.bf16.mxu0 %v7338
        %10556 = vmatpush1.bf16.msra.mxu0 %v7337
        %10557 = vmatprep.subr.bf16.mxu0 %v7340
        %10558 = vmatpush1.bf16.msra.mxu0 %v7339
        %10559 = vmatprep.subr.bf16.mxu0 %v7342
        %10560 = vmatpush1.bf16.msra.mxu0 %v7341
        %10561 = vmatprep.subr.bf16.mxu0 %v7344
        %10562 = vmatpush1.bf16.msra.mxu0 %v7343
        %10563 = vmatprep.subr.bf16.mxu0 %v7346
        %10564 = vmatpush1.bf16.msra.mxu0 %v7345
        %10565 = vmatprep.subr.bf16.mxu0 %v7348
        %10566 = vmatpush1.bf16.msra.mxu0 %v7347
        %10567 = vmatprep.subr.bf16.mxu0 %v7350
        %10568 = vmatpush1.bf16.msra.mxu0 %v7349
        %10569 = vmatprep.subr.bf16.mxu0 %v7352
        %10570 = vmatpush1.bf16.msra.mxu0 %v7351
        %10571 = vmatprep.subr.bf16.mxu0 %v7354
        %10572 = vmatpush1.bf16.msra.mxu0 %v7353
        %10573 = vmatprep.subr.bf16.mxu0 %v7356
        %10574 = vmatpush1.bf16.msra.mxu0 %v7355
        %10575 = vmatprep.subr.bf16.mxu0 %v7358
        %10576 = vmatpush1.bf16.msra.mxu0 %v7357
        %10577 = vmatprep.subr.bf16.mxu0 %v7360
        %10578 = vmatpush1.bf16.msra.mxu0 %v7359
        %10579 = vmatprep.subr.bf16.mxu0 %v7362
        %10580 = vmatpush1.bf16.msra.mxu0 %v7361
        %10581 = vmatprep.mubr.bf16.mxu0 %v2272
        %10582 = vmatmul.mubr.bf16.gmra.mrb[0].mxu0 %v2271
        %v10583 = vpop.f32.mrb[0].mxu0
        %v10584 = vadd.f32 %v10543, %v10583
        %v10585 = vpop.f32.mrb[0].mxu0
        %v10586 = vadd.f32 %v10545, %v10585
        %v10587 = vpop.f32.mrb[0].mxu0
        %v10588 = vpop.f32.mrb[0].mxu0
        %10589 = vdwg.mxu0
        %10590 = vmatprep.subr.bf16.mxu0 %v7364
        %10591 = vmatpush1.bf16.msra.mxu0 %v7363
        %10592 = vmatprep.subr.bf16.mxu0 %v7366
        %10593 = vmatpush1.bf16.msra.mxu0 %v7365
        %10594 = vmatprep.subr.bf16.mxu0 %v7368
        %10595 = vmatpush1.bf16.msra.mxu0 %v7367
        %10596 = vmatprep.subr.bf16.mxu0 %v7370
        %10597 = vmatpush1.bf16.msra.mxu0 %v7369
        %10598 = vmatprep.subr.bf16.mxu0 %v7372
        %10599 = vmatpush1.bf16.msra.mxu0 %v7371
        %10600 = vmatprep.subr.bf16.mxu0 %v7374
        %10601 = vmatpush1.bf16.msra.mxu0 %v7373
        %10602 = vmatprep.subr.bf16.mxu0 %v7376
        %10603 = vmatpush1.bf16.msra.mxu0 %v7375
        %10604 = vmatprep.subr.bf16.mxu0 %v7378
        %10605 = vmatpush1.bf16.msra.mxu0 %v7377
        %10606 = vmatprep.subr.bf16.mxu0 %v7380
        %10607 = vmatpush1.bf16.msra.mxu0 %v7379
        %10608 = vmatprep.subr.bf16.mxu0 %v7382
        %10609 = vmatpush1.bf16.msra.mxu0 %v7381
        %10610 = vmatprep.subr.bf16.mxu0 %v7384
        %10611 = vmatpush1.bf16.msra.mxu0 %v7383
        %10612 = vmatprep.subr.bf16.mxu0 %v7386
        %10613 = vmatpush1.bf16.msra.mxu0 %v7385
        %10614 = vmatprep.subr.bf16.mxu0 %v7388
        %10615 = vmatpush1.bf16.msra.mxu0 %v7387
        %10616 = vmatprep.subr.bf16.mxu0 %v7390
        %10617 = vmatpush1.bf16.msra.mxu0 %v7389
        %10618 = vmatprep.subr.bf16.mxu0 %v7392
        %10619 = vmatpush1.bf16.msra.mxu0 %v7391
        %10620 = vmatprep.subr.bf16.mxu0 %v7394
        %10621 = vmatpush1.bf16.msra.mxu0 %v7393
        %10622 = vmatprep.mubr.bf16.mxu0 %v2274
        %10623 = vmatmul.mubr.bf16.gmra.mrb[0].mxu0 %v2273
        %v10624 = vpop.f32.mrb[0].mxu0
        %v10625 = vadd.f32 %v10584, %v10624
        %v10626 = vpop.f32.mrb[0].mxu0
        %v10627 = vadd.f32 %v10586, %v10626
        %v10628 = vpop.f32.mrb[0].mxu0
        %v10629 = vpop.f32.mrb[0].mxu0
        %10630 = vdwg.mxu0
        %10631 = vmatprep.subr.bf16.mxu0 %v7396
        %10632 = vmatpush1.bf16.msra.mxu0 %v7395
        %10633 = vmatprep.subr.bf16.mxu0 %v7398
        %10634 = vmatpush1.bf16.msra.mxu0 %v7397
        %10635 = vmatprep.subr.bf16.mxu0 %v7400
        %10636 = vmatpush1.bf16.msra.mxu0 %v7399
        %10637 = vmatprep.subr.bf16.mxu0 %v7402
        %10638 = vmatpush1.bf16.msra.mxu0 %v7401
        %10639 = vmatprep.subr.bf16.mxu0 %v7404
        %10640 = vmatpush1.bf16.msra.mxu0 %v7403
        %10641 = vmatprep.subr.bf16.mxu0 %v7406
        %10642 = vmatpush1.bf16.msra.mxu0 %v7405
        %10643 = vmatprep.subr.bf16.mxu0 %v7408
        %10644 = vmatpush1.bf16.msra.mxu0 %v7407
        %10645 = vmatprep.subr.bf16.mxu0 %v7410
        %10646 = vmatpush1.bf16.msra.mxu0 %v7409
        %10647 = vmatprep.subr.bf16.mxu0 %v7412
        %10648 = vmatpush1.bf16.msra.mxu0 %v7411
        %10649 = vmatprep.subr.bf16.mxu0 %v7414
        %10650 = vmatpush1.bf16.msra.mxu0 %v7413
        %10651 = vmatprep.subr.bf16.mxu0 %v7416
        %10652 = vmatpush1.bf16.msra.mxu0 %v7415
        %10653 = vmatprep.subr.bf16.mxu0 %v7418
        %10654 = vmatpush1.bf16.msra.mxu0 %v7417
        %10655 = vmatprep.subr.bf16.mxu0 %v7420
        %10656 = vmatpush1.bf16.msra.mxu0 %v7419
        %10657 = vmatprep.subr.bf16.mxu0 %v7422
        %10658 = vmatpush1.bf16.msra.mxu0 %v7421
        %10659 = vmatprep.subr.bf16.mxu0 %v7424
        %10660 = vmatpush1.bf16.msra.mxu0 %v7423
        %10661 = vmatprep.subr.bf16.mxu0 %v7426
        %10662 = vmatpush1.bf16.msra.mxu0 %v7425
        %10663 = vmatprep.mubr.bf16.mxu0 %v2276
        %10664 = vmatmul.mubr.bf16.gmra.mrb[0].mxu0 %v2275
        %v10665 = vpop.f32.mrb[0].mxu0
        %v10666 = vadd.f32 %v10625, %v10665
        %v10667 = vpop.f32.mrb[0].mxu0
        %v10668 = vadd.f32 %v10627, %v10667
        %v10669 = vpop.f32.mrb[0].mxu0
        %v10670 = vpop.f32.mrb[0].mxu0
        %10671 = vdwg.mxu0
        %10672 = vmatprep.subr.bf16.mxu0 %v7428
        %10673 = vmatpush1.bf16.msra.mxu0 %v7427
        %10674 = vmatprep.subr.bf16.mxu0 %v7430
        %10675 = vmatpush1.bf16.msra.mxu0 %v7429
        %10676 = vmatprep.subr.bf16.mxu0 %v7432
        %10677 = vmatpush1.bf16.msra.mxu0 %v7431
        %10678 = vmatprep.subr.bf16.mxu0 %v7434
        %10679 = vmatpush1.bf16.msra.mxu0 %v7433
        %10680 = vmatprep.subr.bf16.mxu0 %v7436
        %10681 = vmatpush1.bf16.msra.mxu0 %v7435
        %10682 = vmatprep.subr.bf16.mxu0 %v7438
        %10683 = vmatpush1.bf16.msra.mxu0 %v7437
        %10684 = vmatprep.subr.bf16.mxu0 %v7440
        %10685 = vmatpush1.bf16.msra.mxu0 %v7439
        %10686 = vmatprep.subr.bf16.mxu0 %v7442
        %10687 = vmatpush1.bf16.msra.mxu0 %v7441
        %10688 = vmatprep.subr.bf16.mxu0 %v7444
        %10689 = vmatpush1.bf16.msra.mxu0 %v7443
        %10690 = vmatprep.subr.bf16.mxu0 %v7446
        %10691 = vmatpush1.bf16.msra.mxu0 %v7445
        %10692 = vmatprep.subr.bf16.mxu0 %v7448
        %10693 = vmatpush1.bf16.msra.mxu0 %v7447
        %10694 = vmatprep.subr.bf16.mxu0 %v7450
        %10695 = vmatpush1.bf16.msra.mxu0 %v7449
        %10696 = vmatprep.subr.bf16.mxu0 %v7452
        %10697 = vmatpush1.bf16.msra.mxu0 %v7451
        %10698 = vmatprep.subr.bf16.mxu0 %v7454
        %10699 = vmatpush1.bf16.msra.mxu0 %v7453
        %10700 = vmatprep.subr.bf16.mxu0 %v7456
        %10701 = vmatpush1.bf16.msra.mxu0 %v7455
        %10702 = vmatprep.subr.bf16.mxu0 %v7458
        %10703 = vmatpush1.bf16.msra.mxu0 %v7457
        %10704 = vmatprep.mubr.bf16.mxu0 %v2278
        %10705 = vmatmul.mubr.bf16.gmra.mrb[0].mxu0 %v2277
        %v10706 = vpop.f32.mrb[0].mxu0
        %v10707 = vadd.f32 %v10666, %v10706
        %v10708 = vpop.f32.mrb[0].mxu0
        %v10709 = vadd.f32 %v10668, %v10708
        %v10710 = vpop.f32.mrb[0].mxu0
        %v10711 = vpop.f32.mrb[0].mxu0
        %10712 = vdwg.mxu0
        %10713 = vmatprep.subr.bf16.mxu0 %v7460
        %10714 = vmatpush1.bf16.msra.mxu0 %v7459
        %10715 = vmatprep.subr.bf16.mxu0 %v7462
        %10716 = vmatpush1.bf16.msra.mxu0 %v7461
        %10717 = vmatprep.subr.bf16.mxu0 %v7464
        %10718 = vmatpush1.bf16.msra.mxu0 %v7463
        %10719 = vmatprep.subr.bf16.mxu0 %v7466
        %10720 = vmatpush1.bf16.msra.mxu0 %v7465
        %10721 = vmatprep.subr.bf16.mxu0 %v7468
        %10722 = vmatpush1.bf16.msra.mxu0 %v7467
        %10723 = vmatprep.subr.bf16.mxu0 %v7470
        %10724 = vmatpush1.bf16.msra.mxu0 %v7469
        %10725 = vmatprep.subr.bf16.mxu0 %v7472
        %10726 = vmatpush1.bf16.msra.mxu0 %v7471
        %10727 = vmatprep.subr.bf16.mxu0 %v7474
        %10728 = vmatpush1.bf16.msra.mxu0 %v7473
        %10729 = vmatprep.subr.bf16.mxu0 %v7476
        %10730 = vmatpush1.bf16.msra.mxu0 %v7475
        %10731 = vmatprep.subr.bf16.mxu0 %v7478
        %10732 = vmatpush1.bf16.msra.mxu0 %v7477
        %10733 = vmatprep.subr.bf16.mxu0 %v7480
        %10734 = vmatpush1.bf16.msra.mxu0 %v7479
        %10735 = vmatprep.subr.bf16.mxu0 %v7482
        %10736 = vmatpush1.bf16.msra.mxu0 %v7481
        %10737 = vmatprep.subr.bf16.mxu0 %v7484
        %10738 = vmatpush1.bf16.msra.mxu0 %v7483
        %10739 = vmatprep.subr.bf16.mxu0 %v7486
        %10740 = vmatpush1.bf16.msra.mxu0 %v7485
        %10741 = vmatprep.subr.bf16.mxu0 %v7488
        %10742 = vmatpush1.bf16.msra.mxu0 %v7487
        %10743 = vmatprep.subr.bf16.mxu0 %v7490
        %10744 = vmatpush1.bf16.msra.mxu0 %v7489
        %10745 = vmatprep.mubr.bf16.mxu0 %v2280
        %10746 = vmatmul.mubr.bf16.gmra.mrb[0].mxu0 %v2279
        %v10747 = vpop.f32.mrb[0].mxu0
        %v10748 = vadd.f32 %v10707, %v10747
        %v10749 = vpop.f32.mrb[0].mxu0
        %v10750 = vadd.f32 %v10709, %v10749
        %v10751 = vpop.f32.mrb[0].mxu0
        %v10752 = vpop.f32.mrb[0].mxu0
        %10753 = vdwg.mxu0
        %10754 = vmatprep.subr.bf16.mxu0 %v7492
        %10755 = vmatpush1.bf16.msra.mxu0 %v7491
        %10756 = vmatprep.subr.bf16.mxu0 %v7494
        %10757 = vmatpush1.bf16.msra.mxu0 %v7493
        %10758 = vmatprep.subr.bf16.mxu0 %v7496
        %10759 = vmatpush1.bf16.msra.mxu0 %v7495
        %10760 = vmatprep.subr.bf16.mxu0 %v7498
        %10761 = vmatpush1.bf16.msra.mxu0 %v7497
        %10762 = vmatprep.subr.bf16.mxu0 %v7500
        %10763 = vmatpush1.bf16.msra.mxu0 %v7499
        %10764 = vmatprep.subr.bf16.mxu0 %v7502
        %10765 = vmatpush1.bf16.msra.mxu0 %v7501
        %10766 = vmatprep.subr.bf16.mxu0 %v7504
        %10767 = vmatpush1.bf16.msra.mxu0 %v7503
        %10768 = vmatprep.subr.bf16.mxu0 %v7506
        %10769 = vmatpush1.bf16.msra.mxu0 %v7505
        %10770 = vmatprep.subr.bf16.mxu0 %v7508
        %10771 = vmatpush1.bf16.msra.mxu0 %v7507
        %10772 = vmatprep.subr.bf16.mxu0 %v7510
        %10773 = vmatpush1.bf16.msra.mxu0 %v7509
        %10774 = vmatprep.subr.bf16.mxu0 %v7512
        %10775 = vmatpush1.bf16.msra.mxu0 %v7511
        %10776 = vmatprep.subr.bf16.mxu0 %v7514
        %10777 = vmatpush1.bf16.msra.mxu0 %v7513
        %10778 = vmatprep.subr.bf16.mxu0 %v7516
        %10779 = vmatpush1.bf16.msra.mxu0 %v7515
        %10780 = vmatprep.subr.bf16.mxu0 %v7518
        %10781 = vmatpush1.bf16.msra.mxu0 %v7517
        %10782 = vmatprep.subr.bf16.mxu0 %v7520
        %10783 = vmatpush1.bf16.msra.mxu0 %v7519
        %10784 = vmatprep.subr.bf16.mxu0 %v7522
        %10785 = vmatpush1.bf16.msra.mxu0 %v7521
        %10786 = vmatprep.mubr.bf16.mxu0 %v2282
        %10787 = vmatmul.mubr.bf16.gmra.mrb[0].mxu0 %v2281
        %v10788 = vpop.f32.mrb[0].mxu0
        %v10789 = vadd.f32 %v10748, %v10788
        %v10790 = vpop.f32.mrb[0].mxu0
        %v10791 = vadd.f32 %v10750, %v10790
        %v10792 = vpop.f32.mrb[0].mxu0
        %v10793 = vpop.f32.mrb[0].mxu0
        %10794 = vdwg.mxu0
        %10795 = vmatprep.subr.bf16.mxu0 %v7524
        %10796 = vmatpush1.bf16.msra.mxu0 %v7523
        %10797 = vmatprep.subr.bf16.mxu0 %v7526
        %10798 = vmatpush1.bf16.msra.mxu0 %v7525
        %10799 = vmatprep.subr.bf16.mxu0 %v7528
        %10800 = vmatpush1.bf16.msra.mxu0 %v7527
        %10801 = vmatprep.subr.bf16.mxu0 %v7530
        %10802 = vmatpush1.bf16.msra.mxu0 %v7529
        %10803 = vmatprep.subr.bf16.mxu0 %v7532
        %10804 = vmatpush1.bf16.msra.mxu0 %v7531
        %10805 = vmatprep.subr.bf16.mxu0 %v7534
        %10806 = vmatpush1.bf16.msra.mxu0 %v7533
        %10807 = vmatprep.subr.bf16.mxu0 %v7536
        %10808 = vmatpush1.bf16.msra.mxu0 %v7535
        %10809 = vmatprep.subr.bf16.mxu0 %v7538
        %10810 = vmatpush1.bf16.msra.mxu0 %v7537
        %10811 = vmatprep.subr.bf16.mxu0 %v7540
        %10812 = vmatpush1.bf16.msra.mxu0 %v7539
        %10813 = vmatprep.subr.bf16.mxu0 %v7542
        %10814 = vmatpush1.bf16.msra.mxu0 %v7541
        %10815 = vmatprep.subr.bf16.mxu0 %v7544
        %10816 = vmatpush1.bf16.msra.mxu0 %v7543
        %10817 = vmatprep.subr.bf16.mxu0 %v7546
        %10818 = vmatpush1.bf16.msra.mxu0 %v7545
        %10819 = vmatprep.subr.bf16.mxu0 %v7548
        %10820 = vmatpush1.bf16.msra.mxu0 %v7547
        %10821 = vmatprep.subr.bf16.mxu0 %v7550
        %10822 = vmatpush1.bf16.msra.mxu0 %v7549
        %10823 = vmatprep.subr.bf16.mxu0 %v7552
        %10824 = vmatpush1.bf16.msra.mxu0 %v7551
        %10825 = vmatprep.subr.bf16.mxu0 %v7554
        %10826 = vmatpush1.bf16.msra.mxu0 %v7553
        %10827 = vmatprep.mubr.bf16.mxu0 %v2284
        %10828 = vmatmul.mubr.bf16.gmra.mrb[0].mxu0 %v2283
        %v10829 = vpop.f32.mrb[0].mxu0
        %v10830 = vadd.f32 %v10789, %v10829
        %v10831 = vpop.f32.mrb[0].mxu0
        %v10832 = vadd.f32 %v10791, %v10831
        %v10833 = vpop.f32.mrb[0].mxu0
        %v10834 = vpop.f32.mrb[0].mxu0
        %10835 = vdwg.mxu0
        %10836 = vmatprep.subr.bf16.mxu0 %v7556
        %10837 = vmatpush1.bf16.msra.mxu0 %v7555
        %10838 = vmatprep.subr.bf16.mxu0 %v7558
        %10839 = vmatpush1.bf16.msra.mxu0 %v7557
        %10840 = vmatprep.subr.bf16.mxu0 %v7560
        %10841 = vmatpush1.bf16.msra.mxu0 %v7559
        %10842 = vmatprep.subr.bf16.mxu0 %v7562
        %10843 = vmatpush1.bf16.msra.mxu0 %v7561
        %10844 = vmatprep.subr.bf16.mxu0 %v7564
        %10845 = vmatpush1.bf16.msra.mxu0 %v7563
        %10846 = vmatprep.subr.bf16.mxu0 %v7566
        %10847 = vmatpush1.bf16.msra.mxu0 %v7565
        %10848 = vmatprep.subr.bf16.mxu0 %v7568
        %10849 = vmatpush1.bf16.msra.mxu0 %v7567
        %10850 = vmatprep.subr.bf16.mxu0 %v7570
        %10851 = vmatpush1.bf16.msra.mxu0 %v7569
        %10852 = vmatprep.subr.bf16.mxu0 %v7572
        %10853 = vmatpush1.bf16.msra.mxu0 %v7571
        %10854 = vmatprep.subr.bf16.mxu0 %v7574
        %10855 = vmatpush1.bf16.msra.mxu0 %v7573
        %10856 = vmatprep.subr.bf16.mxu0 %v7576
        %10857 = vmatpush1.bf16.msra.mxu0 %v7575
        %10858 = vmatprep.subr.bf16.mxu0 %v7578
        %10859 = vmatpush1.bf16.msra.mxu0 %v7577
        %10860 = vmatprep.subr.bf16.mxu0 %v7580
        %10861 = vmatpush1.bf16.msra.mxu0 %v7579
        %10862 = vmatprep.subr.bf16.mxu0 %v7582
        %10863 = vmatpush1.bf16.msra.mxu0 %v7581
        %10864 = vmatprep.subr.bf16.mxu0 %v7584
        %10865 = vmatpush1.bf16.msra.mxu0 %v7583
        %10866 = vmatprep.subr.bf16.mxu0 %v7586
        %10867 = vmatpush1.bf16.msra.mxu0 %v7585
        %10868 = vmatprep.mubr.bf16.mxu0 %v2286
        %10869 = vmatmul.mubr.bf16.gmra.mrb[0].mxu0 %v2285
        %v10870 = vpop.f32.mrb[0].mxu0
        %v10871 = vadd.f32 %v10830, %v10870
        %v10872 = vpop.f32.mrb[0].mxu0
        %v10873 = vadd.f32 %v10832, %v10872
        %v10874 = vpop.f32.mrb[0].mxu0
        %v10875 = vpop.f32.mrb[0].mxu0
        %10876 = vdwg.mxu0
        %10877 = vmatprep.subr.bf16.mxu0 %v7588
        %10878 = vmatpush1.bf16.msra.mxu0 %v7587
        %10879 = vmatprep.subr.bf16.mxu0 %v7590
        %10880 = vmatpush1.bf16.msra.mxu0 %v7589
        %10881 = vmatprep.subr.bf16.mxu0 %v7592
        %10882 = vmatpush1.bf16.msra.mxu0 %v7591
        %10883 = vmatprep.subr.bf16.mxu0 %v7594
        %10884 = vmatpush1.bf16.msra.mxu0 %v7593
        %10885 = vmatprep.subr.bf16.mxu0 %v7596
        %10886 = vmatpush1.bf16.msra.mxu0 %v7595
        %10887 = vmatprep.subr.bf16.mxu0 %v7598
        %10888 = vmatpush1.bf16.msra.mxu0 %v7597
        %10889 = vmatprep.subr.bf16.mxu0 %v7600
        %10890 = vmatpush1.bf16.msra.mxu0 %v7599
        %10891 = vmatprep.subr.bf16.mxu0 %v7602
        %10892 = vmatpush1.bf16.msra.mxu0 %v7601
        %10893 = vmatprep.subr.bf16.mxu0 %v7604
        %10894 = vmatpush1.bf16.msra.mxu0 %v7603
        %10895 = vmatprep.subr.bf16.mxu0 %v7606
        %10896 = vmatpush1.bf16.msra.mxu0 %v7605
        %10897 = vmatprep.subr.bf16.mxu0 %v7608
        %10898 = vmatpush1.bf16.msra.mxu0 %v7607
        %10899 = vmatprep.subr.bf16.mxu0 %v7610
        %10900 = vmatpush1.bf16.msra.mxu0 %v7609
        %10901 = vmatprep.subr.bf16.mxu0 %v7612
        %10902 = vmatpush1.bf16.msra.mxu0 %v7611
        %10903 = vmatprep.subr.bf16.mxu0 %v7614
        %10904 = vmatpush1.bf16.msra.mxu0 %v7613
        %10905 = vmatprep.subr.bf16.mxu0 %v7616
        %10906 = vmatpush1.bf16.msra.mxu0 %v7615
        %10907 = vmatprep.subr.bf16.mxu0 %v7618
        %10908 = vmatpush1.bf16.msra.mxu0 %v7617
        %10909 = vmatprep.mubr.bf16.mxu0 %v2288
        %10910 = vmatmul.mubr.bf16.gmra.mrb[0].mxu0 %v2287
        %v10911 = vpop.f32.mrb[0].mxu0
        %v10912 = vadd.f32 %v10871, %v10911
        %v10913 = vpop.f32.mrb[0].mxu0
        %v10914 = vadd.f32 %v10873, %v10913
        %v10915 = vpop.f32.mrb[0].mxu0
        %v10916 = vpop.f32.mrb[0].mxu0
        %10917 = vdwg.mxu0
        %10918 = vmatprep.subr.bf16.mxu0 %v7620
        %10919 = vmatpush1.bf16.msra.mxu0 %v7619
        %10920 = vmatprep.subr.bf16.mxu0 %v7622
        %10921 = vmatpush1.bf16.msra.mxu0 %v7621
        %10922 = vmatprep.subr.bf16.mxu0 %v7624
        %10923 = vmatpush1.bf16.msra.mxu0 %v7623
        %10924 = vmatprep.subr.bf16.mxu0 %v7626
        %10925 = vmatpush1.bf16.msra.mxu0 %v7625
        %10926 = vmatprep.subr.bf16.mxu0 %v7628
        %10927 = vmatpush1.bf16.msra.mxu0 %v7627
        %10928 = vmatprep.subr.bf16.mxu0 %v7630
        %10929 = vmatpush1.bf16.msra.mxu0 %v7629
        %10930 = vmatprep.subr.bf16.mxu0 %v7632
        %10931 = vmatpush1.bf16.msra.mxu0 %v7631
        %10932 = vmatprep.subr.bf16.mxu0 %v7634
        %10933 = vmatpush1.bf16.msra.mxu0 %v7633
        %10934 = vmatprep.subr.bf16.mxu0 %v7636
        %10935 = vmatpush1.bf16.msra.mxu0 %v7635
        %10936 = vmatprep.subr.bf16.mxu0 %v7638
        %10937 = vmatpush1.bf16.msra.mxu0 %v7637
        %10938 = vmatprep.subr.bf16.mxu0 %v7640
        %10939 = vmatpush1.bf16.msra.mxu0 %v7639
        %10940 = vmatprep.subr.bf16.mxu0 %v7642
        %10941 = vmatpush1.bf16.msra.mxu0 %v7641
        %10942 = vmatprep.subr.bf16.mxu0 %v7644
        %10943 = vmatpush1.bf16.msra.mxu0 %v7643
        %10944 = vmatprep.subr.bf16.mxu0 %v7646
        %10945 = vmatpush1.bf16.msra.mxu0 %v7645
        %10946 = vmatprep.subr.bf16.mxu0 %v7648
        %10947 = vmatpush1.bf16.msra.mxu0 %v7647
        %10948 = vmatprep.subr.bf16.mxu0 %v7650
        %10949 = vmatpush1.bf16.msra.mxu0 %v7649
        %10950 = vmatprep.mubr.bf16.mxu0 %v2290
        %10951 = vmatmul.mubr.bf16.gmra.mrb[0].mxu0 %v2289
        %v10952 = vpop.f32.mrb[0].mxu0
        %v10953 = vadd.f32 %v10912, %v10952
        %v10954 = vpop.f32.mrb[0].mxu0
        %v10955 = vadd.f32 %v10914, %v10954
        %v10956 = vpop.f32.mrb[0].mxu0
        %v10957 = vpop.f32.mrb[0].mxu0
        %10958 = vdwg.mxu0
        %10959 = vmatprep.subr.bf16.mxu0 %v7652
        %10960 = vmatpush1.bf16.msra.mxu0 %v7651
        %10961 = vmatprep.subr.bf16.mxu0 %v7654
        %10962 = vmatpush1.bf16.msra.mxu0 %v7653
        %10963 = vmatprep.subr.bf16.mxu0 %v7656
        %10964 = vmatpush1.bf16.msra.mxu0 %v7655
        %10965 = vmatprep.subr.bf16.mxu0 %v7658
        %10966 = vmatpush1.bf16.msra.mxu0 %v7657
        %10967 = vmatprep.subr.bf16.mxu0 %v7660
        %10968 = vmatpush1.bf16.msra.mxu0 %v7659
        %10969 = vmatprep.subr.bf16.mxu0 %v7662
        %10970 = vmatpush1.bf16.msra.mxu0 %v7661
        %10971 = vmatprep.subr.bf16.mxu0 %v7664
        %10972 = vmatpush1.bf16.msra.mxu0 %v7663
        %10973 = vmatprep.subr.bf16.mxu0 %v7666
        %10974 = vmatpush1.bf16.msra.mxu0 %v7665
        %10975 = vmatprep.subr.bf16.mxu0 %v7668
        %10976 = vmatpush1.bf16.msra.mxu0 %v7667
        %10977 = vmatprep.subr.bf16.mxu0 %v7670
        %10978 = vmatpush1.bf16.msra.mxu0 %v7669
        %10979 = vmatprep.subr.bf16.mxu0 %v7672
        %10980 = vmatpush1.bf16.msra.mxu0 %v7671
        %10981 = vmatprep.subr.bf16.mxu0 %v7674
        %10982 = vmatpush1.bf16.msra.mxu0 %v7673
        %10983 = vmatprep.subr.bf16.mxu0 %v7676
        %10984 = vmatpush1.bf16.msra.mxu0 %v7675
        %10985 = vmatprep.subr.bf16.mxu0 %v7678
        %10986 = vmatpush1.bf16.msra.mxu0 %v7677
        %10987 = vmatprep.subr.bf16.mxu0 %v7680
        %10988 = vmatpush1.bf16.msra.mxu0 %v7679
        %10989 = vmatprep.subr.bf16.mxu0 %v7682
        %10990 = vmatpush1.bf16.msra.mxu0 %v7681
        %10991 = vmatprep.mubr.bf16.mxu0 %v2292
        %10992 = vmatmul.mubr.bf16.gmra.mrb[0].mxu0 %v2291
        %v10993 = vpop.f32.mrb[0].mxu0
        %v10994 = vadd.f32 %v10953, %v10993
        %v10995 = vpop.f32.mrb[0].mxu0
        %v10996 = vadd.f32 %v10955, %v10995
        %v10997 = vpop.f32.mrb[0].mxu0
        %v10998 = vpop.f32.mrb[0].mxu0
        %10999 = vdwg.mxu0
        %11000 = vmatprep.subr.bf16.mxu0 %v7684
        %11001 = vmatpush1.bf16.msra.mxu0 %v7683
        %11002 = vmatprep.subr.bf16.mxu0 %v7686
        %11003 = vmatpush1.bf16.msra.mxu0 %v7685
        %11004 = vmatprep.subr.bf16.mxu0 %v7688
        %11005 = vmatpush1.bf16.msra.mxu0 %v7687
        %11006 = vmatprep.subr.bf16.mxu0 %v7690
        %11007 = vmatpush1.bf16.msra.mxu0 %v7689
        %11008 = vmatprep.subr.bf16.mxu0 %v7692
        %11009 = vmatpush1.bf16.msra.mxu0 %v7691
        %11010 = vmatprep.subr.bf16.mxu0 %v7694
        %11011 = vmatpush1.bf16.msra.mxu0 %v7693
        %11012 = vmatprep.subr.bf16.mxu0 %v7696
        %11013 = vmatpush1.bf16.msra.mxu0 %v7695
        %11014 = vmatprep.subr.bf16.mxu0 %v7698
        %11015 = vmatpush1.bf16.msra.mxu0 %v7697
        %11016 = vmatprep.subr.bf16.mxu0 %v7700
        %11017 = vmatpush1.bf16.msra.mxu0 %v7699
        %11018 = vmatprep.subr.bf16.mxu0 %v7702
        %11019 = vmatpush1.bf16.msra.mxu0 %v7701
        %11020 = vmatprep.subr.bf16.mxu0 %v7704
        %11021 = vmatpush1.bf16.msra.mxu0 %v7703
        %11022 = vmatprep.subr.bf16.mxu0 %v7706
        %11023 = vmatpush1.bf16.msra.mxu0 %v7705
        %11024 = vmatprep.subr.bf16.mxu0 %v7708
        %11025 = vmatpush1.bf16.msra.mxu0 %v7707
        %11026 = vmatprep.subr.bf16.mxu0 %v7710
        %11027 = vmatpush1.bf16.msra.mxu0 %v7709
        %11028 = vmatprep.subr.bf16.mxu0 %v7712
        %11029 = vmatpush1.bf16.msra.mxu0 %v7711
        %11030 = vmatprep.subr.bf16.mxu0 %v7714
        %11031 = vmatpush1.bf16.msra.mxu0 %v7713
        %11032 = vmatprep.mubr.bf16.mxu0 %v2294
        %11033 = vmatmul.mubr.bf16.gmra.mrb[0].mxu0 %v2293
        %v11034 = vpop.f32.mrb[0].mxu0
        %v11035 = vadd.f32 %v10994, %v11034
        %v11036 = vpop.f32.mrb[0].mxu0
        %v11037 = vadd.f32 %v10996, %v11036
        %v11038 = vpop.f32.mrb[0].mxu0
        %v11039 = vpop.f32.mrb[0].mxu0
        %11040 = vdwg.mxu0
        %11041 = vmatprep.subr.bf16.mxu0 %v7716
        %11042 = vmatpush1.bf16.msra.mxu0 %v7715
        %11043 = vmatprep.subr.bf16.mxu0 %v7718
        %11044 = vmatpush1.bf16.msra.mxu0 %v7717
        %11045 = vmatprep.subr.bf16.mxu0 %v7720
        %11046 = vmatpush1.bf16.msra.mxu0 %v7719
        %11047 = vmatprep.subr.bf16.mxu0 %v7722
        %11048 = vmatpush1.bf16.msra.mxu0 %v7721
        %11049 = vmatprep.subr.bf16.mxu0 %v7724
        %11050 = vmatpush1.bf16.msra.mxu0 %v7723
        %11051 = vmatprep.subr.bf16.mxu0 %v7726
        %11052 = vmatpush1.bf16.msra.mxu0 %v7725
        %11053 = vmatprep.subr.bf16.mxu0 %v7728
        %11054 = vmatpush1.bf16.msra.mxu0 %v7727
        %11055 = vmatprep.subr.bf16.mxu0 %v7730
        %11056 = vmatpush1.bf16.msra.mxu0 %v7729
        %11057 = vmatprep.subr.bf16.mxu0 %v7732
        %11058 = vmatpush1.bf16.msra.mxu0 %v7731
        %11059 = vmatprep.subr.bf16.mxu0 %v7734
        %11060 = vmatpush1.bf16.msra.mxu0 %v7733
        %11061 = vmatprep.subr.bf16.mxu0 %v7736
        %11062 = vmatpush1.bf16.msra.mxu0 %v7735
        %11063 = vmatprep.subr.bf16.mxu0 %v7738
        %11064 = vmatpush1.bf16.msra.mxu0 %v7737
        %11065 = vmatprep.subr.bf16.mxu0 %v7740
        %11066 = vmatpush1.bf16.msra.mxu0 %v7739
        %11067 = vmatprep.subr.bf16.mxu0 %v7742
        %11068 = vmatpush1.bf16.msra.mxu0 %v7741
        %11069 = vmatprep.subr.bf16.mxu0 %v7744
        %11070 = vmatpush1.bf16.msra.mxu0 %v7743
        %11071 = vmatprep.subr.bf16.mxu0 %v7746
        %11072 = vmatpush1.bf16.msra.mxu0 %v7745
        %11073 = vmatprep.mubr.bf16.mxu0 %v2296
        %11074 = vmatmul.mubr.bf16.gmra.mrb[0].mxu0 %v2295
        %v11075 = vpop.f32.mrb[0].mxu0
        %v11076 = vadd.f32 %v11035, %v11075
        %v11077 = vpop.f32.mrb[0].mxu0
        %v11078 = vadd.f32 %v11037, %v11077
        %v11079 = vpop.f32.mrb[0].mxu0
        %v11080 = vpop.f32.mrb[0].mxu0
        %11081 = vdwg.mxu0
        %11082 = vmatprep.subr.bf16.mxu0 %v7748
        %11083 = vmatpush1.bf16.msra.mxu0 %v7747
        %11084 = vmatprep.subr.bf16.mxu0 %v7750
        %11085 = vmatpush1.bf16.msra.mxu0 %v7749
        %11086 = vmatprep.subr.bf16.mxu0 %v7752
        %11087 = vmatpush1.bf16.msra.mxu0 %v7751
        %11088 = vmatprep.subr.bf16.mxu0 %v7754
        %11089 = vmatpush1.bf16.msra.mxu0 %v7753
        %11090 = vmatprep.subr.bf16.mxu0 %v7756
        %11091 = vmatpush1.bf16.msra.mxu0 %v7755
        %11092 = vmatprep.subr.bf16.mxu0 %v7758
        %11093 = vmatpush1.bf16.msra.mxu0 %v7757
        %11094 = vmatprep.subr.bf16.mxu0 %v7760
        %11095 = vmatpush1.bf16.msra.mxu0 %v7759
        %11096 = vmatprep.subr.bf16.mxu0 %v7762
        %11097 = vmatpush1.bf16.msra.mxu0 %v7761
        %11098 = vmatprep.subr.bf16.mxu0 %v7764
        %11099 = vmatpush1.bf16.msra.mxu0 %v7763
        %11100 = vmatprep.subr.bf16.mxu0 %v7766
        %11101 = vmatpush1.bf16.msra.mxu0 %v7765
        %11102 = vmatprep.subr.bf16.mxu0 %v7768
        %11103 = vmatpush1.bf16.msra.mxu0 %v7767
        %11104 = vmatprep.subr.bf16.mxu0 %v7770
        %11105 = vmatpush1.bf16.msra.mxu0 %v7769
        %11106 = vmatprep.subr.bf16.mxu0 %v7772
        %11107 = vmatpush1.bf16.msra.mxu0 %v7771
        %11108 = vmatprep.subr.bf16.mxu0 %v7774
        %11109 = vmatpush1.bf16.msra.mxu0 %v7773
        %11110 = vmatprep.subr.bf16.mxu0 %v7776
        %11111 = vmatpush1.bf16.msra.mxu0 %v7775
        %11112 = vmatprep.subr.bf16.mxu0 %v7778
        %11113 = vmatpush1.bf16.msra.mxu0 %v7777
        %11114 = vmatprep.mubr.bf16.mxu0 %v2298
        %11115 = vmatmul.mubr.bf16.gmra.mrb[0].mxu0 %v2297
        %v11116 = vpop.f32.mrb[0].mxu0
        %v11117 = vadd.f32 %v11076, %v11116
        %v11118 = vpop.f32.mrb[0].mxu0
        %v11119 = vadd.f32 %v11078, %v11118
        %v11120 = vpop.f32.mrb[0].mxu0
        %v11121 = vpop.f32.mrb[0].mxu0
        %11122 = vdwg.mxu0
        %11123 = vmatprep.subr.bf16.mxu0 %v7780
        %11124 = vmatpush1.bf16.msra.mxu0 %v7779
        %11125 = vmatprep.subr.bf16.mxu0 %v7782
        %11126 = vmatpush1.bf16.msra.mxu0 %v7781
        %11127 = vmatprep.subr.bf16.mxu0 %v7784
        %11128 = vmatpush1.bf16.msra.mxu0 %v7783
        %11129 = vmatprep.subr.bf16.mxu0 %v7786
        %11130 = vmatpush1.bf16.msra.mxu0 %v7785
        %11131 = vmatprep.subr.bf16.mxu0 %v7788
        %11132 = vmatpush1.bf16.msra.mxu0 %v7787
        %11133 = vmatprep.subr.bf16.mxu0 %v7790
        %11134 = vmatpush1.bf16.msra.mxu0 %v7789
        %11135 = vmatprep.subr.bf16.mxu0 %v7792
        %11136 = vmatpush1.bf16.msra.mxu0 %v7791
        %11137 = vmatprep.subr.bf16.mxu0 %v7794
        %11138 = vmatpush1.bf16.msra.mxu0 %v7793
        %11139 = vmatprep.subr.bf16.mxu0 %v7796
        %11140 = vmatpush1.bf16.msra.mxu0 %v7795
        %11141 = vmatprep.subr.bf16.mxu0 %v7798
        %11142 = vmatpush1.bf16.msra.mxu0 %v7797
        %11143 = vmatprep.subr.bf16.mxu0 %v7800
        %11144 = vmatpush1.bf16.msra.mxu0 %v7799
        %11145 = vmatprep.subr.bf16.mxu0 %v7802
        %11146 = vmatpush1.bf16.msra.mxu0 %v7801
        %11147 = vmatprep.subr.bf16.mxu0 %v7804
        %11148 = vmatpush1.bf16.msra.mxu0 %v7803
        %11149 = vmatprep.subr.bf16.mxu0 %v7806
        %11150 = vmatpush1.bf16.msra.mxu0 %v7805
        %11151 = vmatprep.subr.bf16.mxu0 %v7808
        %11152 = vmatpush1.bf16.msra.mxu0 %v7807
        %11153 = vmatprep.subr.bf16.mxu0 %v7810
        %11154 = vmatpush1.bf16.msra.mxu0 %v7809
        %11155 = vmatprep.mubr.bf16.mxu0 %v2300
        %11156 = vmatmul.mubr.bf16.gmra.mrb[0].mxu0 %v2299
        %v11157 = vpop.f32.mrb[0].mxu0
        %v11158 = vadd.f32 %v11117, %v11157
        %v11159 = vpop.f32.mrb[0].mxu0
        %v11160 = vadd.f32 %v11119, %v11159
        %v11161 = vpop.f32.mrb[0].mxu0
        %v11162 = vpop.f32.mrb[0].mxu0
        %11163 = vdwg.mxu0
        %11164 = vmatprep.subr.bf16.mxu0 %v7812
        %11165 = vmatpush1.bf16.msra.mxu0 %v7811
        %11166 = vmatprep.subr.bf16.mxu0 %v7814
        %11167 = vmatpush1.bf16.msra.mxu0 %v7813
        %11168 = vmatprep.subr.bf16.mxu0 %v7816
        %11169 = vmatpush1.bf16.msra.mxu0 %v7815
        %11170 = vmatprep.subr.bf16.mxu0 %v7818
        %11171 = vmatpush1.bf16.msra.mxu0 %v7817
        %11172 = vmatprep.subr.bf16.mxu0 %v7820
        %11173 = vmatpush1.bf16.msra.mxu0 %v7819
        %11174 = vmatprep.subr.bf16.mxu0 %v7822
        %11175 = vmatpush1.bf16.msra.mxu0 %v7821
        %11176 = vmatprep.subr.bf16.mxu0 %v7824
        %11177 = vmatpush1.bf16.msra.mxu0 %v7823
        %11178 = vmatprep.subr.bf16.mxu0 %v7826
        %11179 = vmatpush1.bf16.msra.mxu0 %v7825
        %11180 = vmatprep.subr.bf16.mxu0 %v7828
        %11181 = vmatpush1.bf16.msra.mxu0 %v7827
        %11182 = vmatprep.subr.bf16.mxu0 %v7830
        %11183 = vmatpush1.bf16.msra.mxu0 %v7829
        %11184 = vmatprep.subr.bf16.mxu0 %v7832
        %11185 = vmatpush1.bf16.msra.mxu0 %v7831
        %11186 = vmatprep.subr.bf16.mxu0 %v7834
        %11187 = vmatpush1.bf16.msra.mxu0 %v7833
        %11188 = vmatprep.subr.bf16.mxu0 %v7836
        %11189 = vmatpush1.bf16.msra.mxu0 %v7835
        %11190 = vmatprep.subr.bf16.mxu0 %v7838
        %11191 = vmatpush1.bf16.msra.mxu0 %v7837
        %11192 = vmatprep.subr.bf16.mxu0 %v7840
        %11193 = vmatpush1.bf16.msra.mxu0 %v7839
        %11194 = vmatprep.subr.bf16.mxu0 %v7842
        %11195 = vmatpush1.bf16.msra.mxu0 %v7841
        %11196 = vmatprep.mubr.bf16.mxu0 %v2302
        %11197 = vmatmul.mubr.bf16.gmra.mrb[0].mxu0 %v2301
        %v11198 = vpop.f32.mrb[0].mxu0
        %v11199 = vadd.f32 %v11158, %v11198
        %v11200 = vpop.f32.mrb[0].mxu0
        %v11201 = vadd.f32 %v11160, %v11200
        %v11202 = vpop.f32.mrb[0].mxu0
        %v11203 = vpop.f32.mrb[0].mxu0
        %11204 = vdwg.mxu0
        %11205 = vmatprep.subr.bf16.mxu0 %v7844
        %11206 = vmatpush1.bf16.msra.mxu0 %v7843
        %11207 = vmatprep.subr.bf16.mxu0 %v7846
        %11208 = vmatpush1.bf16.msra.mxu0 %v7845
        %11209 = vmatprep.subr.bf16.mxu0 %v7848
        %11210 = vmatpush1.bf16.msra.mxu0 %v7847
        %11211 = vmatprep.subr.bf16.mxu0 %v7850
        %11212 = vmatpush1.bf16.msra.mxu0 %v7849
        %11213 = vmatprep.subr.bf16.mxu0 %v7852
        %11214 = vmatpush1.bf16.msra.mxu0 %v7851
        %11215 = vmatprep.subr.bf16.mxu0 %v7854
        %11216 = vmatpush1.bf16.msra.mxu0 %v7853
        %11217 = vmatprep.subr.bf16.mxu0 %v7856
        %11218 = vmatpush1.bf16.msra.mxu0 %v7855
        %11219 = vmatprep.subr.bf16.mxu0 %v7858
        %11220 = vmatpush1.bf16.msra.mxu0 %v7857
        %11221 = vmatprep.subr.bf16.mxu0 %v7860
        %11222 = vmatpush1.bf16.msra.mxu0 %v7859
        %11223 = vmatprep.subr.bf16.mxu0 %v7862
        %11224 = vmatpush1.bf16.msra.mxu0 %v7861
        %11225 = vmatprep.subr.bf16.mxu0 %v7864
        %11226 = vmatpush1.bf16.msra.mxu0 %v7863
        %11227 = vmatprep.subr.bf16.mxu0 %v7866
        %11228 = vmatpush1.bf16.msra.mxu0 %v7865
        %11229 = vmatprep.subr.bf16.mxu0 %v7868
        %11230 = vmatpush1.bf16.msra.mxu0 %v7867
        %11231 = vmatprep.subr.bf16.mxu0 %v7870
        %11232 = vmatpush1.bf16.msra.mxu0 %v7869
        %11233 = vmatprep.subr.bf16.mxu0 %v7872
        %11234 = vmatpush1.bf16.msra.mxu0 %v7871
        %11235 = vmatprep.subr.bf16.mxu0 %v7874
        %11236 = vmatpush1.bf16.msra.mxu0 %v7873
        %11237 = vmatprep.mubr.bf16.mxu0 %v2304
        %11238 = vmatmul.mubr.bf16.gmra.mrb[0].mxu0 %v2303
        %v11239 = vpop.f32.mrb[0].mxu0
        %v11240 = vadd.f32 %v11199, %v11239
        %v11241 = vpop.f32.mrb[0].mxu0
        %v11242 = vadd.f32 %v11201, %v11241
        %v11243 = vpop.f32.mrb[0].mxu0
        %v11244 = vpop.f32.mrb[0].mxu0
        %11245 = vdwg.mxu0
        %11246 = vmatprep.subr.bf16.mxu0 %v7876
        %11247 = vmatpush1.bf16.msra.mxu0 %v7875
        %11248 = vmatprep.subr.bf16.mxu0 %v7878
        %11249 = vmatpush1.bf16.msra.mxu0 %v7877
        %11250 = vmatprep.subr.bf16.mxu0 %v7880
        %11251 = vmatpush1.bf16.msra.mxu0 %v7879
        %11252 = vmatprep.subr.bf16.mxu0 %v7882
        %11253 = vmatpush1.bf16.msra.mxu0 %v7881
        %11254 = vmatprep.subr.bf16.mxu0 %v7884
        %11255 = vmatpush1.bf16.msra.mxu0 %v7883
        %11256 = vmatprep.subr.bf16.mxu0 %v7886
        %11257 = vmatpush1.bf16.msra.mxu0 %v7885
        %11258 = vmatprep.subr.bf16.mxu0 %v7888
        %11259 = vmatpush1.bf16.msra.mxu0 %v7887
        %11260 = vmatprep.subr.bf16.mxu0 %v7890
        %11261 = vmatpush1.bf16.msra.mxu0 %v7889
        %11262 = vmatprep.subr.bf16.mxu0 %v7892
        %11263 = vmatpush1.bf16.msra.mxu0 %v7891
        %11264 = vmatprep.subr.bf16.mxu0 %v7894
        %11265 = vmatpush1.bf16.msra.mxu0 %v7893
        %11266 = vmatprep.subr.bf16.mxu0 %v7896
        %11267 = vmatpush1.bf16.msra.mxu0 %v7895
        %11268 = vmatprep.subr.bf16.mxu0 %v7898
        %11269 = vmatpush1.bf16.msra.mxu0 %v7897
        %11270 = vmatprep.subr.bf16.mxu0 %v7900
        %11271 = vmatpush1.bf16.msra.mxu0 %v7899
        %11272 = vmatprep.subr.bf16.mxu0 %v7902
        %11273 = vmatpush1.bf16.msra.mxu0 %v7901
        %11274 = vmatprep.subr.bf16.mxu0 %v7904
        %11275 = vmatpush1.bf16.msra.mxu0 %v7903
        %11276 = vmatprep.subr.bf16.mxu0 %v7906
        %11277 = vmatpush1.bf16.msra.mxu0 %v7905
        %11278 = vmatprep.mubr.bf16.mxu0 %v2306
        %11279 = vmatmul.mubr.bf16.gmra.mrb[0].mxu0 %v2305
        %v11280 = vpop.f32.mrb[0].mxu0
        %v11281 = vadd.f32 %v11240, %v11280
        %v11282 = vpop.f32.mrb[0].mxu0
        %v11283 = vadd.f32 %v11242, %v11282
        %v11284 = vpop.f32.mrb[0].mxu0
        %v11285 = vpop.f32.mrb[0].mxu0
        %11286 = vdwg.mxu0
        %11287 = vmatprep.subr.bf16.mxu0 %v7908
        %11288 = vmatpush1.bf16.msra.mxu0 %v7907
        %11289 = vmatprep.subr.bf16.mxu0 %v7910
        %11290 = vmatpush1.bf16.msra.mxu0 %v7909
        %11291 = vmatprep.subr.bf16.mxu0 %v7912
        %11292 = vmatpush1.bf16.msra.mxu0 %v7911
        %11293 = vmatprep.subr.bf16.mxu0 %v7914
        %11294 = vmatpush1.bf16.msra.mxu0 %v7913
        %11295 = vmatprep.subr.bf16.mxu0 %v7916
        %11296 = vmatpush1.bf16.msra.mxu0 %v7915
        %11297 = vmatprep.subr.bf16.mxu0 %v7918
        %11298 = vmatpush1.bf16.msra.mxu0 %v7917
        %11299 = vmatprep.subr.bf16.mxu0 %v7920
        %11300 = vmatpush1.bf16.msra.mxu0 %v7919
        %11301 = vmatprep.subr.bf16.mxu0 %v7922
        %11302 = vmatpush1.bf16.msra.mxu0 %v7921
        %11303 = vmatprep.subr.bf16.mxu0 %v7924
        %11304 = vmatpush1.bf16.msra.mxu0 %v7923
        %11305 = vmatprep.subr.bf16.mxu0 %v7926
        %11306 = vmatpush1.bf16.msra.mxu0 %v7925
        %11307 = vmatprep.subr.bf16.mxu0 %v7928
        %11308 = vmatpush1.bf16.msra.mxu0 %v7927
        %11309 = vmatprep.subr.bf16.mxu0 %v7930
        %11310 = vmatpush1.bf16.msra.mxu0 %v7929
        %11311 = vmatprep.subr.bf16.mxu0 %v7932
        %11312 = vmatpush1.bf16.msra.mxu0 %v7931
        %11313 = vmatprep.subr.bf16.mxu0 %v7934
        %11314 = vmatpush1.bf16.msra.mxu0 %v7933
        %11315 = vmatprep.subr.bf16.mxu0 %v7936
        %11316 = vmatpush1.bf16.msra.mxu0 %v7935
        %11317 = vmatprep.subr.bf16.mxu0 %v7938
        %11318 = vmatpush1.bf16.msra.mxu0 %v7937
        %11319 = vmatprep.mubr.bf16.mxu0 %v2308
        %11320 = vmatmul.mubr.bf16.gmra.mrb[0].mxu0 %v2307
        %v11321 = vpop.f32.mrb[0].mxu0
        %v11322 = vadd.f32 %v11281, %v11321
        %v11323 = vpop.f32.mrb[0].mxu0
        %v11324 = vadd.f32 %v11283, %v11323
        %v11325 = vpop.f32.mrb[0].mxu0
        %v11326 = vpop.f32.mrb[0].mxu0
        %11327 = vdwg.mxu0
        %11328 = vmatprep.subr.bf16.mxu0 %v7940
        %11329 = vmatpush1.bf16.msra.mxu0 %v7939
        %11330 = vmatprep.subr.bf16.mxu0 %v7942
        %11331 = vmatpush1.bf16.msra.mxu0 %v7941
        %11332 = vmatprep.subr.bf16.mxu0 %v7944
        %11333 = vmatpush1.bf16.msra.mxu0 %v7943
        %11334 = vmatprep.subr.bf16.mxu0 %v7946
        %11335 = vmatpush1.bf16.msra.mxu0 %v7945
        %11336 = vmatprep.subr.bf16.mxu0 %v7948
        %11337 = vmatpush1.bf16.msra.mxu0 %v7947
        %11338 = vmatprep.subr.bf16.mxu0 %v7950
        %11339 = vmatpush1.bf16.msra.mxu0 %v7949
        %11340 = vmatprep.subr.bf16.mxu0 %v7952
        %11341 = vmatpush1.bf16.msra.mxu0 %v7951
        %11342 = vmatprep.subr.bf16.mxu0 %v7954
        %11343 = vmatpush1.bf16.msra.mxu0 %v7953
        %11344 = vmatprep.subr.bf16.mxu0 %v7956
        %11345 = vmatpush1.bf16.msra.mxu0 %v7955
        %11346 = vmatprep.subr.bf16.mxu0 %v7958
        %11347 = vmatpush1.bf16.msra.mxu0 %v7957
        %11348 = vmatprep.subr.bf16.mxu0 %v7960
        %11349 = vmatpush1.bf16.msra.mxu0 %v7959
        %11350 = vmatprep.subr.bf16.mxu0 %v7962
        %11351 = vmatpush1.bf16.msra.mxu0 %v7961
        %11352 = vmatprep.subr.bf16.mxu0 %v7964
        %11353 = vmatpush1.bf16.msra.mxu0 %v7963
        %11354 = vmatprep.subr.bf16.mxu0 %v7966
        %11355 = vmatpush1.bf16.msra.mxu0 %v7965
        %11356 = vmatprep.subr.bf16.mxu0 %v7968
        %11357 = vmatpush1.bf16.msra.mxu0 %v7967
        %11358 = vmatprep.subr.bf16.mxu0 %v7970
        %11359 = vmatpush1.bf16.msra.mxu0 %v7969
        %11360 = vmatprep.mubr.bf16.mxu0 %v2310
        %11361 = vmatmul.mubr.bf16.gmra.mrb[0].mxu0 %v2309
        %v11362 = vpop.f32.mrb[0].mxu0
        %v11363 = vadd.f32 %v11322, %v11362
        %v11364 = vpop.f32.mrb[0].mxu0
        %v11365 = vadd.f32 %v11324, %v11364
        %v11366 = vpop.f32.mrb[0].mxu0
        %v11367 = vpop.f32.mrb[0].mxu0
        %11368 = vdwg.mxu0
        %11369 = vmatprep.subr.bf16.mxu0 %v7972
        %11370 = vmatpush1.bf16.msra.mxu0 %v7971
        %11371 = vmatprep.subr.bf16.mxu0 %v7974
        %11372 = vmatpush1.bf16.msra.mxu0 %v7973
        %11373 = vmatprep.subr.bf16.mxu0 %v7976
        %11374 = vmatpush1.bf16.msra.mxu0 %v7975
        %11375 = vmatprep.subr.bf16.mxu0 %v7978
        %11376 = vmatpush1.bf16.msra.mxu0 %v7977
        %11377 = vmatprep.subr.bf16.mxu0 %v7980
        %11378 = vmatpush1.bf16.msra.mxu0 %v7979
        %11379 = vmatprep.subr.bf16.mxu0 %v7982
        %11380 = vmatpush1.bf16.msra.mxu0 %v7981
        %11381 = vmatprep.subr.bf16.mxu0 %v7984
        %11382 = vmatpush1.bf16.msra.mxu0 %v7983
        %11383 = vmatprep.subr.bf16.mxu0 %v7986
        %11384 = vmatpush1.bf16.msra.mxu0 %v7985
        %11385 = vmatprep.subr.bf16.mxu0 %v7988
        %11386 = vmatpush1.bf16.msra.mxu0 %v7987
        %11387 = vmatprep.subr.bf16.mxu0 %v7990
        %11388 = vmatpush1.bf16.msra.mxu0 %v7989
        %11389 = vmatprep.subr.bf16.mxu0 %v7992
        %11390 = vmatpush1.bf16.msra.mxu0 %v7991
        %11391 = vmatprep.subr.bf16.mxu0 %v7994
        %11392 = vmatpush1.bf16.msra.mxu0 %v7993
        %11393 = vmatprep.subr.bf16.mxu0 %v7996
        %11394 = vmatpush1.bf16.msra.mxu0 %v7995
        %11395 = vmatprep.subr.bf16.mxu0 %v7998
        %11396 = vmatpush1.bf16.msra.mxu0 %v7997
        %11397 = vmatprep.subr.bf16.mxu0 %v8000
        %11398 = vmatpush1.bf16.msra.mxu0 %v7999
        %11399 = vmatprep.subr.bf16.mxu0 %v8002
        %11400 = vmatpush1.bf16.msra.mxu0 %v8001
        %11401 = vmatprep.mubr.bf16.mxu0 %v2312
        %11402 = vmatmul.mubr.bf16.gmra.mrb[0].mxu0 %v2311
        %v11403 = vpop.f32.mrb[0].mxu0
        %v11404 = vadd.f32 %v11363, %v11403
        %v11405 = vpop.f32.mrb[0].mxu0
        %v11406 = vadd.f32 %v11365, %v11405
        %v11407 = vpop.f32.mrb[0].mxu0
        %v11408 = vpop.f32.mrb[0].mxu0
        %11409 = vdwg.mxu0
        %11410 = vmatprep.subr.bf16.mxu0 %v8004
        %11411 = vmatpush1.bf16.msra.mxu0 %v8003
        %11412 = vmatprep.subr.bf16.mxu0 %v8006
        %11413 = vmatpush1.bf16.msra.mxu0 %v8005
        %11414 = vmatprep.subr.bf16.mxu0 %v8008
        %11415 = vmatpush1.bf16.msra.mxu0 %v8007
        %11416 = vmatprep.subr.bf16.mxu0 %v8010
        %11417 = vmatpush1.bf16.msra.mxu0 %v8009
        %11418 = vmatprep.subr.bf16.mxu0 %v8012
        %11419 = vmatpush1.bf16.msra.mxu0 %v8011
        %11420 = vmatprep.subr.bf16.mxu0 %v8014
        %11421 = vmatpush1.bf16.msra.mxu0 %v8013
        %11422 = vmatprep.subr.bf16.mxu0 %v8016
        %11423 = vmatpush1.bf16.msra.mxu0 %v8015
        %11424 = vmatprep.subr.bf16.mxu0 %v8018
        %11425 = vmatpush1.bf16.msra.mxu0 %v8017
        %11426 = vmatprep.subr.bf16.mxu0 %v8020
        %11427 = vmatpush1.bf16.msra.mxu0 %v8019
        %11428 = vmatprep.subr.bf16.mxu0 %v8022
        %11429 = vmatpush1.bf16.msra.mxu0 %v8021
        %11430 = vmatprep.subr.bf16.mxu0 %v8024
        %11431 = vmatpush1.bf16.msra.mxu0 %v8023
        %11432 = vmatprep.subr.bf16.mxu0 %v8026
        %11433 = vmatpush1.bf16.msra.mxu0 %v8025
        %11434 = vmatprep.subr.bf16.mxu0 %v8028
        %11435 = vmatpush1.bf16.msra.mxu0 %v8027
        %11436 = vmatprep.subr.bf16.mxu0 %v8030
        %11437 = vmatpush1.bf16.msra.mxu0 %v8029
        %11438 = vmatprep.subr.bf16.mxu0 %v8032
        %11439 = vmatpush1.bf16.msra.mxu0 %v8031
        %11440 = vmatprep.subr.bf16.mxu0 %v8034
        %11441 = vmatpush1.bf16.msra.mxu0 %v8033
        %11442 = vmatprep.mubr.bf16.mxu0 %v2314
        %11443 = vmatmul.mubr.bf16.gmra.mrb[0].mxu0 %v2313
        %v11444 = vpop.f32.mrb[0].mxu0
        %v11445 = vadd.f32 %v11404, %v11444
        %v11446 = vpop.f32.mrb[0].mxu0
        %v11447 = vadd.f32 %v11406, %v11446
        %v11448 = vpop.f32.mrb[0].mxu0
        %v11449 = vpop.f32.mrb[0].mxu0
        %11450 = vdwg.mxu0
        %11451 = vmatprep.subr.bf16.mxu0 %v8036
        %11452 = vmatpush1.bf16.msra.mxu0 %v8035
        %11453 = vmatprep.subr.bf16.mxu0 %v8038
        %11454 = vmatpush1.bf16.msra.mxu0 %v8037
        %11455 = vmatprep.subr.bf16.mxu0 %v8040
        %11456 = vmatpush1.bf16.msra.mxu0 %v8039
        %11457 = vmatprep.subr.bf16.mxu0 %v8042
        %11458 = vmatpush1.bf16.msra.mxu0 %v8041
        %11459 = vmatprep.subr.bf16.mxu0 %v8044
        %11460 = vmatpush1.bf16.msra.mxu0 %v8043
        %11461 = vmatprep.subr.bf16.mxu0 %v8046
        %11462 = vmatpush1.bf16.msra.mxu0 %v8045
        %11463 = vmatprep.subr.bf16.mxu0 %v8048
        %11464 = vmatpush1.bf16.msra.mxu0 %v8047
        %11465 = vmatprep.subr.bf16.mxu0 %v8050
        %11466 = vmatpush1.bf16.msra.mxu0 %v8049
        %11467 = vmatprep.subr.bf16.mxu0 %v8052
        %11468 = vmatpush1.bf16.msra.mxu0 %v8051
        %11469 = vmatprep.subr.bf16.mxu0 %v8054
        %11470 = vmatpush1.bf16.msra.mxu0 %v8053
        %11471 = vmatprep.subr.bf16.mxu0 %v8056
        %11472 = vmatpush1.bf16.msra.mxu0 %v8055
        %11473 = vmatprep.subr.bf16.mxu0 %v8058
        %11474 = vmatpush1.bf16.msra.mxu0 %v8057
        %11475 = vmatprep.subr.bf16.mxu0 %v8060
        %11476 = vmatpush1.bf16.msra.mxu0 %v8059
        %11477 = vmatprep.subr.bf16.mxu0 %v8062
        %11478 = vmatpush1.bf16.msra.mxu0 %v8061
        %11479 = vmatprep.subr.bf16.mxu0 %v8064
        %11480 = vmatpush1.bf16.msra.mxu0 %v8063
        %11481 = vmatprep.subr.bf16.mxu0 %v8066
        %11482 = vmatpush1.bf16.msra.mxu0 %v8065
        %11483 = vmatprep.mubr.bf16.mxu0 %v2316
        %11484 = vmatmul.mubr.bf16.gmra.mrb[0].mxu0 %v2315
        %v11485 = vpop.f32.mrb[0].mxu0
        %v11486 = vadd.f32 %v11445, %v11485
        %v11487 = vpop.f32.mrb[0].mxu0
        %v11488 = vadd.f32 %v11447, %v11487
        %v11489 = vpop.f32.mrb[0].mxu0
        %v11490 = vpop.f32.mrb[0].mxu0
        %11491 = vdwg.mxu0
        %11492 = vmatprep.subr.bf16.mxu0 %v8068
        %11493 = vmatpush1.bf16.msra.mxu0 %v8067
        %11494 = vmatprep.subr.bf16.mxu0 %v8070
        %11495 = vmatpush1.bf16.msra.mxu0 %v8069
        %11496 = vmatprep.subr.bf16.mxu0 %v8072
        %11497 = vmatpush1.bf16.msra.mxu0 %v8071
        %11498 = vmatprep.subr.bf16.mxu0 %v8074
        %11499 = vmatpush1.bf16.msra.mxu0 %v8073
        %11500 = vmatprep.subr.bf16.mxu0 %v8076
        %11501 = vmatpush1.bf16.msra.mxu0 %v8075
        %11502 = vmatprep.subr.bf16.mxu0 %v8078
        %11503 = vmatpush1.bf16.msra.mxu0 %v8077
        %11504 = vmatprep.subr.bf16.mxu0 %v8080
        %11505 = vmatpush1.bf16.msra.mxu0 %v8079
        %11506 = vmatprep.subr.bf16.mxu0 %v8082
        %11507 = vmatpush1.bf16.msra.mxu0 %v8081
        %11508 = vmatprep.subr.bf16.mxu0 %v8084
        %11509 = vmatpush1.bf16.msra.mxu0 %v8083
        %11510 = vmatprep.subr.bf16.mxu0 %v8086
        %11511 = vmatpush1.bf16.msra.mxu0 %v8085
        %11512 = vmatprep.subr.bf16.mxu0 %v8088
        %11513 = vmatpush1.bf16.msra.mxu0 %v8087
        %11514 = vmatprep.subr.bf16.mxu0 %v8090
        %11515 = vmatpush1.bf16.msra.mxu0 %v8089
        %11516 = vmatprep.subr.bf16.mxu0 %v8092
        %11517 = vmatpush1.bf16.msra.mxu0 %v8091
        %11518 = vmatprep.subr.bf16.mxu0 %v8094
        %11519 = vmatpush1.bf16.msra.mxu0 %v8093
        %11520 = vmatprep.subr.bf16.mxu0 %v8096
        %11521 = vmatpush1.bf16.msra.mxu0 %v8095
        %11522 = vmatprep.subr.bf16.mxu0 %v8098
        %11523 = vmatpush1.bf16.msra.mxu0 %v8097
        %11524 = vmatprep.mubr.bf16.mxu0 %v2318
        %11525 = vmatmul.mubr.bf16.gmra.mrb[0].mxu0 %v2317
        %v11526 = vpop.f32.mrb[0].mxu0
        %v11527 = vadd.f32 %v11486, %v11526
        %v11528 = vpop.f32.mrb[0].mxu0
        %v11529 = vadd.f32 %v11488, %v11528
        %v11530 = vpop.f32.mrb[0].mxu0
        %v11531 = vpop.f32.mrb[0].mxu0
        %11532 = vdwg.mxu0
        %11533 = vmatprep.subr.bf16.mxu0 %v8100
        %11534 = vmatpush1.bf16.msra.mxu0 %v8099
        %11535 = vmatprep.subr.bf16.mxu0 %v8102
        %11536 = vmatpush1.bf16.msra.mxu0 %v8101
        %11537 = vmatprep.subr.bf16.mxu0 %v8104
        %11538 = vmatpush1.bf16.msra.mxu0 %v8103
        %11539 = vmatprep.subr.bf16.mxu0 %v8106
        %11540 = vmatpush1.bf16.msra.mxu0 %v8105
        %11541 = vmatprep.subr.bf16.mxu0 %v8108
        %11542 = vmatpush1.bf16.msra.mxu0 %v8107
        %11543 = vmatprep.subr.bf16.mxu0 %v8110
        %11544 = vmatpush1.bf16.msra.mxu0 %v8109
        %11545 = vmatprep.subr.bf16.mxu0 %v8112
        %11546 = vmatpush1.bf16.msra.mxu0 %v8111
        %11547 = vmatprep.subr.bf16.mxu0 %v8114
        %11548 = vmatpush1.bf16.msra.mxu0 %v8113
        %11549 = vmatprep.subr.bf16.mxu0 %v8116
        %11550 = vmatpush1.bf16.msra.mxu0 %v8115
        %11551 = vmatprep.subr.bf16.mxu0 %v8118
        %11552 = vmatpush1.bf16.msra.mxu0 %v8117
        %11553 = vmatprep.subr.bf16.mxu0 %v8120
        %11554 = vmatpush1.bf16.msra.mxu0 %v8119
        %11555 = vmatprep.subr.bf16.mxu0 %v8122
        %11556 = vmatpush1.bf16.msra.mxu0 %v8121
        %11557 = vmatprep.subr.bf16.mxu0 %v8124
        %11558 = vmatpush1.bf16.msra.mxu0 %v8123
        %11559 = vmatprep.subr.bf16.mxu0 %v8126
        %11560 = vmatpush1.bf16.msra.mxu0 %v8125
        %11561 = vmatprep.subr.bf16.mxu0 %v8128
        %11562 = vmatpush1.bf16.msra.mxu0 %v8127
        %11563 = vmatprep.subr.bf16.mxu0 %v8130
        %11564 = vmatpush1.bf16.msra.mxu0 %v8129
        %11565 = vmatprep.mubr.bf16.mxu0 %v2320
        %11566 = vmatmul.mubr.bf16.gmra.mrb[0].mxu0 %v2319
        %v11567 = vpop.f32.mrb[0].mxu0
        %v11568 = vadd.f32 %v11527, %v11567
        %v11569 = vpop.f32.mrb[0].mxu0
        %v11570 = vadd.f32 %v11529, %v11569
        %v11571 = vpop.f32.mrb[0].mxu0
        %v11572 = vpop.f32.mrb[0].mxu0
        %11573 = vdwg.mxu0
        %11574 = vmatprep.subr.bf16.mxu0 %v8132
        %11575 = vmatpush1.bf16.msra.mxu0 %v8131
        %11576 = vmatprep.subr.bf16.mxu0 %v8134
        %11577 = vmatpush1.bf16.msra.mxu0 %v8133
        %11578 = vmatprep.subr.bf16.mxu0 %v8136
        %11579 = vmatpush1.bf16.msra.mxu0 %v8135
        %11580 = vmatprep.subr.bf16.mxu0 %v8138
        %11581 = vmatpush1.bf16.msra.mxu0 %v8137
        %11582 = vmatprep.subr.bf16.mxu0 %v8140
        %11583 = vmatpush1.bf16.msra.mxu0 %v8139
        %11584 = vmatprep.subr.bf16.mxu0 %v8142
        %11585 = vmatpush1.bf16.msra.mxu0 %v8141
        %11586 = vmatprep.subr.bf16.mxu0 %v8144
        %11587 = vmatpush1.bf16.msra.mxu0 %v8143
        %11588 = vmatprep.subr.bf16.mxu0 %v8146
        %11589 = vmatpush1.bf16.msra.mxu0 %v8145
        %11590 = vmatprep.subr.bf16.mxu0 %v8148
        %11591 = vmatpush1.bf16.msra.mxu0 %v8147
        %11592 = vmatprep.subr.bf16.mxu0 %v8150
        %11593 = vmatpush1.bf16.msra.mxu0 %v8149
        %11594 = vmatprep.subr.bf16.mxu0 %v8152
        %11595 = vmatpush1.bf16.msra.mxu0 %v8151
        %11596 = vmatprep.subr.bf16.mxu0 %v8154
        %11597 = vmatpush1.bf16.msra.mxu0 %v8153
        %11598 = vmatprep.subr.bf16.mxu0 %v8156
        %11599 = vmatpush1.bf16.msra.mxu0 %v8155
        %11600 = vmatprep.subr.bf16.mxu0 %v8158
        %11601 = vmatpush1.bf16.msra.mxu0 %v8157
        %11602 = vmatprep.subr.bf16.mxu0 %v8160
        %11603 = vmatpush1.bf16.msra.mxu0 %v8159
        %11604 = vmatprep.subr.bf16.mxu0 %v8162
        %11605 = vmatpush1.bf16.msra.mxu0 %v8161
        %11606 = vmatprep.mubr.bf16.mxu0 %v2322
        %11607 = vmatmul.mubr.bf16.gmra.mrb[0].mxu0 %v2321
        %v11608 = vpop.f32.mrb[0].mxu0
        %v11609 = vadd.f32 %v11568, %v11608
        %v11610 = vpop.f32.mrb[0].mxu0
        %v11611 = vadd.f32 %v11570, %v11610
        %v11612 = vpop.f32.mrb[0].mxu0
        %v11613 = vpop.f32.mrb[0].mxu0
        %11614 = vdwg.mxu0
        %11615 = vmatprep.subr.bf16.mxu0 %v8164
        %11616 = vmatpush1.bf16.msra.mxu0 %v8163
        %11617 = vmatprep.subr.bf16.mxu0 %v8166
        %11618 = vmatpush1.bf16.msra.mxu0 %v8165
        %11619 = vmatprep.subr.bf16.mxu0 %v8168
        %11620 = vmatpush1.bf16.msra.mxu0 %v8167
        %11621 = vmatprep.subr.bf16.mxu0 %v8170
        %11622 = vmatpush1.bf16.msra.mxu0 %v8169
        %11623 = vmatprep.subr.bf16.mxu0 %v8172
        %11624 = vmatpush1.bf16.msra.mxu0 %v8171
        %11625 = vmatprep.subr.bf16.mxu0 %v8174
        %11626 = vmatpush1.bf16.msra.mxu0 %v8173
        %11627 = vmatprep.subr.bf16.mxu0 %v8176
        %11628 = vmatpush1.bf16.msra.mxu0 %v8175
        %11629 = vmatprep.subr.bf16.mxu0 %v8178
        %11630 = vmatpush1.bf16.msra.mxu0 %v8177
        %11631 = vmatprep.subr.bf16.mxu0 %v8180
        %11632 = vmatpush1.bf16.msra.mxu0 %v8179
        %11633 = vmatprep.subr.bf16.mxu0 %v8182
        %11634 = vmatpush1.bf16.msra.mxu0 %v8181
        %11635 = vmatprep.subr.bf16.mxu0 %v8184
        %11636 = vmatpush1.bf16.msra.mxu0 %v8183
        %11637 = vmatprep.subr.bf16.mxu0 %v8186
        %11638 = vmatpush1.bf16.msra.mxu0 %v8185
        %11639 = vmatprep.subr.bf16.mxu0 %v8188
        %11640 = vmatpush1.bf16.msra.mxu0 %v8187
        %11641 = vmatprep.subr.bf16.mxu0 %v8190
        %11642 = vmatpush1.bf16.msra.mxu0 %v8189
        %11643 = vmatprep.subr.bf16.mxu0 %v8192
        %11644 = vmatpush1.bf16.msra.mxu0 %v8191
        %11645 = vmatprep.subr.bf16.mxu0 %v8194
        %11646 = vmatpush1.bf16.msra.mxu0 %v8193
        %11647 = vmatprep.mubr.bf16.mxu0 %v2324
        %11648 = vmatmul.mubr.bf16.gmra.mrb[0].mxu0 %v2323
        %v11649 = vpop.f32.mrb[0].mxu0
        %v11650 = vadd.f32 %v11609, %v11649
        %v11651 = vpop.f32.mrb[0].mxu0
        %v11652 = vadd.f32 %v11611, %v11651
        %v11653 = vpop.f32.mrb[0].mxu0
        %v11654 = vpop.f32.mrb[0].mxu0
        %11655 = vdwg.mxu0
        %11656 = vmatprep.subr.bf16.mxu0 %v8196
        %11657 = vmatpush1.bf16.msra.mxu0 %v8195
        %11658 = vmatprep.subr.bf16.mxu0 %v8198
        %11659 = vmatpush1.bf16.msra.mxu0 %v8197
        %11660 = vmatprep.subr.bf16.mxu0 %v8200
        %11661 = vmatpush1.bf16.msra.mxu0 %v8199
        %11662 = vmatprep.subr.bf16.mxu0 %v8202
        %11663 = vmatpush1.bf16.msra.mxu0 %v8201
        %11664 = vmatprep.subr.bf16.mxu0 %v8204
        %11665 = vmatpush1.bf16.msra.mxu0 %v8203
        %11666 = vmatprep.subr.bf16.mxu0 %v8206
        %11667 = vmatpush1.bf16.msra.mxu0 %v8205
        %11668 = vmatprep.subr.bf16.mxu0 %v8208
        %11669 = vmatpush1.bf16.msra.mxu0 %v8207
        %11670 = vmatprep.subr.bf16.mxu0 %v8210
        %11671 = vmatpush1.bf16.msra.mxu0 %v8209
        %11672 = vmatprep.subr.bf16.mxu0 %v8212
        %11673 = vmatpush1.bf16.msra.mxu0 %v8211
        %11674 = vmatprep.subr.bf16.mxu0 %v8214
        %11675 = vmatpush1.bf16.msra.mxu0 %v8213
        %11676 = vmatprep.subr.bf16.mxu0 %v8216
        %11677 = vmatpush1.bf16.msra.mxu0 %v8215
        %11678 = vmatprep.subr.bf16.mxu0 %v8218
        %11679 = vmatpush1.bf16.msra.mxu0 %v8217
        %11680 = vmatprep.subr.bf16.mxu0 %v8220
        %11681 = vmatpush1.bf16.msra.mxu0 %v8219
        %11682 = vmatprep.subr.bf16.mxu0 %v8222
        %11683 = vmatpush1.bf16.msra.mxu0 %v8221
        %11684 = vmatprep.subr.bf16.mxu0 %v8224
        %11685 = vmatpush1.bf16.msra.mxu0 %v8223
        %11686 = vmatprep.subr.bf16.mxu0 %v8226
        %11687 = vmatpush1.bf16.msra.mxu0 %v8225
        %11688 = vmatprep.mubr.bf16.mxu0 %v2326
        %11689 = vmatmul.mubr.bf16.gmra.mrb[0].mxu0 %v2325
        %v11690 = vpop.f32.mrb[0].mxu0
        %v11691 = vadd.f32 %v11650, %v11690
        %v11692 = vpop.f32.mrb[0].mxu0
        %v11693 = vadd.f32 %v11652, %v11692
        %v11694 = vpop.f32.mrb[0].mxu0
        %v11695 = vpop.f32.mrb[0].mxu0
        %11696 = vdwg.mxu0
        %11697 = vmatprep.subr.bf16.mxu0 %v8228
        %11698 = vmatpush1.bf16.msra.mxu0 %v8227
        %11699 = vmatprep.subr.bf16.mxu0 %v8230
        %11700 = vmatpush1.bf16.msra.mxu0 %v8229
        %11701 = vmatprep.subr.bf16.mxu0 %v8232
        %11702 = vmatpush1.bf16.msra.mxu0 %v8231
        %11703 = vmatprep.subr.bf16.mxu0 %v8234
        %11704 = vmatpush1.bf16.msra.mxu0 %v8233
        %11705 = vmatprep.subr.bf16.mxu0 %v8236
        %11706 = vmatpush1.bf16.msra.mxu0 %v8235
        %11707 = vmatprep.subr.bf16.mxu0 %v8238
        %11708 = vmatpush1.bf16.msra.mxu0 %v8237
        %11709 = vmatprep.subr.bf16.mxu0 %v8240
        %11710 = vmatpush1.bf16.msra.mxu0 %v8239
        %11711 = vmatprep.subr.bf16.mxu0 %v8242
        %11712 = vmatpush1.bf16.msra.mxu0 %v8241
        %11713 = vmatprep.subr.bf16.mxu0 %v8244
        %11714 = vmatpush1.bf16.msra.mxu0 %v8243
        %11715 = vmatprep.subr.bf16.mxu0 %v8246
        %11716 = vmatpush1.bf16.msra.mxu0 %v8245
        %11717 = vmatprep.subr.bf16.mxu0 %v8248
        %11718 = vmatpush1.bf16.msra.mxu0 %v8247
        %11719 = vmatprep.subr.bf16.mxu0 %v8250
        %11720 = vmatpush1.bf16.msra.mxu0 %v8249
        %11721 = vmatprep.subr.bf16.mxu0 %v8252
        %11722 = vmatpush1.bf16.msra.mxu0 %v8251
        %11723 = vmatprep.subr.bf16.mxu0 %v8254
        %11724 = vmatpush1.bf16.msra.mxu0 %v8253
        %11725 = vmatprep.subr.bf16.mxu0 %v8256
        %11726 = vmatpush1.bf16.msra.mxu0 %v8255
        %11727 = vmatprep.subr.bf16.mxu0 %v8258
        %11728 = vmatpush1.bf16.msra.mxu0 %v8257
        %11729 = vmatprep.mubr.bf16.mxu0 %v2328
        %11730 = vmatmul.mubr.bf16.gmra.mrb[0].mxu0 %v2327
        %v11731 = vpop.f32.mrb[0].mxu0
        %v11732 = vadd.f32 %v11691, %v11731
        %v11733 = vpop.f32.mrb[0].mxu0
        %v11734 = vadd.f32 %v11693, %v11733
        %v11735 = vpop.f32.mrb[0].mxu0
        %v11736 = vpop.f32.mrb[0].mxu0
        %11737 = vdwg.mxu0
        %11738 = vmatprep.subr.bf16.mxu0 %v8260
        %11739 = vmatpush1.bf16.msra.mxu0 %v8259
        %11740 = vmatprep.subr.bf16.mxu0 %v8262
        %11741 = vmatpush1.bf16.msra.mxu0 %v8261
        %11742 = vmatprep.subr.bf16.mxu0 %v8264
        %11743 = vmatpush1.bf16.msra.mxu0 %v8263
        %11744 = vmatprep.subr.bf16.mxu0 %v8266
        %11745 = vmatpush1.bf16.msra.mxu0 %v8265
        %11746 = vmatprep.subr.bf16.mxu0 %v8268
        %11747 = vmatpush1.bf16.msra.mxu0 %v8267
        %11748 = vmatprep.subr.bf16.mxu0 %v8270
        %11749 = vmatpush1.bf16.msra.mxu0 %v8269
        %11750 = vmatprep.subr.bf16.mxu0 %v8272
        %11751 = vmatpush1.bf16.msra.mxu0 %v8271
        %11752 = vmatprep.subr.bf16.mxu0 %v8274
        %11753 = vmatpush1.bf16.msra.mxu0 %v8273
        %11754 = vmatprep.subr.bf16.mxu0 %v8276
        %11755 = vmatpush1.bf16.msra.mxu0 %v8275
        %11756 = vmatprep.subr.bf16.mxu0 %v8278
        %11757 = vmatpush1.bf16.msra.mxu0 %v8277
        %11758 = vmatprep.subr.bf16.mxu0 %v8280
        %11759 = vmatpush1.bf16.msra.mxu0 %v8279
        %11760 = vmatprep.subr.bf16.mxu0 %v8282
        %11761 = vmatpush1.bf16.msra.mxu0 %v8281
        %11762 = vmatprep.subr.bf16.mxu0 %v8284
        %11763 = vmatpush1.bf16.msra.mxu0 %v8283
        %11764 = vmatprep.subr.bf16.mxu0 %v8286
        %11765 = vmatpush1.bf16.msra.mxu0 %v8285
        %11766 = vmatprep.subr.bf16.mxu0 %v8288
        %11767 = vmatpush1.bf16.msra.mxu0 %v8287
        %11768 = vmatprep.subr.bf16.mxu0 %v8290
        %11769 = vmatpush1.bf16.msra.mxu0 %v8289
        %11770 = vmatprep.mubr.bf16.mxu0 %v2330
        %11771 = vmatmul.mubr.bf16.gmra.mrb[0].mxu0 %v2329
        %v11772 = vpop.f32.mrb[0].mxu0
        %v11773 = vadd.f32 %v11732, %v11772
        %v11774 = vpop.f32.mrb[0].mxu0
        %v11775 = vadd.f32 %v11734, %v11774
        %v11776 = vpop.f32.mrb[0].mxu0
        %v11777 = vpop.f32.mrb[0].mxu0
        %11778 = vdwg.mxu0
        %11779 = vmatprep.subr.bf16.mxu0 %v8292
        %11780 = vmatpush1.bf16.msra.mxu0 %v8291
        %11781 = vmatprep.subr.bf16.mxu0 %v8294
        %11782 = vmatpush1.bf16.msra.mxu0 %v8293
        %11783 = vmatprep.subr.bf16.mxu0 %v8296
        %11784 = vmatpush1.bf16.msra.mxu0 %v8295
        %11785 = vmatprep.subr.bf16.mxu0 %v8298
        %11786 = vmatpush1.bf16.msra.mxu0 %v8297
        %11787 = vmatprep.subr.bf16.mxu0 %v8300
        %11788 = vmatpush1.bf16.msra.mxu0 %v8299
        %11789 = vmatprep.subr.bf16.mxu0 %v8302
        %11790 = vmatpush1.bf16.msra.mxu0 %v8301
        %11791 = vmatprep.subr.bf16.mxu0 %v8304
        %11792 = vmatpush1.bf16.msra.mxu0 %v8303
        %11793 = vmatprep.subr.bf16.mxu0 %v8306
        %11794 = vmatpush1.bf16.msra.mxu0 %v8305
        %11795 = vmatprep.subr.bf16.mxu0 %v8308
        %11796 = vmatpush1.bf16.msra.mxu0 %v8307
        %11797 = vmatprep.subr.bf16.mxu0 %v8310
        %11798 = vmatpush1.bf16.msra.mxu0 %v8309
        %11799 = vmatprep.subr.bf16.mxu0 %v8312
        %11800 = vmatpush1.bf16.msra.mxu0 %v8311
        %11801 = vmatprep.subr.bf16.mxu0 %v8314
        %11802 = vmatpush1.bf16.msra.mxu0 %v8313
        %11803 = vmatprep.subr.bf16.mxu0 %v8316
        %11804 = vmatpush1.bf16.msra.mxu0 %v8315
        %11805 = vmatprep.subr.bf16.mxu0 %v8318
        %11806 = vmatpush1.bf16.msra.mxu0 %v8317
        %11807 = vmatprep.subr.bf16.mxu0 %v8320
        %11808 = vmatpush1.bf16.msra.mxu0 %v8319
        %11809 = vmatprep.subr.bf16.mxu0 %v8322
        %11810 = vmatpush1.bf16.msra.mxu0 %v8321
        %11811 = vmatprep.mubr.bf16.mxu0 %v2332
        %11812 = vmatmul.mubr.bf16.gmra.mrb[0].mxu0 %v2331
        %v11813 = vpop.f32.mrb[0].mxu0
        %v11814 = vadd.f32 %v11773, %v11813
        %v11815 = vpop.f32.mrb[0].mxu0
        %v11816 = vadd.f32 %v11775, %v11815
        %v11817 = vpop.f32.mrb[0].mxu0
        %v11818 = vpop.f32.mrb[0].mxu0
        %11819 = vdwg.mxu0
        %11820 = vmatprep.subr.bf16.mxu0 %v8324
        %11821 = vmatpush1.bf16.msra.mxu0 %v8323
        %11822 = vmatprep.subr.bf16.mxu0 %v8326
        %11823 = vmatpush1.bf16.msra.mxu0 %v8325
        %11824 = vmatprep.subr.bf16.mxu0 %v8328
        %11825 = vmatpush1.bf16.msra.mxu0 %v8327
        %11826 = vmatprep.subr.bf16.mxu0 %v8330
        %11827 = vmatpush1.bf16.msra.mxu0 %v8329
        %11828 = vmatprep.subr.bf16.mxu0 %v8332
        %11829 = vmatpush1.bf16.msra.mxu0 %v8331
        %11830 = vmatprep.subr.bf16.mxu0 %v8334
        %11831 = vmatpush1.bf16.msra.mxu0 %v8333
        %11832 = vmatprep.subr.bf16.mxu0 %v8336
        %11833 = vmatpush1.bf16.msra.mxu0 %v8335
        %11834 = vmatprep.subr.bf16.mxu0 %v8338
        %11835 = vmatpush1.bf16.msra.mxu0 %v8337
        %11836 = vmatprep.subr.bf16.mxu0 %v8340
        %11837 = vmatpush1.bf16.msra.mxu0 %v8339
        %11838 = vmatprep.subr.bf16.mxu0 %v8342
        %11839 = vmatpush1.bf16.msra.mxu0 %v8341
        %11840 = vmatprep.subr.bf16.mxu0 %v8344
        %11841 = vmatpush1.bf16.msra.mxu0 %v8343
        %11842 = vmatprep.subr.bf16.mxu0 %v8346
        %11843 = vmatpush1.bf16.msra.mxu0 %v8345
        %11844 = vmatprep.subr.bf16.mxu0 %v8348
        %11845 = vmatpush1.bf16.msra.mxu0 %v8347
        %11846 = vmatprep.subr.bf16.mxu0 %v8350
        %11847 = vmatpush1.bf16.msra.mxu0 %v8349
        %11848 = vmatprep.subr.bf16.mxu0 %v8352
        %11849 = vmatpush1.bf16.msra.mxu0 %v8351
        %11850 = vmatprep.subr.bf16.mxu0 %v8354
        %11851 = vmatpush1.bf16.msra.mxu0 %v8353
        %11852 = vmatprep.mubr.bf16.mxu0 %v2334
        %11853 = vmatmul.mubr.bf16.gmra.mrb[0].mxu0 %v2333
        %v11854 = vpop.f32.mrb[0].mxu0
        %v11855 = vadd.f32 %v11814, %v11854
        %v11856 = vpop.f32.mrb[0].mxu0
        %v11857 = vadd.f32 %v11816, %v11856
        %v11858 = vpop.f32.mrb[0].mxu0
        %v11859 = vpop.f32.mrb[0].mxu0
        %11860 = vdwg.mxu0
        %11861 = vmatprep.subr.bf16.mxu0 %v8356
        %11862 = vmatpush1.bf16.msra.mxu0 %v8355
        %11863 = vmatprep.subr.bf16.mxu0 %v8358
        %11864 = vmatpush1.bf16.msra.mxu0 %v8357
        %11865 = vmatprep.subr.bf16.mxu0 %v8360
        %11866 = vmatpush1.bf16.msra.mxu0 %v8359
        %11867 = vmatprep.subr.bf16.mxu0 %v8362
        %11868 = vmatpush1.bf16.msra.mxu0 %v8361
        %11869 = vmatprep.subr.bf16.mxu0 %v8364
        %11870 = vmatpush1.bf16.msra.mxu0 %v8363
        %11871 = vmatprep.subr.bf16.mxu0 %v8366
        %11872 = vmatpush1.bf16.msra.mxu0 %v8365
        %11873 = vmatprep.subr.bf16.mxu0 %v8368
        %11874 = vmatpush1.bf16.msra.mxu0 %v8367
        %11875 = vmatprep.subr.bf16.mxu0 %v8370
        %11876 = vmatpush1.bf16.msra.mxu0 %v8369
        %11877 = vmatprep.subr.bf16.mxu0 %v8372
        %11878 = vmatpush1.bf16.msra.mxu0 %v8371
        %11879 = vmatprep.subr.bf16.mxu0 %v8374
        %11880 = vmatpush1.bf16.msra.mxu0 %v8373
        %11881 = vmatprep.subr.bf16.mxu0 %v8376
        %11882 = vmatpush1.bf16.msra.mxu0 %v8375
        %11883 = vmatprep.subr.bf16.mxu0 %v8378
        %11884 = vmatpush1.bf16.msra.mxu0 %v8377
        %11885 = vmatprep.subr.bf16.mxu0 %v8380
        %11886 = vmatpush1.bf16.msra.mxu0 %v8379
        %11887 = vmatprep.subr.bf16.mxu0 %v8382
        %11888 = vmatpush1.bf16.msra.mxu0 %v8381
        %11889 = vmatprep.subr.bf16.mxu0 %v8384
        %11890 = vmatpush1.bf16.msra.mxu0 %v8383
        %11891 = vmatprep.subr.bf16.mxu0 %v8386
        %11892 = vmatpush1.bf16.msra.mxu0 %v8385
        %11893 = vmatprep.mubr.bf16.mxu0 %v2336
        %11894 = vmatmul.mubr.bf16.gmra.mrb[0].mxu0 %v2335
        %v11895 = vpop.f32.mrb[0].mxu0
        %v11896 = vadd.f32 %v11855, %v11895
        %v11897 = vpop.f32.mrb[0].mxu0
        %v11898 = vadd.f32 %v11857, %v11897
        %v11899 = vpop.f32.mrb[0].mxu0
        %v11900 = vpop.f32.mrb[0].mxu0
        %11901 = vdwg.mxu0
        %11902 = vmatprep.subr.bf16.mxu0 %v8388
        %11903 = vmatpush1.bf16.msra.mxu0 %v8387
        %11904 = vmatprep.subr.bf16.mxu0 %v8390
        %11905 = vmatpush1.bf16.msra.mxu0 %v8389
        %11906 = vmatprep.subr.bf16.mxu0 %v8392
        %11907 = vmatpush1.bf16.msra.mxu0 %v8391
        %11908 = vmatprep.subr.bf16.mxu0 %v8394
        %11909 = vmatpush1.bf16.msra.mxu0 %v8393
        %11910 = vmatprep.subr.bf16.mxu0 %v8396
        %11911 = vmatpush1.bf16.msra.mxu0 %v8395
        %11912 = vmatprep.subr.bf16.mxu0 %v8398
        %11913 = vmatpush1.bf16.msra.mxu0 %v8397
        %11914 = vmatprep.subr.bf16.mxu0 %v8400
        %11915 = vmatpush1.bf16.msra.mxu0 %v8399
        %11916 = vmatprep.subr.bf16.mxu0 %v8402
        %11917 = vmatpush1.bf16.msra.mxu0 %v8401
        %11918 = vmatprep.subr.bf16.mxu0 %v8404
        %11919 = vmatpush1.bf16.msra.mxu0 %v8403
        %11920 = vmatprep.subr.bf16.mxu0 %v8406
        %11921 = vmatpush1.bf16.msra.mxu0 %v8405
        %11922 = vmatprep.subr.bf16.mxu0 %v8408
        %11923 = vmatpush1.bf16.msra.mxu0 %v8407
        %11924 = vmatprep.subr.bf16.mxu0 %v8410
        %11925 = vmatpush1.bf16.msra.mxu0 %v8409
        %11926 = vmatprep.subr.bf16.mxu0 %v8412
        %11927 = vmatpush1.bf16.msra.mxu0 %v8411
        %11928 = vmatprep.subr.bf16.mxu0 %v8414
        %11929 = vmatpush1.bf16.msra.mxu0 %v8413
        %11930 = vmatprep.subr.bf16.mxu0 %v8416
        %11931 = vmatpush1.bf16.msra.mxu0 %v8415
        %11932 = vmatprep.subr.bf16.mxu0 %v8418
        %11933 = vmatpush1.bf16.msra.mxu0 %v8417
        %11934 = vmatprep.mubr.bf16.mxu0 %v2338
        %11935 = vmatmul.mubr.bf16.gmra.mrb[0].mxu0 %v2337
        %v11936 = vpop.f32.mrb[0].mxu0
        %v11937 = vadd.f32 %v11896, %v11936
        %v11938 = vpop.f32.mrb[0].mxu0
        %v11939 = vadd.f32 %v11898, %v11938
        %v11940 = vpop.f32.mrb[0].mxu0
        %v11941 = vpop.f32.mrb[0].mxu0
        %11942 = vdwg.mxu0
        %11943 = vmatprep.subr.bf16.mxu0 %v8420
        %11944 = vmatpush1.bf16.msra.mxu0 %v8419
        %11945 = vmatprep.subr.bf16.mxu0 %v8422
        %11946 = vmatpush1.bf16.msra.mxu0 %v8421
        %11947 = vmatprep.subr.bf16.mxu0 %v8424
        %11948 = vmatpush1.bf16.msra.mxu0 %v8423
        %11949 = vmatprep.subr.bf16.mxu0 %v8426
        %11950 = vmatpush1.bf16.msra.mxu0 %v8425
        %11951 = vmatprep.subr.bf16.mxu0 %v8428
        %11952 = vmatpush1.bf16.msra.mxu0 %v8427
        %11953 = vmatprep.subr.bf16.mxu0 %v8430
        %11954 = vmatpush1.bf16.msra.mxu0 %v8429
        %11955 = vmatprep.subr.bf16.mxu0 %v8432
        %11956 = vmatpush1.bf16.msra.mxu0 %v8431
        %11957 = vmatprep.subr.bf16.mxu0 %v8434
        %11958 = vmatpush1.bf16.msra.mxu0 %v8433
        %11959 = vmatprep.subr.bf16.mxu0 %v8436
        %11960 = vmatpush1.bf16.msra.mxu0 %v8435
        %11961 = vmatprep.subr.bf16.mxu0 %v8438
        %11962 = vmatpush1.bf16.msra.mxu0 %v8437
        %11963 = vmatprep.subr.bf16.mxu0 %v8440
        %11964 = vmatpush1.bf16.msra.mxu0 %v8439
        %11965 = vmatprep.subr.bf16.mxu0 %v8442
        %11966 = vmatpush1.bf16.msra.mxu0 %v8441
        %11967 = vmatprep.subr.bf16.mxu0 %v8444
        %11968 = vmatpush1.bf16.msra.mxu0 %v8443
        %11969 = vmatprep.subr.bf16.mxu0 %v8446
        %11970 = vmatpush1.bf16.msra.mxu0 %v8445
        %11971 = vmatprep.subr.bf16.mxu0 %v8448
        %11972 = vmatpush1.bf16.msra.mxu0 %v8447
        %11973 = vmatprep.subr.bf16.mxu0 %v8450
        %11974 = vmatpush1.bf16.msra.mxu0 %v8449
        %11975 = vmatprep.mubr.bf16.mxu0 %v2340
        %11976 = vmatmul.mubr.bf16.gmra.mrb[0].mxu0 %v2339
        %v11977 = vpop.f32.mrb[0].mxu0
        %v11978 = vadd.f32 %v11937, %v11977
        %v11979 = vpop.f32.mrb[0].mxu0
        %v11980 = vadd.f32 %v11939, %v11979
        %v11981 = vpop.f32.mrb[0].mxu0
        %v11982 = vpop.f32.mrb[0].mxu0
        %11983 = vdwg.mxu0
        %11984 = vmatprep.subr.bf16.mxu0 %v8452
        %11985 = vmatpush1.bf16.msra.mxu0 %v8451
        %11986 = vmatprep.subr.bf16.mxu0 %v8454
        %11987 = vmatpush1.bf16.msra.mxu0 %v8453
        %11988 = vmatprep.subr.bf16.mxu0 %v8456
        %11989 = vmatpush1.bf16.msra.mxu0 %v8455
        %11990 = vmatprep.subr.bf16.mxu0 %v8458
        %11991 = vmatpush1.bf16.msra.mxu0 %v8457
        %11992 = vmatprep.subr.bf16.mxu0 %v8460
        %11993 = vmatpush1.bf16.msra.mxu0 %v8459
        %11994 = vmatprep.subr.bf16.mxu0 %v8462
        %11995 = vmatpush1.bf16.msra.mxu0 %v8461
        %11996 = vmatprep.subr.bf16.mxu0 %v8464
        %11997 = vmatpush1.bf16.msra.mxu0 %v8463
        %11998 = vmatprep.subr.bf16.mxu0 %v8466
        %11999 = vmatpush1.bf16.msra.mxu0 %v8465
        %12000 = vmatprep.subr.bf16.mxu0 %v8468
        %12001 = vmatpush1.bf16.msra.mxu0 %v8467
        %12002 = vmatprep.subr.bf16.mxu0 %v8470
        %12003 = vmatpush1.bf16.msra.mxu0 %v8469
        %12004 = vmatprep.subr.bf16.mxu0 %v8472
        %12005 = vmatpush1.bf16.msra.mxu0 %v8471
        %12006 = vmatprep.subr.bf16.mxu0 %v8474
        %12007 = vmatpush1.bf16.msra.mxu0 %v8473
        %12008 = vmatprep.subr.bf16.mxu0 %v8476
        %12009 = vmatpush1.bf16.msra.mxu0 %v8475
        %12010 = vmatprep.subr.bf16.mxu0 %v8478
        %12011 = vmatpush1.bf16.msra.mxu0 %v8477
        %12012 = vmatprep.subr.bf16.mxu0 %v8480
        %12013 = vmatpush1.bf16.msra.mxu0 %v8479
        %12014 = vmatprep.subr.bf16.mxu0 %v8482
        %12015 = vmatpush1.bf16.msra.mxu0 %v8481
        %12016 = vmatprep.mubr.bf16.mxu0 %v2342
        %12017 = vmatmul.mubr.bf16.gmra.mrb[0].mxu0 %v2341
        %v12018 = vpop.f32.mrb[0].mxu0
        %v12019 = vadd.f32 %v11978, %v12018
        %v12020 = vpop.f32.mrb[0].mxu0
        %v12021 = vadd.f32 %v11980, %v12020
        %v12022 = vpop.f32.mrb[0].mxu0
        %v12023 = vpop.f32.mrb[0].mxu0
        %12024 = vdwg.mxu0
        %12025 = vmatprep.subr.bf16.mxu0 %v8484
        %12026 = vmatpush1.bf16.msra.mxu0 %v8483
        %12027 = vmatprep.subr.bf16.mxu0 %v8486
        %12028 = vmatpush1.bf16.msra.mxu0 %v8485
        %12029 = vmatprep.subr.bf16.mxu0 %v8488
        %12030 = vmatpush1.bf16.msra.mxu0 %v8487
        %12031 = vmatprep.subr.bf16.mxu0 %v8490
        %12032 = vmatpush1.bf16.msra.mxu0 %v8489
        %12033 = vmatprep.subr.bf16.mxu0 %v8492
        %12034 = vmatpush1.bf16.msra.mxu0 %v8491
        %12035 = vmatprep.subr.bf16.mxu0 %v8494
        %12036 = vmatpush1.bf16.msra.mxu0 %v8493
        %12037 = vmatprep.subr.bf16.mxu0 %v8496
        %12038 = vmatpush1.bf16.msra.mxu0 %v8495
        %12039 = vmatprep.subr.bf16.mxu0 %v8498
        %12040 = vmatpush1.bf16.msra.mxu0 %v8497
        %12041 = vmatprep.subr.bf16.mxu0 %v8500
        %12042 = vmatpush1.bf16.msra.mxu0 %v8499
        %12043 = vmatprep.subr.bf16.mxu0 %v8502
        %12044 = vmatpush1.bf16.msra.mxu0 %v8501
        %12045 = vmatprep.subr.bf16.mxu0 %v8504
        %12046 = vmatpush1.bf16.msra.mxu0 %v8503
        %12047 = vmatprep.subr.bf16.mxu0 %v8506
        %12048 = vmatpush1.bf16.msra.mxu0 %v8505
        %12049 = vmatprep.subr.bf16.mxu0 %v8508
        %12050 = vmatpush1.bf16.msra.mxu0 %v8507
        %12051 = vmatprep.subr.bf16.mxu0 %v8510
        %12052 = vmatpush1.bf16.msra.mxu0 %v8509
        %12053 = vmatprep.subr.bf16.mxu0 %v8512
        %12054 = vmatpush1.bf16.msra.mxu0 %v8511
        %12055 = vmatprep.subr.bf16.mxu0 %v8514
        %12056 = vmatpush1.bf16.msra.mxu0 %v8513
        %12057 = vmatprep.mubr.bf16.mxu0 %v2344
        %12058 = vmatmul.mubr.bf16.gmra.mrb[0].mxu0 %v2343
        %v12059 = vpop.f32.mrb[0].mxu0
        %v12060 = vadd.f32 %v12019, %v12059
        %v12061 = vpop.f32.mrb[0].mxu0
        %v12062 = vadd.f32 %v12021, %v12061
        %v12063 = vpop.f32.mrb[0].mxu0
        %v12064 = vpop.f32.mrb[0].mxu0
        %12065 = vdwg.mxu0
        %12066 = vmatprep.subr.bf16.mxu0 %v8516
        %12067 = vmatpush1.bf16.msra.mxu0 %v8515
        %12068 = vmatprep.subr.bf16.mxu0 %v8518
        %12069 = vmatpush1.bf16.msra.mxu0 %v8517
        %12070 = vmatprep.subr.bf16.mxu0 %v8520
        %12071 = vmatpush1.bf16.msra.mxu0 %v8519
        %12072 = vmatprep.subr.bf16.mxu0 %v8522
        %12073 = vmatpush1.bf16.msra.mxu0 %v8521
        %12074 = vmatprep.subr.bf16.mxu0 %v8524
        %12075 = vmatpush1.bf16.msra.mxu0 %v8523
        %12076 = vmatprep.subr.bf16.mxu0 %v8526
        %12077 = vmatpush1.bf16.msra.mxu0 %v8525
        %12078 = vmatprep.subr.bf16.mxu0 %v8528
        %12079 = vmatpush1.bf16.msra.mxu0 %v8527
        %12080 = vmatprep.subr.bf16.mxu0 %v8530
        %12081 = vmatpush1.bf16.msra.mxu0 %v8529
        %12082 = vmatprep.subr.bf16.mxu0 %v8532
        %12083 = vmatpush1.bf16.msra.mxu0 %v8531
        %12084 = vmatprep.subr.bf16.mxu0 %v8534
        %12085 = vmatpush1.bf16.msra.mxu0 %v8533
        %12086 = vmatprep.subr.bf16.mxu0 %v8536
        %12087 = vmatpush1.bf16.msra.mxu0 %v8535
        %12088 = vmatprep.subr.bf16.mxu0 %v8538
        %12089 = vmatpush1.bf16.msra.mxu0 %v8537
        %12090 = vmatprep.subr.bf16.mxu0 %v8540
        %12091 = vmatpush1.bf16.msra.mxu0 %v8539
        %12092 = vmatprep.subr.bf16.mxu0 %v8542
        %12093 = vmatpush1.bf16.msra.mxu0 %v8541
        %12094 = vmatprep.subr.bf16.mxu0 %v8544
        %12095 = vmatpush1.bf16.msra.mxu0 %v8543
        %12096 = vmatprep.subr.bf16.mxu0 %v8546
        %12097 = vmatpush1.bf16.msra.mxu0 %v8545
        %12098 = vmatprep.mubr.bf16.mxu0 %v2346
        %12099 = vmatmul.mubr.bf16.gmra.mrb[0].mxu0 %v2345
        %v12100 = vpop.f32.mrb[0].mxu0
        %v12101 = vadd.f32 %v12060, %v12100
        %v12102 = vpop.f32.mrb[0].mxu0
        %v12103 = vadd.f32 %v12062, %v12102
        %v12104 = vpop.f32.mrb[0].mxu0
        %v12105 = vpop.f32.mrb[0].mxu0
        %12106 = vdwg.mxu0
        %12107 = vmatprep.subr.bf16.mxu0 %v8548
        %12108 = vmatpush1.bf16.msra.mxu0 %v8547
        %12109 = vmatprep.subr.bf16.mxu0 %v8550
        %12110 = vmatpush1.bf16.msra.mxu0 %v8549
        %12111 = vmatprep.subr.bf16.mxu0 %v8552
        %12112 = vmatpush1.bf16.msra.mxu0 %v8551
        %12113 = vmatprep.subr.bf16.mxu0 %v8554
        %12114 = vmatpush1.bf16.msra.mxu0 %v8553
        %12115 = vmatprep.subr.bf16.mxu0 %v8556
        %12116 = vmatpush1.bf16.msra.mxu0 %v8555
        %12117 = vmatprep.subr.bf16.mxu0 %v8558
        %12118 = vmatpush1.bf16.msra.mxu0 %v8557
        %12119 = vmatprep.subr.bf16.mxu0 %v8560
        %12120 = vmatpush1.bf16.msra.mxu0 %v8559
        %12121 = vmatprep.subr.bf16.mxu0 %v8562
        %12122 = vmatpush1.bf16.msra.mxu0 %v8561
        %12123 = vmatprep.subr.bf16.mxu0 %v8564
        %12124 = vmatpush1.bf16.msra.mxu0 %v8563
        %12125 = vmatprep.subr.bf16.mxu0 %v8566
        %12126 = vmatpush1.bf16.msra.mxu0 %v8565
        %12127 = vmatprep.subr.bf16.mxu0 %v8568
        %12128 = vmatpush1.bf16.msra.mxu0 %v8567
        %12129 = vmatprep.subr.bf16.mxu0 %v8570
        %12130 = vmatpush1.bf16.msra.mxu0 %v8569
        %12131 = vmatprep.subr.bf16.mxu0 %v8572
        %12132 = vmatpush1.bf16.msra.mxu0 %v8571
        %12133 = vmatprep.subr.bf16.mxu0 %v8574
        %12134 = vmatpush1.bf16.msra.mxu0 %v8573
        %12135 = vmatprep.subr.bf16.mxu0 %v8576
        %12136 = vmatpush1.bf16.msra.mxu0 %v8575
        %12137 = vmatprep.subr.bf16.mxu0 %v8578
        %12138 = vmatpush1.bf16.msra.mxu0 %v8577
        %12139 = vmatprep.mubr.bf16.mxu0 %v2348
        %12140 = vmatmul.mubr.bf16.gmra.mrb[0].mxu0 %v2347
        %v12141 = vpop.f32.mrb[0].mxu0
        %v12142 = vadd.f32 %v12101, %v12141
        %v12143 = vpop.f32.mrb[0].mxu0
        %v12144 = vadd.f32 %v12103, %v12143
        %v12145 = vpop.f32.mrb[0].mxu0
        %v12146 = vpop.f32.mrb[0].mxu0
        %12147 = vdwg.mxu0
        %12148 = vmatprep.subr.bf16.mxu0 %v8580
        %12149 = vmatpush1.bf16.msra.mxu0 %v8579
        %12150 = vmatprep.subr.bf16.mxu0 %v8582
        %12151 = vmatpush1.bf16.msra.mxu0 %v8581
        %12152 = vmatprep.subr.bf16.mxu0 %v8584
        %12153 = vmatpush1.bf16.msra.mxu0 %v8583
        %12154 = vmatprep.subr.bf16.mxu0 %v8586
        %12155 = vmatpush1.bf16.msra.mxu0 %v8585
        %12156 = vmatprep.subr.bf16.mxu0 %v8588
        %12157 = vmatpush1.bf16.msra.mxu0 %v8587
        %12158 = vmatprep.subr.bf16.mxu0 %v8590
        %12159 = vmatpush1.bf16.msra.mxu0 %v8589
        %12160 = vmatprep.subr.bf16.mxu0 %v8592
        %12161 = vmatpush1.bf16.msra.mxu0 %v8591
        %12162 = vmatprep.subr.bf16.mxu0 %v8594
        %12163 = vmatpush1.bf16.msra.mxu0 %v8593
        %12164 = vmatprep.subr.bf16.mxu0 %v8596
        %12165 = vmatpush1.bf16.msra.mxu0 %v8595
        %12166 = vmatprep.subr.bf16.mxu0 %v8598
        %12167 = vmatpush1.bf16.msra.mxu0 %v8597
        %12168 = vmatprep.subr.bf16.mxu0 %v8600
        %12169 = vmatpush1.bf16.msra.mxu0 %v8599
        %12170 = vmatprep.subr.bf16.mxu0 %v8602
        %12171 = vmatpush1.bf16.msra.mxu0 %v8601
        %12172 = vmatprep.subr.bf16.mxu0 %v8604
        %12173 = vmatpush1.bf16.msra.mxu0 %v8603
        %12174 = vmatprep.subr.bf16.mxu0 %v8606
        %12175 = vmatpush1.bf16.msra.mxu0 %v8605
        %12176 = vmatprep.subr.bf16.mxu0 %v8608
        %12177 = vmatpush1.bf16.msra.mxu0 %v8607
        %12178 = vmatprep.subr.bf16.mxu0 %v8610
        %12179 = vmatpush1.bf16.msra.mxu0 %v8609
        %12180 = vmatprep.mubr.bf16.mxu0 %v2350
        %12181 = vmatmul.mubr.bf16.gmra.mrb[0].mxu0 %v2349
        %v12182 = vpop.f32.mrb[0].mxu0
        %v12183 = vadd.f32 %v12142, %v12182
        %v12184 = vpop.f32.mrb[0].mxu0
        %v12185 = vadd.f32 %v12144, %v12184
        %v12186 = vpop.f32.mrb[0].mxu0
        %v12187 = vpop.f32.mrb[0].mxu0
        %12188 = vdwg.mxu0
        %12189 = vmatprep.subr.bf16.mxu0 %v8612
        %12190 = vmatpush1.bf16.msra.mxu0 %v8611
        %12191 = vmatprep.subr.bf16.mxu0 %v8614
        %12192 = vmatpush1.bf16.msra.mxu0 %v8613
        %12193 = vmatprep.subr.bf16.mxu0 %v8616
        %12194 = vmatpush1.bf16.msra.mxu0 %v8615
        %12195 = vmatprep.subr.bf16.mxu0 %v8618
        %12196 = vmatpush1.bf16.msra.mxu0 %v8617
        %12197 = vmatprep.subr.bf16.mxu0 %v8620
        %12198 = vmatpush1.bf16.msra.mxu0 %v8619
        %12199 = vmatprep.subr.bf16.mxu0 %v8622
        %12200 = vmatpush1.bf16.msra.mxu0 %v8621
        %12201 = vmatprep.subr.bf16.mxu0 %v8624
        %12202 = vmatpush1.bf16.msra.mxu0 %v8623
        %12203 = vmatprep.subr.bf16.mxu0 %v8626
        %12204 = vmatpush1.bf16.msra.mxu0 %v8625
        %12205 = vmatprep.subr.bf16.mxu0 %v8628
        %12206 = vmatpush1.bf16.msra.mxu0 %v8627
        %12207 = vmatprep.subr.bf16.mxu0 %v8630
        %12208 = vmatpush1.bf16.msra.mxu0 %v8629
        %12209 = vmatprep.subr.bf16.mxu0 %v8632
        %12210 = vmatpush1.bf16.msra.mxu0 %v8631
        %12211 = vmatprep.subr.bf16.mxu0 %v8634
        %12212 = vmatpush1.bf16.msra.mxu0 %v8633
        %12213 = vmatprep.subr.bf16.mxu0 %v8636
        %12214 = vmatpush1.bf16.msra.mxu0 %v8635
        %12215 = vmatprep.subr.bf16.mxu0 %v8638
        %12216 = vmatpush1.bf16.msra.mxu0 %v8637
        %12217 = vmatprep.subr.bf16.mxu0 %v8640
        %12218 = vmatpush1.bf16.msra.mxu0 %v8639
        %12219 = vmatprep.subr.bf16.mxu0 %v8642
        %12220 = vmatpush1.bf16.msra.mxu0 %v8641
        %12221 = vmatprep.mubr.bf16.mxu0 %v2352
        %12222 = vmatmul.mubr.bf16.gmra.mrb[0].mxu0 %v2351
        %v12223 = vpop.f32.mrb[0].mxu0
        %v12224 = vadd.f32 %v12183, %v12223
        %v12225 = vpop.f32.mrb[0].mxu0
        %v12226 = vadd.f32 %v12185, %v12225
        %v12227 = vpop.f32.mrb[0].mxu0
        %v12228 = vpop.f32.mrb[0].mxu0
        %12229 = vdwg.mxu0
        %12230 = vmatprep.subr.bf16.mxu0 %v8644
        %12231 = vmatpush1.bf16.msra.mxu0 %v8643
        %12232 = vmatprep.subr.bf16.mxu0 %v8646
        %12233 = vmatpush1.bf16.msra.mxu0 %v8645
        %12234 = vmatprep.subr.bf16.mxu0 %v8648
        %12235 = vmatpush1.bf16.msra.mxu0 %v8647
        %12236 = vmatprep.subr.bf16.mxu0 %v8650
        %12237 = vmatpush1.bf16.msra.mxu0 %v8649
        %12238 = vmatprep.subr.bf16.mxu0 %v8652
        %12239 = vmatpush1.bf16.msra.mxu0 %v8651
        %12240 = vmatprep.subr.bf16.mxu0 %v8654
        %12241 = vmatpush1.bf16.msra.mxu0 %v8653
        %12242 = vmatprep.subr.bf16.mxu0 %v8656
        %12243 = vmatpush1.bf16.msra.mxu0 %v8655
        %12244 = vmatprep.subr.bf16.mxu0 %v8658
        %12245 = vmatpush1.bf16.msra.mxu0 %v8657
        %12246 = vmatprep.subr.bf16.mxu0 %v8660
        %12247 = vmatpush1.bf16.msra.mxu0 %v8659
        %12248 = vmatprep.subr.bf16.mxu0 %v8662
        %12249 = vmatpush1.bf16.msra.mxu0 %v8661
        %12250 = vmatprep.subr.bf16.mxu0 %v8664
        %12251 = vmatpush1.bf16.msra.mxu0 %v8663
        %12252 = vmatprep.subr.bf16.mxu0 %v8666
        %12253 = vmatpush1.bf16.msra.mxu0 %v8665
        %12254 = vmatprep.subr.bf16.mxu0 %v8668
        %12255 = vmatpush1.bf16.msra.mxu0 %v8667
        %12256 = vmatprep.subr.bf16.mxu0 %v8670
        %12257 = vmatpush1.bf16.msra.mxu0 %v8669
        %12258 = vmatprep.subr.bf16.mxu0 %v8672
        %12259 = vmatpush1.bf16.msra.mxu0 %v8671
        %12260 = vmatprep.subr.bf16.mxu0 %v8674
        %12261 = vmatpush1.bf16.msra.mxu0 %v8673
        %12262 = vmatprep.mubr.bf16.mxu0 %v2354
        %12263 = vmatmul.mubr.bf16.gmra.mrb[0].mxu0 %v2353
        %v12264 = vpop.f32.mrb[0].mxu0
        %v12265 = vadd.f32 %v12224, %v12264
        %v12266 = vpop.f32.mrb[0].mxu0
        %v12267 = vadd.f32 %v12226, %v12266
        %v12268 = vpop.f32.mrb[0].mxu0
        %v12269 = vpop.f32.mrb[0].mxu0
        %12270 = vdwg.mxu0
        %12271 = vmatprep.subr.bf16.mxu0 %v8676
        %12272 = vmatpush1.bf16.msra.mxu0 %v8675
        %12273 = vmatprep.subr.bf16.mxu0 %v8678
        %12274 = vmatpush1.bf16.msra.mxu0 %v8677
        %12275 = vmatprep.subr.bf16.mxu0 %v8680
        %12276 = vmatpush1.bf16.msra.mxu0 %v8679
        %12277 = vmatprep.subr.bf16.mxu0 %v8682
        %12278 = vmatpush1.bf16.msra.mxu0 %v8681
        %12279 = vmatprep.subr.bf16.mxu0 %v8684
        %12280 = vmatpush1.bf16.msra.mxu0 %v8683
        %12281 = vmatprep.subr.bf16.mxu0 %v8686
        %12282 = vmatpush1.bf16.msra.mxu0 %v8685
        %12283 = vmatprep.subr.bf16.mxu0 %v8688
        %12284 = vmatpush1.bf16.msra.mxu0 %v8687
        %12285 = vmatprep.subr.bf16.mxu0 %v8690
        %12286 = vmatpush1.bf16.msra.mxu0 %v8689
        %12287 = vmatprep.subr.bf16.mxu0 %v8692
        %12288 = vmatpush1.bf16.msra.mxu0 %v8691
        %12289 = vmatprep.subr.bf16.mxu0 %v8694
        %12290 = vmatpush1.bf16.msra.mxu0 %v8693
        %12291 = vmatprep.subr.bf16.mxu0 %v8696
        %12292 = vmatpush1.bf16.msra.mxu0 %v8695
        %12293 = vmatprep.subr.bf16.mxu0 %v8698
        %12294 = vmatpush1.bf16.msra.mxu0 %v8697
        %12295 = vmatprep.subr.bf16.mxu0 %v8700
        %12296 = vmatpush1.bf16.msra.mxu0 %v8699
        %12297 = vmatprep.subr.bf16.mxu0 %v8702
        %12298 = vmatpush1.bf16.msra.mxu0 %v8701
        %12299 = vmatprep.subr.bf16.mxu0 %v8704
        %12300 = vmatpush1.bf16.msra.mxu0 %v8703
        %12301 = vmatprep.subr.bf16.mxu0 %v8706
        %12302 = vmatpush1.bf16.msra.mxu0 %v8705
        %12303 = vmatprep.mubr.bf16.mxu0 %v2356
        %12304 = vmatmul.mubr.bf16.gmra.mrb[0].mxu0 %v2355
        %v12305 = vpop.f32.mrb[0].mxu0
        %v12306 = vadd.f32 %v12265, %v12305
        %v12307 = vpop.f32.mrb[0].mxu0
        %v12308 = vadd.f32 %v12267, %v12307
        %v12309 = vpop.f32.mrb[0].mxu0
        %v12310 = vpop.f32.mrb[0].mxu0
        %12311 = vdwg.mxu0
        %12312 = vmatprep.subr.bf16.mxu0 %v8708
        %12313 = vmatpush1.bf16.msra.mxu0 %v8707
        %12314 = vmatprep.subr.bf16.mxu0 %v8710
        %12315 = vmatpush1.bf16.msra.mxu0 %v8709
        %12316 = vmatprep.subr.bf16.mxu0 %v8712
        %12317 = vmatpush1.bf16.msra.mxu0 %v8711
        %12318 = vmatprep.subr.bf16.mxu0 %v8714
        %12319 = vmatpush1.bf16.msra.mxu0 %v8713
        %12320 = vmatprep.subr.bf16.mxu0 %v8716
        %12321 = vmatpush1.bf16.msra.mxu0 %v8715
        %12322 = vmatprep.subr.bf16.mxu0 %v8718
        %12323 = vmatpush1.bf16.msra.mxu0 %v8717
        %12324 = vmatprep.subr.bf16.mxu0 %v8720
        %12325 = vmatpush1.bf16.msra.mxu0 %v8719
        %12326 = vmatprep.subr.bf16.mxu0 %v8722
        %12327 = vmatpush1.bf16.msra.mxu0 %v8721
        %12328 = vmatprep.subr.bf16.mxu0 %v8724
        %12329 = vmatpush1.bf16.msra.mxu0 %v8723
        %12330 = vmatprep.subr.bf16.mxu0 %v8726
        %12331 = vmatpush1.bf16.msra.mxu0 %v8725
        %12332 = vmatprep.subr.bf16.mxu0 %v8728
        %12333 = vmatpush1.bf16.msra.mxu0 %v8727
        %12334 = vmatprep.subr.bf16.mxu0 %v8730
        %12335 = vmatpush1.bf16.msra.mxu0 %v8729
        %12336 = vmatprep.subr.bf16.mxu0 %v8732
        %12337 = vmatpush1.bf16.msra.mxu0 %v8731
        %12338 = vmatprep.subr.bf16.mxu0 %v8734
        %12339 = vmatpush1.bf16.msra.mxu0 %v8733
        %12340 = vmatprep.subr.bf16.mxu0 %v8736
        %12341 = vmatpush1.bf16.msra.mxu0 %v8735
        %12342 = vmatprep.subr.bf16.mxu0 %v8738
        %12343 = vmatpush1.bf16.msra.mxu0 %v8737
        %12344 = vmatprep.mubr.bf16.mxu0 %v2358
        %12345 = vmatmul.mubr.bf16.gmra.mrb[0].mxu0 %v2357
        %v12346 = vpop.f32.mrb[0].mxu0
        %v12347 = vadd.f32 %v12306, %v12346
        %v12348 = vpop.f32.mrb[0].mxu0
        %v12349 = vadd.f32 %v12308, %v12348
        %v12350 = vpop.f32.mrb[0].mxu0
        %v12351 = vpop.f32.mrb[0].mxu0
        %12352 = vdwg.mxu0
        %12353 = vmatprep.subr.bf16.mxu0 %v8740
        %12354 = vmatpush1.bf16.msra.mxu0 %v8739
        %12355 = vmatprep.subr.bf16.mxu0 %v8742
        %12356 = vmatpush1.bf16.msra.mxu0 %v8741
        %12357 = vmatprep.subr.bf16.mxu0 %v8744
        %12358 = vmatpush1.bf16.msra.mxu0 %v8743
        %12359 = vmatprep.subr.bf16.mxu0 %v8746
        %12360 = vmatpush1.bf16.msra.mxu0 %v8745
        %12361 = vmatprep.subr.bf16.mxu0 %v8748
        %12362 = vmatpush1.bf16.msra.mxu0 %v8747
        %12363 = vmatprep.subr.bf16.mxu0 %v8750
        %12364 = vmatpush1.bf16.msra.mxu0 %v8749
        %12365 = vmatprep.subr.bf16.mxu0 %v8752
        %12366 = vmatpush1.bf16.msra.mxu0 %v8751
        %12367 = vmatprep.subr.bf16.mxu0 %v8754
        %12368 = vmatpush1.bf16.msra.mxu0 %v8753
        %12369 = vmatprep.subr.bf16.mxu0 %v8756
        %12370 = vmatpush1.bf16.msra.mxu0 %v8755
        %12371 = vmatprep.subr.bf16.mxu0 %v8758
        %12372 = vmatpush1.bf16.msra.mxu0 %v8757
        %12373 = vmatprep.subr.bf16.mxu0 %v8760
        %12374 = vmatpush1.bf16.msra.mxu0 %v8759
        %12375 = vmatprep.subr.bf16.mxu0 %v8762
        %12376 = vmatpush1.bf16.msra.mxu0 %v8761
        %12377 = vmatprep.subr.bf16.mxu0 %v8764
        %12378 = vmatpush1.bf16.msra.mxu0 %v8763
        %12379 = vmatprep.subr.bf16.mxu0 %v8766
        %12380 = vmatpush1.bf16.msra.mxu0 %v8765
        %12381 = vmatprep.subr.bf16.mxu0 %v8768
        %12382 = vmatpush1.bf16.msra.mxu0 %v8767
        %12383 = vmatprep.subr.bf16.mxu0 %v8770
        %12384 = vmatpush1.bf16.msra.mxu0 %v8769
        %12385 = vmatprep.mubr.bf16.mxu0 %v2360
        %12386 = vmatmul.mubr.bf16.gmra.mrb[0].mxu0 %v2359
        %v12387 = vpop.f32.mrb[0].mxu0
        %v12388 = vadd.f32 %v12347, %v12387
        %v12389 = vpop.f32.mrb[0].mxu0
        %v12390 = vadd.f32 %v12349, %v12389
        %v12391 = vpop.f32.mrb[0].mxu0
        %v12392 = vpop.f32.mrb[0].mxu0
        %12393 = vdwg.mxu0
        %12394 = vmatprep.subr.bf16.mxu0 %v8772
        %12395 = vmatpush1.bf16.msra.mxu0 %v8771
        %12396 = vmatprep.subr.bf16.mxu0 %v8774
        %12397 = vmatpush1.bf16.msra.mxu0 %v8773
        %12398 = vmatprep.subr.bf16.mxu0 %v8776
        %12399 = vmatpush1.bf16.msra.mxu0 %v8775
        %12400 = vmatprep.subr.bf16.mxu0 %v8778
        %12401 = vmatpush1.bf16.msra.mxu0 %v8777
        %12402 = vmatprep.subr.bf16.mxu0 %v8780
        %12403 = vmatpush1.bf16.msra.mxu0 %v8779
        %12404 = vmatprep.subr.bf16.mxu0 %v8782
        %12405 = vmatpush1.bf16.msra.mxu0 %v8781
        %12406 = vmatprep.subr.bf16.mxu0 %v8784
        %12407 = vmatpush1.bf16.msra.mxu0 %v8783
        %12408 = vmatprep.subr.bf16.mxu0 %v8786
        %12409 = vmatpush1.bf16.msra.mxu0 %v8785
        %12410 = vmatprep.subr.bf16.mxu0 %v8788
        %12411 = vmatpush1.bf16.msra.mxu0 %v8787
        %12412 = vmatprep.subr.bf16.mxu0 %v8790
        %12413 = vmatpush1.bf16.msra.mxu0 %v8789
        %12414 = vmatprep.subr.bf16.mxu0 %v8792
        %12415 = vmatpush1.bf16.msra.mxu0 %v8791
        %12416 = vmatprep.subr.bf16.mxu0 %v8794
        %12417 = vmatpush1.bf16.msra.mxu0 %v8793
        %12418 = vmatprep.subr.bf16.mxu0 %v8796
        %12419 = vmatpush1.bf16.msra.mxu0 %v8795
        %12420 = vmatprep.subr.bf16.mxu0 %v8798
        %12421 = vmatpush1.bf16.msra.mxu0 %v8797
        %12422 = vmatprep.subr.bf16.mxu0 %v8800
        %12423 = vmatpush1.bf16.msra.mxu0 %v8799
        %12424 = vmatprep.subr.bf16.mxu0 %v8802
        %12425 = vmatpush1.bf16.msra.mxu0 %v8801
        %12426 = vmatprep.mubr.bf16.mxu0 %v2362
        %12427 = vmatmul.mubr.bf16.gmra.mrb[0].mxu0 %v2361
        %v12428 = vpop.f32.mrb[0].mxu0
        %v12429 = vadd.f32 %v12388, %v12428
        %v12430 = vpop.f32.mrb[0].mxu0
        %v12431 = vadd.f32 %v12390, %v12430
        %v12432 = vpop.f32.mrb[0].mxu0
        %v12433 = vpop.f32.mrb[0].mxu0
        %12434 = vdwg.mxu0
        %12435 = vmatprep.subr.bf16.mxu0 %v8804
        %12436 = vmatpush1.bf16.msra.mxu0 %v8803
        %12437 = vmatprep.subr.bf16.mxu0 %v8806
        %12438 = vmatpush1.bf16.msra.mxu0 %v8805
        %12439 = vmatprep.subr.bf16.mxu0 %v8808
        %12440 = vmatpush1.bf16.msra.mxu0 %v8807
        %12441 = vmatprep.subr.bf16.mxu0 %v8810
        %12442 = vmatpush1.bf16.msra.mxu0 %v8809
        %12443 = vmatprep.subr.bf16.mxu0 %v8812
        %12444 = vmatpush1.bf16.msra.mxu0 %v8811
        %12445 = vmatprep.subr.bf16.mxu0 %v8814
        %12446 = vmatpush1.bf16.msra.mxu0 %v8813
        %12447 = vmatprep.subr.bf16.mxu0 %v8816
        %12448 = vmatpush1.bf16.msra.mxu0 %v8815
        %12449 = vmatprep.subr.bf16.mxu0 %v8818
        %12450 = vmatpush1.bf16.msra.mxu0 %v8817
        %12451 = vmatprep.subr.bf16.mxu0 %v8820
        %12452 = vmatpush1.bf16.msra.mxu0 %v8819
        %12453 = vmatprep.subr.bf16.mxu0 %v8822
        %12454 = vmatpush1.bf16.msra.mxu0 %v8821
        %12455 = vmatprep.subr.bf16.mxu0 %v8824
        %12456 = vmatpush1.bf16.msra.mxu0 %v8823
        %12457 = vmatprep.subr.bf16.mxu0 %v8826
        %12458 = vmatpush1.bf16.msra.mxu0 %v8825
        %12459 = vmatprep.subr.bf16.mxu0 %v8828
        %12460 = vmatpush1.bf16.msra.mxu0 %v8827
        %12461 = vmatprep.subr.bf16.mxu0 %v8830
        %12462 = vmatpush1.bf16.msra.mxu0 %v8829
        %12463 = vmatprep.subr.bf16.mxu0 %v8832
        %12464 = vmatpush1.bf16.msra.mxu0 %v8831
        %12465 = vmatprep.subr.bf16.mxu0 %v8834
        %12466 = vmatpush1.bf16.msra.mxu0 %v8833
        %12467 = vmatprep.mubr.bf16.mxu0 %v2364
        %12468 = vmatmul.mubr.bf16.gmra.mrb[0].mxu0 %v2363
        %v12469 = vpop.f32.mrb[0].mxu0
        %v12470 = vadd.f32 %v12429, %v12469
        %v12471 = vpop.f32.mrb[0].mxu0
        %v12472 = vadd.f32 %v12431, %v12471
        %v12473 = vpop.f32.mrb[0].mxu0
        %v12474 = vpop.f32.mrb[0].mxu0
        %12475 = vdwg.mxu0
        %12476 = vmatprep.subr.bf16.mxu0 %v8836
        %12477 = vmatpush1.bf16.msra.mxu0 %v8835
        %12478 = vmatprep.subr.bf16.mxu0 %v8838
        %12479 = vmatpush1.bf16.msra.mxu0 %v8837
        %12480 = vmatprep.subr.bf16.mxu0 %v8840
        %12481 = vmatpush1.bf16.msra.mxu0 %v8839
        %12482 = vmatprep.subr.bf16.mxu0 %v8842
        %12483 = vmatpush1.bf16.msra.mxu0 %v8841
        %12484 = vmatprep.subr.bf16.mxu0 %v8844
        %12485 = vmatpush1.bf16.msra.mxu0 %v8843
        %12486 = vmatprep.subr.bf16.mxu0 %v8846
        %12487 = vmatpush1.bf16.msra.mxu0 %v8845
        %12488 = vmatprep.subr.bf16.mxu0 %v8848
        %12489 = vmatpush1.bf16.msra.mxu0 %v8847
        %12490 = vmatprep.subr.bf16.mxu0 %v8850
        %12491 = vmatpush1.bf16.msra.mxu0 %v8849
        %12492 = vmatprep.subr.bf16.mxu0 %v8852
        %12493 = vmatpush1.bf16.msra.mxu0 %v8851
        %12494 = vmatprep.subr.bf16.mxu0 %v8854
        %12495 = vmatpush1.bf16.msra.mxu0 %v8853
        %12496 = vmatprep.subr.bf16.mxu0 %v8856
        %12497 = vmatpush1.bf16.msra.mxu0 %v8855
        %12498 = vmatprep.subr.bf16.mxu0 %v8858
        %12499 = vmatpush1.bf16.msra.mxu0 %v8857
        %12500 = vmatprep.subr.bf16.mxu0 %v8860
        %12501 = vmatpush1.bf16.msra.mxu0 %v8859
        %12502 = vmatprep.subr.bf16.mxu0 %v8862
        %12503 = vmatpush1.bf16.msra.mxu0 %v8861
        %12504 = vmatprep.subr.bf16.mxu0 %v8864
        %12505 = vmatpush1.bf16.msra.mxu0 %v8863
        %12506 = vmatprep.subr.bf16.mxu0 %v8866
        %12507 = vmatpush1.bf16.msra.mxu0 %v8865
        %12508 = vmatprep.mubr.bf16.mxu0 %v2366
        %12509 = vmatmul.mubr.bf16.gmra.mrb[0].mxu0 %v2365
        %v12510 = vpop.f32.mrb[0].mxu0
        %v12511 = vadd.f32 %v12470, %v12510
        %v12512 = vpop.f32.mrb[0].mxu0
        %v12513 = vadd.f32 %v12472, %v12512
        %v12514 = vpop.f32.mrb[0].mxu0
        %v12515 = vpop.f32.mrb[0].mxu0
        %12516 = vdwg.mxu0
        %v12517 = vadd.f32 %v465, %v12511
        %v12518 = vadd.f32 %v466, %v12513
        %12519 = vst [vmem:[#allocation2] sm:$0xff] %v12517
        %12520 = vst [vmem:[#allocation2 + $0x8] sm:$0xff] %v12518
        %p12521 = scmp.eq.s32.totalorder %s30, 3
        // Predicated region
        $region93: #{tpu_custom_call.1} parent=55 // pred_check
          %p12522 = pneg %p12521
        $region94: #{tpu_custom_call.1} parent=55 // pred_check_branch
          %12524 = sbr.rel (%p12522) target = $region96
        $region95: #{tpu_custom_call.1} parent=55 // pred_region
          %v12525 = vld [vmem:[#allocation2] sm:$0xff]
          %v12526 = vld [vmem:[#allocation2 + $0x8] sm:$0xff]
          %v12527 = vld [vmem:[#allocation8] sm:$0x3]
          %v12529 = vlaneseq
          %v12530 = vshrl.u32 %v12529, 7
          %v12531 = vsub.s32 0, %v12530
          %v12532 = vrot.slane %v12527, %v12531
          %v12533 = vlaneseq
          %v12534 = vshrl.u32 %v12533, 7
          %v12535 = vsub.s32 1, %v12534
          %v12536 = vrot.slane %v12527, %v12535
          %v12539 = vadd.f32 %v12525, %v12532
          %v12540 = vadd.f32 %v12526, %v12536
          %v12541 = vmax.f32 %v12539, 0.0
          %v12542 = vmax.f32 %v12540, 0.0
          %v12543 = vld [vmem:[#allocation9] sm:$0xff]
          %v12544 = vld [vmem:[#allocation9 + $0x8] sm:$0xff]
          %v12545 = vld [vmem:[#allocation9 + $0x10] sm:$0xff]
          %v12546 = vld [vmem:[#allocation9 + $0x18] sm:$0xff]
          %v12547 = vld [vmem:[#allocation9 + $0x20] sm:$0xff]
          %v12548 = vld [vmem:[#allocation9 + $0x28] sm:$0xff]
          %v12549 = vld [vmem:[#allocation9 + $0x30] sm:$0xff]
          %v12550 = vld [vmem:[#allocation9 + $0x38] sm:$0xff]
          %v12551 = vld [vmem:[#allocation9 + $0x40] sm:$0xff]
          %v12552 = vld [vmem:[#allocation9 + $0x48] sm:$0xff]
          %v12553 = vld [vmem:[#allocation9 + $0x50] sm:$0xff]
          %v12554 = vld [vmem:[#allocation9 + $0x58] sm:$0xff]
          %v12555 = vld [vmem:[#allocation9 + $0x60] sm:$0xff]
          %v12556 = vld [vmem:[#allocation9 + $0x68] sm:$0xff]
          %v12557 = vld [vmem:[#allocation9 + $0x70] sm:$0xff]
          %v12558 = vld [vmem:[#allocation9 + $0x78] sm:$0xff]
          %v12559 = vld [vmem:[#allocation9 + $0x80] sm:$0xff]
          %v12560 = vld [vmem:[#allocation9 + $0x88] sm:$0xff]
          %v12561 = vld [vmem:[#allocation9 + $0x90] sm:$0xff]
          %v12562 = vld [vmem:[#allocation9 + $0x98] sm:$0xff]
          %v12563 = vld [vmem:[#allocation9 + $0xa0] sm:$0xff]
          %v12564 = vld [vmem:[#allocation9 + $0xa8] sm:$0xff]
          %v12565 = vld [vmem:[#allocation9 + $0xb0] sm:$0xff]
          %v12566 = vld [vmem:[#allocation9 + $0xb8] sm:$0xff]
          %v12567 = vld [vmem:[#allocation9 + $0xc0] sm:$0xff]
          %v12568 = vld [vmem:[#allocation9 + $0xc8] sm:$0xff]
          %v12569 = vld [vmem:[#allocation9 + $0xd0] sm:$0xff]
          %v12570 = vld [vmem:[#allocation9 + $0xd8] sm:$0xff]
          %v12571 = vld [vmem:[#allocation9 + $0xe0] sm:$0xff]
          %v12572 = vld [vmem:[#allocation9 + $0xe8] sm:$0xff]
          %v12573 = vld [vmem:[#allocation9 + $0xf0] sm:$0xff]
          %v12574 = vld [vmem:[#allocation9 + $0xf8] sm:$0xff]
          %v12575 = vld [vmem:[#allocation11] sm:$0x1]
          %v12577 = vlaneseq
          %v12578 = vshrl.u32 %v12577, 7
          %v12579 = vsub.s32 0, %v12578
          %v12580 = vrot.slane %v12575, %v12579
          %12582 = vmatprep.subr.mxu0 0.0
          %12583 = vmatpush1.msra.mxu0 %v12543
          %12584 = vmatprep.subr.mxu0 0.0
          %12585 = vmatpush1.msra.mxu0 %v12544
          %12586 = vmatprep.subr.mxu0 0.0
          %12587 = vmatpush1.msra.mxu0 %v12545
          %12588 = vmatprep.subr.mxu0 0.0
          %12589 = vmatpush1.msra.mxu0 %v12546
          %12590 = vmatprep.subr.mxu0 0.0
          %12591 = vmatpush1.msra.mxu0 %v12547
          %12592 = vmatprep.subr.mxu0 0.0
          %12593 = vmatpush1.msra.mxu0 %v12548
          %12594 = vmatprep.subr.mxu0 0.0
          %12595 = vmatpush1.msra.mxu0 %v12549
          %12596 = vmatprep.subr.mxu0 0.0
          %12597 = vmatpush1.msra.mxu0 %v12550
          %12598 = vmatprep.subr.mxu0 0.0
          %12599 = vmatpush1.msra.mxu0 %v12551
          %12600 = vmatprep.subr.mxu0 0.0
          %12601 = vmatpush1.msra.mxu0 %v12552
          %12602 = vmatprep.subr.mxu0 0.0
          %12603 = vmatpush1.msra.mxu0 %v12553
          %12604 = vmatprep.subr.mxu0 0.0
          %12605 = vmatpush1.msra.mxu0 %v12554
          %12606 = vmatprep.subr.mxu0 0.0
          %12607 = vmatpush1.msra.mxu0 %v12555
          %12608 = vmatprep.subr.mxu0 0.0
          %12609 = vmatpush1.msra.mxu0 %v12556
          %12610 = vmatprep.subr.mxu0 0.0
          %12611 = vmatpush1.msra.mxu0 %v12557
          %12612 = vmatprep.subr.mxu0 0.0
          %12613 = vmatpush1.msra.mxu0 %v12558
          %12614 = vmatprep.subr.mxu0 0.0
          %12615 = vmatpush1.msra.mxu0 %v12559
          %12616 = vmatprep.subr.mxu0 0.0
          %12617 = vmatpush1.msra.mxu0 %v12560
          %12618 = vmatprep.subr.mxu0 0.0
          %12619 = vmatpush1.msra.mxu0 %v12561
          %12620 = vmatprep.subr.mxu0 0.0
          %12621 = vmatpush1.msra.mxu0 %v12562
          %12622 = vmatprep.subr.mxu0 0.0
          %12623 = vmatpush1.msra.mxu0 %v12563
          %12624 = vmatprep.subr.mxu0 0.0
          %12625 = vmatpush1.msra.mxu0 %v12564
          %12626 = vmatprep.subr.mxu0 0.0
          %12627 = vmatpush1.msra.mxu0 %v12565
          %12628 = vmatprep.subr.mxu0 0.0
          %12629 = vmatpush1.msra.mxu0 %v12566
          %12630 = vmatprep.subr.mxu0 0.0
          %12631 = vmatpush1.msra.mxu0 %v12567
          %12632 = vmatprep.subr.mxu0 0.0
          %12633 = vmatpush1.msra.mxu0 %v12568
          %12634 = vmatprep.subr.mxu0 0.0
          %12635 = vmatpush1.msra.mxu0 %v12569
          %12636 = vmatprep.subr.mxu0 0.0
          %12637 = vmatpush1.msra.mxu0 %v12570
          %12638 = vmatprep.subr.mxu0 0.0
          %12639 = vmatpush1.msra.mxu0 %v12571
          %12640 = vmatprep.subr.mxu0 0.0
          %12641 = vmatpush1.msra.mxu0 %v12572
          %12642 = vmatprep.subr.mxu0 0.0
          %12643 = vmatpush1.msra.mxu0 %v12573
          %12644 = vmatprep.subr.mxu0 0.0
          %12645 = vmatpush1.msra.mxu0 %v12574
          %12646 = vmatprep.mubr.f32.mxu0 %v12542
          %12647 = vmatmul.mubr.f32.gmra.mrb[0].mxu0 %v12541
          %v12648 = vpop.f32.mrb[0].mxu0
          %v12649 = vadd.f32 %v12580, %v12648
          %v12650 = vpop.f32.mrb[0].mxu0
          %12651 = vdwg.mxu0
          %v12652 = vmax.f32 %v12649, 0.0
          %v12653 = vld [vmem:[%s5] sm:$0xff]
          %v12654 = vld [vmem:[%s5 + $0x8] sm:$0xff]
          %v12655 = vld [vmem:[%s5 + $0x10] sm:$0xff]
          %v12656 = vld [vmem:[%s5 + $0x18] sm:$0xff]
          %v12657 = vld [vmem:[%s5 + $0x20] sm:$0xff]
          %v12658 = vld [vmem:[%s5 + $0x28] sm:$0xff]
          %v12659 = vld [vmem:[%s5 + $0x30] sm:$0xff]
          %v12660 = vld [vmem:[%s5 + $0x38] sm:$0xff]
          %v12661 = vld [vmem:[%s5 + $0x40] sm:$0xff]
          %v12662 = vld [vmem:[%s5 + $0x48] sm:$0xff]
          %v12663 = vld [vmem:[%s5 + $0x50] sm:$0xff]
          %v12664 = vld [vmem:[%s5 + $0x58] sm:$0xff]
          %v12665 = vld [vmem:[%s5 + $0x60] sm:$0xff]
          %v12666 = vld [vmem:[%s5 + $0x68] sm:$0xff]
          %v12667 = vld [vmem:[%s5 + $0x70] sm:$0xff]
          %v12668 = vld [vmem:[%s5 + $0x78] sm:$0xff]
          %v12669 = vld [vmem:[#allocation12] sm:$0x1]
          %v12671 = vlaneseq
          %v12672 = vshrl.u32 %v12671, 7
          %v12673 = vsub.s32 0, %v12672
          %v12674 = vrot.slane %v12669, %v12673
          %12676 = vmatprep.subr.mxu0 0.0
          %12677 = vmatpush1.msra.mxu0 %v12653
          %12678 = vmatprep.subr.mxu0 0.0
          %12679 = vmatpush1.msra.mxu0 %v12654
          %12680 = vmatprep.subr.mxu0 0.0
          %12681 = vmatpush1.msra.mxu0 %v12655
          %12682 = vmatprep.subr.mxu0 0.0
          %12683 = vmatpush1.msra.mxu0 %v12656
          %12684 = vmatprep.subr.mxu0 0.0
          %12685 = vmatpush1.msra.mxu0 %v12657
          %12686 = vmatprep.subr.mxu0 0.0
          %12687 = vmatpush1.msra.mxu0 %v12658
          %12688 = vmatprep.subr.mxu0 0.0
          %12689 = vmatpush1.msra.mxu0 %v12659
          %12690 = vmatprep.subr.mxu0 0.0
          %12691 = vmatpush1.msra.mxu0 %v12660
          %12692 = vmatprep.subr.mxu0 0.0
          %12693 = vmatpush1.msra.mxu0 %v12661
          %12694 = vmatprep.subr.mxu0 0.0
          %12695 = vmatpush1.msra.mxu0 %v12662
          %12696 = vmatprep.subr.mxu0 0.0
          %12697 = vmatpush1.msra.mxu0 %v12663
          %12698 = vmatprep.subr.mxu0 0.0
          %12699 = vmatpush1.msra.mxu0 %v12664
          %12700 = vmatprep.subr.mxu0 0.0
          %12701 = vmatpush1.msra.mxu0 %v12665
          %12702 = vmatprep.subr.mxu0 0.0
          %12703 = vmatpush1.msra.mxu0 %v12666
          %12704 = vmatprep.subr.mxu0 0.0
          %12705 = vmatpush1.msra.mxu0 %v12667
          %12706 = vmatprep.subr.mxu0 0.0
          %12707 = vmatpush1.msra.mxu0 %v12668
          %12708 = vmatprep.subr.mxu0 0.0
          %12709 = vmatpush1.msra.mxu0 0.0
          %12710 = vmatprep.subr.mxu0 0.0
          %12711 = vmatpush1.msra.mxu0 0.0
          %12712 = vmatprep.subr.mxu0 0.0
          %12713 = vmatpush1.msra.mxu0 0.0
          %12714 = vmatprep.subr.mxu0 0.0
          %12715 = vmatpush1.msra.mxu0 0.0
          %12716 = vmatprep.subr.mxu0 0.0
          %12717 = vmatpush1.msra.mxu0 0.0
          %12718 = vmatprep.subr.mxu0 0.0
          %12719 = vmatpush1.msra.mxu0 0.0
          %12720 = vmatprep.subr.mxu0 0.0
          %12721 = vmatpush1.msra.mxu0 0.0
          %12722 = vmatprep.subr.mxu0 0.0
          %12723 = vmatpush1.msra.mxu0 0.0
          %12724 = vmatprep.subr.mxu0 0.0
          %12725 = vmatpush1.msra.mxu0 0.0
          %12726 = vmatprep.subr.mxu0 0.0
          %12727 = vmatpush1.msra.mxu0 0.0
          %12728 = vmatprep.subr.mxu0 0.0
          %12729 = vmatpush1.msra.mxu0 0.0
          %12730 = vmatprep.subr.mxu0 0.0
          %12731 = vmatpush1.msra.mxu0 0.0
          %12732 = vmatprep.subr.mxu0 0.0
          %12733 = vmatpush1.msra.mxu0 0.0
          %12734 = vmatprep.subr.mxu0 0.0
          %12735 = vmatpush1.msra.mxu0 0.0
          %12736 = vmatprep.subr.mxu0 0.0
          %12737 = vmatpush1.msra.mxu0 0.0
          %12738 = vmatprep.subr.mxu0 0.0
          %12739 = vmatpush1.msra.mxu0 0.0
          %12740 = vmatprep.mubr.f32.mxu0 0.0
          %12741 = vmatmul.mubr.f32.gmra.mrb[0].mxu0 %v12652
          %v12742 = vpop.f32.mrb[0].mxu0
          %v12743 = vadd.f32 %v12674, %v12742
          %v12744 = vpop.f32.mrb[0].mxu0
          %12745 = vdwg.mxu0
          %v12746 = vmax.f32 %v12743, 0.0
          %v12747 = vld [vmem:[#allocation14] sm:$0xff]
          %v12748 = vld [vmem:[#allocation14 + $0x8] sm:$0xff]
          %v12749 = vld [vmem:[#allocation14 + $0x10] sm:$0xff]
          %v12750 = vld [vmem:[#allocation14 + $0x18] sm:$0xff]
          %v12751 = vld [vmem:[#allocation14 + $0x20] sm:$0xff]
          %v12752 = vld [vmem:[#allocation14 + $0x28] sm:$0xff]
          %v12753 = vld [vmem:[#allocation14 + $0x30] sm:$0xff]
          %v12754 = vld [vmem:[#allocation14 + $0x38] sm:$0xff]
          %v12755 = vld [vmem:[#allocation15] sm:$0x1]
          %v12757 = vlaneseq
          %v12758 = vshrl.u32 %v12757, 7
          %v12759 = vsub.s32 0, %v12758
          %v12760 = vrot.slane %v12755, %v12759
          %vm12762 = vcmask 523264
          %v12764 = vsel %vm12762, %v12746, 0
          %12766 = vmatprep.subr.mxu0 0.0
          %12767 = vmatpush1.msra.mxu0 %v12747
          %12768 = vmatprep.subr.mxu0 0.0
          %12769 = vmatpush1.msra.mxu0 %v12748
          %12770 = vmatprep.subr.mxu0 0.0
          %12771 = vmatpush1.msra.mxu0 %v12749
          %12772 = vmatprep.subr.mxu0 0.0
          %12773 = vmatpush1.msra.mxu0 %v12750
          %12774 = vmatprep.subr.mxu0 0.0
          %12775 = vmatpush1.msra.mxu0 %v12751
          %12776 = vmatprep.subr.mxu0 0.0
          %12777 = vmatpush1.msra.mxu0 %v12752
          %12778 = vmatprep.subr.mxu0 0.0
          %12779 = vmatpush1.msra.mxu0 %v12753
          %12780 = vmatprep.subr.mxu0 0.0
          %12781 = vmatpush1.msra.mxu0 %v12754
          %12782 = vmatprep.subr.mxu0 0.0
          %12783 = vmatpush1.msra.mxu0 0.0
          %12784 = vmatprep.subr.mxu0 0.0
          %12785 = vmatpush1.msra.mxu0 0.0
          %12786 = vmatprep.subr.mxu0 0.0
          %12787 = vmatpush1.msra.mxu0 0.0
          %12788 = vmatprep.subr.mxu0 0.0
          %12789 = vmatpush1.msra.mxu0 0.0
          %12790 = vmatprep.subr.mxu0 0.0
          %12791 = vmatpush1.msra.mxu0 0.0
          %12792 = vmatprep.subr.mxu0 0.0
          %12793 = vmatpush1.msra.mxu0 0.0
          %12794 = vmatprep.subr.mxu0 0.0
          %12795 = vmatpush1.msra.mxu0 0.0
          %12796 = vmatprep.subr.mxu0 0.0
          %12797 = vmatpush1.msra.mxu0 0.0
          %12798 = vmatprep.subr.mxu0 0.0
          %12799 = vmatpush1.msra.mxu0 0.0
          %12800 = vmatprep.subr.mxu0 0.0
          %12801 = vmatpush1.msra.mxu0 0.0
          %12802 = vmatprep.subr.mxu0 0.0
          %12803 = vmatpush1.msra.mxu0 0.0
          %12804 = vmatprep.subr.mxu0 0.0
          %12805 = vmatpush1.msra.mxu0 0.0
          %12806 = vmatprep.subr.mxu0 0.0
          %12807 = vmatpush1.msra.mxu0 0.0
          %12808 = vmatprep.subr.mxu0 0.0
          %12809 = vmatpush1.msra.mxu0 0.0
          %12810 = vmatprep.subr.mxu0 0.0
          %12811 = vmatpush1.msra.mxu0 0.0
          %12812 = vmatprep.subr.mxu0 0.0
          %12813 = vmatpush1.msra.mxu0 0.0
          %12814 = vmatprep.subr.mxu0 0.0
          %12815 = vmatpush1.msra.mxu0 0.0
          %12816 = vmatprep.subr.mxu0 0.0
          %12817 = vmatpush1.msra.mxu0 0.0
          %12818 = vmatprep.subr.mxu0 0.0
          %12819 = vmatpush1.msra.mxu0 0.0
          %12820 = vmatprep.subr.mxu0 0.0
          %12821 = vmatpush1.msra.mxu0 0.0
          %12822 = vmatprep.subr.mxu0 0.0
          %12823 = vmatpush1.msra.mxu0 0.0
          %12824 = vmatprep.subr.mxu0 0.0
          %12825 = vmatpush1.msra.mxu0 0.0
          %12826 = vmatprep.subr.mxu0 0.0
          %12827 = vmatpush1.msra.mxu0 0.0
          %12828 = vmatprep.subr.mxu0 0.0
          %12829 = vmatpush1.msra.mxu0 0.0
          %12830 = vmatprep.mubr.f32.mxu0 0.0
          %12831 = vmatmul.mubr.f32.gmra.mrb[0].mxu0 %v12764
          %v12832 = vpop.f32.mrb[0].mxu0
          %v12833 = vadd.f32 %v12760, %v12832
          %v12834 = vpop.f32.mrb[0].mxu0
          %12835 = vdwg.mxu0
          %v12836 = vlaneseq
          %v12837 = vand.u32 %v12836, 127
          %vm12838 = vcmp.lt.s32.totalorder %v12837, 4
          %v12839 = vsel %vm12838, %v12833, -1e+30
          %12840 = vmax.xlane.f32.xlu0 %v12839
          %v12841 = vpop.xlane.xlu0 %12840
          %v12842 = vsub.f32 %v12839, %v12841
          %v12843 = vmul.f32 %v12842, 1.442695
          %v12844 = vpow.pop %v12843
          %12845 = vadd.xlane.f32.xlu0 %v12844
          %v12846 = vpop.xlane.xlu0 %12845
          %v12847 = vlog2.pop %v12846
          %v12848 = vmul.f32 %v12847, 0.6931472
          %v12849 = vadd.f32 %v12841, %v12848
          %v12850 = vsub.f32 %v12839, %v12849
          %12851 = vst [vmem:[#allocation17] sm:$0xff] %v12850
        $region96: #{tpu_custom_call.1} parent=55 // pred_fallthru
          _
        // Predicated region
        $region97: #{tpu_custom_call.1} parent=55 // pred_check
          %p12852 = pneg %p242
        $region98: #{tpu_custom_call.1} parent=55 // pred_check_branch
          %12854 = sbr.rel (%p12852) target = $region100
        $region99: #{tpu_custom_call.1} parent=55 // pred_region
          %s12856 = ssub.s32 128, 128
          %12857 = vsyncadd [#allocation5], %s12856
          %s12859 = sshll.u32 [#allocation17], 4
          %s12860 = int_to_ptr.vmem [resolvable:$true] %s12859
          %12862 = dma.vmem_to_hbm [thread:$0]  %s12860, 128, %s9, [#allocation5]
        $region100: #{tpu_custom_call.1} parent=55 // pred_fallthru
          _
        // Predicated region
        $region101: #{tpu_custom_call.1} parent=55 // pred_check
          %p12863 = pneg %p242
        $region102: #{tpu_custom_call.1} parent=55 // pred_check_branch
          %12865 = sbr.rel (%p12863) target = $region104
        $region103: #{tpu_custom_call.1} parent=55 // pred_region
          %12866 = dma.done [#allocation5], 128
        $region104: #{tpu_custom_call.1} parent=55 // pred_fallthru
          _
      $region56: #{tpu_custom_call.1} parent=5 // pred_fallthru
        _
      %p12867 = scmp.le.s32.totalorder 2, %s25
      // Predicated region
      $region105: #{tpu_custom_call.1} parent=5 // pred_check
        %p12868 = pneg %p12867
      $region106: #{tpu_custom_call.1} parent=5 // pred_check_branch
        %12870 = sbr.rel (%p12868) target = $region108
      $region107: #{tpu_custom_call.1} parent=5 // pred_region
        %s12871 = ssub.s32 %s25, 2
      $region108: #{tpu_custom_call.1} parent=5 // pred_fallthru
        _
    $region6: #{tpu_custom_call.1} parent=1 // loop_footer
      %s29 = sadd.s32 1, %s25
    $region7: #{tpu_custom_call.1} parent=1 // loop_footer_branch
      %24 = sbr.rel target = $region3
    $region8: #{tpu_custom_call.1} parent=1 // loop_exit
      _
    %12872 = vsyncpa [#allocation4], 1
    %s12873 = scalar_lea.sflag [#allocation4], 1
    %12874 = vsyncpa %s12873, 1
    %12875 = vsyncpa [#allocation7], 1
    %s12876 = scalar_lea.sflag [#allocation7], 1
    %12877 = vsyncpa %s12876, 1
    %12878 = vsyncpa [#allocation10], 1
    %12879 = vsyncpa [#allocation13], 1
    %12880 = vsyncpa [#allocation16], 1
    %12881 = vsyncpa [#allocation5], 1
    %s12882 = scalar_lea.sflag [#allocation5], 1
    %12883 = vsyncpa %s12882, 1

</llo_original>
